<compile_context>
chip_gen: v7x
topology: tpu7x:2x2x1
jax: 0.10.0
libtpu: 0.0.40
codegen_flags: <defaults>
</compile_context>

<pallas_src>
import functools

import jax
import jax.numpy as jnp
from jax import lax
from jax.experimental import pallas as pl
from jax.experimental.pallas import tpu as pltpu

N_FEAT = 32   # n_feat in the PyTorch module
_PAD = 128    # flat-pixel halo width (lane-aligned interior; requires W+1 <= _PAD)


# ----------------------------- in-kernel conv helpers -----------------------------

def _conv33_mxu(pad_ref, x_cm, w_ref, b_ref, cl, cr, W, relu=False):
    """3x3 'same' conv, N_FEAT -> Cout, channels-on-sublanes / pixels-on-lanes.

    x_cm : (N_FEAT, M) value.  w_ref: (9, Cout, N_FEAT) tap-major (t = ky*3+kx).
    b_ref: (Cout, 1).  Returns (Cout, M).
    One small MXU matmul per tap, f32 accumulation, no im2col buffer."""
    cout = w_ref.shape[1]
    m = x_cm.shape[-1]
    pad_ref[:, _PAD:_PAD + m] = x_cm                     # aligned lane-dense store
    acc = jnp.zeros((cout, m), jnp.float32)
    for t in range(9):
        dy, dx = t // 3 - 1, t % 3 - 1
        off = _PAD + dy * W + dx
        sh = pad_ref[:, off:off + m]                     # shifted window view
        if dx == -1:
            sh = sh * cl
        elif dx == 1:
            sh = sh * cr
        acc = acc + jnp.dot(w_ref[t], sh, preferred_element_type=jnp.float32)
    acc = acc + b_ref[...]
    if relu:
        acc = jnp.maximum(acc, 0.0)
    return acc


def _conv_d_vpu(pad_ref, x_1m, wD_ref, bD_ref, cl, cr, W):
    """conv_D: 1 -> N_FEAT.  x_1m: (1, M).  wD_ref: (N_FEAT, 9).  -> (N_FEAT, M).
    K=1 is not worth an MXU call: 9 broadcast FMAs on the VPU."""
    m = x_1m.shape[-1]
    pad_ref[0:1, _PAD:_PAD + m] = x_1m
    acc = jnp.zeros((N_FEAT, m), jnp.float32)
    for t in range(9):
        dy, dx = t // 3 - 1, t % 3 - 1
        off = _PAD + dy * W + dx
        sh = pad_ref[0:1, off:off + m]
        if dx == -1:
            sh = sh * cl
        elif dx == 1:
            sh = sh * cr
        acc = acc + wD_ref[:, t:t + 1] * sh              # (32,1)*(1,M) -> (32,M)
    return acc + bD_ref[...]


def _conv_g_vpu(pad_ref, x_cm, wG_ref, bG_ref, cl, cr, W):
    """conv_G: N_FEAT -> 1.  9 lane-dense VPU FMAs on an (N_FEAT, M) partial
    sum and a single cross-sublane reduction.  -> (1, M)."""
    m = x_cm.shape[-1]
    pad_ref[:, _PAD:_PAD + m] = x_cm
    acc = jnp.zeros((N_FEAT, m), jnp.float32)
    for t in range(9):
        dy, dx = t // 3 - 1, t % 3 - 1
        off = _PAD + dy * W + dx
        sh = pad_ref[:, off:off + m]
        if dx == -1:
            sh = sh * cl
        elif dx == 1:
            sh = sh * cr
        acc = acc + sh * wG_ref[:, t:t + 1]              # (32,M)*(32,1)
    return jnp.sum(acc, axis=0, keepdims=True) + bG_ref[...]


# ----------------------------- fused forward kernel -----------------------------

def _ista_kernel(H, W,
                 lam_ref, x_ref, phitb_ref, mask_ref,
                 wD_ref, bD_ref,
                 w11_ref, b11_ref, w12_ref, b12_ref,
                 wG2_ref, bG2_ref,
                 w21_ref, b21_ref, w22_ref, b22_ref,
                 wG_ref, bG_ref,
                 out_ref,
                 pad_ref):
    M = H * W

    # Zero only the two lane-aligned halo strips; the interior [_PAD, _PAD+M)
    # is fully overwritten before every conv.  A tap's row (dy) overflow lands
    # in these zeros, which implements the 'same' zero padding for free.
    halo = jnp.zeros((N_FEAT, _PAD), jnp.float32)
    pad_ref[:, 0:_PAD] = halo
    pad_ref[:, _PAD + M:_PAD + M + _PAD] = halo

    # Column-boundary masks: dx = -1 / +1 taps would otherwise read the last /
    # first pixel of the neighbouring row (which lives in the interior).
    col = lax.broadcasted_iota(jnp.int32, (1, M), 1) % W
    cl = (col >= 1).astype(jnp.float32)                  # for dx == -1 taps
    cr = (col <= W - 2).astype(jnp.float32)              # for dx == +1 taps

    lam = jnp.maximum(lam_ref[0, 0], 0.0)                # relu(lambda_step)
    x = x_ref[...].reshape(1, M)                         # lane-dense loads
    pb = phitb_ref[...].reshape(1, M)
    mk = mask_ref[...].reshape(1, M)
    # TODO(synk): zero_filled(x, mask) is not defined in the provided source;
    # implemented here (and in the reference) as elementwise masking x * mask.
    x_in = x - lam * (x * mk) + lam * pb                 # (1, M)

    x_d  = _conv_d_vpu(pad_ref, x_in, wD_ref, bD_ref, cl, cr, W)                   # conv_D
    h1   = _conv33_mxu(pad_ref, x_d,  w11_ref, b11_ref, cl, cr, W, relu=True)      # body.conv1+relu
    x_bw = _conv33_mxu(pad_ref, h1,   w12_ref, b12_ref, cl, cr, W)                 # body.conv2
    x_g2 = _conv33_mxu(pad_ref, x_bw, wG2_ref, bG2_ref, cl, cr, W)                 # conv_G2
    x_sk = x_bw + x_g2                                                             # skip add
    h2   = _conv33_mxu(pad_ref, x_sk, w21_ref, b21_ref, cl, cr, W, relu=True)      # body2.conv1+relu
    x_b2 = _conv33_mxu(pad_ref, h2,   w22_ref, b22_ref, cl, cr, W)                 # body2.conv2
    x_g  = _conv_g_vpu(pad_ref, x_b2, wG_ref, bG_ref, cl, cr, W)                   # conv_G

    # x_pred = x_input + x_G : one unmasked 256-lane store.
    out_ref[...] = (x_in + x_g).reshape(out_ref.shape)


def ista_2rb_forward(x, phitb, mask, kp):
    """x, phitb, mask: (N, H, W) float32.  kp: kernel-layout parameter dict."""
    N, H, W = x.shape
    HW = H * W
    assert W + 1 <= _PAD, "flat halo must cover a +/- one-row tap displacement"

    # Lane-dense I/O: (N, 1, H*W) arrays, (1, 1, H*W) blocks -> one image per
    # grid step with the full 256 pixels on the lanes.
    x3 = x.reshape(N, 1, HW)
    p3 = phitb.reshape(N, 1, HW)
    m3 = mask.reshape(N, 1, HW)

    io_spec = pl.BlockSpec((1, 1, HW), lambda i: (i, 0, 0))

    def full_spec(shape):
        nd = len(shape)
        return pl.BlockSpec(shape, lambda i: (0,) * nd)

    in_specs = [
        full_spec(kp['lam'].shape),
        io_spec, io_spec, io_spec,
        full_spec(kp['wD'].shape), full_spec(kp['bD'].shape),
        full_spec(kp['w11'].shape), full_spec(kp['b11'].shape),
        full_spec(kp['w12'].shape), full_spec(kp['b12'].shape),
        full_spec(kp['wG2'].shape), full_spec(kp['bG2'].shape),
        full_spec(kp['w21'].shape), full_spec(kp['b21'].shape),
        full_spec(kp['w22'].shape), full_spec(kp['b22'].shape),
        full_spec(kp['wG'].shape), full_spec(kp['bG'].shape),
    ]

    out = pl.pallas_call(
        functools.partial(_ista_kernel, H, W),
        out_shape=jax.ShapeDtypeStruct((N, 1, HW), jnp.float32),
        grid=(N,),
        in_specs=in_specs,
        out_specs=io_spec,
        scratch_shapes=[
            # flat zero-haloed pixel buffer: (C, PAD + H*W + PAD)
            pltpu.VMEM((N_FEAT, 2 * _PAD + HW), jnp.float32),
        ],
        compiler_params=pltpu.CompilerParams(
            dimension_semantics=("parallel",),
            vmem_limit_bytes=32 * 1024 * 1024),
    )(kp['lam'], x3, p3, m3,
      kp['wD'], kp['bD'],
      kp['w11'], kp['b11'], kp['w12'], kp['b12'],
      kp['wG2'], kp['bG2'],
      kp['w21'], kp['b21'], kp['w22'], kp['b22'],
      kp['wG'], kp['bG'])
    return out.reshape(N, H, W)


# ----------------------------- parameter init / conversion -----------------------------

def init_torch_layout_params(key):
    """Deterministic parameters in PyTorch layouts (OIHW weights, (O,) biases)."""
    ks = jax.random.split(key, 14)

    def conv_w(k, cout, cin):
        return 0.1 * jax.random.normal(k, (cout, cin, 3, 3), jnp.float32)

    def conv_b(k, cout):
        return 0.05 * jax.random.normal(k, (cout,), jnp.float32)

    return {
        'lambda_step': jnp.array([0.5], jnp.float32),
        'conv_D_w': conv_w(ks[0], N_FEAT, 1), 'conv_D_b': conv_b(ks[1], N_FEAT),
        'b1c1_w': conv_w(ks[2], N_FEAT, N_FEAT), 'b1c1_b': conv_b(ks[3], N_FEAT),
        'b1c2_w': conv_w(ks[4], N_FEAT, N_FEAT), 'b1c2_b': conv_b(ks[5], N_FEAT),
        'convG2_w': conv_w(ks[6], N_FEAT, N_FEAT), 'convG2_b': conv_b(ks[7], N_FEAT),
        'b2c1_w': conv_w(ks[8], N_FEAT, N_FEAT), 'b2c1_b': conv_b(ks[9], N_FEAT),
        'b2c2_w': conv_w(ks[10], N_FEAT, N_FEAT), 'b2c2_b': conv_b(ks[11], N_FEAT),
        'convG_w': conv_w(ks[12], 1, N_FEAT), 'convG_b': conv_b(ks[13], 1),
    }


def to_kernel_params(tp):
    def taps_oi(w):  # OIHW -> (9, O, I), tap-major (t = ky*3 + kx)
        o, i, kh, kw = w.shape
        return jnp.transpose(w, (2, 3, 0, 1)).reshape(kh * kw, o, i)

    return {
        'lam': tp['lambda_step'].reshape(1, 1),
        'wD': tp['conv_D_w'].reshape(N_FEAT, 9),            # (O, I=1, 3, 3) -> (O, 9)
        'bD': tp['conv_D_b'].reshape(N_FEAT, 1),
        'w11': taps_oi(tp['b1c1_w']), 'b11': tp['b1c1_b'].reshape(N_FEAT, 1),
        'w12': taps_oi(tp['b1c2_w']), 'b12': tp['b1c2_b'].reshape(N_FEAT, 1),
        'wG2': taps_oi(tp['convG2_w']), 'bG2': tp['convG2_b'].reshape(N_FEAT, 1),
        'w21': taps_oi(tp['b2c1_w']), 'b21': tp['b2c1_b'].reshape(N_FEAT, 1),
        'w22': taps_oi(tp['b2c2_w']), 'b22': tp['b2c2_b'].reshape(N_FEAT, 1),
        'wG': tp['convG_w'][0].reshape(N_FEAT, 9),          # (I=32, 3, 3) -> (I, 9)
        'bG': tp['convG_b'].reshape(1, 1),
    }


# ----------------------------- pure-JAX reference -----------------------------

def reference_forward(x, phitb, mask, tp):
    """x, phitb, mask: (N, 1, H, W) NCHW, matching the PyTorch module."""
    def conv(xx, w, b):
        y = lax.conv_general_dilated(
            xx, w, (1, 1), 'SAME',
            dimension_numbers=('NCHW', 'OIHW', 'NCHW'),
            precision=lax.Precision.HIGHEST)
        return y + b[None, :, None, None]

    lam = jax.nn.relu(tp['lambda_step'])[0]
    x_in = x - lam * (x * mask) + lam * phitb   # zero_filled approximated as x*mask
    x_D = conv(x_in, tp['conv_D_w'], tp['conv_D_b'])
    h1 = jax.nn.relu(conv(x_D, tp['b1c1_w'], tp['b1c1_b']))
    x_backward = conv(h1, tp['b1c2_w'], tp['b1c2_b'])
    x_G2 = conv(x_backward, tp['convG2_w'], tp['convG2_b'])
    x_skip = x_backward + x_G2
    h2 = jax.nn.relu(conv(x_skip, tp['b2c1_w'], tp['b2c1_b']))
    x_backward2 = conv(h2, tp['b2c2_w'], tp['b2c2_b'])
    x_G = conv(x_backward2, tp['convG_w'], tp['convG_b'])
    return x_in + x_G


# ----------------------------- main -----------------------------

if __name__ == "__main__":
    key = jax.random.PRNGKey(0)
    k_x, k_b, k_m, k_p = jax.random.split(key, 4)

    N, H, W = 2, 16, 16
    x = jax.random.normal(k_x, (N, 1, H, W), jnp.float32)
    phitb = jax.random.normal(k_b, (N, 1, H, W), jnp.float32)
    mask = (jax.random.uniform(k_m, (N, 1, H, W)) > 0.5).astype(jnp.float32)

    tp = init_torch_layout_params(k_p)
    kp = to_kernel_params(tp)

    out = jax.jit(ista_2rb_forward)(x[:, 0], phitb[:, 0], mask[:, 0], kp)
    out = jax.block_until_ready(out)

    ref = reference_forward(x, phitb, mask, tp)[:, 0]
    assert out.shape == (N, H, W)
    max_err = float(jnp.max(jnp.abs(out - ref)))
    assert max_err < 2e-2, f"max abs err {max_err}"

    print("KERNEL_OK")
</pallas_src>

<mosaic_0001>
module attributes {stable_mosaic.version = 11 : i64} {
  func.func @_ista_kernel(%arg0: i32, %arg1: memref<1x1xf32, #tpu.memory_space<vmem>>, %arg2: memref<1x1x256xf32, #tpu.memory_space<vmem>>, %arg3: memref<1x1x256xf32, #tpu.memory_space<vmem>>, %arg4: memref<1x1x256xf32, #tpu.memory_space<vmem>>, %arg5: memref<32x9xf32, #tpu.memory_space<vmem>>, %arg6: memref<32x1xf32, #tpu.memory_space<vmem>>, %arg7: memref<9x32x32xf32, #tpu.memory_space<vmem>>, %arg8: memref<32x1xf32, #tpu.memory_space<vmem>>, %arg9: memref<9x32x32xf32, #tpu.memory_space<vmem>>, %arg10: memref<32x1xf32, #tpu.memory_space<vmem>>, %arg11: memref<9x32x32xf32, #tpu.memory_space<vmem>>, %arg12: memref<32x1xf32, #tpu.memory_space<vmem>>, %arg13: memref<9x32x32xf32, #tpu.memory_space<vmem>>, %arg14: memref<32x1xf32, #tpu.memory_space<vmem>>, %arg15: memref<9x32x32xf32, #tpu.memory_space<vmem>>, %arg16: memref<32x1xf32, #tpu.memory_space<vmem>>, %arg17: memref<32x9xf32, #tpu.memory_space<vmem>>, %arg18: memref<1x1xf32, #tpu.memory_space<vmem>>, %arg19: memref<1x1x256xf32, #tpu.memory_space<vmem>>, %arg20: memref<32x512xf32, #tpu.memory_space<vmem>>) attributes {dimension_semantics = [#tpu.dimension_semantics<parallel>], iteration_bounds = array<i64: 2>, scalar_prefetch = 0 : i64, scratch_operands = 1 : i64, tpu.core_type = #tpu.core_type<tc>, window_params = [{pipeline_mode = #tpu.pipeline_mode<synchronous>, transform_indices = @transform_0, window_bounds = array<i64: 1, 1>}, {transform_indices = @transform_1, window_bounds = array<i64: 1, 1, 256>}, {transform_indices = @transform_2, window_bounds = array<i64: 1, 1, 256>}, {transform_indices = @transform_3, window_bounds = array<i64: 1, 1, 256>}, {pipeline_mode = #tpu.pipeline_mode<synchronous>, transform_indices = @transform_4, window_bounds = array<i64: 32, 9>}, {pipeline_mode = #tpu.pipeline_mode<synchronous>, transform_indices = @transform_5, window_bounds = array<i64: 32, 1>}, {pipeline_mode = #tpu.pipeline_mode<synchronous>, transform_indices = @transform_6, window_bounds = array<i64: 9, 32, 32>}, {pipeline_mode = #tpu.pipeline_mode<synchronous>, transform_indices = @transform_7, window_bounds = array<i64: 32, 1>}, {pipeline_mode = #tpu.pipeline_mode<synchronous>, transform_indices = @transform_8, window_bounds = array<i64: 9, 32, 32>}, {pipeline_mode = #tpu.pipeline_mode<synchronous>, transform_indices = @transform_9, window_bounds = array<i64: 32, 1>}, {pipeline_mode = #tpu.pipeline_mode<synchronous>, transform_indices = @transform_10, window_bounds = array<i64: 9, 32, 32>}, {pipeline_mode = #tpu.pipeline_mode<synchronous>, transform_indices = @transform_11, window_bounds = array<i64: 32, 1>}, {pipeline_mode = #tpu.pipeline_mode<synchronous>, transform_indices = @transform_12, window_bounds = array<i64: 9, 32, 32>}, {pipeline_mode = #tpu.pipeline_mode<synchronous>, transform_indices = @transform_13, window_bounds = array<i64: 32, 1>}, {pipeline_mode = #tpu.pipeline_mode<synchronous>, transform_indices = @transform_14, window_bounds = array<i64: 9, 32, 32>}, {pipeline_mode = #tpu.pipeline_mode<synchronous>, transform_indices = @transform_15, window_bounds = array<i64: 32, 1>}, {pipeline_mode = #tpu.pipeline_mode<synchronous>, transform_indices = @transform_16, window_bounds = array<i64: 32, 9>}, {pipeline_mode = #tpu.pipeline_mode<synchronous>, transform_indices = @transform_17, window_bounds = array<i64: 1, 1>}, {transform_indices = @transform_18, window_bounds = array<i64: 1, 1, 256>}]} {
    %cst = arith.constant 0.000000e+00 : f32
    %0 = vector.broadcast %cst : f32 to vector<32x128xf32>
    %c0 = arith.constant 0 : index
    %c0_0 = arith.constant 0 : index
    %1 = vector.load %arg20[%c0, %c0_0] : memref<32x512xf32, #tpu.memory_space<vmem>>, vector<32x128xf32>
    tpu.vector_store %arg20[%c0, %c0_0], %0 {strides = array<i32>} : memref<32x512xf32, #tpu.memory_space<vmem>>, vector<32x128xf32>,
    %c0_1 = arith.constant 0 : index
    %c384 = arith.constant 384 : index
    %2 = vector.load %arg20[%c0_1, %c384] : memref<32x512xf32, #tpu.memory_space<vmem>>, vector<32x128xf32>
    tpu.vector_store %arg20[%c0_1, %c384], %0 {strides = array<i32>} : memref<32x512xf32, #tpu.memory_space<vmem>>, vector<32x128xf32>,
    %3 = tpu.iota {dimensions = array<i32: 1>} : vector<1x256xi32>
    %c16_i32 = arith.constant 16 : i32
    %c0_i32 = arith.constant 0 : i32
    %4 = arith.cmpi eq, %c16_i32, %c0_i32 : i32
    %c1_i32 = arith.constant 1 : i32
    %5 = arith.select %4, %c1_i32, %c16_i32 : i32
    %6 = vector.broadcast %5 : i32 to vector<1x256xi32>
    %7 = arith.remsi %3, %6 : vector<1x256xi32>
    %c0_i32_2 = arith.constant 0 : i32
    %8 = vector.broadcast %c0_i32_2 : i32 to vector<1x256xi32>
    %9 = arith.cmpi ne, %7, %8 : vector<1x256xi32>
    %c0_i32_3 = arith.constant 0 : i32
    %10 = vector.broadcast %c0_i32_3 : i32 to vector<1x256xi32>
    %11 = arith.cmpi slt, %7, %10 : vector<1x256xi32>
    %c0_i32_4 = arith.constant 0 : i32
    %12 = arith.cmpi slt, %5, %c0_i32_4 : i32
    %13 = vector.broadcast %12 : i1 to vector<1x256xi1>
    %14 = vector.broadcast %13 : vector<1x256xi1> to vector<1x256xi1>
    %15 = arith.xori %11, %14 : vector<1x256xi1>
    %16 = arith.andi %15, %9 : vector<1x256xi1>
    %17 = vector.broadcast %5 : i32 to vector<1x256xi32>
    %18 = arith.addi %7, %17 : vector<1x256xi32>
    %19 = arith.select %16, %18, %7 : vector<1x256xi1>, vector<1x256xi32>
    %c1_i32_5 = arith.constant 1 : i32
    %20 = vector.broadcast %c1_i32_5 : i32 to vector<1x256xi32>
    %21 = arith.cmpi sge, %19, %20 : vector<1x256xi32>
    %22 = arith.extui %21 : vector<1x256xi1> to vector<1x256xi32>
    %23 = arith.sitofp %22 : vector<1x256xi32> to vector<1x256xf32>
    %c14_i32 = arith.constant 14 : i32
    %24 = vector.broadcast %c14_i32 : i32 to vector<1x256xi32>
    %25 = arith.cmpi sle, %19, %24 : vector<1x256xi32>
    %26 = arith.extui %25 : vector<1x256xi1> to vector<1x256xi32>
    %27 = arith.sitofp %26 : vector<1x256xi32> to vector<1x256xf32>
    %c0_6 = arith.constant 0 : index
    %c0_7 = arith.constant 0 : index
    %28 = vector.load %arg1[%c0_6, %c0_7] : memref<1x1xf32, #tpu.memory_space<vmem>>, vector<1x1xf32>
    %29 = vector.extract %28[0, 0] : f32 from vector<1x1xf32>
    %cst_8 = arith.constant 0.000000e+00 : f32
    %30 = arith.maximumf %29, %cst_8 : f32
    %c0_9 = arith.constant 0 : index
    %c0_10 = arith.constant 0 : index
    %c0_11 = arith.constant 0 : index
    %31 = vector.load %arg2[%c0_9, %c0_10, %c0_11] : memref<1x1x256xf32, #tpu.memory_space<vmem>>, vector<1x1x256xf32>
    %32 = vector.shape_cast %31 : vector<1x1x256xf32> to vector<1x256xf32>
    %c0_12 = arith.constant 0 : index
    %c0_13 = arith.constant 0 : index
    %c0_14 = arith.constant 0 : index
    %33 = vector.load %arg3[%c0_12, %c0_13, %c0_14] : memref<1x1x256xf32, #tpu.memory_space<vmem>>, vector<1x1x256xf32>
    %34 = vector.shape_cast %33 : vector<1x1x256xf32> to vector<1x256xf32>
    %c0_15 = arith.constant 0 : index
    %c0_16 = arith.constant 0 : index
    %c0_17 = arith.constant 0 : index
    %35 = vector.load %arg4[%c0_15, %c0_16, %c0_17] : memref<1x1x256xf32, #tpu.memory_space<vmem>>, vector<1x1x256xf32>
    %36 = vector.shape_cast %35 : vector<1x1x256xf32> to vector<1x256xf32>
    %37 = arith.mulf %32, %36 : vector<1x256xf32>
    %38 = vector.broadcast %30 : f32 to vector<1x256xf32>
    %39 = arith.mulf %38, %37 : vector<1x256xf32>
    %40 = arith.subf %32, %39 : vector<1x256xf32>
    %41 = vector.broadcast %30 : f32 to vector<1x256xf32>
    %42 = arith.mulf %41, %34 : vector<1x256xf32>
    %43 = arith.addf %40, %42 : vector<1x256xf32>
    %c0_18 = arith.constant 0 : index
    %c128 = arith.constant 128 : index
    %44 = vector.load %arg20[%c0_18, %c128] : memref<32x512xf32, #tpu.memory_space<vmem>>, vector<1x256xf32>
    tpu.vector_store %arg20[%c0_18, %c128], %43 {strides = array<i32>} : memref<32x512xf32, #tpu.memory_space<vmem>>, vector<1x256xf32>,
    %cst_19 = arith.constant 0.000000e+00 : f32
    %45 = vector.broadcast %cst_19 : f32 to vector<32x256xf32>
    %c0_20 = arith.constant 0 : index
    %c111 = arith.constant 111 : index
    %46 = vector.load %arg20[%c0_20, %c111] : memref<32x512xf32, #tpu.memory_space<vmem>>, vector<1x256xf32>
    %47 = arith.mulf %46, %23 : vector<1x256xf32>
    %c0_21 = arith.constant 0 : index
    %c0_22 = arith.constant 0 : index
    %48 = vector.load %arg5[%c0_21, %c0_22] : memref<32x9xf32, #tpu.memory_space<vmem>>, vector<32x1xf32>
    %49 = vector.broadcast %48 : vector<32x1xf32> to vector<32x256xf32>
    %50 = vector.broadcast %47 : vector<1x256xf32> to vector<32x256xf32>
    %51 = arith.mulf %49, %50 : vector<32x256xf32>
    %52 = arith.addf %45, %51 : vector<32x256xf32>
    %c0_23 = arith.constant 0 : index
    %c112 = arith.constant 112 : index
    %53 = vector.load %arg20[%c0_23, %c112] : memref<32x512xf32, #tpu.memory_space<vmem>>, vector<1x256xf32>
    %c0_24 = arith.constant 0 : index
    %c1 = arith.constant 1 : index
    %54 = vector.load %arg5[%c0_24, %c1] : memref<32x9xf32, #tpu.memory_space<vmem>>, vector<32x1xf32>
    %55 = vector.broadcast %54 : vector<32x1xf32> to vector<32x256xf32>
    %56 = vector.broadcast %53 : vector<1x256xf32> to vector<32x256xf32>
    %57 = arith.mulf %55, %56 : vector<32x256xf32>
    %58 = arith.addf %52, %57 : vector<32x256xf32>
    %c0_25 = arith.constant 0 : index
    %c113 = arith.constant 113 : index
    %59 = vector.load %arg20[%c0_25, %c113] : memref<32x512xf32, #tpu.memory_space<vmem>>, vector<1x256xf32>
    %60 = arith.mulf %59, %27 : vector<1x256xf32>
    %c0_26 = arith.constant 0 : index
    %c2 = arith.constant 2 : index
    %61 = vector.load %arg5[%c0_26, %c2] : memref<32x9xf32, #tpu.memory_space<vmem>>, vector<32x1xf32>
    %62 = vector.broadcast %61 : vector<32x1xf32> to vector<32x256xf32>
    %63 = vector.broadcast %60 : vector<1x256xf32> to vector<32x256xf32>
    %64 = arith.mulf %62, %63 : vector<32x256xf32>
    %65 = arith.addf %58, %64 : vector<32x256xf32>
    %c0_27 = arith.constant 0 : index
    %c127 = arith.constant 127 : index
    %66 = vector.load %arg20[%c0_27, %c127] : memref<32x512xf32, #tpu.memory_space<vmem>>, vector<1x256xf32>
    %67 = arith.mulf %66, %23 : vector<1x256xf32>
    %c0_28 = arith.constant 0 : index
    %c3 = arith.constant 3 : index
    %68 = vector.load %arg5[%c0_28, %c3] : memref<32x9xf32, #tpu.memory_space<vmem>>, vector<32x1xf32>
    %69 = vector.broadcast %68 : vector<32x1xf32> to vector<32x256xf32>
    %70 = vector.broadcast %67 : vector<1x256xf32> to vector<32x256xf32>
    %71 = arith.mulf %69, %70 : vector<32x256xf32>
    %72 = arith.addf %65, %71 : vector<32x256xf32>
    %c0_29 = arith.constant 0 : index
    %c128_30 = arith.constant 128 : index
    %73 = vector.load %arg20[%c0_29, %c128_30] : memref<32x512xf32, #tpu.memory_space<vmem>>, vector<1x256xf32>
    %c0_31 = arith.constant 0 : index
    %c4 = arith.constant 4 : index
    %74 = vector.load %arg5[%c0_31, %c4] : memref<32x9xf32, #tpu.memory_space<vmem>>, vector<32x1xf32>
    %75 = vector.broadcast %74 : vector<32x1xf32> to vector<32x256xf32>
    %76 = vector.broadcast %73 : vector<1x256xf32> to vector<32x256xf32>
    %77 = arith.mulf %75, %76 : vector<32x256xf32>
    %78 = arith.addf %72, %77 : vector<32x256xf32>
    %c0_32 = arith.constant 0 : index
    %c129 = arith.constant 129 : index
    %79 = vector.load %arg20[%c0_32, %c129] : memref<32x512xf32, #tpu.memory_space<vmem>>, vector<1x256xf32>
    %80 = arith.mulf %79, %27 : vector<1x256xf32>
    %c0_33 = arith.constant 0 : index
    %c5 = arith.constant 5 : index
    %81 = vector.load %arg5[%c0_33, %c5] : memref<32x9xf32, #tpu.memory_space<vmem>>, vector<32x1xf32>
    %82 = vector.broadcast %81 : vector<32x1xf32> to vector<32x256xf32>
    %83 = vector.broadcast %80 : vector<1x256xf32> to vector<32x256xf32>
    %84 = arith.mulf %82, %83 : vector<32x256xf32>
    %85 = arith.addf %78, %84 : vector<32x256xf32>
    %c0_34 = arith.constant 0 : index
    %c143 = arith.constant 143 : index
    %86 = vector.load %arg20[%c0_34, %c143] : memref<32x512xf32, #tpu.memory_space<vmem>>, vector<1x256xf32>
    %87 = arith.mulf %86, %23 : vector<1x256xf32>
    %c0_35 = arith.constant 0 : index
    %c6 = arith.constant 6 : index
    %88 = vector.load %arg5[%c0_35, %c6] : memref<32x9xf32, #tpu.memory_space<vmem>>, vector<32x1xf32>
    %89 = vector.broadcast %88 : vector<32x1xf32> to vector<32x256xf32>
    %90 = vector.broadcast %87 : vector<1x256xf32> to vector<32x256xf32>
    %91 = arith.mulf %89, %90 : vector<32x256xf32>
    %92 = arith.addf %85, %91 : vector<32x256xf32>
    %c0_36 = arith.constant 0 : index
    %c144 = arith.constant 144 : index
    %93 = vector.load %arg20[%c0_36, %c144] : memref<32x512xf32, #tpu.memory_space<vmem>>, vector<1x256xf32>
    %c0_37 = arith.constant 0 : index
    %c7 = arith.constant 7 : index
    %94 = vector.load %arg5[%c0_37, %c7] : memref<32x9xf32, #tpu.memory_space<vmem>>, vector<32x1xf32>
    %95 = vector.broadcast %94 : vector<32x1xf32> to vector<32x256xf32>
    %96 = vector.broadcast %93 : vector<1x256xf32> to vector<32x256xf32>
    %97 = arith.mulf %95, %96 : vector<32x256xf32>
    %98 = arith.addf %92, %97 : vector<32x256xf32>
    %c0_38 = arith.constant 0 : index
    %c145 = arith.constant 145 : index
    %99 = vector.load %arg20[%c0_38, %c145] : memref<32x512xf32, #tpu.memory_space<vmem>>, vector<1x256xf32>
    %100 = arith.mulf %99, %27 : vector<1x256xf32>
    %c0_39 = arith.constant 0 : index
    %c8 = arith.constant 8 : index
    %101 = vector.load %arg5[%c0_39, %c8] : memref<32x9xf32, #tpu.memory_space<vmem>>, vector<32x1xf32>
    %102 = vector.broadcast %101 : vector<32x1xf32> to vector<32x256xf32>
    %103 = vector.broadcast %100 : vector<1x256xf32> to vector<32x256xf32>
    %104 = arith.mulf %102, %103 : vector<32x256xf32>
    %105 = arith.addf %98, %104 : vector<32x256xf32>
    %c0_40 = arith.constant 0 : index
    %c0_41 = arith.constant 0 : index
    %106 = vector.load %arg6[%c0_40, %c0_41] : memref<32x1xf32, #tpu.memory_space<vmem>>, vector<32x1xf32>
    %107 = vector.broadcast %106 : vector<32x1xf32> to vector<32x256xf32>
    %108 = arith.addf %105, %107 : vector<32x256xf32>
    %c0_42 = arith.constant 0 : index
    %c128_43 = arith.constant 128 : index
    %109 = vector.load %arg20[%c0_42, %c128_43] : memref<32x512xf32, #tpu.memory_space<vmem>>, vector<32x256xf32>
    tpu.vector_store %arg20[%c0_42, %c128_43], %108 {strides = array<i32>} : memref<32x512xf32, #tpu.memory_space<vmem>>, vector<32x256xf32>,
    %cst_44 = arith.constant 0.000000e+00 : f32
    %110 = vector.broadcast %cst_44 : f32 to vector<32x256xf32>
    %c0_45 = arith.constant 0 : index
    %c111_46 = arith.constant 111 : index
    %111 = vector.load %arg20[%c0_45, %c111_46] : memref<32x512xf32, #tpu.memory_space<vmem>>, vector<32x256xf32>
    %112 = vector.broadcast %23 : vector<1x256xf32> to vector<32x256xf32>
    %113 = arith.mulf %111, %112 : vector<32x256xf32>
    %c0_47 = arith.constant 0 : index
    %c0_48 = arith.constant 0 : index
    %c0_49 = arith.constant 0 : index
    %114 = vector.load %arg7[%c0_47, %c0_48, %c0_49] : memref<9x32x32xf32, #tpu.memory_space<vmem>>, vector<1x32x32xf32>
    %115 = vector.shape_cast %114 : vector<1x32x32xf32> to vector<32x32xf32>
    %cst_50 = arith.constant dense<0.000000e+00> : vector<32x256xf32>
    %116 = tpu.matmul %115, %113, %cst_50 {dimension_numbers = #tpu.dot_dimension_numbers<[1], [0], [0], [1], [0, 0, 1, 1], [], []>} : vector<32x32xf32>, vector<32x256xf32>, vector<32x256xf32> -> vector<32x256xf32>
    %117 = arith.addf %110, %116 : vector<32x256xf32>
    %c0_51 = arith.constant 0 : index
    %c112_52 = arith.constant 112 : index
    %118 = vector.load %arg20[%c0_51, %c112_52] : memref<32x512xf32, #tpu.memory_space<vmem>>, vector<32x256xf32>
    %c1_53 = arith.constant 1 : index
    %c0_54 = arith.constant 0 : index
    %c0_55 = arith.constant 0 : index
    %119 = vector.load %arg7[%c1_53, %c0_54, %c0_55] : memref<9x32x32xf32, #tpu.memory_space<vmem>>, vector<1x32x32xf32>
    %120 = vector.shape_cast %119 : vector<1x32x32xf32> to vector<32x32xf32>
    %cst_56 = arith.constant dense<0.000000e+00> : vector<32x256xf32>
    %121 = tpu.matmul %120, %118, %cst_56 {dimension_numbers = #tpu.dot_dimension_numbers<[1], [0], [0], [1], [0, 0, 1, 1], [], []>} : vector<32x32xf32>, vector<32x256xf32>, vector<32x256xf32> -> vector<32x256xf32>
    %122 = arith.addf %117, %121 : vector<32x256xf32>
    %c0_57 = arith.constant 0 : index
    %c113_58 = arith.constant 113 : index
    %123 = vector.load %arg20[%c0_57, %c113_58] : memref<32x512xf32, #tpu.memory_space<vmem>>, vector<32x256xf32>
    %124 = vector.broadcast %27 : vector<1x256xf32> to vector<32x256xf32>
    %125 = arith.mulf %123, %124 : vector<32x256xf32>
    %c2_59 = arith.constant 2 : index
    %c0_60 = arith.constant 0 : index
    %c0_61 = arith.constant 0 : index
    %126 = vector.load %arg7[%c2_59, %c0_60, %c0_61] : memref<9x32x32xf32, #tpu.memory_space<vmem>>, vector<1x32x32xf32>
    %127 = vector.shape_cast %126 : vector<1x32x32xf32> to vector<32x32xf32>
    %cst_62 = arith.constant dense<0.000000e+00> : vector<32x256xf32>
    %128 = tpu.matmul %127, %125, %cst_62 {dimension_numbers = #tpu.dot_dimension_numbers<[1], [0], [0], [1], [0, 0, 1, 1], [], []>} : vector<32x32xf32>, vector<32x256xf32>, vector<32x256xf32> -> vector<32x256xf32>
    %129 = arith.addf %122, %128 : vector<32x256xf32>
    %c0_63 = arith.constant 0 : index
    %c127_64 = arith.constant 127 : index
    %130 = vector.load %arg20[%c0_63, %c127_64] : memref<32x512xf32, #tpu.memory_space<vmem>>, vector<32x256xf32>
    %131 = vector.broadcast %23 : vector<1x256xf32> to vector<32x256xf32>
    %132 = arith.mulf %130, %131 : vector<32x256xf32>
    %c3_65 = arith.constant 3 : index
    %c0_66 = arith.constant 0 : index
    %c0_67 = arith.constant 0 : index
    %133 = vector.load %arg7[%c3_65, %c0_66, %c0_67] : memref<9x32x32xf32, #tpu.memory_space<vmem>>, vector<1x32x32xf32>
    %134 = vector.shape_cast %133 : vector<1x32x32xf32> to vector<32x32xf32>
    %cst_68 = arith.constant dense<0.000000e+00> : vector<32x256xf32>
    %135 = tpu.matmul %134, %132, %cst_68 {dimension_numbers = #tpu.dot_dimension_numbers<[1], [0], [0], [1], [0, 0, 1, 1], [], []>} : vector<32x32xf32>, vector<32x256xf32>, vector<32x256xf32> -> vector<32x256xf32>
    %136 = arith.addf %129, %135 : vector<32x256xf32>
    %c0_69 = arith.constant 0 : index
    %c128_70 = arith.constant 128 : index
    %137 = vector.load %arg20[%c0_69, %c128_70] : memref<32x512xf32, #tpu.memory_space<vmem>>, vector<32x256xf32>
    %c4_71 = arith.constant 4 : index
    %c0_72 = arith.constant 0 : index
    %c0_73 = arith.constant 0 : index
    %138 = vector.load %arg7[%c4_71, %c0_72, %c0_73] : memref<9x32x32xf32, #tpu.memory_space<vmem>>, vector<1x32x32xf32>
    %139 = vector.shape_cast %138 : vector<1x32x32xf32> to vector<32x32xf32>
    %cst_74 = arith.constant dense<0.000000e+00> : vector<32x256xf32>
    %140 = tpu.matmul %139, %137, %cst_74 {dimension_numbers = #tpu.dot_dimension_numbers<[1], [0], [0], [1], [0, 0, 1, 1], [], []>} : vector<32x32xf32>, vector<32x256xf32>, vector<32x256xf32> -> vector<32x256xf32>
    %141 = arith.addf %136, %140 : vector<32x256xf32>
    %c0_75 = arith.constant 0 : index
    %c129_76 = arith.constant 129 : index
    %142 = vector.load %arg20[%c0_75, %c129_76] : memref<32x512xf32, #tpu.memory_space<vmem>>, vector<32x256xf32>
    %143 = vector.broadcast %27 : vector<1x256xf32> to vector<32x256xf32>
    %144 = arith.mulf %142, %143 : vector<32x256xf32>
    %c5_77 = arith.constant 5 : index
    %c0_78 = arith.constant 0 : index
    %c0_79 = arith.constant 0 : index
    %145 = vector.load %arg7[%c5_77, %c0_78, %c0_79] : memref<9x32x32xf32, #tpu.memory_space<vmem>>, vector<1x32x32xf32>
    %146 = vector.shape_cast %145 : vector<1x32x32xf32> to vector<32x32xf32>
    %cst_80 = arith.constant dense<0.000000e+00> : vector<32x256xf32>
    %147 = tpu.matmul %146, %144, %cst_80 {dimension_numbers = #tpu.dot_dimension_numbers<[1], [0], [0], [1], [0, 0, 1, 1], [], []>} : vector<32x32xf32>, vector<32x256xf32>, vector<32x256xf32> -> vector<32x256xf32>
    %148 = arith.addf %141, %147 : vector<32x256xf32>
    %c0_81 = arith.constant 0 : index
    %c143_82 = arith.constant 143 : index
    %149 = vector.load %arg20[%c0_81, %c143_82] : memref<32x512xf32, #tpu.memory_space<vmem>>, vector<32x256xf32>
    %150 = vector.broadcast %23 : vector<1x256xf32> to vector<32x256xf32>
    %151 = arith.mulf %149, %150 : vector<32x256xf32>
    %c6_83 = arith.constant 6 : index
    %c0_84 = arith.constant 0 : index
    %c0_85 = arith.constant 0 : index
    %152 = vector.load %arg7[%c6_83, %c0_84, %c0_85] : memref<9x32x32xf32, #tpu.memory_space<vmem>>, vector<1x32x32xf32>
    %153 = vector.shape_cast %152 : vector<1x32x32xf32> to vector<32x32xf32>
    %cst_86 = arith.constant dense<0.000000e+00> : vector<32x256xf32>
    %154 = tpu.matmul %153, %151, %cst_86 {dimension_numbers = #tpu.dot_dimension_numbers<[1], [0], [0], [1], [0, 0, 1, 1], [], []>} : vector<32x32xf32>, vector<32x256xf32>, vector<32x256xf32> -> vector<32x256xf32>
    %155 = arith.addf %148, %154 : vector<32x256xf32>
    %c0_87 = arith.constant 0 : index
    %c144_88 = arith.constant 144 : index
    %156 = vector.load %arg20[%c0_87, %c144_88] : memref<32x512xf32, #tpu.memory_space<vmem>>, vector<32x256xf32>
    %c7_89 = arith.constant 7 : index
    %c0_90 = arith.constant 0 : index
    %c0_91 = arith.constant 0 : index
    %157 = vector.load %arg7[%c7_89, %c0_90, %c0_91] : memref<9x32x32xf32, #tpu.memory_space<vmem>>, vector<1x32x32xf32>
    %158 = vector.shape_cast %157 : vector<1x32x32xf32> to vector<32x32xf32>
    %cst_92 = arith.constant dense<0.000000e+00> : vector<32x256xf32>
    %159 = tpu.matmul %158, %156, %cst_92 {dimension_numbers = #tpu.dot_dimension_numbers<[1], [0], [0], [1], [0, 0, 1, 1], [], []>} : vector<32x32xf32>, vector<32x256xf32>, vector<32x256xf32> -> vector<32x256xf32>
    %160 = arith.addf %155, %159 : vector<32x256xf32>
    %c0_93 = arith.constant 0 : index
    %c145_94 = arith.constant 145 : index
    %161 = vector.load %arg20[%c0_93, %c145_94] : memref<32x512xf32, #tpu.memory_space<vmem>>, vector<32x256xf32>
    %162 = vector.broadcast %27 : vector<1x256xf32> to vector<32x256xf32>
    %163 = arith.mulf %161, %162 : vector<32x256xf32>
    %c8_95 = arith.constant 8 : index
    %c0_96 = arith.constant 0 : index
    %c0_97 = arith.constant 0 : index
    %164 = vector.load %arg7[%c8_95, %c0_96, %c0_97] : memref<9x32x32xf32, #tpu.memory_space<vmem>>, vector<1x32x32xf32>
    %165 = vector.shape_cast %164 : vector<1x32x32xf32> to vector<32x32xf32>
    %cst_98 = arith.constant dense<0.000000e+00> : vector<32x256xf32>
    %166 = tpu.matmul %165, %163, %cst_98 {dimension_numbers = #tpu.dot_dimension_numbers<[1], [0], [0], [1], [0, 0, 1, 1], [], []>} : vector<32x32xf32>, vector<32x256xf32>, vector<32x256xf32> -> vector<32x256xf32>
    %167 = arith.addf %160, %166 : vector<32x256xf32>
    %c0_99 = arith.constant 0 : index
    %c0_100 = arith.constant 0 : index
    %168 = vector.load %arg8[%c0_99, %c0_100] : memref<32x1xf32, #tpu.memory_space<vmem>>, vector<32x1xf32>
    %169 = vector.broadcast %168 : vector<32x1xf32> to vector<32x256xf32>
    %170 = arith.addf %167, %169 : vector<32x256xf32>
    %cst_101 = arith.constant 0.000000e+00 : f32
    %171 = vector.broadcast %cst_101 : f32 to vector<32x256xf32>
    %172 = arith.maximumf %170, %171 : vector<32x256xf32>
    %c0_102 = arith.constant 0 : index
    %c128_103 = arith.constant 128 : index
    %173 = vector.load %arg20[%c0_102, %c128_103] : memref<32x512xf32, #tpu.memory_space<vmem>>, vector<32x256xf32>
    tpu.vector_store %arg20[%c0_102, %c128_103], %172 {strides = array<i32>} : memref<32x512xf32, #tpu.memory_space<vmem>>, vector<32x256xf32>,
    %cst_104 = arith.constant 0.000000e+00 : f32
    %174 = vector.broadcast %cst_104 : f32 to vector<32x256xf32>
    %c0_105 = arith.constant 0 : index
    %c111_106 = arith.constant 111 : index
    %175 = vector.load %arg20[%c0_105, %c111_106] : memref<32x512xf32, #tpu.memory_space<vmem>>, vector<32x256xf32>
    %176 = vector.broadcast %23 : vector<1x256xf32> to vector<32x256xf32>
    %177 = arith.mulf %175, %176 : vector<32x256xf32>
    %c0_107 = arith.constant 0 : index
    %c0_108 = arith.constant 0 : index
    %c0_109 = arith.constant 0 : index
    %178 = vector.load %arg9[%c0_107, %c0_108, %c0_109] : memref<9x32x32xf32, #tpu.memory_space<vmem>>, vector<1x32x32xf32>
    %179 = vector.shape_cast %178 : vector<1x32x32xf32> to vector<32x32xf32>
    %cst_110 = arith.constant dense<0.000000e+00> : vector<32x256xf32>
    %180 = tpu.matmul %179, %177, %cst_110 {dimension_numbers = #tpu.dot_dimension_numbers<[1], [0], [0], [1], [0, 0, 1, 1], [], []>} : vector<32x32xf32>, vector<32x256xf32>, vector<32x256xf32> -> vector<32x256xf32>
    %181 = arith.addf %174, %180 : vector<32x256xf32>
    %c0_111 = arith.constant 0 : index
    %c112_112 = arith.constant 112 : index
    %182 = vector.load %arg20[%c0_111, %c112_112] : memref<32x512xf32, #tpu.memory_space<vmem>>, vector<32x256xf32>
    %c1_113 = arith.constant 1 : index
    %c0_114 = arith.constant 0 : index
    %c0_115 = arith.constant 0 : index
    %183 = vector.load %arg9[%c1_113, %c0_114, %c0_115] : memref<9x32x32xf32, #tpu.memory_space<vmem>>, vector<1x32x32xf32>
    %184 = vector.shape_cast %183 : vector<1x32x32xf32> to vector<32x32xf32>
    %cst_116 = arith.constant dense<0.000000e+00> : vector<32x256xf32>
    %185 = tpu.matmul %184, %182, %cst_116 {dimension_numbers = #tpu.dot_dimension_numbers<[1], [0], [0], [1], [0, 0, 1, 1], [], []>} : vector<32x32xf32>, vector<32x256xf32>, vector<32x256xf32> -> vector<32x256xf32>
    %186 = arith.addf %181, %185 : vector<32x256xf32>
    %c0_117 = arith.constant 0 : index
    %c113_118 = arith.constant 113 : index
    %187 = vector.load %arg20[%c0_117, %c113_118] : memref<32x512xf32, #tpu.memory_space<vmem>>, vector<32x256xf32>
    %188 = vector.broadcast %27 : vector<1x256xf32> to vector<32x256xf32>
    %189 = arith.mulf %187, %188 : vector<32x256xf32>
    %c2_119 = arith.constant 2 : index
    %c0_120 = arith.constant 0 : index
    %c0_121 = arith.constant 0 : index
    %190 = vector.load %arg9[%c2_119, %c0_120, %c0_121] : memref<9x32x32xf32, #tpu.memory_space<vmem>>, vector<1x32x32xf32>
    %191 = vector.shape_cast %190 : vector<1x32x32xf32> to vector<32x32xf32>
    %cst_122 = arith.constant dense<0.000000e+00> : vector<32x256xf32>
    %192 = tpu.matmul %191, %189, %cst_122 {dimension_numbers = #tpu.dot_dimension_numbers<[1], [0], [0], [1], [0, 0, 1, 1], [], []>} : vector<32x32xf32>, vector<32x256xf32>, vector<32x256xf32> -> vector<32x256xf32>
    %193 = arith.addf %186, %192 : vector<32x256xf32>
    %c0_123 = arith.constant 0 : index
    %c127_124 = arith.constant 127 : index
    %194 = vector.load %arg20[%c0_123, %c127_124] : memref<32x512xf32, #tpu.memory_space<vmem>>, vector<32x256xf32>
    %195 = vector.broadcast %23 : vector<1x256xf32> to vector<32x256xf32>
    %196 = arith.mulf %194, %195 : vector<32x256xf32>
    %c3_125 = arith.constant 3 : index
    %c0_126 = arith.constant 0 : index
    %c0_127 = arith.constant 0 : index
    %197 = vector.load %arg9[%c3_125, %c0_126, %c0_127] : memref<9x32x32xf32, #tpu.memory_space<vmem>>, vector<1x32x32xf32>
    %198 = vector.shape_cast %197 : vector<1x32x32xf32> to vector<32x32xf32>
    %cst_128 = arith.constant dense<0.000000e+00> : vector<32x256xf32>
    %199 = tpu.matmul %198, %196, %cst_128 {dimension_numbers = #tpu.dot_dimension_numbers<[1], [0], [0], [1], [0, 0, 1, 1], [], []>} : vector<32x32xf32>, vector<32x256xf32>, vector<32x256xf32> -> vector<32x256xf32>
    %200 = arith.addf %193, %199 : vector<32x256xf32>
    %c0_129 = arith.constant 0 : index
    %c128_130 = arith.constant 128 : index
    %201 = vector.load %arg20[%c0_129, %c128_130] : memref<32x512xf32, #tpu.memory_space<vmem>>, vector<32x256xf32>
    %c4_131 = arith.constant 4 : index
    %c0_132 = arith.constant 0 : index
    %c0_133 = arith.constant 0 : index
    %202 = vector.load %arg9[%c4_131, %c0_132, %c0_133] : memref<9x32x32xf32, #tpu.memory_space<vmem>>, vector<1x32x32xf32>
    %203 = vector.shape_cast %202 : vector<1x32x32xf32> to vector<32x32xf32>
    %cst_134 = arith.constant dense<0.000000e+00> : vector<32x256xf32>
    %204 = tpu.matmul %203, %201, %cst_134 {dimension_numbers = #tpu.dot_dimension_numbers<[1], [0], [0], [1], [0, 0, 1, 1], [], []>} : vector<32x32xf32>, vector<32x256xf32>, vector<32x256xf32> -> vector<32x256xf32>
    %205 = arith.addf %200, %204 : vector<32x256xf32>
    %c0_135 = arith.constant 0 : index
    %c129_136 = arith.constant 129 : index
    %206 = vector.load %arg20[%c0_135, %c129_136] : memref<32x512xf32, #tpu.memory_space<vmem>>, vector<32x256xf32>
    %207 = vector.broadcast %27 : vector<1x256xf32> to vector<32x256xf32>
    %208 = arith.mulf %206, %207 : vector<32x256xf32>
    %c5_137 = arith.constant 5 : index
    %c0_138 = arith.constant 0 : index
    %c0_139 = arith.constant 0 : index
    %209 = vector.load %arg9[%c5_137, %c0_138, %c0_139] : memref<9x32x32xf32, #tpu.memory_space<vmem>>, vector<1x32x32xf32>
    %210 = vector.shape_cast %209 : vector<1x32x32xf32> to vector<32x32xf32>
    %cst_140 = arith.constant dense<0.000000e+00> : vector<32x256xf32>
    %211 = tpu.matmul %210, %208, %cst_140 {dimension_numbers = #tpu.dot_dimension_numbers<[1], [0], [0], [1], [0, 0, 1, 1], [], []>} : vector<32x32xf32>, vector<32x256xf32>, vector<32x256xf32> -> vector<32x256xf32>
    %212 = arith.addf %205, %211 : vector<32x256xf32>
    %c0_141 = arith.constant 0 : index
    %c143_142 = arith.constant 143 : index
    %213 = vector.load %arg20[%c0_141, %c143_142] : memref<32x512xf32, #tpu.memory_space<vmem>>, vector<32x256xf32>
    %214 = vector.broadcast %23 : vector<1x256xf32> to vector<32x256xf32>
    %215 = arith.mulf %213, %214 : vector<32x256xf32>
    %c6_143 = arith.constant 6 : index
    %c0_144 = arith.constant 0 : index
    %c0_145 = arith.constant 0 : index
    %216 = vector.load %arg9[%c6_143, %c0_144, %c0_145] : memref<9x32x32xf32, #tpu.memory_space<vmem>>, vector<1x32x32xf32>
    %217 = vector.shape_cast %216 : vector<1x32x32xf32> to vector<32x32xf32>
    %cst_146 = arith.constant dense<0.000000e+00> : vector<32x256xf32>
    %218 = tpu.matmul %217, %215, %cst_146 {dimension_numbers = #tpu.dot_dimension_numbers<[1], [0], [0], [1], [0, 0, 1, 1], [], []>} : vector<32x32xf32>, vector<32x256xf32>, vector<32x256xf32> -> vector<32x256xf32>
    %219 = arith.addf %212, %218 : vector<32x256xf32>
    %c0_147 = arith.constant 0 : index
    %c144_148 = arith.constant 144 : index
    %220 = vector.load %arg20[%c0_147, %c144_148] : memref<32x512xf32, #tpu.memory_space<vmem>>, vector<32x256xf32>
    %c7_149 = arith.constant 7 : index
    %c0_150 = arith.constant 0 : index
    %c0_151 = arith.constant 0 : index
    %221 = vector.load %arg9[%c7_149, %c0_150, %c0_151] : memref<9x32x32xf32, #tpu.memory_space<vmem>>, vector<1x32x32xf32>
    %222 = vector.shape_cast %221 : vector<1x32x32xf32> to vector<32x32xf32>
    %cst_152 = arith.constant dense<0.000000e+00> : vector<32x256xf32>
    %223 = tpu.matmul %222, %220, %cst_152 {dimension_numbers = #tpu.dot_dimension_numbers<[1], [0], [0], [1], [0, 0, 1, 1], [], []>} : vector<32x32xf32>, vector<32x256xf32>, vector<32x256xf32> -> vector<32x256xf32>
    %224 = arith.addf %219, %223 : vector<32x256xf32>
    %c0_153 = arith.constant 0 : index
    %c145_154 = arith.constant 145 : index
    %225 = vector.load %arg20[%c0_153, %c145_154] : memref<32x512xf32, #tpu.memory_space<vmem>>, vector<32x256xf32>
    %226 = vector.broadcast %27 : vector<1x256xf32> to vector<32x256xf32>
    %227 = arith.mulf %225, %226 : vector<32x256xf32>
    %c8_155 = arith.constant 8 : index
    %c0_156 = arith.constant 0 : index
    %c0_157 = arith.constant 0 : index
    %228 = vector.load %arg9[%c8_155, %c0_156, %c0_157] : memref<9x32x32xf32, #tpu.memory_space<vmem>>, vector<1x32x32xf32>
    %229 = vector.shape_cast %228 : vector<1x32x32xf32> to vector<32x32xf32>
    %cst_158 = arith.constant dense<0.000000e+00> : vector<32x256xf32>
    %230 = tpu.matmul %229, %227, %cst_158 {dimension_numbers = #tpu.dot_dimension_numbers<[1], [0], [0], [1], [0, 0, 1, 1], [], []>} : vector<32x32xf32>, vector<32x256xf32>, vector<32x256xf32> -> vector<32x256xf32>
    %231 = arith.addf %224, %230 : vector<32x256xf32>
    %c0_159 = arith.constant 0 : index
    %c0_160 = arith.constant 0 : index
    %232 = vector.load %arg10[%c0_159, %c0_160] : memref<32x1xf32, #tpu.memory_space<vmem>>, vector<32x1xf32>
    %233 = vector.broadcast %232 : vector<32x1xf32> to vector<32x256xf32>
    %234 = arith.addf %231, %233 : vector<32x256xf32>
    %c0_161 = arith.constant 0 : index
    %c128_162 = arith.constant 128 : index
    %235 = vector.load %arg20[%c0_161, %c128_162] : memref<32x512xf32, #tpu.memory_space<vmem>>, vector<32x256xf32>
    tpu.vector_store %arg20[%c0_161, %c128_162], %234 {strides = array<i32>} : memref<32x512xf32, #tpu.memory_space<vmem>>, vector<32x256xf32>,
    %cst_163 = arith.constant 0.000000e+00 : f32
    %236 = vector.broadcast %cst_163 : f32 to vector<32x256xf32>
    %c0_164 = arith.constant 0 : index
    %c111_165 = arith.constant 111 : index
    %237 = vector.load %arg20[%c0_164, %c111_165] : memref<32x512xf32, #tpu.memory_space<vmem>>, vector<32x256xf32>
    %238 = vector.broadcast %23 : vector<1x256xf32> to vector<32x256xf32>
    %239 = arith.mulf %237, %238 : vector<32x256xf32>
    %c0_166 = arith.constant 0 : index
    %c0_167 = arith.constant 0 : index
    %c0_168 = arith.constant 0 : index
    %240 = vector.load %arg11[%c0_166, %c0_167, %c0_168] : memref<9x32x32xf32, #tpu.memory_space<vmem>>, vector<1x32x32xf32>
    %241 = vector.shape_cast %240 : vector<1x32x32xf32> to vector<32x32xf32>
    %cst_169 = arith.constant dense<0.000000e+00> : vector<32x256xf32>
    %242 = tpu.matmul %241, %239, %cst_169 {dimension_numbers = #tpu.dot_dimension_numbers<[1], [0], [0], [1], [0, 0, 1, 1], [], []>} : vector<32x32xf32>, vector<32x256xf32>, vector<32x256xf32> -> vector<32x256xf32>
    %243 = arith.addf %236, %242 : vector<32x256xf32>
    %c0_170 = arith.constant 0 : index
    %c112_171 = arith.constant 112 : index
    %244 = vector.load %arg20[%c0_170, %c112_171] : memref<32x512xf32, #tpu.memory_space<vmem>>, vector<32x256xf32>
    %c1_172 = arith.constant 1 : index
    %c0_173 = arith.constant 0 : index
    %c0_174 = arith.constant 0 : index
    %245 = vector.load %arg11[%c1_172, %c0_173, %c0_174] : memref<9x32x32xf32, #tpu.memory_space<vmem>>, vector<1x32x32xf32>
    %246 = vector.shape_cast %245 : vector<1x32x32xf32> to vector<32x32xf32>
    %cst_175 = arith.constant dense<0.000000e+00> : vector<32x256xf32>
    %247 = tpu.matmul %246, %244, %cst_175 {dimension_numbers = #tpu.dot_dimension_numbers<[1], [0], [0], [1], [0, 0, 1, 1], [], []>} : vector<32x32xf32>, vector<32x256xf32>, vector<32x256xf32> -> vector<32x256xf32>
    %248 = arith.addf %243, %247 : vector<32x256xf32>
    %c0_176 = arith.constant 0 : index
    %c113_177 = arith.constant 113 : index
    %249 = vector.load %arg20[%c0_176, %c113_177] : memref<32x512xf32, #tpu.memory_space<vmem>>, vector<32x256xf32>
    %250 = vector.broadcast %27 : vector<1x256xf32> to vector<32x256xf32>
    %251 = arith.mulf %249, %250 : vector<32x256xf32>
    %c2_178 = arith.constant 2 : index
    %c0_179 = arith.constant 0 : index
    %c0_180 = arith.constant 0 : index
    %252 = vector.load %arg11[%c2_178, %c0_179, %c0_180] : memref<9x32x32xf32, #tpu.memory_space<vmem>>, vector<1x32x32xf32>
    %253 = vector.shape_cast %252 : vector<1x32x32xf32> to vector<32x32xf32>
    %cst_181 = arith.constant dense<0.000000e+00> : vector<32x256xf32>
    %254 = tpu.matmul %253, %251, %cst_181 {dimension_numbers = #tpu.dot_dimension_numbers<[1], [0], [0], [1], [0, 0, 1, 1], [], []>} : vector<32x32xf32>, vector<32x256xf32>, vector<32x256xf32> -> vector<32x256xf32>
    %255 = arith.addf %248, %254 : vector<32x256xf32>
    %c0_182 = arith.constant 0 : index
    %c127_183 = arith.constant 127 : index
    %256 = vector.load %arg20[%c0_182, %c127_183] : memref<32x512xf32, #tpu.memory_space<vmem>>, vector<32x256xf32>
    %257 = vector.broadcast %23 : vector<1x256xf32> to vector<32x256xf32>
    %258 = arith.mulf %256, %257 : vector<32x256xf32>
    %c3_184 = arith.constant 3 : index
    %c0_185 = arith.constant 0 : index
    %c0_186 = arith.constant 0 : index
    %259 = vector.load %arg11[%c3_184, %c0_185, %c0_186] : memref<9x32x32xf32, #tpu.memory_space<vmem>>, vector<1x32x32xf32>
    %260 = vector.shape_cast %259 : vector<1x32x32xf32> to vector<32x32xf32>
    %cst_187 = arith.constant dense<0.000000e+00> : vector<32x256xf32>
    %261 = tpu.matmul %260, %258, %cst_187 {dimension_numbers = #tpu.dot_dimension_numbers<[1], [0], [0], [1], [0, 0, 1, 1], [], []>} : vector<32x32xf32>, vector<32x256xf32>, vector<32x256xf32> -> vector<32x256xf32>
    %262 = arith.addf %255, %261 : vector<32x256xf32>
    %c0_188 = arith.constant 0 : index
    %c128_189 = arith.constant 128 : index
    %263 = vector.load %arg20[%c0_188, %c128_189] : memref<32x512xf32, #tpu.memory_space<vmem>>, vector<32x256xf32>
    %c4_190 = arith.constant 4 : index
    %c0_191 = arith.constant 0 : index
    %c0_192 = arith.constant 0 : index
    %264 = vector.load %arg11[%c4_190, %c0_191, %c0_192] : memref<9x32x32xf32, #tpu.memory_space<vmem>>, vector<1x32x32xf32>
    %265 = vector.shape_cast %264 : vector<1x32x32xf32> to vector<32x32xf32>
    %cst_193 = arith.constant dense<0.000000e+00> : vector<32x256xf32>
    %266 = tpu.matmul %265, %263, %cst_193 {dimension_numbers = #tpu.dot_dimension_numbers<[1], [0], [0], [1], [0, 0, 1, 1], [], []>} : vector<32x32xf32>, vector<32x256xf32>, vector<32x256xf32> -> vector<32x256xf32>
    %267 = arith.addf %262, %266 : vector<32x256xf32>
    %c0_194 = arith.constant 0 : index
    %c129_195 = arith.constant 129 : index
    %268 = vector.load %arg20[%c0_194, %c129_195] : memref<32x512xf32, #tpu.memory_space<vmem>>, vector<32x256xf32>
    %269 = vector.broadcast %27 : vector<1x256xf32> to vector<32x256xf32>
    %270 = arith.mulf %268, %269 : vector<32x256xf32>
    %c5_196 = arith.constant 5 : index
    %c0_197 = arith.constant 0 : index
    %c0_198 = arith.constant 0 : index
    %271 = vector.load %arg11[%c5_196, %c0_197, %c0_198] : memref<9x32x32xf32, #tpu.memory_space<vmem>>, vector<1x32x32xf32>
    %272 = vector.shape_cast %271 : vector<1x32x32xf32> to vector<32x32xf32>
    %cst_199 = arith.constant dense<0.000000e+00> : vector<32x256xf32>
    %273 = tpu.matmul %272, %270, %cst_199 {dimension_numbers = #tpu.dot_dimension_numbers<[1], [0], [0], [1], [0, 0, 1, 1], [], []>} : vector<32x32xf32>, vector<32x256xf32>, vector<32x256xf32> -> vector<32x256xf32>
    %274 = arith.addf %267, %273 : vector<32x256xf32>
    %c0_200 = arith.constant 0 : index
    %c143_201 = arith.constant 143 : index
    %275 = vector.load %arg20[%c0_200, %c143_201] : memref<32x512xf32, #tpu.memory_space<vmem>>, vector<32x256xf32>
    %276 = vector.broadcast %23 : vector<1x256xf32> to vector<32x256xf32>
    %277 = arith.mulf %275, %276 : vector<32x256xf32>
    %c6_202 = arith.constant 6 : index
    %c0_203 = arith.constant 0 : index
    %c0_204 = arith.constant 0 : index
    %278 = vector.load %arg11[%c6_202, %c0_203, %c0_204] : memref<9x32x32xf32, #tpu.memory_space<vmem>>, vector<1x32x32xf32>
    %279 = vector.shape_cast %278 : vector<1x32x32xf32> to vector<32x32xf32>
    %cst_205 = arith.constant dense<0.000000e+00> : vector<32x256xf32>
    %280 = tpu.matmul %279, %277, %cst_205 {dimension_numbers = #tpu.dot_dimension_numbers<[1], [0], [0], [1], [0, 0, 1, 1], [], []>} : vector<32x32xf32>, vector<32x256xf32>, vector<32x256xf32> -> vector<32x256xf32>
    %281 = arith.addf %274, %280 : vector<32x256xf32>
    %c0_206 = arith.constant 0 : index
    %c144_207 = arith.constant 144 : index
    %282 = vector.load %arg20[%c0_206, %c144_207] : memref<32x512xf32, #tpu.memory_space<vmem>>, vector<32x256xf32>
    %c7_208 = arith.constant 7 : index
    %c0_209 = arith.constant 0 : index
    %c0_210 = arith.constant 0 : index
    %283 = vector.load %arg11[%c7_208, %c0_209, %c0_210] : memref<9x32x32xf32, #tpu.memory_space<vmem>>, vector<1x32x32xf32>
    %284 = vector.shape_cast %283 : vector<1x32x32xf32> to vector<32x32xf32>
    %cst_211 = arith.constant dense<0.000000e+00> : vector<32x256xf32>
    %285 = tpu.matmul %284, %282, %cst_211 {dimension_numbers = #tpu.dot_dimension_numbers<[1], [0], [0], [1], [0, 0, 1, 1], [], []>} : vector<32x32xf32>, vector<32x256xf32>, vector<32x256xf32> -> vector<32x256xf32>
    %286 = arith.addf %281, %285 : vector<32x256xf32>
    %c0_212 = arith.constant 0 : index
    %c145_213 = arith.constant 145 : index
    %287 = vector.load %arg20[%c0_212, %c145_213] : memref<32x512xf32, #tpu.memory_space<vmem>>, vector<32x256xf32>
    %288 = vector.broadcast %27 : vector<1x256xf32> to vector<32x256xf32>
    %289 = arith.mulf %287, %288 : vector<32x256xf32>
    %c8_214 = arith.constant 8 : index
    %c0_215 = arith.constant 0 : index
    %c0_216 = arith.constant 0 : index
    %290 = vector.load %arg11[%c8_214, %c0_215, %c0_216] : memref<9x32x32xf32, #tpu.memory_space<vmem>>, vector<1x32x32xf32>
    %291 = vector.shape_cast %290 : vector<1x32x32xf32> to vector<32x32xf32>
    %cst_217 = arith.constant dense<0.000000e+00> : vector<32x256xf32>
    %292 = tpu.matmul %291, %289, %cst_217 {dimension_numbers = #tpu.dot_dimension_numbers<[1], [0], [0], [1], [0, 0, 1, 1], [], []>} : vector<32x32xf32>, vector<32x256xf32>, vector<32x256xf32> -> vector<32x256xf32>
    %293 = arith.addf %286, %292 : vector<32x256xf32>
    %c0_218 = arith.constant 0 : index
    %c0_219 = arith.constant 0 : index
    %294 = vector.load %arg12[%c0_218, %c0_219] : memref<32x1xf32, #tpu.memory_space<vmem>>, vector<32x1xf32>
    %295 = vector.broadcast %294 : vector<32x1xf32> to vector<32x256xf32>
    %296 = arith.addf %293, %295 : vector<32x256xf32>
    %297 = arith.addf %234, %296 : vector<32x256xf32>
    %c0_220 = arith.constant 0 : index
    %c128_221 = arith.constant 128 : index
    %298 = vector.load %arg20[%c0_220, %c128_221] : memref<32x512xf32, #tpu.memory_space<vmem>>, vector<32x256xf32>
    tpu.vector_store %arg20[%c0_220, %c128_221], %297 {strides = array<i32>} : memref<32x512xf32, #tpu.memory_space<vmem>>, vector<32x256xf32>,
    %cst_222 = arith.constant 0.000000e+00 : f32
    %299 = vector.broadcast %cst_222 : f32 to vector<32x256xf32>
    %c0_223 = arith.constant 0 : index
    %c111_224 = arith.constant 111 : index
    %300 = vector.load %arg20[%c0_223, %c111_224] : memref<32x512xf32, #tpu.memory_space<vmem>>, vector<32x256xf32>
    %301 = vector.broadcast %23 : vector<1x256xf32> to vector<32x256xf32>
    %302 = arith.mulf %300, %301 : vector<32x256xf32>
    %c0_225 = arith.constant 0 : index
    %c0_226 = arith.constant 0 : index
    %c0_227 = arith.constant 0 : index
    %303 = vector.load %arg13[%c0_225, %c0_226, %c0_227] : memref<9x32x32xf32, #tpu.memory_space<vmem>>, vector<1x32x32xf32>
    %304 = vector.shape_cast %303 : vector<1x32x32xf32> to vector<32x32xf32>
    %cst_228 = arith.constant dense<0.000000e+00> : vector<32x256xf32>
    %305 = tpu.matmul %304, %302, %cst_228 {dimension_numbers = #tpu.dot_dimension_numbers<[1], [0], [0], [1], [0, 0, 1, 1], [], []>} : vector<32x32xf32>, vector<32x256xf32>, vector<32x256xf32> -> vector<32x256xf32>
    %306 = arith.addf %299, %305 : vector<32x256xf32>
    %c0_229 = arith.constant 0 : index
    %c112_230 = arith.constant 112 : index
    %307 = vector.load %arg20[%c0_229, %c112_230] : memref<32x512xf32, #tpu.memory_space<vmem>>, vector<32x256xf32>
    %c1_231 = arith.constant 1 : index
    %c0_232 = arith.constant 0 : index
    %c0_233 = arith.constant 0 : index
    %308 = vector.load %arg13[%c1_231, %c0_232, %c0_233] : memref<9x32x32xf32, #tpu.memory_space<vmem>>, vector<1x32x32xf32>
    %309 = vector.shape_cast %308 : vector<1x32x32xf32> to vector<32x32xf32>
    %cst_234 = arith.constant dense<0.000000e+00> : vector<32x256xf32>
    %310 = tpu.matmul %309, %307, %cst_234 {dimension_numbers = #tpu.dot_dimension_numbers<[1], [0], [0], [1], [0, 0, 1, 1], [], []>} : vector<32x32xf32>, vector<32x256xf32>, vector<32x256xf32> -> vector<32x256xf32>
    %311 = arith.addf %306, %310 : vector<32x256xf32>
    %c0_235 = arith.constant 0 : index
    %c113_236 = arith.constant 113 : index
    %312 = vector.load %arg20[%c0_235, %c113_236] : memref<32x512xf32, #tpu.memory_space<vmem>>, vector<32x256xf32>
    %313 = vector.broadcast %27 : vector<1x256xf32> to vector<32x256xf32>
    %314 = arith.mulf %312, %313 : vector<32x256xf32>
    %c2_237 = arith.constant 2 : index
    %c0_238 = arith.constant 0 : index
    %c0_239 = arith.constant 0 : index
    %315 = vector.load %arg13[%c2_237, %c0_238, %c0_239] : memref<9x32x32xf32, #tpu.memory_space<vmem>>, vector<1x32x32xf32>
    %316 = vector.shape_cast %315 : vector<1x32x32xf32> to vector<32x32xf32>
    %cst_240 = arith.constant dense<0.000000e+00> : vector<32x256xf32>
    %317 = tpu.matmul %316, %314, %cst_240 {dimension_numbers = #tpu.dot_dimension_numbers<[1], [0], [0], [1], [0, 0, 1, 1], [], []>} : vector<32x32xf32>, vector<32x256xf32>, vector<32x256xf32> -> vector<32x256xf32>
    %318 = arith.addf %311, %317 : vector<32x256xf32>
    %c0_241 = arith.constant 0 : index
    %c127_242 = arith.constant 127 : index
    %319 = vector.load %arg20[%c0_241, %c127_242] : memref<32x512xf32, #tpu.memory_space<vmem>>, vector<32x256xf32>
    %320 = vector.broadcast %23 : vector<1x256xf32> to vector<32x256xf32>
    %321 = arith.mulf %319, %320 : vector<32x256xf32>
    %c3_243 = arith.constant 3 : index
    %c0_244 = arith.constant 0 : index
    %c0_245 = arith.constant 0 : index
    %322 = vector.load %arg13[%c3_243, %c0_244, %c0_245] : memref<9x32x32xf32, #tpu.memory_space<vmem>>, vector<1x32x32xf32>
    %323 = vector.shape_cast %322 : vector<1x32x32xf32> to vector<32x32xf32>
    %cst_246 = arith.constant dense<0.000000e+00> : vector<32x256xf32>
    %324 = tpu.matmul %323, %321, %cst_246 {dimension_numbers = #tpu.dot_dimension_numbers<[1], [0], [0], [1], [0, 0, 1, 1], [], []>} : vector<32x32xf32>, vector<32x256xf32>, vector<32x256xf32> -> vector<32x256xf32>
    %325 = arith.addf %318, %324 : vector<32x256xf32>
    %c0_247 = arith.constant 0 : index
    %c128_248 = arith.constant 128 : index
    %326 = vector.load %arg20[%c0_247, %c128_248] : memref<32x512xf32, #tpu.memory_space<vmem>>, vector<32x256xf32>
    %c4_249 = arith.constant 4 : index
    %c0_250 = arith.constant 0 : index
    %c0_251 = arith.constant 0 : index
    %327 = vector.load %arg13[%c4_249, %c0_250, %c0_251] : memref<9x32x32xf32, #tpu.memory_space<vmem>>, vector<1x32x32xf32>
    %328 = vector.shape_cast %327 : vector<1x32x32xf32> to vector<32x32xf32>
    %cst_252 = arith.constant dense<0.000000e+00> : vector<32x256xf32>
    %329 = tpu.matmul %328, %326, %cst_252 {dimension_numbers = #tpu.dot_dimension_numbers<[1], [0], [0], [1], [0, 0, 1, 1], [], []>} : vector<32x32xf32>, vector<32x256xf32>, vector<32x256xf32> -> vector<32x256xf32>
    %330 = arith.addf %325, %329 : vector<32x256xf32>
    %c0_253 = arith.constant 0 : index
    %c129_254 = arith.constant 129 : index
    %331 = vector.load %arg20[%c0_253, %c129_254] : memref<32x512xf32, #tpu.memory_space<vmem>>, vector<32x256xf32>
    %332 = vector.broadcast %27 : vector<1x256xf32> to vector<32x256xf32>
    %333 = arith.mulf %331, %332 : vector<32x256xf32>
    %c5_255 = arith.constant 5 : index
    %c0_256 = arith.constant 0 : index
    %c0_257 = arith.constant 0 : index
    %334 = vector.load %arg13[%c5_255, %c0_256, %c0_257] : memref<9x32x32xf32, #tpu.memory_space<vmem>>, vector<1x32x32xf32>
    %335 = vector.shape_cast %334 : vector<1x32x32xf32> to vector<32x32xf32>
    %cst_258 = arith.constant dense<0.000000e+00> : vector<32x256xf32>
    %336 = tpu.matmul %335, %333, %cst_258 {dimension_numbers = #tpu.dot_dimension_numbers<[1], [0], [0], [1], [0, 0, 1, 1], [], []>} : vector<32x32xf32>, vector<32x256xf32>, vector<32x256xf32> -> vector<32x256xf32>
    %337 = arith.addf %330, %336 : vector<32x256xf32>
    %c0_259 = arith.constant 0 : index
    %c143_260 = arith.constant 143 : index
    %338 = vector.load %arg20[%c0_259, %c143_260] : memref<32x512xf32, #tpu.memory_space<vmem>>, vector<32x256xf32>
    %339 = vector.broadcast %23 : vector<1x256xf32> to vector<32x256xf32>
    %340 = arith.mulf %338, %339 : vector<32x256xf32>
    %c6_261 = arith.constant 6 : index
    %c0_262 = arith.constant 0 : index
    %c0_263 = arith.constant 0 : index
    %341 = vector.load %arg13[%c6_261, %c0_262, %c0_263] : memref<9x32x32xf32, #tpu.memory_space<vmem>>, vector<1x32x32xf32>
    %342 = vector.shape_cast %341 : vector<1x32x32xf32> to vector<32x32xf32>
    %cst_264 = arith.constant dense<0.000000e+00> : vector<32x256xf32>
    %343 = tpu.matmul %342, %340, %cst_264 {dimension_numbers = #tpu.dot_dimension_numbers<[1], [0], [0], [1], [0, 0, 1, 1], [], []>} : vector<32x32xf32>, vector<32x256xf32>, vector<32x256xf32> -> vector<32x256xf32>
    %344 = arith.addf %337, %343 : vector<32x256xf32>
    %c0_265 = arith.constant 0 : index
    %c144_266 = arith.constant 144 : index
    %345 = vector.load %arg20[%c0_265, %c144_266] : memref<32x512xf32, #tpu.memory_space<vmem>>, vector<32x256xf32>
    %c7_267 = arith.constant 7 : index
    %c0_268 = arith.constant 0 : index
    %c0_269 = arith.constant 0 : index
    %346 = vector.load %arg13[%c7_267, %c0_268, %c0_269] : memref<9x32x32xf32, #tpu.memory_space<vmem>>, vector<1x32x32xf32>
    %347 = vector.shape_cast %346 : vector<1x32x32xf32> to vector<32x32xf32>
    %cst_270 = arith.constant dense<0.000000e+00> : vector<32x256xf32>
    %348 = tpu.matmul %347, %345, %cst_270 {dimension_numbers = #tpu.dot_dimension_numbers<[1], [0], [0], [1], [0, 0, 1, 1], [], []>} : vector<32x32xf32>, vector<32x256xf32>, vector<32x256xf32> -> vector<32x256xf32>
    %349 = arith.addf %344, %348 : vector<32x256xf32>
    %c0_271 = arith.constant 0 : index
    %c145_272 = arith.constant 145 : index
    %350 = vector.load %arg20[%c0_271, %c145_272] : memref<32x512xf32, #tpu.memory_space<vmem>>, vector<32x256xf32>
    %351 = vector.broadcast %27 : vector<1x256xf32> to vector<32x256xf32>
    %352 = arith.mulf %350, %351 : vector<32x256xf32>
    %c8_273 = arith.constant 8 : index
    %c0_274 = arith.constant 0 : index
    %c0_275 = arith.constant 0 : index
    %353 = vector.load %arg13[%c8_273, %c0_274, %c0_275] : memref<9x32x32xf32, #tpu.memory_space<vmem>>, vector<1x32x32xf32>
    %354 = vector.shape_cast %353 : vector<1x32x32xf32> to vector<32x32xf32>
    %cst_276 = arith.constant dense<0.000000e+00> : vector<32x256xf32>
    %355 = tpu.matmul %354, %352, %cst_276 {dimension_numbers = #tpu.dot_dimension_numbers<[1], [0], [0], [1], [0, 0, 1, 1], [], []>} : vector<32x32xf32>, vector<32x256xf32>, vector<32x256xf32> -> vector<32x256xf32>
    %356 = arith.addf %349, %355 : vector<32x256xf32>
    %c0_277 = arith.constant 0 : index
    %c0_278 = arith.constant 0 : index
    %357 = vector.load %arg14[%c0_277, %c0_278] : memref<32x1xf32, #tpu.memory_space<vmem>>, vector<32x1xf32>
    %358 = vector.broadcast %357 : vector<32x1xf32> to vector<32x256xf32>
    %359 = arith.addf %356, %358 : vector<32x256xf32>
    %cst_279 = arith.constant 0.000000e+00 : f32
    %360 = vector.broadcast %cst_279 : f32 to vector<32x256xf32>
    %361 = arith.maximumf %359, %360 : vector<32x256xf32>
    %c0_280 = arith.constant 0 : index
    %c128_281 = arith.constant 128 : index
    %362 = vector.load %arg20[%c0_280, %c128_281] : memref<32x512xf32, #tpu.memory_space<vmem>>, vector<32x256xf32>
    tpu.vector_store %arg20[%c0_280, %c128_281], %361 {strides = array<i32>} : memref<32x512xf32, #tpu.memory_space<vmem>>, vector<32x256xf32>,
    %cst_282 = arith.constant 0.000000e+00 : f32
    %363 = vector.broadcast %cst_282 : f32 to vector<32x256xf32>
    %c0_283 = arith.constant 0 : index
    %c111_284 = arith.constant 111 : index
    %364 = vector.load %arg20[%c0_283, %c111_284] : memref<32x512xf32, #tpu.memory_space<vmem>>, vector<32x256xf32>
    %365 = vector.broadcast %23 : vector<1x256xf32> to vector<32x256xf32>
    %366 = arith.mulf %364, %365 : vector<32x256xf32>
    %c0_285 = arith.constant 0 : index
    %c0_286 = arith.constant 0 : index
    %c0_287 = arith.constant 0 : index
    %367 = vector.load %arg15[%c0_285, %c0_286, %c0_287] : memref<9x32x32xf32, #tpu.memory_space<vmem>>, vector<1x32x32xf32>
    %368 = vector.shape_cast %367 : vector<1x32x32xf32> to vector<32x32xf32>
    %cst_288 = arith.constant dense<0.000000e+00> : vector<32x256xf32>
    %369 = tpu.matmul %368, %366, %cst_288 {dimension_numbers = #tpu.dot_dimension_numbers<[1], [0], [0], [1], [0, 0, 1, 1], [], []>} : vector<32x32xf32>, vector<32x256xf32>, vector<32x256xf32> -> vector<32x256xf32>
    %370 = arith.addf %363, %369 : vector<32x256xf32>
    %c0_289 = arith.constant 0 : index
    %c112_290 = arith.constant 112 : index
    %371 = vector.load %arg20[%c0_289, %c112_290] : memref<32x512xf32, #tpu.memory_space<vmem>>, vector<32x256xf32>
    %c1_291 = arith.constant 1 : index
    %c0_292 = arith.constant 0 : index
    %c0_293 = arith.constant 0 : index
    %372 = vector.load %arg15[%c1_291, %c0_292, %c0_293] : memref<9x32x32xf32, #tpu.memory_space<vmem>>, vector<1x32x32xf32>
    %373 = vector.shape_cast %372 : vector<1x32x32xf32> to vector<32x32xf32>
    %cst_294 = arith.constant dense<0.000000e+00> : vector<32x256xf32>
    %374 = tpu.matmul %373, %371, %cst_294 {dimension_numbers = #tpu.dot_dimension_numbers<[1], [0], [0], [1], [0, 0, 1, 1], [], []>} : vector<32x32xf32>, vector<32x256xf32>, vector<32x256xf32> -> vector<32x256xf32>
    %375 = arith.addf %370, %374 : vector<32x256xf32>
    %c0_295 = arith.constant 0 : index
    %c113_296 = arith.constant 113 : index
    %376 = vector.load %arg20[%c0_295, %c113_296] : memref<32x512xf32, #tpu.memory_space<vmem>>, vector<32x256xf32>
    %377 = vector.broadcast %27 : vector<1x256xf32> to vector<32x256xf32>
    %378 = arith.mulf %376, %377 : vector<32x256xf32>
    %c2_297 = arith.constant 2 : index
    %c0_298 = arith.constant 0 : index
    %c0_299 = arith.constant 0 : index
    %379 = vector.load %arg15[%c2_297, %c0_298, %c0_299] : memref<9x32x32xf32, #tpu.memory_space<vmem>>, vector<1x32x32xf32>
    %380 = vector.shape_cast %379 : vector<1x32x32xf32> to vector<32x32xf32>
    %cst_300 = arith.constant dense<0.000000e+00> : vector<32x256xf32>
    %381 = tpu.matmul %380, %378, %cst_300 {dimension_numbers = #tpu.dot_dimension_numbers<[1], [0], [0], [1], [0, 0, 1, 1], [], []>} : vector<32x32xf32>, vector<32x256xf32>, vector<32x256xf32> -> vector<32x256xf32>
    %382 = arith.addf %375, %381 : vector<32x256xf32>
    %c0_301 = arith.constant 0 : index
    %c127_302 = arith.constant 127 : index
    %383 = vector.load %arg20[%c0_301, %c127_302] : memref<32x512xf32, #tpu.memory_space<vmem>>, vector<32x256xf32>
    %384 = vector.broadcast %23 : vector<1x256xf32> to vector<32x256xf32>
    %385 = arith.mulf %383, %384 : vector<32x256xf32>
    %c3_303 = arith.constant 3 : index
    %c0_304 = arith.constant 0 : index
    %c0_305 = arith.constant 0 : index
    %386 = vector.load %arg15[%c3_303, %c0_304, %c0_305] : memref<9x32x32xf32, #tpu.memory_space<vmem>>, vector<1x32x32xf32>
    %387 = vector.shape_cast %386 : vector<1x32x32xf32> to vector<32x32xf32>
    %cst_306 = arith.constant dense<0.000000e+00> : vector<32x256xf32>
    %388 = tpu.matmul %387, %385, %cst_306 {dimension_numbers = #tpu.dot_dimension_numbers<[1], [0], [0], [1], [0, 0, 1, 1], [], []>} : vector<32x32xf32>, vector<32x256xf32>, vector<32x256xf32> -> vector<32x256xf32>
    %389 = arith.addf %382, %388 : vector<32x256xf32>
    %c0_307 = arith.constant 0 : index
    %c128_308 = arith.constant 128 : index
    %390 = vector.load %arg20[%c0_307, %c128_308] : memref<32x512xf32, #tpu.memory_space<vmem>>, vector<32x256xf32>
    %c4_309 = arith.constant 4 : index
    %c0_310 = arith.constant 0 : index
    %c0_311 = arith.constant 0 : index
    %391 = vector.load %arg15[%c4_309, %c0_310, %c0_311] : memref<9x32x32xf32, #tpu.memory_space<vmem>>, vector<1x32x32xf32>
    %392 = vector.shape_cast %391 : vector<1x32x32xf32> to vector<32x32xf32>
    %cst_312 = arith.constant dense<0.000000e+00> : vector<32x256xf32>
    %393 = tpu.matmul %392, %390, %cst_312 {dimension_numbers = #tpu.dot_dimension_numbers<[1], [0], [0], [1], [0, 0, 1, 1], [], []>} : vector<32x32xf32>, vector<32x256xf32>, vector<32x256xf32> -> vector<32x256xf32>
    %394 = arith.addf %389, %393 : vector<32x256xf32>
    %c0_313 = arith.constant 0 : index
    %c129_314 = arith.constant 129 : index
    %395 = vector.load %arg20[%c0_313, %c129_314] : memref<32x512xf32, #tpu.memory_space<vmem>>, vector<32x256xf32>
    %396 = vector.broadcast %27 : vector<1x256xf32> to vector<32x256xf32>
    %397 = arith.mulf %395, %396 : vector<32x256xf32>
    %c5_315 = arith.constant 5 : index
    %c0_316 = arith.constant 0 : index
    %c0_317 = arith.constant 0 : index
    %398 = vector.load %arg15[%c5_315, %c0_316, %c0_317] : memref<9x32x32xf32, #tpu.memory_space<vmem>>, vector<1x32x32xf32>
    %399 = vector.shape_cast %398 : vector<1x32x32xf32> to vector<32x32xf32>
    %cst_318 = arith.constant dense<0.000000e+00> : vector<32x256xf32>
    %400 = tpu.matmul %399, %397, %cst_318 {dimension_numbers = #tpu.dot_dimension_numbers<[1], [0], [0], [1], [0, 0, 1, 1], [], []>} : vector<32x32xf32>, vector<32x256xf32>, vector<32x256xf32> -> vector<32x256xf32>
    %401 = arith.addf %394, %400 : vector<32x256xf32>
    %c0_319 = arith.constant 0 : index
    %c143_320 = arith.constant 143 : index
    %402 = vector.load %arg20[%c0_319, %c143_320] : memref<32x512xf32, #tpu.memory_space<vmem>>, vector<32x256xf32>
    %403 = vector.broadcast %23 : vector<1x256xf32> to vector<32x256xf32>
    %404 = arith.mulf %402, %403 : vector<32x256xf32>
    %c6_321 = arith.constant 6 : index
    %c0_322 = arith.constant 0 : index
    %c0_323 = arith.constant 0 : index
    %405 = vector.load %arg15[%c6_321, %c0_322, %c0_323] : memref<9x32x32xf32, #tpu.memory_space<vmem>>, vector<1x32x32xf32>
    %406 = vector.shape_cast %405 : vector<1x32x32xf32> to vector<32x32xf32>
    %cst_324 = arith.constant dense<0.000000e+00> : vector<32x256xf32>
    %407 = tpu.matmul %406, %404, %cst_324 {dimension_numbers = #tpu.dot_dimension_numbers<[1], [0], [0], [1], [0, 0, 1, 1], [], []>} : vector<32x32xf32>, vector<32x256xf32>, vector<32x256xf32> -> vector<32x256xf32>
    %408 = arith.addf %401, %407 : vector<32x256xf32>
    %c0_325 = arith.constant 0 : index
    %c144_326 = arith.constant 144 : index
    %409 = vector.load %arg20[%c0_325, %c144_326] : memref<32x512xf32, #tpu.memory_space<vmem>>, vector<32x256xf32>
    %c7_327 = arith.constant 7 : index
    %c0_328 = arith.constant 0 : index
    %c0_329 = arith.constant 0 : index
    %410 = vector.load %arg15[%c7_327, %c0_328, %c0_329] : memref<9x32x32xf32, #tpu.memory_space<vmem>>, vector<1x32x32xf32>
    %411 = vector.shape_cast %410 : vector<1x32x32xf32> to vector<32x32xf32>
    %cst_330 = arith.constant dense<0.000000e+00> : vector<32x256xf32>
    %412 = tpu.matmul %411, %409, %cst_330 {dimension_numbers = #tpu.dot_dimension_numbers<[1], [0], [0], [1], [0, 0, 1, 1], [], []>} : vector<32x32xf32>, vector<32x256xf32>, vector<32x256xf32> -> vector<32x256xf32>
    %413 = arith.addf %408, %412 : vector<32x256xf32>
    %c0_331 = arith.constant 0 : index
    %c145_332 = arith.constant 145 : index
    %414 = vector.load %arg20[%c0_331, %c145_332] : memref<32x512xf32, #tpu.memory_space<vmem>>, vector<32x256xf32>
    %415 = vector.broadcast %27 : vector<1x256xf32> to vector<32x256xf32>
    %416 = arith.mulf %414, %415 : vector<32x256xf32>
    %c8_333 = arith.constant 8 : index
    %c0_334 = arith.constant 0 : index
    %c0_335 = arith.constant 0 : index
    %417 = vector.load %arg15[%c8_333, %c0_334, %c0_335] : memref<9x32x32xf32, #tpu.memory_space<vmem>>, vector<1x32x32xf32>
    %418 = vector.shape_cast %417 : vector<1x32x32xf32> to vector<32x32xf32>
    %cst_336 = arith.constant dense<0.000000e+00> : vector<32x256xf32>
    %419 = tpu.matmul %418, %416, %cst_336 {dimension_numbers = #tpu.dot_dimension_numbers<[1], [0], [0], [1], [0, 0, 1, 1], [], []>} : vector<32x32xf32>, vector<32x256xf32>, vector<32x256xf32> -> vector<32x256xf32>
    %420 = arith.addf %413, %419 : vector<32x256xf32>
    %c0_337 = arith.constant 0 : index
    %c0_338 = arith.constant 0 : index
    %421 = vector.load %arg16[%c0_337, %c0_338] : memref<32x1xf32, #tpu.memory_space<vmem>>, vector<32x1xf32>
    %422 = vector.broadcast %421 : vector<32x1xf32> to vector<32x256xf32>
    %423 = arith.addf %420, %422 : vector<32x256xf32>
    %c0_339 = arith.constant 0 : index
    %c128_340 = arith.constant 128 : index
    %424 = vector.load %arg20[%c0_339, %c128_340] : memref<32x512xf32, #tpu.memory_space<vmem>>, vector<32x256xf32>
    tpu.vector_store %arg20[%c0_339, %c128_340], %423 {strides = array<i32>} : memref<32x512xf32, #tpu.memory_space<vmem>>, vector<32x256xf32>,
    %cst_341 = arith.constant 0.000000e+00 : f32
    %425 = vector.broadcast %cst_341 : f32 to vector<32x256xf32>
    %c0_342 = arith.constant 0 : index
    %c111_343 = arith.constant 111 : index
    %426 = vector.load %arg20[%c0_342, %c111_343] : memref<32x512xf32, #tpu.memory_space<vmem>>, vector<32x256xf32>
    %427 = vector.broadcast %23 : vector<1x256xf32> to vector<32x256xf32>
    %428 = arith.mulf %426, %427 : vector<32x256xf32>
    %c0_344 = arith.constant 0 : index
    %c0_345 = arith.constant 0 : index
    %429 = vector.load %arg17[%c0_344, %c0_345] : memref<32x9xf32, #tpu.memory_space<vmem>>, vector<32x1xf32>
    %430 = vector.broadcast %429 : vector<32x1xf32> to vector<32x256xf32>
    %431 = arith.mulf %428, %430 : vector<32x256xf32>
    %432 = arith.addf %425, %431 : vector<32x256xf32>
    %c0_346 = arith.constant 0 : index
    %c112_347 = arith.constant 112 : index
    %433 = vector.load %arg20[%c0_346, %c112_347] : memref<32x512xf32, #tpu.memory_space<vmem>>, vector<32x256xf32>
    %c0_348 = arith.constant 0 : index
    %c1_349 = arith.constant 1 : index
    %434 = vector.load %arg17[%c0_348, %c1_349] : memref<32x9xf32, #tpu.memory_space<vmem>>, vector<32x1xf32>
    %435 = vector.broadcast %434 : vector<32x1xf32> to vector<32x256xf32>
    %436 = arith.mulf %433, %435 : vector<32x256xf32>
    %437 = arith.addf %432, %436 : vector<32x256xf32>
    %c0_350 = arith.constant 0 : index
    %c113_351 = arith.constant 113 : index
    %438 = vector.load %arg20[%c0_350, %c113_351] : memref<32x512xf32, #tpu.memory_space<vmem>>, vector<32x256xf32>
    %439 = vector.broadcast %27 : vector<1x256xf32> to vector<32x256xf32>
    %440 = arith.mulf %438, %439 : vector<32x256xf32>
    %c0_352 = arith.constant 0 : index
    %c2_353 = arith.constant 2 : index
    %441 = vector.load %arg17[%c0_352, %c2_353] : memref<32x9xf32, #tpu.memory_space<vmem>>, vector<32x1xf32>
    %442 = vector.broadcast %441 : vector<32x1xf32> to vector<32x256xf32>
    %443 = arith.mulf %440, %442 : vector<32x256xf32>
    %444 = arith.addf %437, %443 : vector<32x256xf32>
    %c0_354 = arith.constant 0 : index
    %c127_355 = arith.constant 127 : index
    %445 = vector.load %arg20[%c0_354, %c127_355] : memref<32x512xf32, #tpu.memory_space<vmem>>, vector<32x256xf32>
    %446 = vector.broadcast %23 : vector<1x256xf32> to vector<32x256xf32>
    %447 = arith.mulf %445, %446 : vector<32x256xf32>
    %c0_356 = arith.constant 0 : index
    %c3_357 = arith.constant 3 : index
    %448 = vector.load %arg17[%c0_356, %c3_357] : memref<32x9xf32, #tpu.memory_space<vmem>>, vector<32x1xf32>
    %449 = vector.broadcast %448 : vector<32x1xf32> to vector<32x256xf32>
    %450 = arith.mulf %447, %449 : vector<32x256xf32>
    %451 = arith.addf %444, %450 : vector<32x256xf32>
    %c0_358 = arith.constant 0 : index
    %c128_359 = arith.constant 128 : index
    %452 = vector.load %arg20[%c0_358, %c128_359] : memref<32x512xf32, #tpu.memory_space<vmem>>, vector<32x256xf32>
    %c0_360 = arith.constant 0 : index
    %c4_361 = arith.constant 4 : index
    %453 = vector.load %arg17[%c0_360, %c4_361] : memref<32x9xf32, #tpu.memory_space<vmem>>, vector<32x1xf32>
    %454 = vector.broadcast %453 : vector<32x1xf32> to vector<32x256xf32>
    %455 = arith.mulf %452, %454 : vector<32x256xf32>
    %456 = arith.addf %451, %455 : vector<32x256xf32>
    %c0_362 = arith.constant 0 : index
    %c129_363 = arith.constant 129 : index
    %457 = vector.load %arg20[%c0_362, %c129_363] : memref<32x512xf32, #tpu.memory_space<vmem>>, vector<32x256xf32>
    %458 = vector.broadcast %27 : vector<1x256xf32> to vector<32x256xf32>
    %459 = arith.mulf %457, %458 : vector<32x256xf32>
    %c0_364 = arith.constant 0 : index
    %c5_365 = arith.constant 5 : index
    %460 = vector.load %arg17[%c0_364, %c5_365] : memref<32x9xf32, #tpu.memory_space<vmem>>, vector<32x1xf32>
    %461 = vector.broadcast %460 : vector<32x1xf32> to vector<32x256xf32>
    %462 = arith.mulf %459, %461 : vector<32x256xf32>
    %463 = arith.addf %456, %462 : vector<32x256xf32>
    %c0_366 = arith.constant 0 : index
    %c143_367 = arith.constant 143 : index
    %464 = vector.load %arg20[%c0_366, %c143_367] : memref<32x512xf32, #tpu.memory_space<vmem>>, vector<32x256xf32>
    %465 = vector.broadcast %23 : vector<1x256xf32> to vector<32x256xf32>
    %466 = arith.mulf %464, %465 : vector<32x256xf32>
    %c0_368 = arith.constant 0 : index
    %c6_369 = arith.constant 6 : index
    %467 = vector.load %arg17[%c0_368, %c6_369] : memref<32x9xf32, #tpu.memory_space<vmem>>, vector<32x1xf32>
    %468 = vector.broadcast %467 : vector<32x1xf32> to vector<32x256xf32>
    %469 = arith.mulf %466, %468 : vector<32x256xf32>
    %470 = arith.addf %463, %469 : vector<32x256xf32>
    %c0_370 = arith.constant 0 : index
    %c144_371 = arith.constant 144 : index
    %471 = vector.load %arg20[%c0_370, %c144_371] : memref<32x512xf32, #tpu.memory_space<vmem>>, vector<32x256xf32>
    %c0_372 = arith.constant 0 : index
    %c7_373 = arith.constant 7 : index
    %472 = vector.load %arg17[%c0_372, %c7_373] : memref<32x9xf32, #tpu.memory_space<vmem>>, vector<32x1xf32>
    %473 = vector.broadcast %472 : vector<32x1xf32> to vector<32x256xf32>
    %474 = arith.mulf %471, %473 : vector<32x256xf32>
    %475 = arith.addf %470, %474 : vector<32x256xf32>
    %c0_374 = arith.constant 0 : index
    %c145_375 = arith.constant 145 : index
    %476 = vector.load %arg20[%c0_374, %c145_375] : memref<32x512xf32, #tpu.memory_space<vmem>>, vector<32x256xf32>
    %477 = vector.broadcast %27 : vector<1x256xf32> to vector<32x256xf32>
    %478 = arith.mulf %476, %477 : vector<32x256xf32>
    %c0_376 = arith.constant 0 : index
    %c8_377 = arith.constant 8 : index
    %479 = vector.load %arg17[%c0_376, %c8_377] : memref<32x9xf32, #tpu.memory_space<vmem>>, vector<32x1xf32>
    %480 = vector.broadcast %479 : vector<32x1xf32> to vector<32x256xf32>
    %481 = arith.mulf %478, %480 : vector<32x256xf32>
    %482 = arith.addf %475, %481 : vector<32x256xf32>
    %cst_378 = arith.constant dense<0.000000e+00> : vector<256xf32>
    %483 = vector.multi_reduction <add>, %482, %cst_378 [0] : vector<32x256xf32> to vector<256xf32>
    %484 = vector.shape_cast %483 : vector<256xf32> to vector<1x256xf32>
    %c0_379 = arith.constant 0 : index
    %c0_380 = arith.constant 0 : index
    %485 = vector.load %arg18[%c0_379, %c0_380] : memref<1x1xf32, #tpu.memory_space<vmem>>, vector<1x1xf32>
    %486 = vector.broadcast %485 : vector<1x1xf32> to vector<1x256xf32>
    %487 = arith.addf %484, %486 : vector<1x256xf32>
    %488 = arith.addf %43, %487 : vector<1x256xf32>
    %489 = vector.shape_cast %488 : vector<1x256xf32> to vector<1x1x256xf32>
    %c0_381 = arith.constant 0 : index
    %c0_382 = arith.constant 0 : index
    %c0_383 = arith.constant 0 : index
    %490 = vector.load %arg19[%c0_381, %c0_382, %c0_383] : memref<1x1x256xf32, #tpu.memory_space<vmem>>, vector<1x1x256xf32>
    tpu.vector_store %arg19[%c0_381, %c0_382, %c0_383], %489 {strides = array<i32>} : memref<1x1x256xf32, #tpu.memory_space<vmem>>, vector<1x1x256xf32>,
    return
  }
  func.func @transform_0(%arg0: i32) -> (i32, i32) {
    %c0_i32 = arith.constant 0 : i32
    %c0_i32_0 = arith.constant 0 : i32
    %c0_i32_1 = arith.constant 0 : i32
    return %c0_i32, %c0_i32_0 : i32, i32
  }
  func.func @transform_1(%arg0: i32) -> (i32, i32, i32) {
    %c0_i32 = arith.constant 0 : i32
    %c0_i32_0 = arith.constant 0 : i32
    %c0_i32_1 = arith.constant 0 : i32
    return %arg0, %c0_i32, %c0_i32_0 : i32, i32, i32
  }
  func.func @transform_2(%arg0: i32) -> (i32, i32, i32) {
    %c0_i32 = arith.constant 0 : i32
    %c0_i32_0 = arith.constant 0 : i32
    %c0_i32_1 = arith.constant 0 : i32
    return %arg0, %c0_i32, %c0_i32_0 : i32, i32, i32
  }
  func.func @transform_3(%arg0: i32) -> (i32, i32, i32) {
    %c0_i32 = arith.constant 0 : i32
    %c0_i32_0 = arith.constant 0 : i32
    %c0_i32_1 = arith.constant 0 : i32
    return %arg0, %c0_i32, %c0_i32_0 : i32, i32, i32
  }
  func.func @transform_4(%arg0: i32) -> (i32, i32) {
    %c0_i32 = arith.constant 0 : i32
    %c0_i32_0 = arith.constant 0 : i32
    %c0_i32_1 = arith.constant 0 : i32
    return %c0_i32, %c0_i32_0 : i32, i32
  }
  func.func @transform_5(%arg0: i32) -> (i32, i32) {
    %c0_i32 = arith.constant 0 : i32
    %c0_i32_0 = arith.constant 0 : i32
    %c0_i32_1 = arith.constant 0 : i32
    return %c0_i32, %c0_i32_0 : i32, i32
  }
  func.func @transform_6(%arg0: i32) -> (i32, i32, i32) {
    %c0_i32 = arith.constant 0 : i32
    %c0_i32_0 = arith.constant 0 : i32
    %c0_i32_1 = arith.constant 0 : i32
    %c0_i32_2 = arith.constant 0 : i32
    return %c0_i32, %c0_i32_0, %c0_i32_1 : i32, i32, i32
  }
  func.func @transform_7(%arg0: i32) -> (i32, i32) {
    %c0_i32 = arith.constant 0 : i32
    %c0_i32_0 = arith.constant 0 : i32
    %c0_i32_1 = arith.constant 0 : i32
    return %c0_i32, %c0_i32_0 : i32, i32
  }
  func.func @transform_8(%arg0: i32) -> (i32, i32, i32) {
    %c0_i32 = arith.constant 0 : i32
    %c0_i32_0 = arith.constant 0 : i32
    %c0_i32_1 = arith.constant 0 : i32
    %c0_i32_2 = arith.constant 0 : i32
    return %c0_i32, %c0_i32_0, %c0_i32_1 : i32, i32, i32
  }
  func.func @transform_9(%arg0: i32) -> (i32, i32) {
    %c0_i32 = arith.constant 0 : i32
    %c0_i32_0 = arith.constant 0 : i32
    %c0_i32_1 = arith.constant 0 : i32
    return %c0_i32, %c0_i32_0 : i32, i32
  }
  func.func @transform_10(%arg0: i32) -> (i32, i32, i32) {
    %c0_i32 = arith.constant 0 : i32
    %c0_i32_0 = arith.constant 0 : i32
    %c0_i32_1 = arith.constant 0 : i32
    %c0_i32_2 = arith.constant 0 : i32
    return %c0_i32, %c0_i32_0, %c0_i32_1 : i32, i32, i32
  }
  func.func @transform_11(%arg0: i32) -> (i32, i32) {
    %c0_i32 = arith.constant 0 : i32
    %c0_i32_0 = arith.constant 0 : i32
    %c0_i32_1 = arith.constant 0 : i32
    return %c0_i32, %c0_i32_0 : i32, i32
  }
  func.func @transform_12(%arg0: i32) -> (i32, i32, i32) {
    %c0_i32 = arith.constant 0 : i32
    %c0_i32_0 = arith.constant 0 : i32
    %c0_i32_1 = arith.constant 0 : i32
    %c0_i32_2 = arith.constant 0 : i32
    return %c0_i32, %c0_i32_0, %c0_i32_1 : i32, i32, i32
  }
  func.func @transform_13(%arg0: i32) -> (i32, i32) {
    %c0_i32 = arith.constant 0 : i32
    %c0_i32_0 = arith.constant 0 : i32
    %c0_i32_1 = arith.constant 0 : i32
    return %c0_i32, %c0_i32_0 : i32, i32
  }
  func.func @transform_14(%arg0: i32) -> (i32, i32, i32) {
    %c0_i32 = arith.constant 0 : i32
    %c0_i32_0 = arith.constant 0 : i32
    %c0_i32_1 = arith.constant 0 : i32
    %c0_i32_2 = arith.constant 0 : i32
    return %c0_i32, %c0_i32_0, %c0_i32_1 : i32, i32, i32
  }
  func.func @transform_15(%arg0: i32) -> (i32, i32) {
    %c0_i32 = arith.constant 0 : i32
    %c0_i32_0 = arith.constant 0 : i32
    %c0_i32_1 = arith.constant 0 : i32
    return %c0_i32, %c0_i32_0 : i32, i32
  }
  func.func @transform_16(%arg0: i32) -> (i32, i32) {
    %c0_i32 = arith.constant 0 : i32
    %c0_i32_0 = arith.constant 0 : i32
    %c0_i32_1 = arith.constant 0 : i32
    return %c0_i32, %c0_i32_0 : i32, i32
  }
  func.func @transform_17(%arg0: i32) -> (i32, i32) {
    %c0_i32 = arith.constant 0 : i32
    %c0_i32_0 = arith.constant 0 : i32
    %c0_i32_1 = arith.constant 0 : i32
    return %c0_i32, %c0_i32_0 : i32, i32
  }
  func.func @transform_18(%arg0: i32) -> (i32, i32, i32) {
    %c0_i32 = arith.constant 0 : i32
    %c0_i32_0 = arith.constant 0 : i32
    %c0_i32_1 = arith.constant 0 : i32
    return %arg0, %c0_i32, %c0_i32_0 : i32, i32, i32
  }
}

</mosaic_0001>

<llo_original>
// kernel: ista_2rb_forward.1
$region0: #{ista_2rb_forward.1}
  #allocation0 [shape = 'u32[]', space=smem, size = 0x4, offset = 0x4, fixed_abs, tag = 'smem constant byte address 0x4 - core index']
  #allocation1 [shape = 'u32[144,128]{1,0:T(1,128)}', space=vmem, size = 0x12000, scoped, tag = 'internal scratch']
  #allocation2 [shape = 'f32[32,512]{1,0:T(8,128)}', space=vmem, size = 0x10000, scoped, tag = 'scratch operand']
  #allocation3 [shape = 'f32[1,1]{1,0:T(1,128)S(1)}', space=vmem, size = 0x200, scoped, tag = 'scoped memory for ista_2rb_forward.1']
  #allocation4 [shape = 'f32[1,1]{1,0:T(1,128)S(1)}', space=vmem, size = 0x200, scoped, tag = 'scoped memory for ista_2rb_forward.1']
  %s0 = inlined_call_operand.<no memory space> [shape: f32[1,1], index: 0, kind: input, shape index: {}]
  %s1 = inlined_call_operand.vmem [shape: f32[2,1,256], index: 1, kind: input, shape index: {}]
  %s2 = inlined_call_operand.vmem [shape: f32[2,1,256], index: 2, kind: input, shape index: {}]
  %s3 = inlined_call_operand.vmem [shape: f32[2,1,256], index: 3, kind: input, shape index: {}]
  %s4 = inlined_call_operand.vmem [shape: f32[32,9], index: 4, kind: input, shape index: {}]
  %s5 = inlined_call_operand.vmem [shape: f32[32,1], index: 5, kind: input, shape index: {}]
  %s6 = inlined_call_operand.vmem [shape: f32[9,32,32], index: 6, kind: input, shape index: {}]
  %s7 = inlined_call_operand.vmem [shape: f32[32,1], index: 7, kind: input, shape index: {}]
  %s8 = inlined_call_operand.hbm [shape: f32[9,32,32], index: 8, kind: input, shape index: {}]
  %s9 = inlined_call_operand.vmem [shape: f32[32,1], index: 9, kind: input, shape index: {}]
  %s10 = inlined_call_operand.hbm [shape: f32[9,32,32], index: 10, kind: input, shape index: {}]
  %s11 = inlined_call_operand.vmem [shape: f32[32,1], index: 11, kind: input, shape index: {}]
  %s12 = inlined_call_operand.hbm [shape: f32[9,32,32], index: 12, kind: input, shape index: {}]
  %s13 = inlined_call_operand.vmem [shape: f32[32,1], index: 13, kind: input, shape index: {}]
  %s14 = inlined_call_operand.hbm [shape: f32[9,32,32], index: 14, kind: input, shape index: {}]
  %s15 = inlined_call_operand.vmem [shape: f32[32,1], index: 15, kind: input, shape index: {}]
  %s16 = inlined_call_operand.vmem [shape: f32[32,9], index: 16, kind: input, shape index: {}]
  %s17 = inlined_call_operand.<no memory space> [shape: f32[1,1], index: 17, kind: input, shape index: {}]
  %s18 = inlined_call_operand.vmem [shape: f32[2,1,256], index: 18, kind: output, shape index: {}]
  %s19 = sld [smem:[#allocation0]]
  $region121: #{ista_2rb_forward.1} parent=0
    _
  %s21 = ssub.s32 1, %s19
  %s22 = scalar_select 0, %s21, %s19
  %v23 = vstv %s0
  %24 = vst [vmem:[#allocation3] sm:$0x1] %v23
  %v25 = vstv %s17
  %26 = vst [vmem:[#allocation4] sm:$0x1] %v25
  $region1: #{ista_2rb_forward.1} parent=0
    #allocation5 [shape = 'u8[147456]{0}', space=vmem, size = 0x24000, scoped, tag = 'input window, operand 8, single buffered']
    #allocation6 [shape = 's32[2]{0}', space=sflag, size = 0x8, scoped, tag = 'scoped memory for ista_2rb_forward.1']
    #allocation7 [shape = 'u8[147456]{0}', space=vmem, size = 0x24000, scoped, tag = 'input window, operand 10, single buffered']
    #allocation8 [shape = 's32[1]{0}', space=sflag, size = 0x4, scoped, tag = 'scoped memory for ista_2rb_forward.1']
    #allocation9 [shape = 'u8[147456]{0}', space=vmem, size = 0x24000, scoped, tag = 'input window, operand 12, single buffered']
    #allocation10 [shape = 'u8[147456]{0}', space=vmem, size = 0x24000, scoped, tag = 'input window, operand 14, single buffered']
    #allocation11 [shape = 's32[1]{0}', space=sflag, size = 0x4, scoped, tag = 'scoped memory for ista_2rb_forward.1']
    %27 = vsyncpa [#allocation6], 0
    %28 = vsyncpa [#allocation8], 0
    %29 = vsyncpa [#allocation11], 0
    loop: start=0, step=1, limit=4
    $region2: #{ista_2rb_forward.1} parent=1 // loop_pre_header
      _
    $region3: #{ista_2rb_forward.1} parent=1 // loop_header
      %s31 = sphi 0, %s35
      %p32 = scmp.ge.s32.totalorder %s31, 4
      %s39 = sphi 0, %s39
      %s41 = sphi 0, %s39
      %s42 = sphi 0, %s41
      %s56 = sphi 0, %s42
      %s62 = sphi 0, %s64
      %s65 = sphi 0, %s62
      %s66 = sphi 0, %s65
      %s82 = sphi 0, %s66
      %s88 = sphi 0, %s90
      %s91 = sphi 0, %s88
      %s92 = sphi 0, %s91
      %s108 = sphi 0, %s92
      %s114 = sphi 0, %s116
      %s117 = sphi 0, %s114
      %s118 = sphi 0, %s117
      %s134 = sphi 0, %s118
      %s138 = sphi 0, %s138
      %s140 = sphi 0, %s138
      %s141 = sphi 0, %s140
      %s155 = sphi 0, %s141
      %s159 = sphi 0, %s159
      %s161 = sphi 0, %s159
      %s162 = sphi 0, %s161
      %s176 = sphi 0, %s162
      %s180 = sphi 0, %s180
      %s182 = sphi 0, %s180
      %s183 = sphi 0, %s182
      %s197 = sphi 0, %s183
      %s201 = sphi 0, %s201
      %s203 = sphi 0, %s201
      %s204 = sphi 0, %s203
      %s218 = sphi 0, %s204
      %s222 = sphi 0, %s222
      %s224 = sphi 0, %s222
      %s225 = sphi 0, %s224
      %s239 = sphi 0, %s225
      %s243 = sphi 0, %s243
      %s245 = sphi 0, %s243
      %s246 = sphi 0, %s245
      %s260 = sphi 0, %s246
      %s264 = sphi 0, %s264
      %s266 = sphi 0, %s264
      %s267 = sphi 0, %s266
      %s281 = sphi 0, %s267
      %s285 = sphi 0, %s285
      %s287 = sphi 0, %s285
      %s288 = sphi 0, %s287
      %s302 = sphi 0, %s288
      %s306 = sphi 0, %s306
      %s308 = sphi 0, %s306
      %s309 = sphi 0, %s308
      %s323 = sphi 0, %s309
      %s327 = sphi 0, %s327
      %s329 = sphi 0, %s327
      %s330 = sphi 0, %s329
      %s344 = sphi 0, %s330
      %s348 = sphi 0, %s348
      %s350 = sphi 0, %s348
      %s351 = sphi 0, %s350
      %s365 = sphi 0, %s351
      %s369 = sphi 0, %s369
      %s371 = sphi 0, %s369
      %s372 = sphi 0, %s371
      %s386 = sphi 0, %s372
      %s390 = sphi 0, %s390
      %s392 = sphi 0, %s390
      %s393 = sphi 0, %s392
      %s407 = sphi 0, %s393
      %s411 = sphi 0, %s411
      %s413 = sphi 0, %s411
      %s414 = sphi 0, %s413
      %s428 = sphi 0, %s414
      %s434 = sphi 0, %s436
      %s437 = sphi 0, %s434
      %s438 = sphi 0, %s437
      %s454 = sphi 0, %s438
    $region4: #{ista_2rb_forward.1} parent=1 // loop_header_branch
      %34 = sbr.rel (%p32) target = $region8
    $region5: #{ista_2rb_forward.1} parent=1 // loop_body
      %s36 = ssub.s32 %s31, 1
      %s37 = ssub.s32 %s31, 2
      %s38 = sadd.s32 %s31, 1
      %s40 = sadd.s32 %s39, 1
      %p43 = scmp.eq.s32.totalorder %s31, 1
      %p44 = scmp.ne.s32.totalorder %s39, %s41
      %p45 = scmp.eq.s32.totalorder %s31, 0
      %p46 = por %p44, %p45
      %p47 = scmp.ne.s32.totalorder %s39, %s41
      %p48 = scmp.eq.s32.totalorder %s36, 1
      %p49 = por %p47, %p48
      %p50 = scmp.ne.s32.totalorder %s41, %s42
      %p51 = scmp.eq.s32.totalorder %s36, 0
      %p52 = por %p50, %p51
      %p53 = scmp.ne.s32.totalorder %s41, %s42
      %p54 = scmp.eq.s32.totalorder %s37, 1
      %p55 = por %p53, %p54
      %p57 = scmp.ne.s32.totalorder %s42, %s56
      %p58 = scmp.eq.s32.totalorder %s37, 0
      %p59 = por %p57, %p58
      %s60 = ssub.s32 %s31, %s38
      %p61 = scmp.eq.s32.totalorder %s60, 0
      %s63 = sadd.s32 %s62, 1
      %s64 = scalar_select %p61, %s62, %s63
      %p67 = pneg %p61
      %p68 = scmp.eq.s32.totalorder %s31, 1
      %p69 = por %p67, %p68
      %p70 = scmp.ne.s32.totalorder %s62, %s65
      %p71 = scmp.eq.s32.totalorder %s31, 0
      %p72 = por %p70, %p71
      %p73 = scmp.ne.s32.totalorder %s62, %s65
      %p74 = scmp.eq.s32.totalorder %s36, 1
      %p75 = por %p73, %p74
      %p76 = scmp.ne.s32.totalorder %s65, %s66
      %p77 = scmp.eq.s32.totalorder %s36, 0
      %p78 = por %p76, %p77
      %p79 = scmp.ne.s32.totalorder %s65, %s66
      %p80 = scmp.eq.s32.totalorder %s37, 1
      %p81 = por %p79, %p80
      %p83 = scmp.ne.s32.totalorder %s66, %s82
      %p84 = scmp.eq.s32.totalorder %s37, 0
      %p85 = por %p83, %p84
      %s86 = ssub.s32 %s31, %s38
      %p87 = scmp.eq.s32.totalorder %s86, 0
      %s89 = sadd.s32 %s88, 1
      %s90 = scalar_select %p87, %s88, %s89
      %p93 = pneg %p87
      %p94 = scmp.eq.s32.totalorder %s31, 1
      %p95 = por %p93, %p94
      %p96 = scmp.ne.s32.totalorder %s88, %s91
      %p97 = scmp.eq.s32.totalorder %s31, 0
      %p98 = por %p96, %p97
      %p99 = scmp.ne.s32.totalorder %s88, %s91
      %p100 = scmp.eq.s32.totalorder %s36, 1
      %p101 = por %p99, %p100
      %p102 = scmp.ne.s32.totalorder %s91, %s92
      %p103 = scmp.eq.s32.totalorder %s36, 0
      %p104 = por %p102, %p103
      %p105 = scmp.ne.s32.totalorder %s91, %s92
      %p106 = scmp.eq.s32.totalorder %s37, 1
      %p107 = por %p105, %p106
      %p109 = scmp.ne.s32.totalorder %s92, %s108
      %p110 = scmp.eq.s32.totalorder %s37, 0
      %p111 = por %p109, %p110
      %s112 = ssub.s32 %s31, %s38
      %p113 = scmp.eq.s32.totalorder %s112, 0
      %s115 = sadd.s32 %s114, 1
      %s116 = scalar_select %p113, %s114, %s115
      %p119 = pneg %p113
      %p120 = scmp.eq.s32.totalorder %s31, 1
      %p121 = por %p119, %p120
      %p122 = scmp.ne.s32.totalorder %s114, %s117
      %p123 = scmp.eq.s32.totalorder %s31, 0
      %p124 = por %p122, %p123
      %p125 = scmp.ne.s32.totalorder %s114, %s117
      %p126 = scmp.eq.s32.totalorder %s36, 1
      %p127 = por %p125, %p126
      %p128 = scmp.ne.s32.totalorder %s117, %s118
      %p129 = scmp.eq.s32.totalorder %s36, 0
      %p130 = por %p128, %p129
      %p131 = scmp.ne.s32.totalorder %s117, %s118
      %p132 = scmp.eq.s32.totalorder %s37, 1
      %p133 = por %p131, %p132
      %p135 = scmp.ne.s32.totalorder %s118, %s134
      %p136 = scmp.eq.s32.totalorder %s37, 0
      %p137 = por %p135, %p136
      %s139 = sadd.s32 %s138, 1
      %p142 = scmp.eq.s32.totalorder %s31, 1
      %p143 = scmp.ne.s32.totalorder %s138, %s140
      %p144 = scmp.eq.s32.totalorder %s31, 0
      %p145 = por %p143, %p144
      %p146 = scmp.ne.s32.totalorder %s138, %s140
      %p147 = scmp.eq.s32.totalorder %s36, 1
      %p148 = por %p146, %p147
      %p149 = scmp.ne.s32.totalorder %s140, %s141
      %p150 = scmp.eq.s32.totalorder %s36, 0
      %p151 = por %p149, %p150
      %p152 = scmp.ne.s32.totalorder %s140, %s141
      %p153 = scmp.eq.s32.totalorder %s37, 1
      %p154 = por %p152, %p153
      %p156 = scmp.ne.s32.totalorder %s141, %s155
      %p157 = scmp.eq.s32.totalorder %s37, 0
      %p158 = por %p156, %p157
      %s160 = sadd.s32 %s159, 1
      %p163 = scmp.eq.s32.totalorder %s31, 1
      %p164 = scmp.ne.s32.totalorder %s159, %s161
      %p165 = scmp.eq.s32.totalorder %s31, 0
      %p166 = por %p164, %p165
      %p167 = scmp.ne.s32.totalorder %s159, %s161
      %p168 = scmp.eq.s32.totalorder %s36, 1
      %p169 = por %p167, %p168
      %p170 = scmp.ne.s32.totalorder %s161, %s162
      %p171 = scmp.eq.s32.totalorder %s36, 0
      %p172 = por %p170, %p171
      %p173 = scmp.ne.s32.totalorder %s161, %s162
      %p174 = scmp.eq.s32.totalorder %s37, 1
      %p175 = por %p173, %p174
      %p177 = scmp.ne.s32.totalorder %s162, %s176
      %p178 = scmp.eq.s32.totalorder %s37, 0
      %p179 = por %p177, %p178
      %s181 = sadd.s32 %s180, 1
      %p184 = scmp.eq.s32.totalorder %s31, 1
      %p185 = scmp.ne.s32.totalorder %s180, %s182
      %p186 = scmp.eq.s32.totalorder %s31, 0
      %p187 = por %p185, %p186
      %p188 = scmp.ne.s32.totalorder %s180, %s182
      %p189 = scmp.eq.s32.totalorder %s36, 1
      %p190 = por %p188, %p189
      %p191 = scmp.ne.s32.totalorder %s182, %s183
      %p192 = scmp.eq.s32.totalorder %s36, 0
      %p193 = por %p191, %p192
      %p194 = scmp.ne.s32.totalorder %s182, %s183
      %p195 = scmp.eq.s32.totalorder %s37, 1
      %p196 = por %p194, %p195
      %p198 = scmp.ne.s32.totalorder %s183, %s197
      %p199 = scmp.eq.s32.totalorder %s37, 0
      %p200 = por %p198, %p199
      %s202 = sadd.s32 %s201, 1
      %p205 = scmp.eq.s32.totalorder %s31, 1
      %p206 = scmp.ne.s32.totalorder %s201, %s203
      %p207 = scmp.eq.s32.totalorder %s31, 0
      %p208 = por %p206, %p207
      %p209 = scmp.ne.s32.totalorder %s201, %s203
      %p210 = scmp.eq.s32.totalorder %s36, 1
      %p211 = por %p209, %p210
      %p212 = scmp.ne.s32.totalorder %s203, %s204
      %p213 = scmp.eq.s32.totalorder %s36, 0
      %p214 = por %p212, %p213
      %p215 = scmp.ne.s32.totalorder %s203, %s204
      %p216 = scmp.eq.s32.totalorder %s37, 1
      %p217 = por %p215, %p216
      %p219 = scmp.ne.s32.totalorder %s204, %s218
      %p220 = scmp.eq.s32.totalorder %s37, 0
      %p221 = por %p219, %p220
      %s223 = sadd.s32 %s222, 1
      %p226 = scmp.eq.s32.totalorder %s31, 1
      %p227 = scmp.ne.s32.totalorder %s222, %s224
      %p228 = scmp.eq.s32.totalorder %s31, 0
      %p229 = por %p227, %p228
      %p230 = scmp.ne.s32.totalorder %s222, %s224
      %p231 = scmp.eq.s32.totalorder %s36, 1
      %p232 = por %p230, %p231
      %p233 = scmp.ne.s32.totalorder %s224, %s225
      %p234 = scmp.eq.s32.totalorder %s36, 0
      %p235 = por %p233, %p234
      %p236 = scmp.ne.s32.totalorder %s224, %s225
      %p237 = scmp.eq.s32.totalorder %s37, 1
      %p238 = por %p236, %p237
      %p240 = scmp.ne.s32.totalorder %s225, %s239
      %p241 = scmp.eq.s32.totalorder %s37, 0
      %p242 = por %p240, %p241
      %s244 = sadd.s32 %s243, 1
      %p247 = scmp.eq.s32.totalorder %s31, 1
      %p248 = scmp.ne.s32.totalorder %s243, %s245
      %p249 = scmp.eq.s32.totalorder %s31, 0
      %p250 = por %p248, %p249
      %p251 = scmp.ne.s32.totalorder %s243, %s245
      %p252 = scmp.eq.s32.totalorder %s36, 1
      %p253 = por %p251, %p252
      %p254 = scmp.ne.s32.totalorder %s245, %s246
      %p255 = scmp.eq.s32.totalorder %s36, 0
      %p256 = por %p254, %p255
      %p257 = scmp.ne.s32.totalorder %s245, %s246
      %p258 = scmp.eq.s32.totalorder %s37, 1
      %p259 = por %p257, %p258
      %p261 = scmp.ne.s32.totalorder %s246, %s260
      %p262 = scmp.eq.s32.totalorder %s37, 0
      %p263 = por %p261, %p262
      %s265 = sadd.s32 %s264, 1
      %p268 = scmp.eq.s32.totalorder %s31, 1
      %p269 = scmp.ne.s32.totalorder %s264, %s266
      %p270 = scmp.eq.s32.totalorder %s31, 0
      %p271 = por %p269, %p270
      %p272 = scmp.ne.s32.totalorder %s264, %s266
      %p273 = scmp.eq.s32.totalorder %s36, 1
      %p274 = por %p272, %p273
      %p275 = scmp.ne.s32.totalorder %s266, %s267
      %p276 = scmp.eq.s32.totalorder %s36, 0
      %p277 = por %p275, %p276
      %p278 = scmp.ne.s32.totalorder %s266, %s267
      %p279 = scmp.eq.s32.totalorder %s37, 1
      %p280 = por %p278, %p279
      %p282 = scmp.ne.s32.totalorder %s267, %s281
      %p283 = scmp.eq.s32.totalorder %s37, 0
      %p284 = por %p282, %p283
      %s286 = sadd.s32 %s285, 1
      %p289 = scmp.eq.s32.totalorder %s31, 1
      %p290 = scmp.ne.s32.totalorder %s285, %s287
      %p291 = scmp.eq.s32.totalorder %s31, 0
      %p292 = por %p290, %p291
      %p293 = scmp.ne.s32.totalorder %s285, %s287
      %p294 = scmp.eq.s32.totalorder %s36, 1
      %p295 = por %p293, %p294
      %p296 = scmp.ne.s32.totalorder %s287, %s288
      %p297 = scmp.eq.s32.totalorder %s36, 0
      %p298 = por %p296, %p297
      %p299 = scmp.ne.s32.totalorder %s287, %s288
      %p300 = scmp.eq.s32.totalorder %s37, 1
      %p301 = por %p299, %p300
      %p303 = scmp.ne.s32.totalorder %s288, %s302
      %p304 = scmp.eq.s32.totalorder %s37, 0
      %p305 = por %p303, %p304
      %s307 = sadd.s32 %s306, 1
      %p310 = scmp.eq.s32.totalorder %s31, 1
      %p311 = scmp.ne.s32.totalorder %s306, %s308
      %p312 = scmp.eq.s32.totalorder %s31, 0
      %p313 = por %p311, %p312
      %p314 = scmp.ne.s32.totalorder %s306, %s308
      %p315 = scmp.eq.s32.totalorder %s36, 1
      %p316 = por %p314, %p315
      %p317 = scmp.ne.s32.totalorder %s308, %s309
      %p318 = scmp.eq.s32.totalorder %s36, 0
      %p319 = por %p317, %p318
      %p320 = scmp.ne.s32.totalorder %s308, %s309
      %p321 = scmp.eq.s32.totalorder %s37, 1
      %p322 = por %p320, %p321
      %p324 = scmp.ne.s32.totalorder %s309, %s323
      %p325 = scmp.eq.s32.totalorder %s37, 0
      %p326 = por %p324, %p325
      %s328 = sadd.s32 %s327, 1
      %p331 = scmp.eq.s32.totalorder %s31, 1
      %p332 = scmp.ne.s32.totalorder %s327, %s329
      %p333 = scmp.eq.s32.totalorder %s31, 0
      %p334 = por %p332, %p333
      %p335 = scmp.ne.s32.totalorder %s327, %s329
      %p336 = scmp.eq.s32.totalorder %s36, 1
      %p337 = por %p335, %p336
      %p338 = scmp.ne.s32.totalorder %s329, %s330
      %p339 = scmp.eq.s32.totalorder %s36, 0
      %p340 = por %p338, %p339
      %p341 = scmp.ne.s32.totalorder %s329, %s330
      %p342 = scmp.eq.s32.totalorder %s37, 1
      %p343 = por %p341, %p342
      %p345 = scmp.ne.s32.totalorder %s330, %s344
      %p346 = scmp.eq.s32.totalorder %s37, 0
      %p347 = por %p345, %p346
      %s349 = sadd.s32 %s348, 1
      %p352 = scmp.eq.s32.totalorder %s31, 1
      %p353 = scmp.ne.s32.totalorder %s348, %s350
      %p354 = scmp.eq.s32.totalorder %s31, 0
      %p355 = por %p353, %p354
      %p356 = scmp.ne.s32.totalorder %s348, %s350
      %p357 = scmp.eq.s32.totalorder %s36, 1
      %p358 = por %p356, %p357
      %p359 = scmp.ne.s32.totalorder %s350, %s351
      %p360 = scmp.eq.s32.totalorder %s36, 0
      %p361 = por %p359, %p360
      %p362 = scmp.ne.s32.totalorder %s350, %s351
      %p363 = scmp.eq.s32.totalorder %s37, 1
      %p364 = por %p362, %p363
      %p366 = scmp.ne.s32.totalorder %s351, %s365
      %p367 = scmp.eq.s32.totalorder %s37, 0
      %p368 = por %p366, %p367
      %s370 = sadd.s32 %s369, 1
      %p373 = scmp.eq.s32.totalorder %s31, 1
      %p374 = scmp.ne.s32.totalorder %s369, %s371
      %p375 = scmp.eq.s32.totalorder %s31, 0
      %p376 = por %p374, %p375
      %p377 = scmp.ne.s32.totalorder %s369, %s371
      %p378 = scmp.eq.s32.totalorder %s36, 1
      %p379 = por %p377, %p378
      %p380 = scmp.ne.s32.totalorder %s371, %s372
      %p381 = scmp.eq.s32.totalorder %s36, 0
      %p382 = por %p380, %p381
      %p383 = scmp.ne.s32.totalorder %s371, %s372
      %p384 = scmp.eq.s32.totalorder %s37, 1
      %p385 = por %p383, %p384
      %p387 = scmp.ne.s32.totalorder %s372, %s386
      %p388 = scmp.eq.s32.totalorder %s37, 0
      %p389 = por %p387, %p388
      %s391 = sadd.s32 %s390, 1
      %p394 = scmp.eq.s32.totalorder %s31, 1
      %p395 = scmp.ne.s32.totalorder %s390, %s392
      %p396 = scmp.eq.s32.totalorder %s31, 0
      %p397 = por %p395, %p396
      %p398 = scmp.ne.s32.totalorder %s390, %s392
      %p399 = scmp.eq.s32.totalorder %s36, 1
      %p400 = por %p398, %p399
      %p401 = scmp.ne.s32.totalorder %s392, %s393
      %p402 = scmp.eq.s32.totalorder %s36, 0
      %p403 = por %p401, %p402
      %p404 = scmp.ne.s32.totalorder %s392, %s393
      %p405 = scmp.eq.s32.totalorder %s37, 1
      %p406 = por %p404, %p405
      %p408 = scmp.ne.s32.totalorder %s393, %s407
      %p409 = scmp.eq.s32.totalorder %s37, 0
      %p410 = por %p408, %p409
      %s412 = sadd.s32 %s411, 1
      %p415 = scmp.eq.s32.totalorder %s31, 1
      %p416 = scmp.ne.s32.totalorder %s411, %s413
      %p417 = scmp.eq.s32.totalorder %s31, 0
      %p418 = por %p416, %p417
      %p419 = scmp.ne.s32.totalorder %s411, %s413
      %p420 = scmp.eq.s32.totalorder %s36, 1
      %p421 = por %p419, %p420
      %p422 = scmp.ne.s32.totalorder %s413, %s414
      %p423 = scmp.eq.s32.totalorder %s36, 0
      %p424 = por %p422, %p423
      %p425 = scmp.ne.s32.totalorder %s413, %s414
      %p426 = scmp.eq.s32.totalorder %s37, 1
      %p427 = por %p425, %p426
      %p429 = scmp.ne.s32.totalorder %s414, %s428
      %p430 = scmp.eq.s32.totalorder %s37, 0
      %p431 = por %p429, %p430
      %s432 = ssub.s32 %s31, %s38
      %p433 = scmp.eq.s32.totalorder %s432, 0
      %s435 = sadd.s32 %s434, 1
      %s436 = scalar_select %p433, %s434, %s435
      %p439 = pneg %p433
      %p440 = scmp.eq.s32.totalorder %s31, 1
      %p441 = por %p439, %p440
      %p442 = scmp.ne.s32.totalorder %s434, %s437
      %p443 = scmp.eq.s32.totalorder %s31, 0
      %p444 = por %p442, %p443
      %p445 = scmp.ne.s32.totalorder %s434, %s437
      %p446 = scmp.eq.s32.totalorder %s36, 1
      %p447 = por %p445, %p446
      %p448 = scmp.ne.s32.totalorder %s437, %s438
      %p449 = scmp.eq.s32.totalorder %s36, 0
      %p450 = por %p448, %p449
      %p451 = scmp.ne.s32.totalorder %s437, %s438
      %p452 = scmp.eq.s32.totalorder %s37, 1
      %p453 = por %p451, %p452
      %p455 = scmp.ne.s32.totalorder %s438, %s454
      %p456 = scmp.eq.s32.totalorder %s37, 0
      %p457 = por %p455, %p456
      %p458 = scmp.le.s32.totalorder 1, %s31
      %p459 = scmp.lt.s32.totalorder %s31, 3
      %p460 = pnand %p458, %p459
      %p461 = pneg %p460
      // Predicated region
      $region9: #{ista_2rb_forward.1} parent=5 // pred_check
        _
      $region10: #{ista_2rb_forward.1} parent=5 // pred_check_branch
        %463 = sbr.rel (%p460) target = $region12
      $region11: #{ista_2rb_forward.1} parent=5 // pred_region
        %s464 = ssub.s32 %s31, 1
        // Predicated region
        $region13: #{ista_2rb_forward.1} parent=11 // pred_check
          %p465 = pneg %p52
        $region14: #{ista_2rb_forward.1} parent=11 // pred_check_branch
          %467 = sbr.rel (%p465) target = $region16
        $region15: #{ista_2rb_forward.1} parent=11 // pred_region
          _
        $region16: #{ista_2rb_forward.1} parent=11 // pred_fallthru
          _
        // Predicated region
        $region17: #{ista_2rb_forward.1} parent=11 // pred_check
          %p468 = pneg %p151
        $region18: #{ista_2rb_forward.1} parent=11 // pred_check_branch
          %470 = sbr.rel (%p468) target = $region20
        $region19: #{ista_2rb_forward.1} parent=11 // pred_region
          _
        $region20: #{ista_2rb_forward.1} parent=11 // pred_fallthru
          _
        // Predicated region
        $region21: #{ista_2rb_forward.1} parent=11 // pred_check
          %p471 = pneg %p172
        $region22: #{ista_2rb_forward.1} parent=11 // pred_check_branch
          %473 = sbr.rel (%p471) target = $region24
        $region23: #{ista_2rb_forward.1} parent=11 // pred_region
          _
        $region24: #{ista_2rb_forward.1} parent=11 // pred_fallthru
          _
        // Predicated region
        $region25: #{ista_2rb_forward.1} parent=11 // pred_check
          %p474 = pneg %p193
        $region26: #{ista_2rb_forward.1} parent=11 // pred_check_branch
          %476 = sbr.rel (%p474) target = $region28
        $region27: #{ista_2rb_forward.1} parent=11 // pred_region
          _
        $region28: #{ista_2rb_forward.1} parent=11 // pred_fallthru
          _
        // Predicated region
        $region29: #{ista_2rb_forward.1} parent=11 // pred_check
          %p477 = pneg %p214
        $region30: #{ista_2rb_forward.1} parent=11 // pred_check_branch
          %479 = sbr.rel (%p477) target = $region32
        $region31: #{ista_2rb_forward.1} parent=11 // pred_region
          _
        $region32: #{ista_2rb_forward.1} parent=11 // pred_fallthru
          _
        // Predicated region
        $region33: #{ista_2rb_forward.1} parent=11 // pred_check
          %p480 = pneg %p235
        $region34: #{ista_2rb_forward.1} parent=11 // pred_check_branch
          %482 = sbr.rel (%p480) target = $region36
        $region35: #{ista_2rb_forward.1} parent=11 // pred_region
          %s484 = ssub.s32 4608, 4608
          %485 = vsyncadd [#allocation6], %s484
          %s486 = sshll.u32 [#allocation5], 4
          %s487 = int_to_ptr.vmem [resolvable:$true] %s486
          %492 = dma.hbm_to_vmem [thread:$0]  %s8, 4608, %s487, [#allocation6], 128, 128, 8
        $region36: #{ista_2rb_forward.1} parent=11 // pred_fallthru
          _
        // Predicated region
        $region37: #{ista_2rb_forward.1} parent=11 // pred_check
          %p493 = pneg %p256
        $region38: #{ista_2rb_forward.1} parent=11 // pred_check_branch
          %495 = sbr.rel (%p493) target = $region40
        $region39: #{ista_2rb_forward.1} parent=11 // pred_region
          _
        $region40: #{ista_2rb_forward.1} parent=11 // pred_fallthru
          _
        // Predicated region
        $region41: #{ista_2rb_forward.1} parent=11 // pred_check
          %p496 = pneg %p277
        $region42: #{ista_2rb_forward.1} parent=11 // pred_check_branch
          %498 = sbr.rel (%p496) target = $region44
        $region43: #{ista_2rb_forward.1} parent=11 // pred_region
          %s500 = ssub.s32 4608, 4608
          %501 = vsyncadd [#allocation8], %s500
          %s502 = sshll.u32 [#allocation7], 4
          %s503 = int_to_ptr.vmem [resolvable:$true] %s502
          %508 = dma.hbm_to_vmem [thread:$0]  %s10, 4608, %s503, [#allocation8], 128, 128, 8
        $region44: #{ista_2rb_forward.1} parent=11 // pred_fallthru
          _
        // Predicated region
        $region45: #{ista_2rb_forward.1} parent=11 // pred_check
          %p509 = pneg %p298
        $region46: #{ista_2rb_forward.1} parent=11 // pred_check_branch
          %511 = sbr.rel (%p509) target = $region48
        $region47: #{ista_2rb_forward.1} parent=11 // pred_region
          _
        $region48: #{ista_2rb_forward.1} parent=11 // pred_fallthru
          _
        // Predicated region
        $region49: #{ista_2rb_forward.1} parent=11 // pred_check
          %p512 = pneg %p319
        $region50: #{ista_2rb_forward.1} parent=11 // pred_check_branch
          %514 = sbr.rel (%p512) target = $region52
        $region51: #{ista_2rb_forward.1} parent=11 // pred_region
          %s516 = ssub.s32 4608, 4608
          %517 = vsyncadd [#allocation8], %s516
          %s518 = sshll.u32 [#allocation9], 4
          %s519 = int_to_ptr.vmem [resolvable:$true] %s518
          %524 = dma.hbm_to_vmem [thread:$0]  %s12, 4608, %s519, [#allocation8], 128, 128, 8
        $region52: #{ista_2rb_forward.1} parent=11 // pred_fallthru
          _
        // Predicated region
        $region53: #{ista_2rb_forward.1} parent=11 // pred_check
          %p525 = pneg %p340
        $region54: #{ista_2rb_forward.1} parent=11 // pred_check_branch
          %527 = sbr.rel (%p525) target = $region56
        $region55: #{ista_2rb_forward.1} parent=11 // pred_region
          _
        $region56: #{ista_2rb_forward.1} parent=11 // pred_fallthru
          _
        // Predicated region
        $region57: #{ista_2rb_forward.1} parent=11 // pred_check
          %p528 = pneg %p361
        $region58: #{ista_2rb_forward.1} parent=11 // pred_check_branch
          %530 = sbr.rel (%p528) target = $region60
        $region59: #{ista_2rb_forward.1} parent=11 // pred_region
          %s532 = ssub.s32 4608, 4608
          %533 = vsyncadd [#allocation11], %s532
          %s534 = sshll.u32 [#allocation10], 4
          %s535 = int_to_ptr.vmem [resolvable:$true] %s534
          %540 = dma.hbm_to_vmem [thread:$0]  %s14, 4608, %s535, [#allocation11], 128, 128, 8
        $region60: #{ista_2rb_forward.1} parent=11 // pred_fallthru
          _
        // Predicated region
        $region61: #{ista_2rb_forward.1} parent=11 // pred_check
          %p541 = pneg %p382
        $region62: #{ista_2rb_forward.1} parent=11 // pred_check_branch
          %543 = sbr.rel (%p541) target = $region64
        $region63: #{ista_2rb_forward.1} parent=11 // pred_region
          _
        $region64: #{ista_2rb_forward.1} parent=11 // pred_fallthru
          _
        // Predicated region
        $region65: #{ista_2rb_forward.1} parent=11 // pred_check
          %p544 = pneg %p403
        $region66: #{ista_2rb_forward.1} parent=11 // pred_check_branch
          %546 = sbr.rel (%p544) target = $region68
        $region67: #{ista_2rb_forward.1} parent=11 // pred_region
          _
        $region68: #{ista_2rb_forward.1} parent=11 // pred_fallthru
          _
        // Predicated region
        $region69: #{ista_2rb_forward.1} parent=11 // pred_check
          %p547 = pneg %p424
        $region70: #{ista_2rb_forward.1} parent=11 // pred_check_branch
          %549 = sbr.rel (%p547) target = $region72
        $region71: #{ista_2rb_forward.1} parent=11 // pred_region
          _
        $region72: #{ista_2rb_forward.1} parent=11 // pred_fallthru
          _
      $region12: #{ista_2rb_forward.1} parent=5 // pred_fallthru
        _
      %p550 = scmp.lt.s32.totalorder %s31, 2
      // Predicated region
      $region73: #{ista_2rb_forward.1} parent=5 // pred_check
        %p551 = pneg %p550
      $region74: #{ista_2rb_forward.1} parent=5 // pred_check_branch
        %553 = sbr.rel (%p551) target = $region76
      $region75: #{ista_2rb_forward.1} parent=5 // pred_region
        // Predicated region
        $region77: #{ista_2rb_forward.1} parent=75 // pred_check
          %p554 = pneg %p72
        $region78: #{ista_2rb_forward.1} parent=75 // pred_check_branch
          %556 = sbr.rel (%p554) target = $region80
        $region79: #{ista_2rb_forward.1} parent=75 // pred_region
          %p557 = scmp.lt.s32.totalorder %s31, 1
          %s558 = scalar_select %p557, %s31, 1
          %s559 = smul.addr %s558, 2
          %s560 = scalar_lea.vmem %s1, %s559
        $region80: #{ista_2rb_forward.1} parent=75 // pred_fallthru
          _
        // Predicated region
        $region81: #{ista_2rb_forward.1} parent=75 // pred_check
          %p561 = pneg %p98
        $region82: #{ista_2rb_forward.1} parent=75 // pred_check_branch
          %563 = sbr.rel (%p561) target = $region84
        $region83: #{ista_2rb_forward.1} parent=75 // pred_region
          %p564 = scmp.lt.s32.totalorder %s31, 1
          %s565 = scalar_select %p564, %s31, 1
          %s566 = smul.addr %s565, 2
          %s567 = scalar_lea.vmem %s2, %s566
        $region84: #{ista_2rb_forward.1} parent=75 // pred_fallthru
          _
        // Predicated region
        $region85: #{ista_2rb_forward.1} parent=75 // pred_check
          %p568 = pneg %p124
        $region86: #{ista_2rb_forward.1} parent=75 // pred_check_branch
          %570 = sbr.rel (%p568) target = $region88
        $region87: #{ista_2rb_forward.1} parent=75 // pred_region
          %p571 = scmp.lt.s32.totalorder %s31, 1
          %s572 = scalar_select %p571, %s31, 1
          %s573 = smul.addr %s572, 2
          %s574 = scalar_lea.vmem %s3, %s573
        $region88: #{ista_2rb_forward.1} parent=75 // pred_fallthru
          _
      $region76: #{ista_2rb_forward.1} parent=5 // pred_fallthru
        _
      %p575 = scmp.le.s32.totalorder 1, %s31
      %p576 = scmp.lt.s32.totalorder %s31, 3
      %p577 = pnand %p575, %p576
      %p578 = pneg %p577
      // Predicated region
      $region89: #{ista_2rb_forward.1} parent=5 // pred_check
        _
      $region90: #{ista_2rb_forward.1} parent=5 // pred_check_branch
        %580 = sbr.rel (%p577) target = $region92
      $region91: #{ista_2rb_forward.1} parent=5 // pred_region
        %s581 = ssub.s32 %s31, 1
        // Predicated region
        $region93: #{ista_2rb_forward.1} parent=91 // pred_check
          %p582 = pneg %p235
        $region94: #{ista_2rb_forward.1} parent=91 // pred_check_branch
          %584 = sbr.rel (%p582) target = $region96
        $region95: #{ista_2rb_forward.1} parent=91 // pred_region
          %585 = dma.done [#allocation6], 4608
        $region96: #{ista_2rb_forward.1} parent=91 // pred_fallthru
          _
        // Predicated region
        $region97: #{ista_2rb_forward.1} parent=91 // pred_check
          %p586 = pneg %p277
        $region98: #{ista_2rb_forward.1} parent=91 // pred_check_branch
          %588 = sbr.rel (%p586) target = $region100
        $region99: #{ista_2rb_forward.1} parent=91 // pred_region
          %589 = dma.done [#allocation8], 4608
        $region100: #{ista_2rb_forward.1} parent=91 // pred_fallthru
          _
        // Predicated region
        $region101: #{ista_2rb_forward.1} parent=91 // pred_check
          %p590 = pneg %p319
        $region102: #{ista_2rb_forward.1} parent=91 // pred_check_branch
          %592 = sbr.rel (%p590) target = $region104
        $region103: #{ista_2rb_forward.1} parent=91 // pred_region
          %593 = dma.done [#allocation8], 4608
        $region104: #{ista_2rb_forward.1} parent=91 // pred_fallthru
          _
        // Predicated region
        $region105: #{ista_2rb_forward.1} parent=91 // pred_check
          %p594 = pneg %p361
        $region106: #{ista_2rb_forward.1} parent=91 // pred_check_branch
          %596 = sbr.rel (%p594) target = $region108
        $region107: #{ista_2rb_forward.1} parent=91 // pred_region
          %597 = dma.done [#allocation11], 4608
        $region108: #{ista_2rb_forward.1} parent=91 // pred_fallthru
          _
        %p598 = pneg %p52
        %p599 = pneg %p49
        %p600 = scmp.lt.s32.totalorder %s36, 1
        %s601 = scalar_select %p600, %s36, 1
        %s602 = smul.addr %s601, 2
        %s603 = scalar_lea.vmem %s1, %s602
        %p604 = pneg %p78
        %p605 = pneg %p75
        %p606 = scmp.lt.s32.totalorder %s36, 1
        %s607 = scalar_select %p606, %s36, 1
        %s608 = smul.addr %s607, 2
        %s609 = scalar_lea.vmem %s2, %s608
        %p610 = pneg %p104
        %p611 = pneg %p101
        %p612 = scmp.lt.s32.totalorder %s36, 1
        %s613 = scalar_select %p612, %s36, 1
        %s614 = smul.addr %s613, 2
        %s615 = scalar_lea.vmem %s3, %s614
        %p616 = pneg %p130
        %p617 = pneg %p127
        %p618 = pneg %p151
        %p619 = pneg %p148
        %p620 = pneg %p172
        %p621 = pneg %p169
        %p622 = pneg %p193
        %p623 = pneg %p190
        %p624 = pneg %p214
        %p625 = pneg %p211
        %p626 = pneg %p235
        %p627 = pneg %p232
        %p628 = pneg %p256
        %p629 = pneg %p253
        %p630 = pneg %p277
        %p631 = pneg %p274
        %p632 = pneg %p298
        %p633 = pneg %p295
        %p634 = pneg %p319
        %p635 = pneg %p316
        %p636 = pneg %p340
        %p637 = pneg %p337
        %p638 = pneg %p361
        %p639 = pneg %p358
        %p640 = pneg %p382
        %p641 = pneg %p379
        %p642 = pneg %p403
        %p643 = pneg %p400
        %p644 = pneg %p424
        %p645 = pneg %p421
        %p646 = pneg %p450
        %p647 = pneg %p447
        %p648 = scmp.lt.s32.totalorder %s36, 1
        %s649 = scalar_select %p648, %s36, 1
        %s650 = smul.addr %s649, 2
        %s651 = scalar_lea.vmem %s18, %s650
        %p652 = scmp.lt.s32.totalorder %s36, 1
        %s653 = scalar_select %p652, %s36, 1
        %s654 = smul.addr %s653, 2
        %s655 = scalar_lea.vmem %s1, %s654
        %p656 = scmp.lt.s32.totalorder %s36, 1
        %s657 = scalar_select %p656, %s36, 1
        %s658 = smul.addr %s657, 2
        %s659 = scalar_lea.vmem %s2, %s658
        %p660 = scmp.lt.s32.totalorder %s36, 1
        %s661 = scalar_select %p660, %s36, 1
        %s662 = smul.addr %s661, 2
        %s663 = scalar_lea.vmem %s3, %s662
        %p664 = scmp.lt.s32.totalorder %s36, 1
        %s665 = scalar_select %p664, %s36, 1
        %s666 = smul.addr %s665, 2
        %s667 = scalar_lea.vmem %s18, %s666
        %668 = vst [vmem:[#allocation2] sm:$0xff] 0.0
        %669 = vst [vmem:[#allocation2 + $0x20] sm:$0xff] 0.0
        %670 = vst [vmem:[#allocation2 + $0x40] sm:$0xff] 0.0
        %671 = vst [vmem:[#allocation2 + $0x60] sm:$0xff] 0.0
        %672 = vst [vmem:[#allocation2 + $0x18] sm:$0xff] 0.0
        %673 = vst [vmem:[#allocation2 + $0x38] sm:$0xff] 0.0
        %674 = vst [vmem:[#allocation2 + $0x58] sm:$0xff] 0.0
        %675 = vst [vmem:[#allocation2 + $0x78] sm:$0xff] 0.0
        %v676 = vlaneseq
        %v677 = vand.u32 %v676, 127
        %v678 = vadd.s32 %v677, 128
        %vm679 = vcmp.lt.s32.totalorder %v677, 0
        %v680 = vsub.s32 0, %v677
        %v681 = vsel %vm679, %v680, %v677
        %v682 = vshrl.u32 %v681, 4
        %v683 = vand.u32 %v681, 15
        %v684 = vsub.s32 0, %v683
        %v685 = vsel %vm679, %v684, %v683
        %vm686 = vcmp.lt.s32.totalorder %v678, 0
        %v687 = vsub.s32 0, %v678
        %v688 = vsel %vm686, %v687, %v678
        %v689 = vshrl.u32 %v688, 4
        %v690 = vand.u32 %v688, 15
        %v691 = vsub.s32 0, %v690
        %v692 = vsel %vm686, %v691, %v690
        %vm693 = vcmp.ne.s32.totalorder %v685, 0
        %vm694 = vcmp.ne.s32.totalorder %v692, 0
        %vm695 = vcmp.lt.s32.totalorder %v685, 0
        %vm696 = vcmp.lt.s32.totalorder %v692, 0
        %vm697 = vmand %vm695, %vm693
        %vm698 = vmand %vm696, %vm694
        %v699 = vadd.s32 %v685, 16
        %v700 = vadd.s32 %v692, 16
        %v701 = vsel %vm697, %v699, %v685
        %v702 = vsel %vm698, %v700, %v692
        %vm703 = vcmp.ge.s32.totalorder %v701, 1
        %vm704 = vcmp.ge.s32.totalorder %v702, 1
        %v705 = vsel %vm703, 1, 0
        %v706 = vsel %vm704, 1, 0
        %v707 = vcvt.s32.f32 %v705
        %v708 = vcvt.s32.f32 %v706
        %vm709 = vcmp.le.s32.totalorder %v701, 14
        %vm710 = vcmp.le.s32.totalorder %v702, 14
        %v711 = vsel %vm709, 1, 0
        %v712 = vsel %vm710, 1, 0
        %v713 = vcvt.s32.f32 %v711
        %v714 = vcvt.s32.f32 %v712
        %v715 = vld [vmem:[#allocation3] sm:$0x1]
        %s716 = vtos %v715
        %s717 = smax.f32 %s716, 0.0
        %v718 = vld [vmem:[%s655] sm:$0x3]
        %v719 = vld [vmem:[%s659] sm:$0x3]
        %v720 = vld [vmem:[%s663] sm:$0x3]
        %v721 = vmul.f32 %v718, %v720
        %v722 = vstv %s717
        %v723 = vmul.f32 %v722, %v721
        %v724 = vsub.f32 %v718, %v723
        %v725 = vmul.f32 %v722, %v719
        %v726 = vadd.f32 %v724, %v725
        %v727 = vlaneseq
        %vm728 = vcmp.ge.s32.totalorder %v727, 0
        %vm729 = vcmp.lt.s32.totalorder %v727, 256
        %vm730 = vmand %vm728, %vm729
        %s731 = scalar_lea.vmem [#allocation2], 8
        %732 = vst.msk [vmem:[%s731] ss:$8 sm:$0x3] %vm730, %v726
        %733 = vst.msk [vmem:[%s731] ss:$8 sm:$0x0] %vm730, %v726
        %v734 = vld [vmem:[#allocation2] ss:$8 sm:$0x7]
        %v737 = vcombine.low %v707, %v708
        %v739 = vunpack.c.l.s4 1966171168
        %v740 = vunpack.c.0.s8 %v739
        %v741 = vlaneseq
        %v742 = vshrl.u32 %v741, 7
        %v743 = vsub.s32 %v740, %v742
        %v744 = vrot.slane %v737, %v743
        %v746 = vunpack.c.l.s4 1966171168
        %v747 = vunpack.c.0.s8 %v746
        %v748 = vlaneseq
        %v749 = vshrl.u32 %v748, 7
        %v750 = vsub.s32 %v747, %v749
        %v751 = vrot.slane %v744, %v750
        %752 = vrot.lane.b32.xlu0 %v751, 111
        %v753 = vpop.permute.xlu0 %752
        %v754 = vrot.slane %v753, 7
        %vm755 = vcmask 908288
        %v756 = vsel %vm755, %v754, %v753
        %v758 = vmul.f32 %v734, %v756
        %v759 = vld [vmem:[%s4] sm:$0xff]
        %v760 = vld [vmem:[%s4 + $0x8] sm:$0xff]
        %v761 = vld [vmem:[%s4 + $0x10] sm:$0xff]
        %v762 = vld [vmem:[%s4 + $0x18] sm:$0xff]
        %764 = vset.pattern.permute.xlu0 0
        %765 = vperm.xlu0 %764, %v759
        %v766 = vpop.permute.xlu0 %765
        %769 = vset.pattern.permute.xlu0 0
        %770 = vperm.xlu0 %769, %v760
        %v771 = vpop.permute.xlu0 %770
        %774 = vset.pattern.permute.xlu0 0
        %775 = vperm.xlu0 %774, %v761
        %v776 = vpop.permute.xlu0 %775
        %779 = vset.pattern.permute.xlu0 0
        %780 = vperm.xlu0 %779, %v762
        %v781 = vpop.permute.xlu0 %780
        %v784 = vlaneseq
        %v785 = vshrl.u32 %v784, 7
        %v786 = vsub.s32 0, %v785
        %v787 = vrot.slane %v758, %v786
        %v788 = vlaneseq
        %v789 = vshrl.u32 %v788, 7
        %v790 = vsub.s32 1, %v789
        %v791 = vrot.slane %v758, %v790
        %v792 = vlaneseq
        %v793 = vshrl.u32 %v792, 7
        %v794 = vsub.s32 2, %v793
        %v795 = vrot.slane %v758, %v794
        %v799 = vmul.f32 %v766, %v787
        %v800 = vmul.f32 %v766, %v791
        %v801 = vmul.f32 %v766, %v795
        %v802 = vmul.f32 %v771, %v787
        %v803 = vmul.f32 %v771, %v791
        %v804 = vmul.f32 %v771, %v795
        %v805 = vmul.f32 %v776, %v787
        %v806 = vmul.f32 %v776, %v791
        %v807 = vmul.f32 %v776, %v795
        %v808 = vmul.f32 %v781, %v787
        %v809 = vmul.f32 %v781, %v791
        %v810 = vmul.f32 %v781, %v795
        %v811 = vadd.f32 %v799, 0.0
        %v812 = vadd.f32 %v800, 0.0
        %v813 = vadd.f32 %v801, 0.0
        %v814 = vadd.f32 %v802, 0.0
        %v815 = vadd.f32 %v803, 0.0
        %v816 = vadd.f32 %v804, 0.0
        %v817 = vadd.f32 %v805, 0.0
        %v818 = vadd.f32 %v806, 0.0
        %v819 = vadd.f32 %v807, 0.0
        %v820 = vadd.f32 %v808, 0.0
        %v821 = vadd.f32 %v809, 0.0
        %v822 = vadd.f32 %v810, 0.0
        %v823 = vld [vmem:[#allocation2] ss:$8 sm:$0x7]
        %824 = vset.pattern.permute.xlu0 1
        %825 = vperm.xlu0 %824, %v759
        %v826 = vpop.permute.xlu0 %825
        %828 = vset.pattern.permute.xlu0 1
        %829 = vperm.xlu0 %828, %v760
        %v830 = vpop.permute.xlu0 %829
        %832 = vset.pattern.permute.xlu0 1
        %833 = vperm.xlu0 %832, %v761
        %v834 = vpop.permute.xlu0 %833
        %836 = vset.pattern.permute.xlu0 1
        %837 = vperm.xlu0 %836, %v762
        %v838 = vpop.permute.xlu0 %837
        %v841 = vlaneseq
        %v842 = vshrl.u32 %v841, 7
        %v843 = vsub.s32 0, %v842
        %v844 = vrot.slane %v823, %v843
        %v845 = vlaneseq
        %v846 = vshrl.u32 %v845, 7
        %v847 = vsub.s32 1, %v846
        %v848 = vrot.slane %v823, %v847
        %v849 = vlaneseq
        %v850 = vshrl.u32 %v849, 7
        %v851 = vsub.s32 2, %v850
        %v852 = vrot.slane %v823, %v851
        %v856 = vmul.f32 %v826, %v844
        %v857 = vmul.f32 %v826, %v848
        %v858 = vmul.f32 %v826, %v852
        %v859 = vmul.f32 %v830, %v844
        %v860 = vmul.f32 %v830, %v848
        %v861 = vmul.f32 %v830, %v852
        %v862 = vmul.f32 %v834, %v844
        %v863 = vmul.f32 %v834, %v848
        %v864 = vmul.f32 %v834, %v852
        %v865 = vmul.f32 %v838, %v844
        %v866 = vmul.f32 %v838, %v848
        %v867 = vmul.f32 %v838, %v852
        %880 = vrot.lane.b32.xlu0 %v856, 127
        %v881 = vpop.permute.xlu0 %880
        %882 = vrot.lane.b32.xlu0 %v857, 127
        %v883 = vpop.permute.xlu0 %882
        %884 = vrot.lane.b32.xlu0 %v858, 127
        %v885 = vpop.permute.xlu0 %884
        %886 = vrot.lane.b32.xlu0 %v859, 127
        %v887 = vpop.permute.xlu0 %886
        %888 = vrot.lane.b32.xlu0 %v860, 127
        %v889 = vpop.permute.xlu0 %888
        %890 = vrot.lane.b32.xlu0 %v861, 127
        %v891 = vpop.permute.xlu0 %890
        %892 = vrot.lane.b32.xlu0 %v862, 127
        %v893 = vpop.permute.xlu0 %892
        %894 = vrot.lane.b32.xlu0 %v863, 127
        %v895 = vpop.permute.xlu0 %894
        %896 = vrot.lane.b32.xlu0 %v864, 127
        %v897 = vpop.permute.xlu0 %896
        %898 = vrot.lane.b32.xlu0 %v865, 127
        %v899 = vpop.permute.xlu0 %898
        %900 = vrot.lane.b32.xlu0 %v866, 127
        %v901 = vpop.permute.xlu0 %900
        %902 = vrot.lane.b32.xlu0 %v867, 127
        %v903 = vpop.permute.xlu0 %902
        %vm904 = vcmask 1039360
        %v905 = vsel %vm904, %v881, %v883
        %v906 = vsel %vm904, %v883, %v885
        %v907 = vsel %vm904, %v887, %v889
        %v908 = vsel %vm904, %v889, %v891
        %v909 = vsel %vm904, %v893, %v895
        %v910 = vsel %vm904, %v895, %v897
        %v911 = vsel %vm904, %v899, %v901
        %v912 = vsel %vm904, %v901, %v903
        %v925 = vadd.f32 %v811, %v905
        %v926 = vadd.f32 %v812, %v906
        %v927 = vadd.f32 %v813, %v885
        %v928 = vadd.f32 %v814, %v907
        %v929 = vadd.f32 %v815, %v908
        %v930 = vadd.f32 %v816, %v891
        %v931 = vadd.f32 %v817, %v909
        %v932 = vadd.f32 %v818, %v910
        %v933 = vadd.f32 %v819, %v897
        %v934 = vadd.f32 %v820, %v911
        %v935 = vadd.f32 %v821, %v912
        %v936 = vadd.f32 %v822, %v903
        %v939 = vcombine.low %v713, %v714
        %v941 = vunpack.c.l.s4 1966171168
        %v942 = vunpack.c.0.s8 %v941
        %v943 = vlaneseq
        %v944 = vshrl.u32 %v943, 7
        %v945 = vsub.s32 %v942, %v944
        %v946 = vrot.slane %v939, %v945
        %v948 = vunpack.c.l.s4 1966171168
        %v949 = vunpack.c.0.s8 %v948
        %v950 = vlaneseq
        %v951 = vshrl.u32 %v950, 7
        %v952 = vsub.s32 %v949, %v951
        %v953 = vrot.slane %v946, %v952
        %954 = vrot.lane.b32.xlu0 %v953, 113
        %v955 = vpop.permute.xlu0 %954
        %v956 = vrot.slane %v955, 7
        %vm957 = vcmask 924672
        %v958 = vsel %vm957, %v956, %v955
        %v960 = vmul.f32 %v823, %v958
        %v961 = vld [vmem:[%s4] sm:$0xff]
        %v962 = vld [vmem:[%s4 + $0x8] sm:$0xff]
        %v963 = vld [vmem:[%s4 + $0x10] sm:$0xff]
        %v964 = vld [vmem:[%s4 + $0x18] sm:$0xff]
        %966 = vset.pattern.permute.xlu0 2
        %967 = vperm.xlu0 %966, %v961
        %v968 = vpop.permute.xlu0 %967
        %971 = vset.pattern.permute.xlu0 2
        %972 = vperm.xlu0 %971, %v962
        %v973 = vpop.permute.xlu0 %972
        %976 = vset.pattern.permute.xlu0 2
        %977 = vperm.xlu0 %976, %v963
        %v978 = vpop.permute.xlu0 %977
        %981 = vset.pattern.permute.xlu0 2
        %982 = vperm.xlu0 %981, %v964
        %v983 = vpop.permute.xlu0 %982
        %v986 = vlaneseq
        %v987 = vshrl.u32 %v986, 7
        %v988 = vsub.s32 0, %v987
        %v989 = vrot.slane %v960, %v988
        %v990 = vlaneseq
        %v991 = vshrl.u32 %v990, 7
        %v992 = vsub.s32 1, %v991
        %v993 = vrot.slane %v960, %v992
        %v994 = vlaneseq
        %v995 = vshrl.u32 %v994, 7
        %v996 = vsub.s32 2, %v995
        %v997 = vrot.slane %v960, %v996
        %v1001 = vmul.f32 %v968, %v989
        %v1002 = vmul.f32 %v968, %v993
        %v1003 = vmul.f32 %v968, %v997
        %v1004 = vmul.f32 %v973, %v989
        %v1005 = vmul.f32 %v973, %v993
        %v1006 = vmul.f32 %v973, %v997
        %v1007 = vmul.f32 %v978, %v989
        %v1008 = vmul.f32 %v978, %v993
        %v1009 = vmul.f32 %v978, %v997
        %v1010 = vmul.f32 %v983, %v989
        %v1011 = vmul.f32 %v983, %v993
        %v1012 = vmul.f32 %v983, %v997
        %1025 = vrot.lane.b32.xlu0 %v1001, 126
        %v1026 = vpop.permute.xlu0 %1025
        %1027 = vrot.lane.b32.xlu0 %v1002, 126
        %v1028 = vpop.permute.xlu0 %1027
        %1029 = vrot.lane.b32.xlu0 %v1003, 126
        %v1030 = vpop.permute.xlu0 %1029
        %1031 = vrot.lane.b32.xlu0 %v1004, 126
        %v1032 = vpop.permute.xlu0 %1031
        %1033 = vrot.lane.b32.xlu0 %v1005, 126
        %v1034 = vpop.permute.xlu0 %1033
        %1035 = vrot.lane.b32.xlu0 %v1006, 126
        %v1036 = vpop.permute.xlu0 %1035
        %1037 = vrot.lane.b32.xlu0 %v1007, 126
        %v1038 = vpop.permute.xlu0 %1037
        %1039 = vrot.lane.b32.xlu0 %v1008, 126
        %v1040 = vpop.permute.xlu0 %1039
        %1041 = vrot.lane.b32.xlu0 %v1009, 126
        %v1042 = vpop.permute.xlu0 %1041
        %1043 = vrot.lane.b32.xlu0 %v1010, 126
        %v1044 = vpop.permute.xlu0 %1043
        %1045 = vrot.lane.b32.xlu0 %v1011, 126
        %v1046 = vpop.permute.xlu0 %1045
        %1047 = vrot.lane.b32.xlu0 %v1012, 126
        %v1048 = vpop.permute.xlu0 %1047
        %vm1049 = vcmask 1031168
        %v1050 = vsel %vm1049, %v1026, %v1028
        %v1051 = vsel %vm1049, %v1028, %v1030
        %v1052 = vsel %vm1049, %v1032, %v1034
        %v1053 = vsel %vm1049, %v1034, %v1036
        %v1054 = vsel %vm1049, %v1038, %v1040
        %v1055 = vsel %vm1049, %v1040, %v1042
        %v1056 = vsel %vm1049, %v1044, %v1046
        %v1057 = vsel %vm1049, %v1046, %v1048
        %v1070 = vadd.f32 %v925, %v1050
        %v1071 = vadd.f32 %v926, %v1051
        %v1072 = vadd.f32 %v927, %v1030
        %v1073 = vadd.f32 %v928, %v1052
        %v1074 = vadd.f32 %v929, %v1053
        %v1075 = vadd.f32 %v930, %v1036
        %v1076 = vadd.f32 %v931, %v1054
        %v1077 = vadd.f32 %v932, %v1055
        %v1078 = vadd.f32 %v933, %v1042
        %v1079 = vadd.f32 %v934, %v1056
        %v1080 = vadd.f32 %v935, %v1057
        %v1081 = vadd.f32 %v936, %v1048
        %v1082 = vld [vmem:[#allocation2] ss:$8 sm:$0x7]
        %1083 = vrot.lane.b32.xlu0 %v751, 127
        %v1084 = vpop.permute.xlu0 %1083
        %v1085 = vrot.slane %v1084, 7
        %v1086 = vsel %vm904, %v1085, %v1084
        %v1088 = vmul.f32 %v1082, %v1086
        %v1089 = vld [vmem:[%s4] sm:$0xff]
        %v1090 = vld [vmem:[%s4 + $0x8] sm:$0xff]
        %v1091 = vld [vmem:[%s4 + $0x10] sm:$0xff]
        %v1092 = vld [vmem:[%s4 + $0x18] sm:$0xff]
        %1094 = vset.pattern.permute.xlu0 3
        %1095 = vperm.xlu0 %1094, %v1089
        %v1096 = vpop.permute.xlu0 %1095
        %1099 = vset.pattern.permute.xlu0 3
        %1100 = vperm.xlu0 %1099, %v1090
        %v1101 = vpop.permute.xlu0 %1100
        %1104 = vset.pattern.permute.xlu0 3
        %1105 = vperm.xlu0 %1104, %v1091
        %v1106 = vpop.permute.xlu0 %1105
        %1109 = vset.pattern.permute.xlu0 3
        %1110 = vperm.xlu0 %1109, %v1092
        %v1111 = vpop.permute.xlu0 %1110
        %v1114 = vlaneseq
        %v1115 = vshrl.u32 %v1114, 7
        %v1116 = vsub.s32 0, %v1115
        %v1117 = vrot.slane %v1088, %v1116
        %v1118 = vlaneseq
        %v1119 = vshrl.u32 %v1118, 7
        %v1120 = vsub.s32 1, %v1119
        %v1121 = vrot.slane %v1088, %v1120
        %v1122 = vlaneseq
        %v1123 = vshrl.u32 %v1122, 7
        %v1124 = vsub.s32 2, %v1123
        %v1125 = vrot.slane %v1088, %v1124
        %v1129 = vmul.f32 %v1096, %v1117
        %v1130 = vmul.f32 %v1096, %v1121
        %v1131 = vmul.f32 %v1096, %v1125
        %v1132 = vmul.f32 %v1101, %v1117
        %v1133 = vmul.f32 %v1101, %v1121
        %v1134 = vmul.f32 %v1101, %v1125
        %v1135 = vmul.f32 %v1106, %v1117
        %v1136 = vmul.f32 %v1106, %v1121
        %v1137 = vmul.f32 %v1106, %v1125
        %v1138 = vmul.f32 %v1111, %v1117
        %v1139 = vmul.f32 %v1111, %v1121
        %v1140 = vmul.f32 %v1111, %v1125
        %1153 = vrot.lane.b32.xlu0 %v1129, 112
        %v1154 = vpop.permute.xlu0 %1153
        %1155 = vrot.lane.b32.xlu0 %v1130, 112
        %v1156 = vpop.permute.xlu0 %1155
        %1157 = vrot.lane.b32.xlu0 %v1131, 112
        %v1158 = vpop.permute.xlu0 %1157
        %1159 = vrot.lane.b32.xlu0 %v1132, 112
        %v1160 = vpop.permute.xlu0 %1159
        %1161 = vrot.lane.b32.xlu0 %v1133, 112
        %v1162 = vpop.permute.xlu0 %1161
        %1163 = vrot.lane.b32.xlu0 %v1134, 112
        %v1164 = vpop.permute.xlu0 %1163
        %1165 = vrot.lane.b32.xlu0 %v1135, 112
        %v1166 = vpop.permute.xlu0 %1165
        %1167 = vrot.lane.b32.xlu0 %v1136, 112
        %v1168 = vpop.permute.xlu0 %1167
        %1169 = vrot.lane.b32.xlu0 %v1137, 112
        %v1170 = vpop.permute.xlu0 %1169
        %1171 = vrot.lane.b32.xlu0 %v1138, 112
        %v1172 = vpop.permute.xlu0 %1171
        %1173 = vrot.lane.b32.xlu0 %v1139, 112
        %v1174 = vpop.permute.xlu0 %1173
        %1175 = vrot.lane.b32.xlu0 %v1140, 112
        %v1176 = vpop.permute.xlu0 %1175
        %vm1177 = vcmask 916480
        %v1178 = vsel %vm1177, %v1154, %v1156
        %v1179 = vsel %vm1177, %v1156, %v1158
        %v1180 = vsel %vm1177, %v1160, %v1162
        %v1181 = vsel %vm1177, %v1162, %v1164
        %v1182 = vsel %vm1177, %v1166, %v1168
        %v1183 = vsel %vm1177, %v1168, %v1170
        %v1184 = vsel %vm1177, %v1172, %v1174
        %v1185 = vsel %vm1177, %v1174, %v1176
        %v1198 = vadd.f32 %v1070, %v1178
        %v1199 = vadd.f32 %v1071, %v1179
        %v1200 = vadd.f32 %v1072, %v1158
        %v1201 = vadd.f32 %v1073, %v1180
        %v1202 = vadd.f32 %v1074, %v1181
        %v1203 = vadd.f32 %v1075, %v1164
        %v1204 = vadd.f32 %v1076, %v1182
        %v1205 = vadd.f32 %v1077, %v1183
        %v1206 = vadd.f32 %v1078, %v1170
        %v1207 = vadd.f32 %v1079, %v1184
        %v1208 = vadd.f32 %v1080, %v1185
        %v1209 = vadd.f32 %v1081, %v1176
        %v1210 = vld [vmem:[%s731] ss:$8 sm:$0x3]
        %1211 = vset.pattern.permute.xlu0 4
        %1212 = vperm.xlu0 %1211, %v1089
        %v1213 = vpop.permute.xlu0 %1212
        %1215 = vset.pattern.permute.xlu0 4
        %1216 = vperm.xlu0 %1215, %v1090
        %v1217 = vpop.permute.xlu0 %1216
        %1219 = vset.pattern.permute.xlu0 4
        %1220 = vperm.xlu0 %1219, %v1091
        %v1221 = vpop.permute.xlu0 %1220
        %1223 = vset.pattern.permute.xlu0 4
        %1224 = vperm.xlu0 %1223, %v1092
        %v1225 = vpop.permute.xlu0 %1224
        %v1228 = vlaneseq
        %v1229 = vshrl.u32 %v1228, 7
        %v1230 = vsub.s32 0, %v1229
        %v1231 = vrot.slane %v1210, %v1230
        %v1232 = vlaneseq
        %v1233 = vshrl.u32 %v1232, 7
        %v1234 = vsub.s32 1, %v1233
        %v1235 = vrot.slane %v1210, %v1234
        %v1238 = vmul.f32 %v1213, %v1231
        %v1239 = vmul.f32 %v1213, %v1235
        %v1240 = vmul.f32 %v1217, %v1231
        %v1241 = vmul.f32 %v1217, %v1235
        %v1242 = vmul.f32 %v1221, %v1231
        %v1243 = vmul.f32 %v1221, %v1235
        %v1244 = vmul.f32 %v1225, %v1231
        %v1245 = vmul.f32 %v1225, %v1235
        %1254 = vrot.lane.b32.xlu0 %v1238, 111
        %v1255 = vpop.permute.xlu0 %1254
        %1256 = vrot.lane.b32.xlu0 %v1239, 111
        %v1257 = vpop.permute.xlu0 %1256
        %1258 = vrot.lane.b32.xlu0 %v1240, 111
        %v1259 = vpop.permute.xlu0 %1258
        %1260 = vrot.lane.b32.xlu0 %v1241, 111
        %v1261 = vpop.permute.xlu0 %1260
        %1262 = vrot.lane.b32.xlu0 %v1242, 111
        %v1263 = vpop.permute.xlu0 %1262
        %1264 = vrot.lane.b32.xlu0 %v1243, 111
        %v1265 = vpop.permute.xlu0 %1264
        %1266 = vrot.lane.b32.xlu0 %v1244, 111
        %v1267 = vpop.permute.xlu0 %1266
        %1268 = vrot.lane.b32.xlu0 %v1245, 111
        %v1269 = vpop.permute.xlu0 %1268
        %v1270 = vsel %vm755, %v1255, %v1257
        %v1271 = vsel %vm755, %v1259, %v1261
        %v1272 = vsel %vm755, %v1263, %v1265
        %v1273 = vsel %vm755, %v1267, %v1269
        %v1286 = vadd.f32 %v1198, %v1255
        %v1287 = vadd.f32 %v1199, %v1270
        %v1288 = vadd.f32 %v1200, %v1257
        %v1289 = vadd.f32 %v1201, %v1259
        %v1290 = vadd.f32 %v1202, %v1271
        %v1291 = vadd.f32 %v1203, %v1261
        %v1292 = vadd.f32 %v1204, %v1263
        %v1293 = vadd.f32 %v1205, %v1272
        %v1294 = vadd.f32 %v1206, %v1265
        %v1295 = vadd.f32 %v1207, %v1267
        %v1296 = vadd.f32 %v1208, %v1273
        %v1297 = vadd.f32 %v1209, %v1269
        %v1298 = vld [vmem:[%s731] ss:$8 sm:$0x7]
        %1299 = vrot.lane.b32.xlu0 %v953, 1
        %v1300 = vpop.permute.xlu0 %1299
        %v1301 = vrot.slane %v1300, 7
        %vm1302 = vcmask 7168
        %v1303 = vsel %vm1302, %v1301, %v1300
        %v1305 = vmul.f32 %v1298, %v1303
        %v1306 = vld [vmem:[%s4] sm:$0xff]
        %v1307 = vld [vmem:[%s4 + $0x8] sm:$0xff]
        %v1308 = vld [vmem:[%s4 + $0x10] sm:$0xff]
        %v1309 = vld [vmem:[%s4 + $0x18] sm:$0xff]
        %1311 = vset.pattern.permute.xlu0 5
        %1312 = vperm.xlu0 %1311, %v1306
        %v1313 = vpop.permute.xlu0 %1312
        %1316 = vset.pattern.permute.xlu0 5
        %1317 = vperm.xlu0 %1316, %v1307
        %v1318 = vpop.permute.xlu0 %1317
        %1321 = vset.pattern.permute.xlu0 5
        %1322 = vperm.xlu0 %1321, %v1308
        %v1323 = vpop.permute.xlu0 %1322
        %1326 = vset.pattern.permute.xlu0 5
        %1327 = vperm.xlu0 %1326, %v1309
        %v1328 = vpop.permute.xlu0 %1327
        %v1331 = vlaneseq
        %v1332 = vshrl.u32 %v1331, 7
        %v1333 = vsub.s32 0, %v1332
        %v1334 = vrot.slane %v1305, %v1333
        %v1335 = vlaneseq
        %v1336 = vshrl.u32 %v1335, 7
        %v1337 = vsub.s32 1, %v1336
        %v1338 = vrot.slane %v1305, %v1337
        %v1339 = vlaneseq
        %v1340 = vshrl.u32 %v1339, 7
        %v1341 = vsub.s32 2, %v1340
        %v1342 = vrot.slane %v1305, %v1341
        %v1346 = vmul.f32 %v1313, %v1334
        %v1347 = vmul.f32 %v1313, %v1338
        %v1348 = vmul.f32 %v1313, %v1342
        %v1349 = vmul.f32 %v1318, %v1334
        %v1350 = vmul.f32 %v1318, %v1338
        %v1351 = vmul.f32 %v1318, %v1342
        %v1352 = vmul.f32 %v1323, %v1334
        %v1353 = vmul.f32 %v1323, %v1338
        %v1354 = vmul.f32 %v1323, %v1342
        %v1355 = vmul.f32 %v1328, %v1334
        %v1356 = vmul.f32 %v1328, %v1338
        %v1357 = vmul.f32 %v1328, %v1342
        %1370 = vrot.lane.b32.xlu0 %v1346, 110
        %v1371 = vpop.permute.xlu0 %1370
        %1372 = vrot.lane.b32.xlu0 %v1347, 110
        %v1373 = vpop.permute.xlu0 %1372
        %1374 = vrot.lane.b32.xlu0 %v1348, 110
        %v1375 = vpop.permute.xlu0 %1374
        %1376 = vrot.lane.b32.xlu0 %v1349, 110
        %v1377 = vpop.permute.xlu0 %1376
        %1378 = vrot.lane.b32.xlu0 %v1350, 110
        %v1379 = vpop.permute.xlu0 %1378
        %1380 = vrot.lane.b32.xlu0 %v1351, 110
        %v1381 = vpop.permute.xlu0 %1380
        %1382 = vrot.lane.b32.xlu0 %v1352, 110
        %v1383 = vpop.permute.xlu0 %1382
        %1384 = vrot.lane.b32.xlu0 %v1353, 110
        %v1385 = vpop.permute.xlu0 %1384
        %1386 = vrot.lane.b32.xlu0 %v1354, 110
        %v1387 = vpop.permute.xlu0 %1386
        %1388 = vrot.lane.b32.xlu0 %v1355, 110
        %v1389 = vpop.permute.xlu0 %1388
        %1390 = vrot.lane.b32.xlu0 %v1356, 110
        %v1391 = vpop.permute.xlu0 %1390
        %1392 = vrot.lane.b32.xlu0 %v1357, 110
        %v1393 = vpop.permute.xlu0 %1392
        %vm1394 = vcmask 900096
        %v1395 = vsel %vm1394, %v1371, %v1373
        %v1396 = vsel %vm1394, %v1373, %v1375
        %v1397 = vsel %vm1394, %v1377, %v1379
        %v1398 = vsel %vm1394, %v1379, %v1381
        %v1399 = vsel %vm1394, %v1383, %v1385
        %v1400 = vsel %vm1394, %v1385, %v1387
        %v1401 = vsel %vm1394, %v1389, %v1391
        %v1402 = vsel %vm1394, %v1391, %v1393
        %v1415 = vadd.f32 %v1286, %v1371
        %v1416 = vadd.f32 %v1287, %v1395
        %v1417 = vadd.f32 %v1288, %v1396
        %v1418 = vadd.f32 %v1289, %v1377
        %v1419 = vadd.f32 %v1290, %v1397
        %v1420 = vadd.f32 %v1291, %v1398
        %v1421 = vadd.f32 %v1292, %v1383
        %v1422 = vadd.f32 %v1293, %v1399
        %v1423 = vadd.f32 %v1294, %v1400
        %v1424 = vadd.f32 %v1295, %v1389
        %v1425 = vadd.f32 %v1296, %v1401
        %v1426 = vadd.f32 %v1297, %v1402
        %v1427 = vld [vmem:[%s731] ss:$8 sm:$0x7]
        %1428 = vrot.lane.b32.xlu0 %v751, 15
        %v1429 = vpop.permute.xlu0 %1428
        %v1430 = vrot.slane %v1429, 7
        %vm1431 = vcmask 121856
        %v1432 = vsel %vm1431, %v1430, %v1429
        %v1434 = vmul.f32 %v1427, %v1432
        %v1435 = vld [vmem:[%s4] sm:$0xff]
        %v1436 = vld [vmem:[%s4 + $0x8] sm:$0xff]
        %v1437 = vld [vmem:[%s4 + $0x10] sm:$0xff]
        %v1438 = vld [vmem:[%s4 + $0x18] sm:$0xff]
        %1440 = vset.pattern.permute.xlu0 6
        %1441 = vperm.xlu0 %1440, %v1435
        %v1442 = vpop.permute.xlu0 %1441
        %1445 = vset.pattern.permute.xlu0 6
        %1446 = vperm.xlu0 %1445, %v1436
        %v1447 = vpop.permute.xlu0 %1446
        %1450 = vset.pattern.permute.xlu0 6
        %1451 = vperm.xlu0 %1450, %v1437
        %v1452 = vpop.permute.xlu0 %1451
        %1455 = vset.pattern.permute.xlu0 6
        %1456 = vperm.xlu0 %1455, %v1438
        %v1457 = vpop.permute.xlu0 %1456
        %v1460 = vlaneseq
        %v1461 = vshrl.u32 %v1460, 7
        %v1462 = vsub.s32 0, %v1461
        %v1463 = vrot.slane %v1434, %v1462
        %v1464 = vlaneseq
        %v1465 = vshrl.u32 %v1464, 7
        %v1466 = vsub.s32 1, %v1465
        %v1467 = vrot.slane %v1434, %v1466
        %v1468 = vlaneseq
        %v1469 = vshrl.u32 %v1468, 7
        %v1470 = vsub.s32 2, %v1469
        %v1471 = vrot.slane %v1434, %v1470
        %v1475 = vmul.f32 %v1442, %v1463
        %v1476 = vmul.f32 %v1442, %v1467
        %v1477 = vmul.f32 %v1442, %v1471
        %v1478 = vmul.f32 %v1447, %v1463
        %v1479 = vmul.f32 %v1447, %v1467
        %v1480 = vmul.f32 %v1447, %v1471
        %v1481 = vmul.f32 %v1452, %v1463
        %v1482 = vmul.f32 %v1452, %v1467
        %v1483 = vmul.f32 %v1452, %v1471
        %v1484 = vmul.f32 %v1457, %v1463
        %v1485 = vmul.f32 %v1457, %v1467
        %v1486 = vmul.f32 %v1457, %v1471
        %1499 = vrot.lane.b32.xlu0 %v1475, 96
        %v1500 = vpop.permute.xlu0 %1499
        %1501 = vrot.lane.b32.xlu0 %v1476, 96
        %v1502 = vpop.permute.xlu0 %1501
        %1503 = vrot.lane.b32.xlu0 %v1477, 96
        %v1504 = vpop.permute.xlu0 %1503
        %1505 = vrot.lane.b32.xlu0 %v1478, 96
        %v1506 = vpop.permute.xlu0 %1505
        %1507 = vrot.lane.b32.xlu0 %v1479, 96
        %v1508 = vpop.permute.xlu0 %1507
        %1509 = vrot.lane.b32.xlu0 %v1480, 96
        %v1510 = vpop.permute.xlu0 %1509
        %1511 = vrot.lane.b32.xlu0 %v1481, 96
        %v1512 = vpop.permute.xlu0 %1511
        %1513 = vrot.lane.b32.xlu0 %v1482, 96
        %v1514 = vpop.permute.xlu0 %1513
        %1515 = vrot.lane.b32.xlu0 %v1483, 96
        %v1516 = vpop.permute.xlu0 %1515
        %1517 = vrot.lane.b32.xlu0 %v1484, 96
        %v1518 = vpop.permute.xlu0 %1517
        %1519 = vrot.lane.b32.xlu0 %v1485, 96
        %v1520 = vpop.permute.xlu0 %1519
        %1521 = vrot.lane.b32.xlu0 %v1486, 96
        %v1522 = vpop.permute.xlu0 %1521
        %vm1523 = vcmask 785408
        %v1524 = vsel %vm1523, %v1500, %v1502
        %v1525 = vsel %vm1523, %v1502, %v1504
        %v1526 = vsel %vm1523, %v1506, %v1508
        %v1527 = vsel %vm1523, %v1508, %v1510
        %v1528 = vsel %vm1523, %v1512, %v1514
        %v1529 = vsel %vm1523, %v1514, %v1516
        %v1530 = vsel %vm1523, %v1518, %v1520
        %v1531 = vsel %vm1523, %v1520, %v1522
        %v1544 = vadd.f32 %v1415, %v1500
        %v1545 = vadd.f32 %v1416, %v1524
        %v1546 = vadd.f32 %v1417, %v1525
        %v1547 = vadd.f32 %v1418, %v1506
        %v1548 = vadd.f32 %v1419, %v1526
        %v1549 = vadd.f32 %v1420, %v1527
        %v1550 = vadd.f32 %v1421, %v1512
        %v1551 = vadd.f32 %v1422, %v1528
        %v1552 = vadd.f32 %v1423, %v1529
        %v1553 = vadd.f32 %v1424, %v1518
        %v1554 = vadd.f32 %v1425, %v1530
        %v1555 = vadd.f32 %v1426, %v1531
        %v1556 = vld [vmem:[%s731] ss:$8 sm:$0x7]
        %1557 = vset.pattern.permute.xlu0 7
        %1558 = vperm.xlu0 %1557, %v1435
        %v1559 = vpop.permute.xlu0 %1558
        %1561 = vset.pattern.permute.xlu0 7
        %1562 = vperm.xlu0 %1561, %v1436
        %v1563 = vpop.permute.xlu0 %1562
        %1565 = vset.pattern.permute.xlu0 7
        %1566 = vperm.xlu0 %1565, %v1437
        %v1567 = vpop.permute.xlu0 %1566
        %1569 = vset.pattern.permute.xlu0 7
        %1570 = vperm.xlu0 %1569, %v1438
        %v1571 = vpop.permute.xlu0 %1570
        %v1574 = vlaneseq
        %v1575 = vshrl.u32 %v1574, 7
        %v1576 = vsub.s32 0, %v1575
        %v1577 = vrot.slane %v1556, %v1576
        %v1578 = vlaneseq
        %v1579 = vshrl.u32 %v1578, 7
        %v1580 = vsub.s32 1, %v1579
        %v1581 = vrot.slane %v1556, %v1580
        %v1582 = vlaneseq
        %v1583 = vshrl.u32 %v1582, 7
        %v1584 = vsub.s32 2, %v1583
        %v1585 = vrot.slane %v1556, %v1584
        %v1589 = vmul.f32 %v1559, %v1577
        %v1590 = vmul.f32 %v1559, %v1581
        %v1591 = vmul.f32 %v1559, %v1585
        %v1592 = vmul.f32 %v1563, %v1577
        %v1593 = vmul.f32 %v1563, %v1581
        %v1594 = vmul.f32 %v1563, %v1585
        %v1595 = vmul.f32 %v1567, %v1577
        %v1596 = vmul.f32 %v1567, %v1581
        %v1597 = vmul.f32 %v1567, %v1585
        %v1598 = vmul.f32 %v1571, %v1577
        %v1599 = vmul.f32 %v1571, %v1581
        %v1600 = vmul.f32 %v1571, %v1585
        %1613 = vrot.lane.b32.xlu0 %v1589, 95
        %v1614 = vpop.permute.xlu0 %1613
        %1615 = vrot.lane.b32.xlu0 %v1590, 95
        %v1616 = vpop.permute.xlu0 %1615
        %1617 = vrot.lane.b32.xlu0 %v1591, 95
        %v1618 = vpop.permute.xlu0 %1617
        %1619 = vrot.lane.b32.xlu0 %v1592, 95
        %v1620 = vpop.permute.xlu0 %1619
        %1621 = vrot.lane.b32.xlu0 %v1593, 95
        %v1622 = vpop.permute.xlu0 %1621
        %1623 = vrot.lane.b32.xlu0 %v1594, 95
        %v1624 = vpop.permute.xlu0 %1623
        %1625 = vrot.lane.b32.xlu0 %v1595, 95
        %v1626 = vpop.permute.xlu0 %1625
        %1627 = vrot.lane.b32.xlu0 %v1596, 95
        %v1628 = vpop.permute.xlu0 %1627
        %1629 = vrot.lane.b32.xlu0 %v1597, 95
        %v1630 = vpop.permute.xlu0 %1629
        %1631 = vrot.lane.b32.xlu0 %v1598, 95
        %v1632 = vpop.permute.xlu0 %1631
        %1633 = vrot.lane.b32.xlu0 %v1599, 95
        %v1634 = vpop.permute.xlu0 %1633
        %1635 = vrot.lane.b32.xlu0 %v1600, 95
        %v1636 = vpop.permute.xlu0 %1635
        %vm1637 = vcmask 777216
        %v1638 = vsel %vm1637, %v1614, %v1616
        %v1639 = vsel %vm1637, %v1616, %v1618
        %v1640 = vsel %vm1637, %v1620, %v1622
        %v1641 = vsel %vm1637, %v1622, %v1624
        %v1642 = vsel %vm1637, %v1626, %v1628
        %v1643 = vsel %vm1637, %v1628, %v1630
        %v1644 = vsel %vm1637, %v1632, %v1634
        %v1645 = vsel %vm1637, %v1634, %v1636
        %v1658 = vadd.f32 %v1544, %v1614
        %v1659 = vadd.f32 %v1545, %v1638
        %v1660 = vadd.f32 %v1546, %v1639
        %v1661 = vadd.f32 %v1547, %v1620
        %v1662 = vadd.f32 %v1548, %v1640
        %v1663 = vadd.f32 %v1549, %v1641
        %v1664 = vadd.f32 %v1550, %v1626
        %v1665 = vadd.f32 %v1551, %v1642
        %v1666 = vadd.f32 %v1552, %v1643
        %v1667 = vadd.f32 %v1553, %v1632
        %v1668 = vadd.f32 %v1554, %v1644
        %v1669 = vadd.f32 %v1555, %v1645
        %1670 = vrot.lane.b32.xlu0 %v953, 17
        %v1671 = vpop.permute.xlu0 %1670
        %v1672 = vrot.slane %v1671, 7
        %vm1673 = vcmask 138240
        %v1674 = vsel %vm1673, %v1672, %v1671
        %v1676 = vmul.f32 %v1556, %v1674
        %v1677 = vld [vmem:[%s4] sm:$0xff]
        %v1678 = vld [vmem:[%s4 + $0x8] sm:$0xff]
        %v1679 = vld [vmem:[%s4 + $0x10] sm:$0xff]
        %v1680 = vld [vmem:[%s4 + $0x18] sm:$0xff]
        %1682 = vset.pattern.permute.xlu0 8
        %1683 = vperm.xlu0 %1682, %v1677
        %v1684 = vpop.permute.xlu0 %1683
        %1687 = vset.pattern.permute.xlu0 8
        %1688 = vperm.xlu0 %1687, %v1678
        %v1689 = vpop.permute.xlu0 %1688
        %1692 = vset.pattern.permute.xlu0 8
        %1693 = vperm.xlu0 %1692, %v1679
        %v1694 = vpop.permute.xlu0 %1693
        %1697 = vset.pattern.permute.xlu0 8
        %1698 = vperm.xlu0 %1697, %v1680
        %v1699 = vpop.permute.xlu0 %1698
        %v1702 = vlaneseq
        %v1703 = vshrl.u32 %v1702, 7
        %v1704 = vsub.s32 0, %v1703
        %v1705 = vrot.slane %v1676, %v1704
        %v1706 = vlaneseq
        %v1707 = vshrl.u32 %v1706, 7
        %v1708 = vsub.s32 1, %v1707
        %v1709 = vrot.slane %v1676, %v1708
        %v1710 = vlaneseq
        %v1711 = vshrl.u32 %v1710, 7
        %v1712 = vsub.s32 2, %v1711
        %v1713 = vrot.slane %v1676, %v1712
        %v1717 = vmul.f32 %v1684, %v1705
        %v1718 = vmul.f32 %v1684, %v1709
        %v1719 = vmul.f32 %v1684, %v1713
        %v1720 = vmul.f32 %v1689, %v1705
        %v1721 = vmul.f32 %v1689, %v1709
        %v1722 = vmul.f32 %v1689, %v1713
        %v1723 = vmul.f32 %v1694, %v1705
        %v1724 = vmul.f32 %v1694, %v1709
        %v1725 = vmul.f32 %v1694, %v1713
        %v1726 = vmul.f32 %v1699, %v1705
        %v1727 = vmul.f32 %v1699, %v1709
        %v1728 = vmul.f32 %v1699, %v1713
        %1741 = vrot.lane.b32.xlu0 %v1717, 94
        %v1742 = vpop.permute.xlu0 %1741
        %1743 = vrot.lane.b32.xlu0 %v1718, 94
        %v1744 = vpop.permute.xlu0 %1743
        %1745 = vrot.lane.b32.xlu0 %v1719, 94
        %v1746 = vpop.permute.xlu0 %1745
        %1747 = vrot.lane.b32.xlu0 %v1720, 94
        %v1748 = vpop.permute.xlu0 %1747
        %1749 = vrot.lane.b32.xlu0 %v1721, 94
        %v1750 = vpop.permute.xlu0 %1749
        %1751 = vrot.lane.b32.xlu0 %v1722, 94
        %v1752 = vpop.permute.xlu0 %1751
        %1753 = vrot.lane.b32.xlu0 %v1723, 94
        %v1754 = vpop.permute.xlu0 %1753
        %1755 = vrot.lane.b32.xlu0 %v1724, 94
        %v1756 = vpop.permute.xlu0 %1755
        %1757 = vrot.lane.b32.xlu0 %v1725, 94
        %v1758 = vpop.permute.xlu0 %1757
        %1759 = vrot.lane.b32.xlu0 %v1726, 94
        %v1760 = vpop.permute.xlu0 %1759
        %1761 = vrot.lane.b32.xlu0 %v1727, 94
        %v1762 = vpop.permute.xlu0 %1761
        %1763 = vrot.lane.b32.xlu0 %v1728, 94
        %v1764 = vpop.permute.xlu0 %1763
        %vm1765 = vcmask 769024
        %v1766 = vsel %vm1765, %v1742, %v1744
        %v1767 = vsel %vm1765, %v1744, %v1746
        %v1768 = vsel %vm1765, %v1748, %v1750
        %v1769 = vsel %vm1765, %v1750, %v1752
        %v1770 = vsel %vm1765, %v1754, %v1756
        %v1771 = vsel %vm1765, %v1756, %v1758
        %v1772 = vsel %vm1765, %v1760, %v1762
        %v1773 = vsel %vm1765, %v1762, %v1764
        %v1786 = vadd.f32 %v1658, %v1742
        %v1787 = vadd.f32 %v1659, %v1766
        %v1788 = vadd.f32 %v1660, %v1767
        %v1789 = vadd.f32 %v1661, %v1748
        %v1790 = vadd.f32 %v1662, %v1768
        %v1791 = vadd.f32 %v1663, %v1769
        %v1792 = vadd.f32 %v1664, %v1754
        %v1793 = vadd.f32 %v1665, %v1770
        %v1794 = vadd.f32 %v1666, %v1771
        %v1795 = vadd.f32 %v1667, %v1760
        %v1796 = vadd.f32 %v1668, %v1772
        %v1797 = vadd.f32 %v1669, %v1773
        %v1798 = vld [vmem:[%s5] sm:$0xff]
        %v1799 = vld [vmem:[%s5 + $0x8] sm:$0xff]
        %v1800 = vld [vmem:[%s5 + $0x10] sm:$0xff]
        %v1801 = vld [vmem:[%s5 + $0x18] sm:$0xff]
        %1803 = vset.pattern.permute.xlu0 0
        %1804 = vperm.xlu0 %1803, %v1798
        %v1805 = vpop.permute.xlu0 %1804
        %1808 = vset.pattern.permute.xlu0 0
        %1809 = vperm.xlu0 %1808, %v1799
        %v1810 = vpop.permute.xlu0 %1809
        %1813 = vset.pattern.permute.xlu0 0
        %1814 = vperm.xlu0 %1813, %v1800
        %v1815 = vpop.permute.xlu0 %1814
        %1818 = vset.pattern.permute.xlu0 0
        %1819 = vperm.xlu0 %1818, %v1801
        %v1820 = vpop.permute.xlu0 %1819
        %v1822 = vadd.f32 %v1786, %v1805
        %v1823 = vadd.f32 %v1787, %v1805
        %v1824 = vadd.f32 %v1788, %v1805
        %v1825 = vadd.f32 %v1789, %v1810
        %v1826 = vadd.f32 %v1790, %v1810
        %v1827 = vadd.f32 %v1791, %v1810
        %v1828 = vadd.f32 %v1792, %v1815
        %v1829 = vadd.f32 %v1793, %v1815
        %v1830 = vadd.f32 %v1794, %v1815
        %v1831 = vadd.f32 %v1795, %v1820
        %v1832 = vadd.f32 %v1796, %v1820
        %v1833 = vadd.f32 %v1797, %v1820
        %1846 = vrot.lane.b32.xlu0 %v1822, 17
        %v1847 = vpop.permute.xlu0 %1846
        %1848 = vrot.lane.b32.xlu0 %v1823, 17
        %v1849 = vpop.permute.xlu0 %1848
        %1850 = vrot.lane.b32.xlu0 %v1824, 17
        %v1851 = vpop.permute.xlu0 %1850
        %1852 = vrot.lane.b32.xlu0 %v1825, 17
        %v1853 = vpop.permute.xlu0 %1852
        %1854 = vrot.lane.b32.xlu0 %v1826, 17
        %v1855 = vpop.permute.xlu0 %1854
        %1856 = vrot.lane.b32.xlu0 %v1827, 17
        %v1857 = vpop.permute.xlu0 %1856
        %1858 = vrot.lane.b32.xlu0 %v1828, 17
        %v1859 = vpop.permute.xlu0 %1858
        %1860 = vrot.lane.b32.xlu0 %v1829, 17
        %v1861 = vpop.permute.xlu0 %1860
        %1862 = vrot.lane.b32.xlu0 %v1830, 17
        %v1863 = vpop.permute.xlu0 %1862
        %1864 = vrot.lane.b32.xlu0 %v1831, 17
        %v1865 = vpop.permute.xlu0 %1864
        %1866 = vrot.lane.b32.xlu0 %v1832, 17
        %v1867 = vpop.permute.xlu0 %1866
        %1868 = vrot.lane.b32.xlu0 %v1833, 17
        %v1869 = vpop.permute.xlu0 %1868
        %v1870 = vsel %vm1673, %v1847, %v1849
        %v1871 = vsel %vm1673, %v1849, %v1851
        %v1872 = vsel %vm1673, %v1853, %v1855
        %v1873 = vsel %vm1673, %v1855, %v1857
        %v1874 = vsel %vm1673, %v1859, %v1861
        %v1875 = vsel %vm1673, %v1861, %v1863
        %v1876 = vsel %vm1673, %v1865, %v1867
        %v1877 = vsel %vm1673, %v1867, %v1869
        %1886 = vst [vmem:[#allocation2 + $0x8] sm:$0xff] %v1870
        %1887 = vst [vmem:[#allocation2 + $0x10] sm:$0xff] %v1871
        %1888 = vst [vmem:[#allocation2 + $0x28] sm:$0xff] %v1872
        %1889 = vst [vmem:[#allocation2 + $0x30] sm:$0xff] %v1873
        %1890 = vst [vmem:[#allocation2 + $0x48] sm:$0xff] %v1874
        %1891 = vst [vmem:[#allocation2 + $0x50] sm:$0xff] %v1875
        %1892 = vst [vmem:[#allocation2 + $0x68] sm:$0xff] %v1876
        %1893 = vst [vmem:[#allocation2 + $0x70] sm:$0xff] %v1877
        %v1894 = vld [vmem:[#allocation2] sm:$0xff]
        %v1895 = vld [vmem:[#allocation2 + $0x8] sm:$0xff]
        %v1896 = vld [vmem:[#allocation2 + $0x10] sm:$0xff]
        %v1897 = vld [vmem:[#allocation2 + $0x20] sm:$0xff]
        %v1898 = vld [vmem:[#allocation2 + $0x28] sm:$0xff]
        %v1899 = vld [vmem:[#allocation2 + $0x30] sm:$0xff]
        %v1900 = vld [vmem:[#allocation2 + $0x40] sm:$0xff]
        %v1901 = vld [vmem:[#allocation2 + $0x48] sm:$0xff]
        %v1902 = vld [vmem:[#allocation2 + $0x50] sm:$0xff]
        %v1903 = vld [vmem:[#allocation2 + $0x60] sm:$0xff]
        %v1904 = vld [vmem:[#allocation2 + $0x68] sm:$0xff]
        %v1905 = vld [vmem:[#allocation2 + $0x70] sm:$0xff]
        %1906 = vrot.lane.b32.xlu0 %v707, 111
        %v1907 = vpop.permute.xlu0 %1906
        %1908 = vrot.lane.b32.xlu0 %v708, 111
        %v1909 = vpop.permute.xlu0 %1908
        %v1910 = vsel %vm755, %v1907, %v1909
        %v1914 = vmul.f32 %v1894, %v1907
        %v1915 = vmul.f32 %v1895, %v1910
        %v1916 = vmul.f32 %v1896, %v1909
        %v1917 = vmul.f32 %v1897, %v1907
        %v1918 = vmul.f32 %v1898, %v1910
        %v1919 = vmul.f32 %v1899, %v1909
        %v1920 = vmul.f32 %v1900, %v1907
        %v1921 = vmul.f32 %v1901, %v1910
        %v1922 = vmul.f32 %v1902, %v1909
        %v1923 = vmul.f32 %v1903, %v1907
        %v1924 = vmul.f32 %v1904, %v1910
        %v1925 = vmul.f32 %v1905, %v1909
        %v1926 = vld [vmem:[%s6] sm:$0xff]
        %v1927 = vld [vmem:[%s6 + $0x8] sm:$0xff]
        %v1928 = vld [vmem:[%s6 + $0x10] sm:$0xff]
        %v1929 = vld [vmem:[%s6 + $0x18] sm:$0xff]
        %s1930 = scalar_lea.vmem %s6, 32
        %v1931 = vld [vmem:[%s1930] sm:$0xff]
        %v1932 = vld [vmem:[%s1930 + $0x8] sm:$0xff]
        %v1933 = vld [vmem:[%s1930 + $0x10] sm:$0xff]
        %v1934 = vld [vmem:[%s1930 + $0x18] sm:$0xff]
        %1947 = vrot.lane.b32.xlu0 %v1894, 16
        %v1948 = vpop.permute.xlu0 %1947
        %1949 = vrot.lane.b32.xlu0 %v1895, 16
        %v1950 = vpop.permute.xlu0 %1949
        %1951 = vrot.lane.b32.xlu0 %v1896, 16
        %v1952 = vpop.permute.xlu0 %1951
        %1953 = vrot.lane.b32.xlu0 %v1897, 16
        %v1954 = vpop.permute.xlu0 %1953
        %1955 = vrot.lane.b32.xlu0 %v1898, 16
        %v1956 = vpop.permute.xlu0 %1955
        %1957 = vrot.lane.b32.xlu0 %v1899, 16
        %v1958 = vpop.permute.xlu0 %1957
        %1959 = vrot.lane.b32.xlu0 %v1900, 16
        %v1960 = vpop.permute.xlu0 %1959
        %1961 = vrot.lane.b32.xlu0 %v1901, 16
        %v1962 = vpop.permute.xlu0 %1961
        %1963 = vrot.lane.b32.xlu0 %v1902, 16
        %v1964 = vpop.permute.xlu0 %1963
        %1965 = vrot.lane.b32.xlu0 %v1903, 16
        %v1966 = vpop.permute.xlu0 %1965
        %1967 = vrot.lane.b32.xlu0 %v1904, 16
        %v1968 = vpop.permute.xlu0 %1967
        %1969 = vrot.lane.b32.xlu0 %v1905, 16
        %v1970 = vpop.permute.xlu0 %1969
        %vm1971 = vcmask 130048
        %v1972 = vsel %vm1971, %v1948, %v1950
        %v1973 = vsel %vm1971, %v1950, %v1952
        %v1974 = vsel %vm1971, %v1954, %v1956
        %v1975 = vsel %vm1971, %v1956, %v1958
        %v1976 = vsel %vm1971, %v1960, %v1962
        %v1977 = vsel %vm1971, %v1962, %v1964
        %v1978 = vsel %vm1971, %v1966, %v1968
        %v1979 = vsel %vm1971, %v1968, %v1970
        %vm1988 = vcmask 261120
        %v1990 = vsel %vm1988, %v1931, 0
        %v1993 = vsel %vm1988, %v1932, 0
        %v1996 = vsel %vm1988, %v1933, 0
        %v1999 = vsel %vm1988, %v1934, 0
        %2001 = vmatprep.subr.mxu0 %v1973
        %2002 = vmatpush1.msra.mxu0 %v1972
        %2003 = vmatprep.subr.mxu0 %v1975
        %2004 = vmatpush1.msra.mxu0 %v1974
        %2005 = vmatprep.subr.mxu0 %v1977
        %2006 = vmatpush1.msra.mxu0 %v1976
        %2007 = vmatprep.subr.mxu0 %v1979
        %2008 = vmatpush1.msra.mxu0 %v1978
        %2009 = vmatprep.subr.mxu0 0.0
        %2010 = vmatpush1.msra.mxu0 0.0
        %2011 = vmatprep.subr.mxu0 0.0
        %2012 = vmatpush1.msra.mxu0 0.0
        %2013 = vmatprep.subr.mxu0 0.0
        %2014 = vmatpush1.msra.mxu0 0.0
        %2015 = vmatprep.subr.mxu0 0.0
        %2016 = vmatpush1.msra.mxu0 0.0
        %2017 = vmatprep.subr.mxu0 0.0
        %2018 = vmatpush1.msra.mxu0 0.0
        %2019 = vmatprep.subr.mxu0 0.0
        %2020 = vmatpush1.msra.mxu0 0.0
        %2021 = vmatprep.subr.mxu0 0.0
        %2022 = vmatpush1.msra.mxu0 0.0
        %2023 = vmatprep.subr.mxu0 0.0
        %2024 = vmatpush1.msra.mxu0 0.0
        %2025 = vmatprep.subr.mxu0 0.0
        %2026 = vmatpush1.msra.mxu0 0.0
        %2027 = vmatprep.subr.mxu0 0.0
        %2028 = vmatpush1.msra.mxu0 0.0
        %2029 = vmatprep.subr.mxu0 0.0
        %2030 = vmatpush1.msra.mxu0 0.0
        %2031 = vmatprep.subr.mxu0 0.0
        %2032 = vmatpush1.msra.mxu0 0.0
        %2033 = vmatprep.subr.mxu0 0.0
        %2034 = vmatpush1.msra.mxu0 0.0
        %2035 = vmatprep.subr.mxu0 0.0
        %2036 = vmatpush1.msra.mxu0 0.0
        %2037 = vmatprep.subr.mxu0 0.0
        %2038 = vmatpush1.msra.mxu0 0.0
        %2039 = vmatprep.subr.mxu0 0.0
        %2040 = vmatpush1.msra.mxu0 0.0
        %2041 = vmatprep.subr.mxu0 0.0
        %2042 = vmatpush1.msra.mxu0 0.0
        %2043 = vmatprep.subr.mxu0 0.0
        %2044 = vmatpush1.msra.mxu0 0.0
        %2045 = vmatprep.subr.mxu0 0.0
        %2046 = vmatpush1.msra.mxu0 0.0
        %2047 = vmatprep.subr.mxu0 0.0
        %2048 = vmatpush1.msra.mxu0 0.0
        %2049 = vmatprep.subr.mxu0 0.0
        %2050 = vmatpush1.msra.mxu0 0.0
        %2051 = vmatprep.subr.mxu0 0.0
        %2052 = vmatpush1.msra.mxu0 0.0
        %2053 = vmatprep.subr.mxu0 0.0
        %2054 = vmatpush1.msra.mxu0 0.0
        %2055 = vmatprep.subr.mxu0 0.0
        %2056 = vmatpush1.msra.mxu0 0.0
        %2057 = vmatprep.subr.mxu0 0.0
        %2058 = vmatpush1.msra.mxu0 0.0
        %2059 = vmatprep.subr.mxu0 0.0
        %2060 = vmatpush1.msra.mxu0 0.0
        %2061 = vmatprep.subr.mxu0 0.0
        %2062 = vmatpush1.msra.mxu0 0.0
        %2063 = vmatprep.subr.mxu0 0.0
        %2064 = vmatpush1.msra.mxu0 0.0
        %2065 = vmatprep.mubr.f32.mxu0 0.0
        %2066 = vmatmul.mubr.f32.gmra.mrb[0].mxu0 %v1990
        %v2067 = vpop.f32.mrb[0].mxu0
        %v2068 = vadd.f32 0.0, %v2067
        %v2069 = vpop.f32.mrb[0].mxu0
        %v2070 = vadd.f32 0.0, %v2069
        %2071 = vmatprep.mubr.f32.mxu0 0.0
        %2072 = vmatmul.mubr.f32.gmra.mrb[0].mxu0 %v1993
        %v2073 = vpop.f32.mrb[0].mxu0
        %v2074 = vadd.f32 0.0, %v2073
        %v2075 = vpop.f32.mrb[0].mxu0
        %v2076 = vadd.f32 0.0, %v2075
        %2077 = vmatprep.mubr.f32.mxu0 0.0
        %2078 = vmatmul.mubr.f32.gmra.mrb[0].mxu0 %v1996
        %v2079 = vpop.f32.mrb[0].mxu0
        %v2080 = vadd.f32 0.0, %v2079
        %v2081 = vpop.f32.mrb[0].mxu0
        %v2082 = vadd.f32 0.0, %v2081
        %2083 = vmatprep.mubr.f32.mxu0 0.0
        %2084 = vmatmul.mubr.f32.gmra.mrb[0].mxu0 %v1999
        %v2085 = vpop.f32.mrb[0].mxu0
        %v2086 = vadd.f32 0.0, %v2085
        %v2087 = vpop.f32.mrb[0].mxu0
        %v2088 = vadd.f32 0.0, %v2087
        %2089 = vdwg.mxu0
        %2102 = vrot.lane.b32.xlu0 %v1914, 17
        %v2103 = vpop.permute.xlu0 %2102
        %2104 = vrot.lane.b32.xlu0 %v1915, 17
        %v2105 = vpop.permute.xlu0 %2104
        %2106 = vrot.lane.b32.xlu0 %v1916, 17
        %v2107 = vpop.permute.xlu0 %2106
        %2108 = vrot.lane.b32.xlu0 %v1917, 17
        %v2109 = vpop.permute.xlu0 %2108
        %2110 = vrot.lane.b32.xlu0 %v1918, 17
        %v2111 = vpop.permute.xlu0 %2110
        %2112 = vrot.lane.b32.xlu0 %v1919, 17
        %v2113 = vpop.permute.xlu0 %2112
        %2114 = vrot.lane.b32.xlu0 %v1920, 17
        %v2115 = vpop.permute.xlu0 %2114
        %2116 = vrot.lane.b32.xlu0 %v1921, 17
        %v2117 = vpop.permute.xlu0 %2116
        %2118 = vrot.lane.b32.xlu0 %v1922, 17
        %v2119 = vpop.permute.xlu0 %2118
        %2120 = vrot.lane.b32.xlu0 %v1923, 17
        %v2121 = vpop.permute.xlu0 %2120
        %2122 = vrot.lane.b32.xlu0 %v1924, 17
        %v2123 = vpop.permute.xlu0 %2122
        %2124 = vrot.lane.b32.xlu0 %v1925, 17
        %v2125 = vpop.permute.xlu0 %2124
        %v2126 = vsel %vm1673, %v2103, %v2105
        %v2127 = vsel %vm1673, %v2105, %v2107
        %v2128 = vsel %vm1673, %v2109, %v2111
        %v2129 = vsel %vm1673, %v2111, %v2113
        %v2130 = vsel %vm1673, %v2115, %v2117
        %v2131 = vsel %vm1673, %v2117, %v2119
        %v2132 = vsel %vm1673, %v2121, %v2123
        %v2133 = vsel %vm1673, %v2123, %v2125
        %v2143 = vsel %vm1988, %v1926, 0
        %v2146 = vsel %vm1988, %v1927, 0
        %v2149 = vsel %vm1988, %v1928, 0
        %v2152 = vsel %vm1988, %v1929, 0
        %2154 = vmatprep.subr.mxu0 %v2127
        %2155 = vmatpush1.msra.mxu0 %v2126
        %2156 = vmatprep.subr.mxu0 %v2129
        %2157 = vmatpush1.msra.mxu0 %v2128
        %2158 = vmatprep.subr.mxu0 %v2131
        %2159 = vmatpush1.msra.mxu0 %v2130
        %2160 = vmatprep.subr.mxu0 %v2133
        %2161 = vmatpush1.msra.mxu0 %v2132
        %2162 = vmatprep.subr.mxu0 0.0
        %2163 = vmatpush1.msra.mxu0 0.0
        %2164 = vmatprep.subr.mxu0 0.0
        %2165 = vmatpush1.msra.mxu0 0.0
        %2166 = vmatprep.subr.mxu0 0.0
        %2167 = vmatpush1.msra.mxu0 0.0
        %2168 = vmatprep.subr.mxu0 0.0
        %2169 = vmatpush1.msra.mxu0 0.0
        %2170 = vmatprep.subr.mxu0 0.0
        %2171 = vmatpush1.msra.mxu0 0.0
        %2172 = vmatprep.subr.mxu0 0.0
        %2173 = vmatpush1.msra.mxu0 0.0
        %2174 = vmatprep.subr.mxu0 0.0
        %2175 = vmatpush1.msra.mxu0 0.0
        %2176 = vmatprep.subr.mxu0 0.0
        %2177 = vmatpush1.msra.mxu0 0.0
        %2178 = vmatprep.subr.mxu0 0.0
        %2179 = vmatpush1.msra.mxu0 0.0
        %2180 = vmatprep.subr.mxu0 0.0
        %2181 = vmatpush1.msra.mxu0 0.0
        %2182 = vmatprep.subr.mxu0 0.0
        %2183 = vmatpush1.msra.mxu0 0.0
        %2184 = vmatprep.subr.mxu0 0.0
        %2185 = vmatpush1.msra.mxu0 0.0
        %2186 = vmatprep.subr.mxu0 0.0
        %2187 = vmatpush1.msra.mxu0 0.0
        %2188 = vmatprep.subr.mxu0 0.0
        %2189 = vmatpush1.msra.mxu0 0.0
        %2190 = vmatprep.subr.mxu0 0.0
        %2191 = vmatpush1.msra.mxu0 0.0
        %2192 = vmatprep.subr.mxu0 0.0
        %2193 = vmatpush1.msra.mxu0 0.0
        %2194 = vmatprep.subr.mxu0 0.0
        %2195 = vmatpush1.msra.mxu0 0.0
        %2196 = vmatprep.subr.mxu0 0.0
        %2197 = vmatpush1.msra.mxu0 0.0
        %2198 = vmatprep.subr.mxu0 0.0
        %2199 = vmatpush1.msra.mxu0 0.0
        %2200 = vmatprep.subr.mxu0 0.0
        %2201 = vmatpush1.msra.mxu0 0.0
        %2202 = vmatprep.subr.mxu0 0.0
        %2203 = vmatpush1.msra.mxu0 0.0
        %2204 = vmatprep.subr.mxu0 0.0
        %2205 = vmatpush1.msra.mxu0 0.0
        %2206 = vmatprep.subr.mxu0 0.0
        %2207 = vmatpush1.msra.mxu0 0.0
        %2208 = vmatprep.subr.mxu0 0.0
        %2209 = vmatpush1.msra.mxu0 0.0
        %2210 = vmatprep.subr.mxu0 0.0
        %2211 = vmatpush1.msra.mxu0 0.0
        %2212 = vmatprep.subr.mxu0 0.0
        %2213 = vmatpush1.msra.mxu0 0.0
        %2214 = vmatprep.subr.mxu0 0.0
        %2215 = vmatpush1.msra.mxu0 0.0
        %2216 = vmatprep.subr.mxu0 0.0
        %2217 = vmatpush1.msra.mxu0 0.0
        %2218 = vmatprep.mubr.f32.mxu0 0.0
        %2219 = vmatmul.mubr.f32.gmra.mrb[0].mxu0 %v2143
        %v2220 = vpop.f32.mrb[0].mxu0
        %v2221 = vadd.f32 %v2068, %v2220
        %v2222 = vpop.f32.mrb[0].mxu0
        %v2223 = vadd.f32 %v2070, %v2222
        %2224 = vmatprep.mubr.f32.mxu0 0.0
        %2225 = vmatmul.mubr.f32.gmra.mrb[0].mxu0 %v2146
        %v2226 = vpop.f32.mrb[0].mxu0
        %v2227 = vadd.f32 %v2074, %v2226
        %v2228 = vpop.f32.mrb[0].mxu0
        %v2229 = vadd.f32 %v2076, %v2228
        %2230 = vmatprep.mubr.f32.mxu0 0.0
        %2231 = vmatmul.mubr.f32.gmra.mrb[0].mxu0 %v2149
        %v2232 = vpop.f32.mrb[0].mxu0
        %v2233 = vadd.f32 %v2080, %v2232
        %v2234 = vpop.f32.mrb[0].mxu0
        %v2235 = vadd.f32 %v2082, %v2234
        %2236 = vmatprep.mubr.f32.mxu0 0.0
        %2237 = vmatmul.mubr.f32.gmra.mrb[0].mxu0 %v2152
        %v2238 = vpop.f32.mrb[0].mxu0
        %v2239 = vadd.f32 %v2086, %v2238
        %v2240 = vpop.f32.mrb[0].mxu0
        %v2241 = vadd.f32 %v2088, %v2240
        %2242 = vdwg.mxu0
        %2243 = vrot.lane.b32.xlu0 %v713, 113
        %v2244 = vpop.permute.xlu0 %2243
        %2245 = vrot.lane.b32.xlu0 %v714, 113
        %v2246 = vpop.permute.xlu0 %2245
        %v2247 = vsel %vm957, %v2244, %v2246
        %v2251 = vmul.f32 %v1894, %v2244
        %v2252 = vmul.f32 %v1895, %v2247
        %v2253 = vmul.f32 %v1896, %v2246
        %v2254 = vmul.f32 %v1897, %v2244
        %v2255 = vmul.f32 %v1898, %v2247
        %v2256 = vmul.f32 %v1899, %v2246
        %v2257 = vmul.f32 %v1900, %v2244
        %v2258 = vmul.f32 %v1901, %v2247
        %v2259 = vmul.f32 %v1902, %v2246
        %v2260 = vmul.f32 %v1903, %v2244
        %v2261 = vmul.f32 %v1904, %v2247
        %v2262 = vmul.f32 %v1905, %v2246
        %s2263 = scalar_lea.vmem %s6, 64
        %v2264 = vld [vmem:[%s2263] sm:$0xff]
        %v2265 = vld [vmem:[%s2263 + $0x8] sm:$0xff]
        %v2266 = vld [vmem:[%s2263 + $0x10] sm:$0xff]
        %v2267 = vld [vmem:[%s2263 + $0x18] sm:$0xff]
        %2280 = vrot.lane.b32.xlu0 %v2251, 15
        %v2281 = vpop.permute.xlu0 %2280
        %2282 = vrot.lane.b32.xlu0 %v2252, 15
        %v2283 = vpop.permute.xlu0 %2282
        %2284 = vrot.lane.b32.xlu0 %v2253, 15
        %v2285 = vpop.permute.xlu0 %2284
        %2286 = vrot.lane.b32.xlu0 %v2254, 15
        %v2287 = vpop.permute.xlu0 %2286
        %2288 = vrot.lane.b32.xlu0 %v2255, 15
        %v2289 = vpop.permute.xlu0 %2288
        %2290 = vrot.lane.b32.xlu0 %v2256, 15
        %v2291 = vpop.permute.xlu0 %2290
        %2292 = vrot.lane.b32.xlu0 %v2257, 15
        %v2293 = vpop.permute.xlu0 %2292
        %2294 = vrot.lane.b32.xlu0 %v2258, 15
        %v2295 = vpop.permute.xlu0 %2294
        %2296 = vrot.lane.b32.xlu0 %v2259, 15
        %v2297 = vpop.permute.xlu0 %2296
        %2298 = vrot.lane.b32.xlu0 %v2260, 15
        %v2299 = vpop.permute.xlu0 %2298
        %2300 = vrot.lane.b32.xlu0 %v2261, 15
        %v2301 = vpop.permute.xlu0 %2300
        %2302 = vrot.lane.b32.xlu0 %v2262, 15
        %v2303 = vpop.permute.xlu0 %2302
        %v2304 = vsel %vm1431, %v2281, %v2283
        %v2305 = vsel %vm1431, %v2283, %v2285
        %v2306 = vsel %vm1431, %v2287, %v2289
        %v2307 = vsel %vm1431, %v2289, %v2291
        %v2308 = vsel %vm1431, %v2293, %v2295
        %v2309 = vsel %vm1431, %v2295, %v2297
        %v2310 = vsel %vm1431, %v2299, %v2301
        %v2311 = vsel %vm1431, %v2301, %v2303
        %v2321 = vsel %vm1988, %v2264, 0
        %v2324 = vsel %vm1988, %v2265, 0
        %v2327 = vsel %vm1988, %v2266, 0
        %v2330 = vsel %vm1988, %v2267, 0
        %2332 = vmatprep.subr.mxu0 %v2305
        %2333 = vmatpush1.msra.mxu0 %v2304
        %2334 = vmatprep.subr.mxu0 %v2307
        %2335 = vmatpush1.msra.mxu0 %v2306
        %2336 = vmatprep.subr.mxu0 %v2309
        %2337 = vmatpush1.msra.mxu0 %v2308
        %2338 = vmatprep.subr.mxu0 %v2311
        %2339 = vmatpush1.msra.mxu0 %v2310
        %2340 = vmatprep.subr.mxu0 0.0
        %2341 = vmatpush1.msra.mxu0 0.0
        %2342 = vmatprep.subr.mxu0 0.0
        %2343 = vmatpush1.msra.mxu0 0.0
        %2344 = vmatprep.subr.mxu0 0.0
        %2345 = vmatpush1.msra.mxu0 0.0
        %2346 = vmatprep.subr.mxu0 0.0
        %2347 = vmatpush1.msra.mxu0 0.0
        %2348 = vmatprep.subr.mxu0 0.0
        %2349 = vmatpush1.msra.mxu0 0.0
        %2350 = vmatprep.subr.mxu0 0.0
        %2351 = vmatpush1.msra.mxu0 0.0
        %2352 = vmatprep.subr.mxu0 0.0
        %2353 = vmatpush1.msra.mxu0 0.0
        %2354 = vmatprep.subr.mxu0 0.0
        %2355 = vmatpush1.msra.mxu0 0.0
        %2356 = vmatprep.subr.mxu0 0.0
        %2357 = vmatpush1.msra.mxu0 0.0
        %2358 = vmatprep.subr.mxu0 0.0
        %2359 = vmatpush1.msra.mxu0 0.0
        %2360 = vmatprep.subr.mxu0 0.0
        %2361 = vmatpush1.msra.mxu0 0.0
        %2362 = vmatprep.subr.mxu0 0.0
        %2363 = vmatpush1.msra.mxu0 0.0
        %2364 = vmatprep.subr.mxu0 0.0
        %2365 = vmatpush1.msra.mxu0 0.0
        %2366 = vmatprep.subr.mxu0 0.0
        %2367 = vmatpush1.msra.mxu0 0.0
        %2368 = vmatprep.subr.mxu0 0.0
        %2369 = vmatpush1.msra.mxu0 0.0
        %2370 = vmatprep.subr.mxu0 0.0
        %2371 = vmatpush1.msra.mxu0 0.0
        %2372 = vmatprep.subr.mxu0 0.0
        %2373 = vmatpush1.msra.mxu0 0.0
        %2374 = vmatprep.subr.mxu0 0.0
        %2375 = vmatpush1.msra.mxu0 0.0
        %2376 = vmatprep.subr.mxu0 0.0
        %2377 = vmatpush1.msra.mxu0 0.0
        %2378 = vmatprep.subr.mxu0 0.0
        %2379 = vmatpush1.msra.mxu0 0.0
        %2380 = vmatprep.subr.mxu0 0.0
        %2381 = vmatpush1.msra.mxu0 0.0
        %2382 = vmatprep.subr.mxu0 0.0
        %2383 = vmatpush1.msra.mxu0 0.0
        %2384 = vmatprep.subr.mxu0 0.0
        %2385 = vmatpush1.msra.mxu0 0.0
        %2386 = vmatprep.subr.mxu0 0.0
        %2387 = vmatpush1.msra.mxu0 0.0
        %2388 = vmatprep.subr.mxu0 0.0
        %2389 = vmatpush1.msra.mxu0 0.0
        %2390 = vmatprep.subr.mxu0 0.0
        %2391 = vmatpush1.msra.mxu0 0.0
        %2392 = vmatprep.subr.mxu0 0.0
        %2393 = vmatpush1.msra.mxu0 0.0
        %2394 = vmatprep.subr.mxu0 0.0
        %2395 = vmatpush1.msra.mxu0 0.0
        %2396 = vmatprep.mubr.f32.mxu0 0.0
        %2397 = vmatmul.mubr.f32.gmra.mrb[0].mxu0 %v2321
        %v2398 = vpop.f32.mrb[0].mxu0
        %v2399 = vadd.f32 0.0, %v2398
        %v2400 = vpop.f32.mrb[0].mxu0
        %v2401 = vadd.f32 0.0, %v2400
        %2402 = vmatprep.mubr.f32.mxu0 0.0
        %2403 = vmatmul.mubr.f32.gmra.mrb[0].mxu0 %v2324
        %v2404 = vpop.f32.mrb[0].mxu0
        %v2405 = vadd.f32 0.0, %v2404
        %v2406 = vpop.f32.mrb[0].mxu0
        %v2407 = vadd.f32 0.0, %v2406
        %2408 = vmatprep.mubr.f32.mxu0 0.0
        %2409 = vmatmul.mubr.f32.gmra.mrb[0].mxu0 %v2327
        %v2410 = vpop.f32.mrb[0].mxu0
        %v2411 = vadd.f32 0.0, %v2410
        %v2412 = vpop.f32.mrb[0].mxu0
        %v2413 = vadd.f32 0.0, %v2412
        %2414 = vmatprep.mubr.f32.mxu0 0.0
        %2415 = vmatmul.mubr.f32.gmra.mrb[0].mxu0 %v2330
        %v2416 = vpop.f32.mrb[0].mxu0
        %v2417 = vadd.f32 0.0, %v2416
        %v2418 = vpop.f32.mrb[0].mxu0
        %v2419 = vadd.f32 0.0, %v2418
        %2420 = vdwg.mxu0
        %v2421 = vadd.f32 %v2221, %v2399
        %v2422 = vadd.f32 %v2223, %v2401
        %v2423 = vadd.f32 %v2227, %v2405
        %v2424 = vadd.f32 %v2229, %v2407
        %v2425 = vadd.f32 %v2233, %v2411
        %v2426 = vadd.f32 %v2235, %v2413
        %v2427 = vadd.f32 %v2239, %v2417
        %v2428 = vadd.f32 %v2241, %v2419
        %2429 = vrot.lane.b32.xlu0 %v707, 127
        %v2430 = vpop.permute.xlu0 %2429
        %2431 = vrot.lane.b32.xlu0 %v708, 127
        %v2432 = vpop.permute.xlu0 %2431
        %v2433 = vsel %vm904, %v2430, %v2432
        %v2437 = vmul.f32 %v1894, %v2430
        %v2438 = vmul.f32 %v1895, %v2433
        %v2439 = vmul.f32 %v1896, %v2432
        %v2440 = vmul.f32 %v1897, %v2430
        %v2441 = vmul.f32 %v1898, %v2433
        %v2442 = vmul.f32 %v1899, %v2432
        %v2443 = vmul.f32 %v1900, %v2430
        %v2444 = vmul.f32 %v1901, %v2433
        %v2445 = vmul.f32 %v1902, %v2432
        %v2446 = vmul.f32 %v1903, %v2430
        %v2447 = vmul.f32 %v1904, %v2433
        %v2448 = vmul.f32 %v1905, %v2432
        %s2449 = scalar_lea.vmem %s6, 96
        %v2450 = vld [vmem:[%s2449] sm:$0xff]
        %v2451 = vld [vmem:[%s2449 + $0x8] sm:$0xff]
        %v2452 = vld [vmem:[%s2449 + $0x10] sm:$0xff]
        %v2453 = vld [vmem:[%s2449 + $0x18] sm:$0xff]
        %2466 = vrot.lane.b32.xlu0 %v2437, 1
        %v2467 = vpop.permute.xlu0 %2466
        %2468 = vrot.lane.b32.xlu0 %v2438, 1
        %v2469 = vpop.permute.xlu0 %2468
        %2470 = vrot.lane.b32.xlu0 %v2439, 1
        %v2471 = vpop.permute.xlu0 %2470
        %2472 = vrot.lane.b32.xlu0 %v2440, 1
        %v2473 = vpop.permute.xlu0 %2472
        %2474 = vrot.lane.b32.xlu0 %v2441, 1
        %v2475 = vpop.permute.xlu0 %2474
        %2476 = vrot.lane.b32.xlu0 %v2442, 1
        %v2477 = vpop.permute.xlu0 %2476
        %2478 = vrot.lane.b32.xlu0 %v2443, 1
        %v2479 = vpop.permute.xlu0 %2478
        %2480 = vrot.lane.b32.xlu0 %v2444, 1
        %v2481 = vpop.permute.xlu0 %2480
        %2482 = vrot.lane.b32.xlu0 %v2445, 1
        %v2483 = vpop.permute.xlu0 %2482
        %2484 = vrot.lane.b32.xlu0 %v2446, 1
        %v2485 = vpop.permute.xlu0 %2484
        %2486 = vrot.lane.b32.xlu0 %v2447, 1
        %v2487 = vpop.permute.xlu0 %2486
        %2488 = vrot.lane.b32.xlu0 %v2448, 1
        %v2489 = vpop.permute.xlu0 %2488
        %v2490 = vsel %vm1302, %v2467, %v2469
        %v2491 = vsel %vm1302, %v2469, %v2471
        %v2492 = vsel %vm1302, %v2473, %v2475
        %v2493 = vsel %vm1302, %v2475, %v2477
        %v2494 = vsel %vm1302, %v2479, %v2481
        %v2495 = vsel %vm1302, %v2481, %v2483
        %v2496 = vsel %vm1302, %v2485, %v2487
        %v2497 = vsel %vm1302, %v2487, %v2489
        %v2507 = vsel %vm1988, %v2450, 0
        %v2510 = vsel %vm1988, %v2451, 0
        %v2513 = vsel %vm1988, %v2452, 0
        %v2516 = vsel %vm1988, %v2453, 0
        %2518 = vmatprep.subr.mxu0 %v2491
        %2519 = vmatpush1.msra.mxu0 %v2490
        %2520 = vmatprep.subr.mxu0 %v2493
        %2521 = vmatpush1.msra.mxu0 %v2492
        %2522 = vmatprep.subr.mxu0 %v2495
        %2523 = vmatpush1.msra.mxu0 %v2494
        %2524 = vmatprep.subr.mxu0 %v2497
        %2525 = vmatpush1.msra.mxu0 %v2496
        %2526 = vmatprep.subr.mxu0 0.0
        %2527 = vmatpush1.msra.mxu0 0.0
        %2528 = vmatprep.subr.mxu0 0.0
        %2529 = vmatpush1.msra.mxu0 0.0
        %2530 = vmatprep.subr.mxu0 0.0
        %2531 = vmatpush1.msra.mxu0 0.0
        %2532 = vmatprep.subr.mxu0 0.0
        %2533 = vmatpush1.msra.mxu0 0.0
        %2534 = vmatprep.subr.mxu0 0.0
        %2535 = vmatpush1.msra.mxu0 0.0
        %2536 = vmatprep.subr.mxu0 0.0
        %2537 = vmatpush1.msra.mxu0 0.0
        %2538 = vmatprep.subr.mxu0 0.0
        %2539 = vmatpush1.msra.mxu0 0.0
        %2540 = vmatprep.subr.mxu0 0.0
        %2541 = vmatpush1.msra.mxu0 0.0
        %2542 = vmatprep.subr.mxu0 0.0
        %2543 = vmatpush1.msra.mxu0 0.0
        %2544 = vmatprep.subr.mxu0 0.0
        %2545 = vmatpush1.msra.mxu0 0.0
        %2546 = vmatprep.subr.mxu0 0.0
        %2547 = vmatpush1.msra.mxu0 0.0
        %2548 = vmatprep.subr.mxu0 0.0
        %2549 = vmatpush1.msra.mxu0 0.0
        %2550 = vmatprep.subr.mxu0 0.0
        %2551 = vmatpush1.msra.mxu0 0.0
        %2552 = vmatprep.subr.mxu0 0.0
        %2553 = vmatpush1.msra.mxu0 0.0
        %2554 = vmatprep.subr.mxu0 0.0
        %2555 = vmatpush1.msra.mxu0 0.0
        %2556 = vmatprep.subr.mxu0 0.0
        %2557 = vmatpush1.msra.mxu0 0.0
        %2558 = vmatprep.subr.mxu0 0.0
        %2559 = vmatpush1.msra.mxu0 0.0
        %2560 = vmatprep.subr.mxu0 0.0
        %2561 = vmatpush1.msra.mxu0 0.0
        %2562 = vmatprep.subr.mxu0 0.0
        %2563 = vmatpush1.msra.mxu0 0.0
        %2564 = vmatprep.subr.mxu0 0.0
        %2565 = vmatpush1.msra.mxu0 0.0
        %2566 = vmatprep.subr.mxu0 0.0
        %2567 = vmatpush1.msra.mxu0 0.0
        %2568 = vmatprep.subr.mxu0 0.0
        %2569 = vmatpush1.msra.mxu0 0.0
        %2570 = vmatprep.subr.mxu0 0.0
        %2571 = vmatpush1.msra.mxu0 0.0
        %2572 = vmatprep.subr.mxu0 0.0
        %2573 = vmatpush1.msra.mxu0 0.0
        %2574 = vmatprep.subr.mxu0 0.0
        %2575 = vmatpush1.msra.mxu0 0.0
        %2576 = vmatprep.subr.mxu0 0.0
        %2577 = vmatpush1.msra.mxu0 0.0
        %2578 = vmatprep.subr.mxu0 0.0
        %2579 = vmatpush1.msra.mxu0 0.0
        %2580 = vmatprep.subr.mxu0 0.0
        %2581 = vmatpush1.msra.mxu0 0.0
        %2582 = vmatprep.mubr.f32.mxu0 0.0
        %2583 = vmatmul.mubr.f32.gmra.mrb[0].mxu0 %v2507
        %v2584 = vpop.f32.mrb[0].mxu0
        %v2585 = vadd.f32 0.0, %v2584
        %v2586 = vpop.f32.mrb[0].mxu0
        %v2587 = vadd.f32 0.0, %v2586
        %2588 = vmatprep.mubr.f32.mxu0 0.0
        %2589 = vmatmul.mubr.f32.gmra.mrb[0].mxu0 %v2510
        %v2590 = vpop.f32.mrb[0].mxu0
        %v2591 = vadd.f32 0.0, %v2590
        %v2592 = vpop.f32.mrb[0].mxu0
        %v2593 = vadd.f32 0.0, %v2592
        %2594 = vmatprep.mubr.f32.mxu0 0.0
        %2595 = vmatmul.mubr.f32.gmra.mrb[0].mxu0 %v2513
        %v2596 = vpop.f32.mrb[0].mxu0
        %v2597 = vadd.f32 0.0, %v2596
        %v2598 = vpop.f32.mrb[0].mxu0
        %v2599 = vadd.f32 0.0, %v2598
        %2600 = vmatprep.mubr.f32.mxu0 0.0
        %2601 = vmatmul.mubr.f32.gmra.mrb[0].mxu0 %v2516
        %v2602 = vpop.f32.mrb[0].mxu0
        %v2603 = vadd.f32 0.0, %v2602
        %v2604 = vpop.f32.mrb[0].mxu0
        %v2605 = vadd.f32 0.0, %v2604
        %2606 = vdwg.mxu0
        %v2607 = vadd.f32 %v2421, %v2585
        %v2608 = vadd.f32 %v2422, %v2587
        %v2609 = vadd.f32 %v2423, %v2591
        %v2610 = vadd.f32 %v2424, %v2593
        %v2611 = vadd.f32 %v2425, %v2597
        %v2612 = vadd.f32 %v2426, %v2599
        %v2613 = vadd.f32 %v2427, %v2603
        %v2614 = vadd.f32 %v2428, %v2605
        %s2615 = scalar_lea.vmem %s6, 128
        %v2616 = vld [vmem:[%s2615] sm:$0xff]
        %v2617 = vld [vmem:[%s2615 + $0x8] sm:$0xff]
        %v2618 = vld [vmem:[%s2615 + $0x10] sm:$0xff]
        %v2619 = vld [vmem:[%s2615 + $0x18] sm:$0xff]
        %v2621 = vsel %vm1988, %v2616, 0
        %v2624 = vsel %vm1988, %v2617, 0
        %v2627 = vsel %vm1988, %v2618, 0
        %v2630 = vsel %vm1988, %v2619, 0
        %2632 = vmatprep.subr.mxu0 %v1896
        %2633 = vmatpush1.msra.mxu0 %v1895
        %2634 = vmatprep.subr.mxu0 %v1899
        %2635 = vmatpush1.msra.mxu0 %v1898
        %2636 = vmatprep.subr.mxu0 %v1902
        %2637 = vmatpush1.msra.mxu0 %v1901
        %2638 = vmatprep.subr.mxu0 %v1905
        %2639 = vmatpush1.msra.mxu0 %v1904
        %2640 = vmatprep.subr.mxu0 0.0
        %2641 = vmatpush1.msra.mxu0 0.0
        %2642 = vmatprep.subr.mxu0 0.0
        %2643 = vmatpush1.msra.mxu0 0.0
        %2644 = vmatprep.subr.mxu0 0.0
        %2645 = vmatpush1.msra.mxu0 0.0
        %2646 = vmatprep.subr.mxu0 0.0
        %2647 = vmatpush1.msra.mxu0 0.0
        %2648 = vmatprep.subr.mxu0 0.0
        %2649 = vmatpush1.msra.mxu0 0.0
        %2650 = vmatprep.subr.mxu0 0.0
        %2651 = vmatpush1.msra.mxu0 0.0
        %2652 = vmatprep.subr.mxu0 0.0
        %2653 = vmatpush1.msra.mxu0 0.0
        %2654 = vmatprep.subr.mxu0 0.0
        %2655 = vmatpush1.msra.mxu0 0.0
        %2656 = vmatprep.subr.mxu0 0.0
        %2657 = vmatpush1.msra.mxu0 0.0
        %2658 = vmatprep.subr.mxu0 0.0
        %2659 = vmatpush1.msra.mxu0 0.0
        %2660 = vmatprep.subr.mxu0 0.0
        %2661 = vmatpush1.msra.mxu0 0.0
        %2662 = vmatprep.subr.mxu0 0.0
        %2663 = vmatpush1.msra.mxu0 0.0
        %2664 = vmatprep.subr.mxu0 0.0
        %2665 = vmatpush1.msra.mxu0 0.0
        %2666 = vmatprep.subr.mxu0 0.0
        %2667 = vmatpush1.msra.mxu0 0.0
        %2668 = vmatprep.subr.mxu0 0.0
        %2669 = vmatpush1.msra.mxu0 0.0
        %2670 = vmatprep.subr.mxu0 0.0
        %2671 = vmatpush1.msra.mxu0 0.0
        %2672 = vmatprep.subr.mxu0 0.0
        %2673 = vmatpush1.msra.mxu0 0.0
        %2674 = vmatprep.subr.mxu0 0.0
        %2675 = vmatpush1.msra.mxu0 0.0
        %2676 = vmatprep.subr.mxu0 0.0
        %2677 = vmatpush1.msra.mxu0 0.0
        %2678 = vmatprep.subr.mxu0 0.0
        %2679 = vmatpush1.msra.mxu0 0.0
        %2680 = vmatprep.subr.mxu0 0.0
        %2681 = vmatpush1.msra.mxu0 0.0
        %2682 = vmatprep.subr.mxu0 0.0
        %2683 = vmatpush1.msra.mxu0 0.0
        %2684 = vmatprep.subr.mxu0 0.0
        %2685 = vmatpush1.msra.mxu0 0.0
        %2686 = vmatprep.subr.mxu0 0.0
        %2687 = vmatpush1.msra.mxu0 0.0
        %2688 = vmatprep.subr.mxu0 0.0
        %2689 = vmatpush1.msra.mxu0 0.0
        %2690 = vmatprep.subr.mxu0 0.0
        %2691 = vmatpush1.msra.mxu0 0.0
        %2692 = vmatprep.subr.mxu0 0.0
        %2693 = vmatpush1.msra.mxu0 0.0
        %2694 = vmatprep.subr.mxu0 0.0
        %2695 = vmatpush1.msra.mxu0 0.0
        %2696 = vmatprep.mubr.f32.mxu0 0.0
        %2697 = vmatmul.mubr.f32.gmra.mrb[0].mxu0 %v2621
        %v2698 = vpop.f32.mrb[0].mxu0
        %v2699 = vadd.f32 0.0, %v2698
        %v2700 = vpop.f32.mrb[0].mxu0
        %v2701 = vadd.f32 0.0, %v2700
        %2702 = vmatprep.mubr.f32.mxu0 0.0
        %2703 = vmatmul.mubr.f32.gmra.mrb[0].mxu0 %v2624
        %v2704 = vpop.f32.mrb[0].mxu0
        %v2705 = vadd.f32 0.0, %v2704
        %v2706 = vpop.f32.mrb[0].mxu0
        %v2707 = vadd.f32 0.0, %v2706
        %2708 = vmatprep.mubr.f32.mxu0 0.0
        %2709 = vmatmul.mubr.f32.gmra.mrb[0].mxu0 %v2627
        %v2710 = vpop.f32.mrb[0].mxu0
        %v2711 = vadd.f32 0.0, %v2710
        %v2712 = vpop.f32.mrb[0].mxu0
        %v2713 = vadd.f32 0.0, %v2712
        %2714 = vmatprep.mubr.f32.mxu0 0.0
        %2715 = vmatmul.mubr.f32.gmra.mrb[0].mxu0 %v2630
        %v2716 = vpop.f32.mrb[0].mxu0
        %v2717 = vadd.f32 0.0, %v2716
        %v2718 = vpop.f32.mrb[0].mxu0
        %v2719 = vadd.f32 0.0, %v2718
        %2720 = vdwg.mxu0
        %v2721 = vadd.f32 %v2607, %v2699
        %v2722 = vadd.f32 %v2608, %v2701
        %v2723 = vadd.f32 %v2609, %v2705
        %v2724 = vadd.f32 %v2610, %v2707
        %v2725 = vadd.f32 %v2611, %v2711
        %v2726 = vadd.f32 %v2612, %v2713
        %v2727 = vadd.f32 %v2613, %v2717
        %v2728 = vadd.f32 %v2614, %v2719
        %v2729 = vld [vmem:[#allocation2 + $0x8] sm:$0xff]
        %v2730 = vld [vmem:[#allocation2 + $0x10] sm:$0xff]
        %v2731 = vld [vmem:[#allocation2 + $0x18] sm:$0xff]
        %v2732 = vld [vmem:[#allocation2 + $0x28] sm:$0xff]
        %v2733 = vld [vmem:[#allocation2 + $0x30] sm:$0xff]
        %v2734 = vld [vmem:[#allocation2 + $0x38] sm:$0xff]
        %v2735 = vld [vmem:[#allocation2 + $0x48] sm:$0xff]
        %v2736 = vld [vmem:[#allocation2 + $0x50] sm:$0xff]
        %v2737 = vld [vmem:[#allocation2 + $0x58] sm:$0xff]
        %v2738 = vld [vmem:[#allocation2 + $0x68] sm:$0xff]
        %v2739 = vld [vmem:[#allocation2 + $0x70] sm:$0xff]
        %v2740 = vld [vmem:[#allocation2 + $0x78] sm:$0xff]
        %2741 = vrot.lane.b32.xlu0 %v713, 1
        %v2742 = vpop.permute.xlu0 %2741
        %2743 = vrot.lane.b32.xlu0 %v714, 1
        %v2744 = vpop.permute.xlu0 %2743
        %v2745 = vsel %vm1302, %v2742, %v2744
        %v2749 = vmul.f32 %v2729, %v2742
        %v2750 = vmul.f32 %v2730, %v2745
        %v2751 = vmul.f32 %v2731, %v2744
        %v2752 = vmul.f32 %v2732, %v2742
        %v2753 = vmul.f32 %v2733, %v2745
        %v2754 = vmul.f32 %v2734, %v2744
        %v2755 = vmul.f32 %v2735, %v2742
        %v2756 = vmul.f32 %v2736, %v2745
        %v2757 = vmul.f32 %v2737, %v2744
        %v2758 = vmul.f32 %v2738, %v2742
        %v2759 = vmul.f32 %v2739, %v2745
        %v2760 = vmul.f32 %v2740, %v2744
        %s2761 = scalar_lea.vmem %s6, 160
        %v2762 = vld [vmem:[%s2761] sm:$0xff]
        %v2763 = vld [vmem:[%s2761 + $0x8] sm:$0xff]
        %v2764 = vld [vmem:[%s2761 + $0x10] sm:$0xff]
        %v2765 = vld [vmem:[%s2761 + $0x18] sm:$0xff]
        %2778 = vrot.lane.b32.xlu0 %v2749, 127
        %v2779 = vpop.permute.xlu0 %2778
        %2780 = vrot.lane.b32.xlu0 %v2750, 127
        %v2781 = vpop.permute.xlu0 %2780
        %2782 = vrot.lane.b32.xlu0 %v2751, 127
        %v2783 = vpop.permute.xlu0 %2782
        %2784 = vrot.lane.b32.xlu0 %v2752, 127
        %v2785 = vpop.permute.xlu0 %2784
        %2786 = vrot.lane.b32.xlu0 %v2753, 127
        %v2787 = vpop.permute.xlu0 %2786
        %2788 = vrot.lane.b32.xlu0 %v2754, 127
        %v2789 = vpop.permute.xlu0 %2788
        %2790 = vrot.lane.b32.xlu0 %v2755, 127
        %v2791 = vpop.permute.xlu0 %2790
        %2792 = vrot.lane.b32.xlu0 %v2756, 127
        %v2793 = vpop.permute.xlu0 %2792
        %2794 = vrot.lane.b32.xlu0 %v2757, 127
        %v2795 = vpop.permute.xlu0 %2794
        %2796 = vrot.lane.b32.xlu0 %v2758, 127
        %v2797 = vpop.permute.xlu0 %2796
        %2798 = vrot.lane.b32.xlu0 %v2759, 127
        %v2799 = vpop.permute.xlu0 %2798
        %2800 = vrot.lane.b32.xlu0 %v2760, 127
        %v2801 = vpop.permute.xlu0 %2800
        %v2802 = vsel %vm904, %v2779, %v2781
        %v2803 = vsel %vm904, %v2781, %v2783
        %v2804 = vsel %vm904, %v2785, %v2787
        %v2805 = vsel %vm904, %v2787, %v2789
        %v2806 = vsel %vm904, %v2791, %v2793
        %v2807 = vsel %vm904, %v2793, %v2795
        %v2808 = vsel %vm904, %v2797, %v2799
        %v2809 = vsel %vm904, %v2799, %v2801
        %v2819 = vsel %vm1988, %v2762, 0
        %v2822 = vsel %vm1988, %v2763, 0
        %v2825 = vsel %vm1988, %v2764, 0
        %v2828 = vsel %vm1988, %v2765, 0
        %2830 = vmatprep.subr.mxu0 %v2803
        %2831 = vmatpush1.msra.mxu0 %v2802
        %2832 = vmatprep.subr.mxu0 %v2805
        %2833 = vmatpush1.msra.mxu0 %v2804
        %2834 = vmatprep.subr.mxu0 %v2807
        %2835 = vmatpush1.msra.mxu0 %v2806
        %2836 = vmatprep.subr.mxu0 %v2809
        %2837 = vmatpush1.msra.mxu0 %v2808
        %2838 = vmatprep.subr.mxu0 0.0
        %2839 = vmatpush1.msra.mxu0 0.0
        %2840 = vmatprep.subr.mxu0 0.0
        %2841 = vmatpush1.msra.mxu0 0.0
        %2842 = vmatprep.subr.mxu0 0.0
        %2843 = vmatpush1.msra.mxu0 0.0
        %2844 = vmatprep.subr.mxu0 0.0
        %2845 = vmatpush1.msra.mxu0 0.0
        %2846 = vmatprep.subr.mxu0 0.0
        %2847 = vmatpush1.msra.mxu0 0.0
        %2848 = vmatprep.subr.mxu0 0.0
        %2849 = vmatpush1.msra.mxu0 0.0
        %2850 = vmatprep.subr.mxu0 0.0
        %2851 = vmatpush1.msra.mxu0 0.0
        %2852 = vmatprep.subr.mxu0 0.0
        %2853 = vmatpush1.msra.mxu0 0.0
        %2854 = vmatprep.subr.mxu0 0.0
        %2855 = vmatpush1.msra.mxu0 0.0
        %2856 = vmatprep.subr.mxu0 0.0
        %2857 = vmatpush1.msra.mxu0 0.0
        %2858 = vmatprep.subr.mxu0 0.0
        %2859 = vmatpush1.msra.mxu0 0.0
        %2860 = vmatprep.subr.mxu0 0.0
        %2861 = vmatpush1.msra.mxu0 0.0
        %2862 = vmatprep.subr.mxu0 0.0
        %2863 = vmatpush1.msra.mxu0 0.0
        %2864 = vmatprep.subr.mxu0 0.0
        %2865 = vmatpush1.msra.mxu0 0.0
        %2866 = vmatprep.subr.mxu0 0.0
        %2867 = vmatpush1.msra.mxu0 0.0
        %2868 = vmatprep.subr.mxu0 0.0
        %2869 = vmatpush1.msra.mxu0 0.0
        %2870 = vmatprep.subr.mxu0 0.0
        %2871 = vmatpush1.msra.mxu0 0.0
        %2872 = vmatprep.subr.mxu0 0.0
        %2873 = vmatpush1.msra.mxu0 0.0
        %2874 = vmatprep.subr.mxu0 0.0
        %2875 = vmatpush1.msra.mxu0 0.0
        %2876 = vmatprep.subr.mxu0 0.0
        %2877 = vmatpush1.msra.mxu0 0.0
        %2878 = vmatprep.subr.mxu0 0.0
        %2879 = vmatpush1.msra.mxu0 0.0
        %2880 = vmatprep.subr.mxu0 0.0
        %2881 = vmatpush1.msra.mxu0 0.0
        %2882 = vmatprep.subr.mxu0 0.0
        %2883 = vmatpush1.msra.mxu0 0.0
        %2884 = vmatprep.subr.mxu0 0.0
        %2885 = vmatpush1.msra.mxu0 0.0
        %2886 = vmatprep.subr.mxu0 0.0
        %2887 = vmatpush1.msra.mxu0 0.0
        %2888 = vmatprep.subr.mxu0 0.0
        %2889 = vmatpush1.msra.mxu0 0.0
        %2890 = vmatprep.subr.mxu0 0.0
        %2891 = vmatpush1.msra.mxu0 0.0
        %2892 = vmatprep.subr.mxu0 0.0
        %2893 = vmatpush1.msra.mxu0 0.0
        %2894 = vmatprep.mubr.f32.mxu0 0.0
        %2895 = vmatmul.mubr.f32.gmra.mrb[0].mxu0 %v2819
        %v2896 = vpop.f32.mrb[0].mxu0
        %v2897 = vadd.f32 0.0, %v2896
        %v2898 = vpop.f32.mrb[0].mxu0
        %v2899 = vadd.f32 0.0, %v2898
        %2900 = vmatprep.mubr.f32.mxu0 0.0
        %2901 = vmatmul.mubr.f32.gmra.mrb[0].mxu0 %v2822
        %v2902 = vpop.f32.mrb[0].mxu0
        %v2903 = vadd.f32 0.0, %v2902
        %v2904 = vpop.f32.mrb[0].mxu0
        %v2905 = vadd.f32 0.0, %v2904
        %2906 = vmatprep.mubr.f32.mxu0 0.0
        %2907 = vmatmul.mubr.f32.gmra.mrb[0].mxu0 %v2825
        %v2908 = vpop.f32.mrb[0].mxu0
        %v2909 = vadd.f32 0.0, %v2908
        %v2910 = vpop.f32.mrb[0].mxu0
        %v2911 = vadd.f32 0.0, %v2910
        %2912 = vmatprep.mubr.f32.mxu0 0.0
        %2913 = vmatmul.mubr.f32.gmra.mrb[0].mxu0 %v2828
        %v2914 = vpop.f32.mrb[0].mxu0
        %v2915 = vadd.f32 0.0, %v2914
        %v2916 = vpop.f32.mrb[0].mxu0
        %v2917 = vadd.f32 0.0, %v2916
        %2918 = vdwg.mxu0
        %v2919 = vadd.f32 %v2721, %v2897
        %v2920 = vadd.f32 %v2722, %v2899
        %v2921 = vadd.f32 %v2723, %v2903
        %v2922 = vadd.f32 %v2724, %v2905
        %v2923 = vadd.f32 %v2725, %v2909
        %v2924 = vadd.f32 %v2726, %v2911
        %v2925 = vadd.f32 %v2727, %v2915
        %v2926 = vadd.f32 %v2728, %v2917
        %2927 = vrot.lane.b32.xlu0 %v707, 15
        %v2928 = vpop.permute.xlu0 %2927
        %2929 = vrot.lane.b32.xlu0 %v708, 15
        %v2930 = vpop.permute.xlu0 %2929
        %v2931 = vsel %vm1431, %v2928, %v2930
        %v2935 = vmul.f32 %v2729, %v2928
        %v2936 = vmul.f32 %v2730, %v2931
        %v2937 = vmul.f32 %v2731, %v2930
        %v2938 = vmul.f32 %v2732, %v2928
        %v2939 = vmul.f32 %v2733, %v2931
        %v2940 = vmul.f32 %v2734, %v2930
        %v2941 = vmul.f32 %v2735, %v2928
        %v2942 = vmul.f32 %v2736, %v2931
        %v2943 = vmul.f32 %v2737, %v2930
        %v2944 = vmul.f32 %v2738, %v2928
        %v2945 = vmul.f32 %v2739, %v2931
        %v2946 = vmul.f32 %v2740, %v2930
        %s2947 = scalar_lea.vmem %s6, 192
        %v2948 = vld [vmem:[%s2947] sm:$0xff]
        %v2949 = vld [vmem:[%s2947 + $0x8] sm:$0xff]
        %v2950 = vld [vmem:[%s2947 + $0x10] sm:$0xff]
        %v2951 = vld [vmem:[%s2947 + $0x18] sm:$0xff]
        %2964 = vrot.lane.b32.xlu0 %v2935, 113
        %v2965 = vpop.permute.xlu0 %2964
        %2966 = vrot.lane.b32.xlu0 %v2936, 113
        %v2967 = vpop.permute.xlu0 %2966
        %2968 = vrot.lane.b32.xlu0 %v2937, 113
        %v2969 = vpop.permute.xlu0 %2968
        %2970 = vrot.lane.b32.xlu0 %v2938, 113
        %v2971 = vpop.permute.xlu0 %2970
        %2972 = vrot.lane.b32.xlu0 %v2939, 113
        %v2973 = vpop.permute.xlu0 %2972
        %2974 = vrot.lane.b32.xlu0 %v2940, 113
        %v2975 = vpop.permute.xlu0 %2974
        %2976 = vrot.lane.b32.xlu0 %v2941, 113
        %v2977 = vpop.permute.xlu0 %2976
        %2978 = vrot.lane.b32.xlu0 %v2942, 113
        %v2979 = vpop.permute.xlu0 %2978
        %2980 = vrot.lane.b32.xlu0 %v2943, 113
        %v2981 = vpop.permute.xlu0 %2980
        %2982 = vrot.lane.b32.xlu0 %v2944, 113
        %v2983 = vpop.permute.xlu0 %2982
        %2984 = vrot.lane.b32.xlu0 %v2945, 113
        %v2985 = vpop.permute.xlu0 %2984
        %2986 = vrot.lane.b32.xlu0 %v2946, 113
        %v2987 = vpop.permute.xlu0 %2986
        %v2988 = vsel %vm957, %v2965, %v2967
        %v2989 = vsel %vm957, %v2967, %v2969
        %v2990 = vsel %vm957, %v2971, %v2973
        %v2991 = vsel %vm957, %v2973, %v2975
        %v2992 = vsel %vm957, %v2977, %v2979
        %v2993 = vsel %vm957, %v2979, %v2981
        %v2994 = vsel %vm957, %v2983, %v2985
        %v2995 = vsel %vm957, %v2985, %v2987
        %v3005 = vsel %vm1988, %v2948, 0
        %v3008 = vsel %vm1988, %v2949, 0
        %v3011 = vsel %vm1988, %v2950, 0
        %v3014 = vsel %vm1988, %v2951, 0
        %3016 = vmatprep.subr.mxu0 %v2989
        %3017 = vmatpush1.msra.mxu0 %v2988
        %3018 = vmatprep.subr.mxu0 %v2991
        %3019 = vmatpush1.msra.mxu0 %v2990
        %3020 = vmatprep.subr.mxu0 %v2993
        %3021 = vmatpush1.msra.mxu0 %v2992
        %3022 = vmatprep.subr.mxu0 %v2995
        %3023 = vmatpush1.msra.mxu0 %v2994
        %3024 = vmatprep.subr.mxu0 0.0
        %3025 = vmatpush1.msra.mxu0 0.0
        %3026 = vmatprep.subr.mxu0 0.0
        %3027 = vmatpush1.msra.mxu0 0.0
        %3028 = vmatprep.subr.mxu0 0.0
        %3029 = vmatpush1.msra.mxu0 0.0
        %3030 = vmatprep.subr.mxu0 0.0
        %3031 = vmatpush1.msra.mxu0 0.0
        %3032 = vmatprep.subr.mxu0 0.0
        %3033 = vmatpush1.msra.mxu0 0.0
        %3034 = vmatprep.subr.mxu0 0.0
        %3035 = vmatpush1.msra.mxu0 0.0
        %3036 = vmatprep.subr.mxu0 0.0
        %3037 = vmatpush1.msra.mxu0 0.0
        %3038 = vmatprep.subr.mxu0 0.0
        %3039 = vmatpush1.msra.mxu0 0.0
        %3040 = vmatprep.subr.mxu0 0.0
        %3041 = vmatpush1.msra.mxu0 0.0
        %3042 = vmatprep.subr.mxu0 0.0
        %3043 = vmatpush1.msra.mxu0 0.0
        %3044 = vmatprep.subr.mxu0 0.0
        %3045 = vmatpush1.msra.mxu0 0.0
        %3046 = vmatprep.subr.mxu0 0.0
        %3047 = vmatpush1.msra.mxu0 0.0
        %3048 = vmatprep.subr.mxu0 0.0
        %3049 = vmatpush1.msra.mxu0 0.0
        %3050 = vmatprep.subr.mxu0 0.0
        %3051 = vmatpush1.msra.mxu0 0.0
        %3052 = vmatprep.subr.mxu0 0.0
        %3053 = vmatpush1.msra.mxu0 0.0
        %3054 = vmatprep.subr.mxu0 0.0
        %3055 = vmatpush1.msra.mxu0 0.0
        %3056 = vmatprep.subr.mxu0 0.0
        %3057 = vmatpush1.msra.mxu0 0.0
        %3058 = vmatprep.subr.mxu0 0.0
        %3059 = vmatpush1.msra.mxu0 0.0
        %3060 = vmatprep.subr.mxu0 0.0
        %3061 = vmatpush1.msra.mxu0 0.0
        %3062 = vmatprep.subr.mxu0 0.0
        %3063 = vmatpush1.msra.mxu0 0.0
        %3064 = vmatprep.subr.mxu0 0.0
        %3065 = vmatpush1.msra.mxu0 0.0
        %3066 = vmatprep.subr.mxu0 0.0
        %3067 = vmatpush1.msra.mxu0 0.0
        %3068 = vmatprep.subr.mxu0 0.0
        %3069 = vmatpush1.msra.mxu0 0.0
        %3070 = vmatprep.subr.mxu0 0.0
        %3071 = vmatpush1.msra.mxu0 0.0
        %3072 = vmatprep.subr.mxu0 0.0
        %3073 = vmatpush1.msra.mxu0 0.0
        %3074 = vmatprep.subr.mxu0 0.0
        %3075 = vmatpush1.msra.mxu0 0.0
        %3076 = vmatprep.subr.mxu0 0.0
        %3077 = vmatpush1.msra.mxu0 0.0
        %3078 = vmatprep.subr.mxu0 0.0
        %3079 = vmatpush1.msra.mxu0 0.0
        %3080 = vmatprep.mubr.f32.mxu0 0.0
        %3081 = vmatmul.mubr.f32.gmra.mrb[0].mxu0 %v3005
        %v3082 = vpop.f32.mrb[0].mxu0
        %v3083 = vadd.f32 0.0, %v3082
        %v3084 = vpop.f32.mrb[0].mxu0
        %v3085 = vadd.f32 0.0, %v3084
        %3086 = vmatprep.mubr.f32.mxu0 0.0
        %3087 = vmatmul.mubr.f32.gmra.mrb[0].mxu0 %v3008
        %v3088 = vpop.f32.mrb[0].mxu0
        %v3089 = vadd.f32 0.0, %v3088
        %v3090 = vpop.f32.mrb[0].mxu0
        %v3091 = vadd.f32 0.0, %v3090
        %3092 = vmatprep.mubr.f32.mxu0 0.0
        %3093 = vmatmul.mubr.f32.gmra.mrb[0].mxu0 %v3011
        %v3094 = vpop.f32.mrb[0].mxu0
        %v3095 = vadd.f32 0.0, %v3094
        %v3096 = vpop.f32.mrb[0].mxu0
        %v3097 = vadd.f32 0.0, %v3096
        %3098 = vmatprep.mubr.f32.mxu0 0.0
        %3099 = vmatmul.mubr.f32.gmra.mrb[0].mxu0 %v3014
        %v3100 = vpop.f32.mrb[0].mxu0
        %v3101 = vadd.f32 0.0, %v3100
        %v3102 = vpop.f32.mrb[0].mxu0
        %v3103 = vadd.f32 0.0, %v3102
        %3104 = vdwg.mxu0
        %v3105 = vadd.f32 %v2919, %v3083
        %v3106 = vadd.f32 %v2920, %v3085
        %v3107 = vadd.f32 %v2921, %v3089
        %v3108 = vadd.f32 %v2922, %v3091
        %v3109 = vadd.f32 %v2923, %v3095
        %v3110 = vadd.f32 %v2924, %v3097
        %v3111 = vadd.f32 %v2925, %v3101
        %v3112 = vadd.f32 %v2926, %v3103
        %s3113 = scalar_lea.vmem %s6, 224
        %v3114 = vld [vmem:[%s3113] sm:$0xff]
        %v3115 = vld [vmem:[%s3113 + $0x8] sm:$0xff]
        %v3116 = vld [vmem:[%s3113 + $0x10] sm:$0xff]
        %v3117 = vld [vmem:[%s3113 + $0x18] sm:$0xff]
        %3130 = vrot.lane.b32.xlu0 %v2729, 112
        %v3131 = vpop.permute.xlu0 %3130
        %3132 = vrot.lane.b32.xlu0 %v2730, 112
        %v3133 = vpop.permute.xlu0 %3132
        %3134 = vrot.lane.b32.xlu0 %v2731, 112
        %v3135 = vpop.permute.xlu0 %3134
        %3136 = vrot.lane.b32.xlu0 %v2732, 112
        %v3137 = vpop.permute.xlu0 %3136
        %3138 = vrot.lane.b32.xlu0 %v2733, 112
        %v3139 = vpop.permute.xlu0 %3138
        %3140 = vrot.lane.b32.xlu0 %v2734, 112
        %v3141 = vpop.permute.xlu0 %3140
        %3142 = vrot.lane.b32.xlu0 %v2735, 112
        %v3143 = vpop.permute.xlu0 %3142
        %3144 = vrot.lane.b32.xlu0 %v2736, 112
        %v3145 = vpop.permute.xlu0 %3144
        %3146 = vrot.lane.b32.xlu0 %v2737, 112
        %v3147 = vpop.permute.xlu0 %3146
        %3148 = vrot.lane.b32.xlu0 %v2738, 112
        %v3149 = vpop.permute.xlu0 %3148
        %3150 = vrot.lane.b32.xlu0 %v2739, 112
        %v3151 = vpop.permute.xlu0 %3150
        %3152 = vrot.lane.b32.xlu0 %v2740, 112
        %v3153 = vpop.permute.xlu0 %3152
        %v3154 = vsel %vm1177, %v3131, %v3133
        %v3155 = vsel %vm1177, %v3133, %v3135
        %v3156 = vsel %vm1177, %v3137, %v3139
        %v3157 = vsel %vm1177, %v3139, %v3141
        %v3158 = vsel %vm1177, %v3143, %v3145
        %v3159 = vsel %vm1177, %v3145, %v3147
        %v3160 = vsel %vm1177, %v3149, %v3151
        %v3161 = vsel %vm1177, %v3151, %v3153
        %v3171 = vsel %vm1988, %v3114, 0
        %v3174 = vsel %vm1988, %v3115, 0
        %v3177 = vsel %vm1988, %v3116, 0
        %v3180 = vsel %vm1988, %v3117, 0
        %3182 = vmatprep.subr.mxu0 %v3155
        %3183 = vmatpush1.msra.mxu0 %v3154
        %3184 = vmatprep.subr.mxu0 %v3157
        %3185 = vmatpush1.msra.mxu0 %v3156
        %3186 = vmatprep.subr.mxu0 %v3159
        %3187 = vmatpush1.msra.mxu0 %v3158
        %3188 = vmatprep.subr.mxu0 %v3161
        %3189 = vmatpush1.msra.mxu0 %v3160
        %3190 = vmatprep.subr.mxu0 0.0
        %3191 = vmatpush1.msra.mxu0 0.0
        %3192 = vmatprep.subr.mxu0 0.0
        %3193 = vmatpush1.msra.mxu0 0.0
        %3194 = vmatprep.subr.mxu0 0.0
        %3195 = vmatpush1.msra.mxu0 0.0
        %3196 = vmatprep.subr.mxu0 0.0
        %3197 = vmatpush1.msra.mxu0 0.0
        %3198 = vmatprep.subr.mxu0 0.0
        %3199 = vmatpush1.msra.mxu0 0.0
        %3200 = vmatprep.subr.mxu0 0.0
        %3201 = vmatpush1.msra.mxu0 0.0
        %3202 = vmatprep.subr.mxu0 0.0
        %3203 = vmatpush1.msra.mxu0 0.0
        %3204 = vmatprep.subr.mxu0 0.0
        %3205 = vmatpush1.msra.mxu0 0.0
        %3206 = vmatprep.subr.mxu0 0.0
        %3207 = vmatpush1.msra.mxu0 0.0
        %3208 = vmatprep.subr.mxu0 0.0
        %3209 = vmatpush1.msra.mxu0 0.0
        %3210 = vmatprep.subr.mxu0 0.0
        %3211 = vmatpush1.msra.mxu0 0.0
        %3212 = vmatprep.subr.mxu0 0.0
        %3213 = vmatpush1.msra.mxu0 0.0
        %3214 = vmatprep.subr.mxu0 0.0
        %3215 = vmatpush1.msra.mxu0 0.0
        %3216 = vmatprep.subr.mxu0 0.0
        %3217 = vmatpush1.msra.mxu0 0.0
        %3218 = vmatprep.subr.mxu0 0.0
        %3219 = vmatpush1.msra.mxu0 0.0
        %3220 = vmatprep.subr.mxu0 0.0
        %3221 = vmatpush1.msra.mxu0 0.0
        %3222 = vmatprep.subr.mxu0 0.0
        %3223 = vmatpush1.msra.mxu0 0.0
        %3224 = vmatprep.subr.mxu0 0.0
        %3225 = vmatpush1.msra.mxu0 0.0
        %3226 = vmatprep.subr.mxu0 0.0
        %3227 = vmatpush1.msra.mxu0 0.0
        %3228 = vmatprep.subr.mxu0 0.0
        %3229 = vmatpush1.msra.mxu0 0.0
        %3230 = vmatprep.subr.mxu0 0.0
        %3231 = vmatpush1.msra.mxu0 0.0
        %3232 = vmatprep.subr.mxu0 0.0
        %3233 = vmatpush1.msra.mxu0 0.0
        %3234 = vmatprep.subr.mxu0 0.0
        %3235 = vmatpush1.msra.mxu0 0.0
        %3236 = vmatprep.subr.mxu0 0.0
        %3237 = vmatpush1.msra.mxu0 0.0
        %3238 = vmatprep.subr.mxu0 0.0
        %3239 = vmatpush1.msra.mxu0 0.0
        %3240 = vmatprep.subr.mxu0 0.0
        %3241 = vmatpush1.msra.mxu0 0.0
        %3242 = vmatprep.subr.mxu0 0.0
        %3243 = vmatpush1.msra.mxu0 0.0
        %3244 = vmatprep.subr.mxu0 0.0
        %3245 = vmatpush1.msra.mxu0 0.0
        %3246 = vmatprep.mubr.f32.mxu0 0.0
        %3247 = vmatmul.mubr.f32.gmra.mrb[0].mxu0 %v3171
        %v3248 = vpop.f32.mrb[0].mxu0
        %v3249 = vadd.f32 0.0, %v3248
        %v3250 = vpop.f32.mrb[0].mxu0
        %v3251 = vadd.f32 0.0, %v3250
        %3252 = vmatprep.mubr.f32.mxu0 0.0
        %3253 = vmatmul.mubr.f32.gmra.mrb[0].mxu0 %v3174
        %v3254 = vpop.f32.mrb[0].mxu0
        %v3255 = vadd.f32 0.0, %v3254
        %v3256 = vpop.f32.mrb[0].mxu0
        %v3257 = vadd.f32 0.0, %v3256
        %3258 = vmatprep.mubr.f32.mxu0 0.0
        %3259 = vmatmul.mubr.f32.gmra.mrb[0].mxu0 %v3177
        %v3260 = vpop.f32.mrb[0].mxu0
        %v3261 = vadd.f32 0.0, %v3260
        %v3262 = vpop.f32.mrb[0].mxu0
        %v3263 = vadd.f32 0.0, %v3262
        %3264 = vmatprep.mubr.f32.mxu0 0.0
        %3265 = vmatmul.mubr.f32.gmra.mrb[0].mxu0 %v3180
        %v3266 = vpop.f32.mrb[0].mxu0
        %v3267 = vadd.f32 0.0, %v3266
        %v3268 = vpop.f32.mrb[0].mxu0
        %v3269 = vadd.f32 0.0, %v3268
        %3270 = vdwg.mxu0
        %v3271 = vadd.f32 %v3105, %v3249
        %v3272 = vadd.f32 %v3106, %v3251
        %v3273 = vadd.f32 %v3107, %v3255
        %v3274 = vadd.f32 %v3108, %v3257
        %v3275 = vadd.f32 %v3109, %v3261
        %v3276 = vadd.f32 %v3110, %v3263
        %v3277 = vadd.f32 %v3111, %v3267
        %v3278 = vadd.f32 %v3112, %v3269
        %3279 = vrot.lane.b32.xlu0 %v713, 17
        %v3280 = vpop.permute.xlu0 %3279
        %3281 = vrot.lane.b32.xlu0 %v714, 17
        %v3282 = vpop.permute.xlu0 %3281
        %v3283 = vsel %vm1673, %v3280, %v3282
        %v3287 = vmul.f32 %v2729, %v3280
        %v3288 = vmul.f32 %v2730, %v3283
        %v3289 = vmul.f32 %v2731, %v3282
        %v3290 = vmul.f32 %v2732, %v3280
        %v3291 = vmul.f32 %v2733, %v3283
        %v3292 = vmul.f32 %v2734, %v3282
        %v3293 = vmul.f32 %v2735, %v3280
        %v3294 = vmul.f32 %v2736, %v3283
        %v3295 = vmul.f32 %v2737, %v3282
        %v3296 = vmul.f32 %v2738, %v3280
        %v3297 = vmul.f32 %v2739, %v3283
        %v3298 = vmul.f32 %v2740, %v3282
        %s3299 = scalar_lea.vmem %s6, 256
        %v3300 = vld [vmem:[%s3299] sm:$0xff]
        %v3301 = vld [vmem:[%s3299 + $0x8] sm:$0xff]
        %v3302 = vld [vmem:[%s3299 + $0x10] sm:$0xff]
        %v3303 = vld [vmem:[%s3299 + $0x18] sm:$0xff]
        %3316 = vrot.lane.b32.xlu0 %v3287, 111
        %v3317 = vpop.permute.xlu0 %3316
        %3318 = vrot.lane.b32.xlu0 %v3288, 111
        %v3319 = vpop.permute.xlu0 %3318
        %3320 = vrot.lane.b32.xlu0 %v3289, 111
        %v3321 = vpop.permute.xlu0 %3320
        %3322 = vrot.lane.b32.xlu0 %v3290, 111
        %v3323 = vpop.permute.xlu0 %3322
        %3324 = vrot.lane.b32.xlu0 %v3291, 111
        %v3325 = vpop.permute.xlu0 %3324
        %3326 = vrot.lane.b32.xlu0 %v3292, 111
        %v3327 = vpop.permute.xlu0 %3326
        %3328 = vrot.lane.b32.xlu0 %v3293, 111
        %v3329 = vpop.permute.xlu0 %3328
        %3330 = vrot.lane.b32.xlu0 %v3294, 111
        %v3331 = vpop.permute.xlu0 %3330
        %3332 = vrot.lane.b32.xlu0 %v3295, 111
        %v3333 = vpop.permute.xlu0 %3332
        %3334 = vrot.lane.b32.xlu0 %v3296, 111
        %v3335 = vpop.permute.xlu0 %3334
        %3336 = vrot.lane.b32.xlu0 %v3297, 111
        %v3337 = vpop.permute.xlu0 %3336
        %3338 = vrot.lane.b32.xlu0 %v3298, 111
        %v3339 = vpop.permute.xlu0 %3338
        %v3340 = vsel %vm755, %v3317, %v3319
        %v3341 = vsel %vm755, %v3319, %v3321
        %v3342 = vsel %vm755, %v3323, %v3325
        %v3343 = vsel %vm755, %v3325, %v3327
        %v3344 = vsel %vm755, %v3329, %v3331
        %v3345 = vsel %vm755, %v3331, %v3333
        %v3346 = vsel %vm755, %v3335, %v3337
        %v3347 = vsel %vm755, %v3337, %v3339
        %v3357 = vsel %vm1988, %v3300, 0
        %v3360 = vsel %vm1988, %v3301, 0
        %v3363 = vsel %vm1988, %v3302, 0
        %v3366 = vsel %vm1988, %v3303, 0
        %3368 = vmatprep.subr.mxu0 %v3341
        %3369 = vmatpush1.msra.mxu0 %v3340
        %3370 = vmatprep.subr.mxu0 %v3343
        %3371 = vmatpush1.msra.mxu0 %v3342
        %3372 = vmatprep.subr.mxu0 %v3345
        %3373 = vmatpush1.msra.mxu0 %v3344
        %3374 = vmatprep.subr.mxu0 %v3347
        %3375 = vmatpush1.msra.mxu0 %v3346
        %3376 = vmatprep.subr.mxu0 0.0
        %3377 = vmatpush1.msra.mxu0 0.0
        %3378 = vmatprep.subr.mxu0 0.0
        %3379 = vmatpush1.msra.mxu0 0.0
        %3380 = vmatprep.subr.mxu0 0.0
        %3381 = vmatpush1.msra.mxu0 0.0
        %3382 = vmatprep.subr.mxu0 0.0
        %3383 = vmatpush1.msra.mxu0 0.0
        %3384 = vmatprep.subr.mxu0 0.0
        %3385 = vmatpush1.msra.mxu0 0.0
        %3386 = vmatprep.subr.mxu0 0.0
        %3387 = vmatpush1.msra.mxu0 0.0
        %3388 = vmatprep.subr.mxu0 0.0
        %3389 = vmatpush1.msra.mxu0 0.0
        %3390 = vmatprep.subr.mxu0 0.0
        %3391 = vmatpush1.msra.mxu0 0.0
        %3392 = vmatprep.subr.mxu0 0.0
        %3393 = vmatpush1.msra.mxu0 0.0
        %3394 = vmatprep.subr.mxu0 0.0
        %3395 = vmatpush1.msra.mxu0 0.0
        %3396 = vmatprep.subr.mxu0 0.0
        %3397 = vmatpush1.msra.mxu0 0.0
        %3398 = vmatprep.subr.mxu0 0.0
        %3399 = vmatpush1.msra.mxu0 0.0
        %3400 = vmatprep.subr.mxu0 0.0
        %3401 = vmatpush1.msra.mxu0 0.0
        %3402 = vmatprep.subr.mxu0 0.0
        %3403 = vmatpush1.msra.mxu0 0.0
        %3404 = vmatprep.subr.mxu0 0.0
        %3405 = vmatpush1.msra.mxu0 0.0
        %3406 = vmatprep.subr.mxu0 0.0
        %3407 = vmatpush1.msra.mxu0 0.0
        %3408 = vmatprep.subr.mxu0 0.0
        %3409 = vmatpush1.msra.mxu0 0.0
        %3410 = vmatprep.subr.mxu0 0.0
        %3411 = vmatpush1.msra.mxu0 0.0
        %3412 = vmatprep.subr.mxu0 0.0
        %3413 = vmatpush1.msra.mxu0 0.0
        %3414 = vmatprep.subr.mxu0 0.0
        %3415 = vmatpush1.msra.mxu0 0.0
        %3416 = vmatprep.subr.mxu0 0.0
        %3417 = vmatpush1.msra.mxu0 0.0
        %3418 = vmatprep.subr.mxu0 0.0
        %3419 = vmatpush1.msra.mxu0 0.0
        %3420 = vmatprep.subr.mxu0 0.0
        %3421 = vmatpush1.msra.mxu0 0.0
        %3422 = vmatprep.subr.mxu0 0.0
        %3423 = vmatpush1.msra.mxu0 0.0
        %3424 = vmatprep.subr.mxu0 0.0
        %3425 = vmatpush1.msra.mxu0 0.0
        %3426 = vmatprep.subr.mxu0 0.0
        %3427 = vmatpush1.msra.mxu0 0.0
        %3428 = vmatprep.subr.mxu0 0.0
        %3429 = vmatpush1.msra.mxu0 0.0
        %3430 = vmatprep.subr.mxu0 0.0
        %3431 = vmatpush1.msra.mxu0 0.0
        %3432 = vmatprep.mubr.f32.mxu0 0.0
        %3433 = vmatmul.mubr.f32.gmra.mrb[0].mxu0 %v3357
        %v3434 = vpop.f32.mrb[0].mxu0
        %v3435 = vadd.f32 0.0, %v3434
        %v3436 = vpop.f32.mrb[0].mxu0
        %v3437 = vadd.f32 0.0, %v3436
        %3438 = vmatprep.mubr.f32.mxu0 0.0
        %3439 = vmatmul.mubr.f32.gmra.mrb[0].mxu0 %v3360
        %v3440 = vpop.f32.mrb[0].mxu0
        %v3441 = vadd.f32 0.0, %v3440
        %v3442 = vpop.f32.mrb[0].mxu0
        %v3443 = vadd.f32 0.0, %v3442
        %3444 = vmatprep.mubr.f32.mxu0 0.0
        %3445 = vmatmul.mubr.f32.gmra.mrb[0].mxu0 %v3363
        %v3446 = vpop.f32.mrb[0].mxu0
        %v3447 = vadd.f32 0.0, %v3446
        %v3448 = vpop.f32.mrb[0].mxu0
        %v3449 = vadd.f32 0.0, %v3448
        %3450 = vmatprep.mubr.f32.mxu0 0.0
        %3451 = vmatmul.mubr.f32.gmra.mrb[0].mxu0 %v3366
        %v3452 = vpop.f32.mrb[0].mxu0
        %v3453 = vadd.f32 0.0, %v3452
        %v3454 = vpop.f32.mrb[0].mxu0
        %v3455 = vadd.f32 0.0, %v3454
        %3456 = vdwg.mxu0
        %v3457 = vadd.f32 %v3271, %v3435
        %v3458 = vadd.f32 %v3272, %v3437
        %v3459 = vadd.f32 %v3273, %v3441
        %v3460 = vadd.f32 %v3274, %v3443
        %v3461 = vadd.f32 %v3275, %v3447
        %v3462 = vadd.f32 %v3276, %v3449
        %v3463 = vadd.f32 %v3277, %v3453
        %v3464 = vadd.f32 %v3278, %v3455
        %v3465 = vld [vmem:[%s7] sm:$0xff]
        %v3466 = vld [vmem:[%s7 + $0x8] sm:$0xff]
        %v3467 = vld [vmem:[%s7 + $0x10] sm:$0xff]
        %v3468 = vld [vmem:[%s7 + $0x18] sm:$0xff]
        %3470 = vset.pattern.permute.xlu0 0
        %3471 = vperm.xlu0 %3470, %v3465
        %v3472 = vpop.permute.xlu0 %3471
        %3475 = vset.pattern.permute.xlu0 0
        %3476 = vperm.xlu0 %3475, %v3466
        %v3477 = vpop.permute.xlu0 %3476
        %3480 = vset.pattern.permute.xlu0 0
        %3481 = vperm.xlu0 %3480, %v3467
        %v3482 = vpop.permute.xlu0 %3481
        %3485 = vset.pattern.permute.xlu0 0
        %3486 = vperm.xlu0 %3485, %v3468
        %v3487 = vpop.permute.xlu0 %3486
        %v3489 = vadd.f32 %v3457, %v3472
        %v3490 = vadd.f32 %v3458, %v3472
        %v3491 = vadd.f32 %v3459, %v3477
        %v3492 = vadd.f32 %v3460, %v3477
        %v3493 = vadd.f32 %v3461, %v3482
        %v3494 = vadd.f32 %v3462, %v3482
        %v3495 = vadd.f32 %v3463, %v3487
        %v3496 = vadd.f32 %v3464, %v3487
        %v3497 = vmax.f32 %v3489, 0.0
        %v3498 = vmax.f32 %v3490, 0.0
        %v3499 = vmax.f32 %v3491, 0.0
        %v3500 = vmax.f32 %v3492, 0.0
        %v3501 = vmax.f32 %v3493, 0.0
        %v3502 = vmax.f32 %v3494, 0.0
        %v3503 = vmax.f32 %v3495, 0.0
        %v3504 = vmax.f32 %v3496, 0.0
        %3505 = vst [vmem:[#allocation2 + $0x8] sm:$0xff] %v3497
        %3506 = vst [vmem:[#allocation2 + $0x10] sm:$0xff] %v3498
        %3507 = vst [vmem:[#allocation2 + $0x28] sm:$0xff] %v3499
        %3508 = vst [vmem:[#allocation2 + $0x30] sm:$0xff] %v3500
        %3509 = vst [vmem:[#allocation2 + $0x48] sm:$0xff] %v3501
        %3510 = vst [vmem:[#allocation2 + $0x50] sm:$0xff] %v3502
        %3511 = vst [vmem:[#allocation2 + $0x68] sm:$0xff] %v3503
        %3512 = vst [vmem:[#allocation2 + $0x70] sm:$0xff] %v3504
        %v3513 = vld [vmem:[#allocation2] sm:$0xff]
        %v3514 = vld [vmem:[#allocation2 + $0x8] sm:$0xff]
        %v3515 = vld [vmem:[#allocation2 + $0x10] sm:$0xff]
        %v3516 = vld [vmem:[#allocation2 + $0x20] sm:$0xff]
        %v3517 = vld [vmem:[#allocation2 + $0x28] sm:$0xff]
        %v3518 = vld [vmem:[#allocation2 + $0x30] sm:$0xff]
        %v3519 = vld [vmem:[#allocation2 + $0x40] sm:$0xff]
        %v3520 = vld [vmem:[#allocation2 + $0x48] sm:$0xff]
        %v3521 = vld [vmem:[#allocation2 + $0x50] sm:$0xff]
        %v3522 = vld [vmem:[#allocation2 + $0x60] sm:$0xff]
        %v3523 = vld [vmem:[#allocation2 + $0x68] sm:$0xff]
        %v3524 = vld [vmem:[#allocation2 + $0x70] sm:$0xff]
        %v3525 = vmul.f32 %v3513, %v1907
        %v3526 = vmul.f32 %v3514, %v1910
        %v3527 = vmul.f32 %v3515, %v1909
        %v3528 = vmul.f32 %v3516, %v1907
        %v3529 = vmul.f32 %v3517, %v1910
        %v3530 = vmul.f32 %v3518, %v1909
        %v3531 = vmul.f32 %v3519, %v1907
        %v3532 = vmul.f32 %v3520, %v1910
        %v3533 = vmul.f32 %v3521, %v1909
        %v3534 = vmul.f32 %v3522, %v1907
        %v3535 = vmul.f32 %v3523, %v1910
        %v3536 = vmul.f32 %v3524, %v1909
        %v3537 = vld [vmem:[#allocation5] sm:$0xff]
        %v3538 = vld [vmem:[#allocation5 + $0x8] sm:$0xff]
        %v3539 = vld [vmem:[#allocation5 + $0x10] sm:$0xff]
        %v3540 = vld [vmem:[#allocation5 + $0x18] sm:$0xff]
        %s3541 = scalar_lea.vmem [#allocation5], 32
        %v3542 = vld [vmem:[%s3541] sm:$0xff]
        %v3543 = vld [vmem:[%s3541 + $0x8] sm:$0xff]
        %v3544 = vld [vmem:[%s3541 + $0x10] sm:$0xff]
        %v3545 = vld [vmem:[%s3541 + $0x18] sm:$0xff]
        %3558 = vrot.lane.b32.xlu0 %v3513, 16
        %v3559 = vpop.permute.xlu0 %3558
        %3560 = vrot.lane.b32.xlu0 %v3514, 16
        %v3561 = vpop.permute.xlu0 %3560
        %3562 = vrot.lane.b32.xlu0 %v3515, 16
        %v3563 = vpop.permute.xlu0 %3562
        %3564 = vrot.lane.b32.xlu0 %v3516, 16
        %v3565 = vpop.permute.xlu0 %3564
        %3566 = vrot.lane.b32.xlu0 %v3517, 16
        %v3567 = vpop.permute.xlu0 %3566
        %3568 = vrot.lane.b32.xlu0 %v3518, 16
        %v3569 = vpop.permute.xlu0 %3568
        %3570 = vrot.lane.b32.xlu0 %v3519, 16
        %v3571 = vpop.permute.xlu0 %3570
        %3572 = vrot.lane.b32.xlu0 %v3520, 16
        %v3573 = vpop.permute.xlu0 %3572
        %3574 = vrot.lane.b32.xlu0 %v3521, 16
        %v3575 = vpop.permute.xlu0 %3574
        %3576 = vrot.lane.b32.xlu0 %v3522, 16
        %v3577 = vpop.permute.xlu0 %3576
        %3578 = vrot.lane.b32.xlu0 %v3523, 16
        %v3579 = vpop.permute.xlu0 %3578
        %3580 = vrot.lane.b32.xlu0 %v3524, 16
        %v3581 = vpop.permute.xlu0 %3580
        %v3582 = vsel %vm1971, %v3559, %v3561
        %v3583 = vsel %vm1971, %v3561, %v3563
        %v3584 = vsel %vm1971, %v3565, %v3567
        %v3585 = vsel %vm1971, %v3567, %v3569
        %v3586 = vsel %vm1971, %v3571, %v3573
        %v3587 = vsel %vm1971, %v3573, %v3575
        %v3588 = vsel %vm1971, %v3577, %v3579
        %v3589 = vsel %vm1971, %v3579, %v3581
        %v3599 = vsel %vm1988, %v3542, 0
        %v3602 = vsel %vm1988, %v3543, 0
        %v3605 = vsel %vm1988, %v3544, 0
        %v3608 = vsel %vm1988, %v3545, 0
        %3610 = vmatprep.subr.mxu0 %v3583
        %3611 = vmatpush1.msra.mxu0 %v3582
        %3612 = vmatprep.subr.mxu0 %v3585
        %3613 = vmatpush1.msra.mxu0 %v3584
        %3614 = vmatprep.subr.mxu0 %v3587
        %3615 = vmatpush1.msra.mxu0 %v3586
        %3616 = vmatprep.subr.mxu0 %v3589
        %3617 = vmatpush1.msra.mxu0 %v3588
        %3618 = vmatprep.subr.mxu0 0.0
        %3619 = vmatpush1.msra.mxu0 0.0
        %3620 = vmatprep.subr.mxu0 0.0
        %3621 = vmatpush1.msra.mxu0 0.0
        %3622 = vmatprep.subr.mxu0 0.0
        %3623 = vmatpush1.msra.mxu0 0.0
        %3624 = vmatprep.subr.mxu0 0.0
        %3625 = vmatpush1.msra.mxu0 0.0
        %3626 = vmatprep.subr.mxu0 0.0
        %3627 = vmatpush1.msra.mxu0 0.0
        %3628 = vmatprep.subr.mxu0 0.0
        %3629 = vmatpush1.msra.mxu0 0.0
        %3630 = vmatprep.subr.mxu0 0.0
        %3631 = vmatpush1.msra.mxu0 0.0
        %3632 = vmatprep.subr.mxu0 0.0
        %3633 = vmatpush1.msra.mxu0 0.0
        %3634 = vmatprep.subr.mxu0 0.0
        %3635 = vmatpush1.msra.mxu0 0.0
        %3636 = vmatprep.subr.mxu0 0.0
        %3637 = vmatpush1.msra.mxu0 0.0
        %3638 = vmatprep.subr.mxu0 0.0
        %3639 = vmatpush1.msra.mxu0 0.0
        %3640 = vmatprep.subr.mxu0 0.0
        %3641 = vmatpush1.msra.mxu0 0.0
        %3642 = vmatprep.subr.mxu0 0.0
        %3643 = vmatpush1.msra.mxu0 0.0
        %3644 = vmatprep.subr.mxu0 0.0
        %3645 = vmatpush1.msra.mxu0 0.0
        %3646 = vmatprep.subr.mxu0 0.0
        %3647 = vmatpush1.msra.mxu0 0.0
        %3648 = vmatprep.subr.mxu0 0.0
        %3649 = vmatpush1.msra.mxu0 0.0
        %3650 = vmatprep.subr.mxu0 0.0
        %3651 = vmatpush1.msra.mxu0 0.0
        %3652 = vmatprep.subr.mxu0 0.0
        %3653 = vmatpush1.msra.mxu0 0.0
        %3654 = vmatprep.subr.mxu0 0.0
        %3655 = vmatpush1.msra.mxu0 0.0
        %3656 = vmatprep.subr.mxu0 0.0
        %3657 = vmatpush1.msra.mxu0 0.0
        %3658 = vmatprep.subr.mxu0 0.0
        %3659 = vmatpush1.msra.mxu0 0.0
        %3660 = vmatprep.subr.mxu0 0.0
        %3661 = vmatpush1.msra.mxu0 0.0
        %3662 = vmatprep.subr.mxu0 0.0
        %3663 = vmatpush1.msra.mxu0 0.0
        %3664 = vmatprep.subr.mxu0 0.0
        %3665 = vmatpush1.msra.mxu0 0.0
        %3666 = vmatprep.subr.mxu0 0.0
        %3667 = vmatpush1.msra.mxu0 0.0
        %3668 = vmatprep.subr.mxu0 0.0
        %3669 = vmatpush1.msra.mxu0 0.0
        %3670 = vmatprep.subr.mxu0 0.0
        %3671 = vmatpush1.msra.mxu0 0.0
        %3672 = vmatprep.subr.mxu0 0.0
        %3673 = vmatpush1.msra.mxu0 0.0
        %3674 = vmatprep.mubr.f32.mxu0 0.0
        %3675 = vmatmul.mubr.f32.gmra.mrb[0].mxu0 %v3599
        %v3676 = vpop.f32.mrb[0].mxu0
        %v3677 = vadd.f32 0.0, %v3676
        %v3678 = vpop.f32.mrb[0].mxu0
        %v3679 = vadd.f32 0.0, %v3678
        %3680 = vmatprep.mubr.f32.mxu0 0.0
        %3681 = vmatmul.mubr.f32.gmra.mrb[0].mxu0 %v3602
        %v3682 = vpop.f32.mrb[0].mxu0
        %v3683 = vadd.f32 0.0, %v3682
        %v3684 = vpop.f32.mrb[0].mxu0
        %v3685 = vadd.f32 0.0, %v3684
        %3686 = vmatprep.mubr.f32.mxu0 0.0
        %3687 = vmatmul.mubr.f32.gmra.mrb[0].mxu0 %v3605
        %v3688 = vpop.f32.mrb[0].mxu0
        %v3689 = vadd.f32 0.0, %v3688
        %v3690 = vpop.f32.mrb[0].mxu0
        %v3691 = vadd.f32 0.0, %v3690
        %3692 = vmatprep.mubr.f32.mxu0 0.0
        %3693 = vmatmul.mubr.f32.gmra.mrb[0].mxu0 %v3608
        %v3694 = vpop.f32.mrb[0].mxu0
        %v3695 = vadd.f32 0.0, %v3694
        %v3696 = vpop.f32.mrb[0].mxu0
        %v3697 = vadd.f32 0.0, %v3696
        %3698 = vdwg.mxu0
        %3711 = vrot.lane.b32.xlu0 %v3525, 17
        %v3712 = vpop.permute.xlu0 %3711
        %3713 = vrot.lane.b32.xlu0 %v3526, 17
        %v3714 = vpop.permute.xlu0 %3713
        %3715 = vrot.lane.b32.xlu0 %v3527, 17
        %v3716 = vpop.permute.xlu0 %3715
        %3717 = vrot.lane.b32.xlu0 %v3528, 17
        %v3718 = vpop.permute.xlu0 %3717
        %3719 = vrot.lane.b32.xlu0 %v3529, 17
        %v3720 = vpop.permute.xlu0 %3719
        %3721 = vrot.lane.b32.xlu0 %v3530, 17
        %v3722 = vpop.permute.xlu0 %3721
        %3723 = vrot.lane.b32.xlu0 %v3531, 17
        %v3724 = vpop.permute.xlu0 %3723
        %3725 = vrot.lane.b32.xlu0 %v3532, 17
        %v3726 = vpop.permute.xlu0 %3725
        %3727 = vrot.lane.b32.xlu0 %v3533, 17
        %v3728 = vpop.permute.xlu0 %3727
        %3729 = vrot.lane.b32.xlu0 %v3534, 17
        %v3730 = vpop.permute.xlu0 %3729
        %3731 = vrot.lane.b32.xlu0 %v3535, 17
        %v3732 = vpop.permute.xlu0 %3731
        %3733 = vrot.lane.b32.xlu0 %v3536, 17
        %v3734 = vpop.permute.xlu0 %3733
        %v3735 = vsel %vm1673, %v3712, %v3714
        %v3736 = vsel %vm1673, %v3714, %v3716
        %v3737 = vsel %vm1673, %v3718, %v3720
        %v3738 = vsel %vm1673, %v3720, %v3722
        %v3739 = vsel %vm1673, %v3724, %v3726
        %v3740 = vsel %vm1673, %v3726, %v3728
        %v3741 = vsel %vm1673, %v3730, %v3732
        %v3742 = vsel %vm1673, %v3732, %v3734
        %v3752 = vsel %vm1988, %v3537, 0
        %v3755 = vsel %vm1988, %v3538, 0
        %v3758 = vsel %vm1988, %v3539, 0
        %v3761 = vsel %vm1988, %v3540, 0
        %3763 = vmatprep.subr.mxu0 %v3736
        %3764 = vmatpush1.msra.mxu0 %v3735
        %3765 = vmatprep.subr.mxu0 %v3738
        %3766 = vmatpush1.msra.mxu0 %v3737
        %3767 = vmatprep.subr.mxu0 %v3740
        %3768 = vmatpush1.msra.mxu0 %v3739
        %3769 = vmatprep.subr.mxu0 %v3742
        %3770 = vmatpush1.msra.mxu0 %v3741
        %3771 = vmatprep.subr.mxu0 0.0
        %3772 = vmatpush1.msra.mxu0 0.0
        %3773 = vmatprep.subr.mxu0 0.0
        %3774 = vmatpush1.msra.mxu0 0.0
        %3775 = vmatprep.subr.mxu0 0.0
        %3776 = vmatpush1.msra.mxu0 0.0
        %3777 = vmatprep.subr.mxu0 0.0
        %3778 = vmatpush1.msra.mxu0 0.0
        %3779 = vmatprep.subr.mxu0 0.0
        %3780 = vmatpush1.msra.mxu0 0.0
        %3781 = vmatprep.subr.mxu0 0.0
        %3782 = vmatpush1.msra.mxu0 0.0
        %3783 = vmatprep.subr.mxu0 0.0
        %3784 = vmatpush1.msra.mxu0 0.0
        %3785 = vmatprep.subr.mxu0 0.0
        %3786 = vmatpush1.msra.mxu0 0.0
        %3787 = vmatprep.subr.mxu0 0.0
        %3788 = vmatpush1.msra.mxu0 0.0
        %3789 = vmatprep.subr.mxu0 0.0
        %3790 = vmatpush1.msra.mxu0 0.0
        %3791 = vmatprep.subr.mxu0 0.0
        %3792 = vmatpush1.msra.mxu0 0.0
        %3793 = vmatprep.subr.mxu0 0.0
        %3794 = vmatpush1.msra.mxu0 0.0
        %3795 = vmatprep.subr.mxu0 0.0
        %3796 = vmatpush1.msra.mxu0 0.0
        %3797 = vmatprep.subr.mxu0 0.0
        %3798 = vmatpush1.msra.mxu0 0.0
        %3799 = vmatprep.subr.mxu0 0.0
        %3800 = vmatpush1.msra.mxu0 0.0
        %3801 = vmatprep.subr.mxu0 0.0
        %3802 = vmatpush1.msra.mxu0 0.0
        %3803 = vmatprep.subr.mxu0 0.0
        %3804 = vmatpush1.msra.mxu0 0.0
        %3805 = vmatprep.subr.mxu0 0.0
        %3806 = vmatpush1.msra.mxu0 0.0
        %3807 = vmatprep.subr.mxu0 0.0
        %3808 = vmatpush1.msra.mxu0 0.0
        %3809 = vmatprep.subr.mxu0 0.0
        %3810 = vmatpush1.msra.mxu0 0.0
        %3811 = vmatprep.subr.mxu0 0.0
        %3812 = vmatpush1.msra.mxu0 0.0
        %3813 = vmatprep.subr.mxu0 0.0
        %3814 = vmatpush1.msra.mxu0 0.0
        %3815 = vmatprep.subr.mxu0 0.0
        %3816 = vmatpush1.msra.mxu0 0.0
        %3817 = vmatprep.subr.mxu0 0.0
        %3818 = vmatpush1.msra.mxu0 0.0
        %3819 = vmatprep.subr.mxu0 0.0
        %3820 = vmatpush1.msra.mxu0 0.0
        %3821 = vmatprep.subr.mxu0 0.0
        %3822 = vmatpush1.msra.mxu0 0.0
        %3823 = vmatprep.subr.mxu0 0.0
        %3824 = vmatpush1.msra.mxu0 0.0
        %3825 = vmatprep.subr.mxu0 0.0
        %3826 = vmatpush1.msra.mxu0 0.0
        %3827 = vmatprep.mubr.f32.mxu0 0.0
        %3828 = vmatmul.mubr.f32.gmra.mrb[0].mxu0 %v3752
        %v3829 = vpop.f32.mrb[0].mxu0
        %v3830 = vadd.f32 %v3677, %v3829
        %v3831 = vpop.f32.mrb[0].mxu0
        %v3832 = vadd.f32 %v3679, %v3831
        %3833 = vmatprep.mubr.f32.mxu0 0.0
        %3834 = vmatmul.mubr.f32.gmra.mrb[0].mxu0 %v3755
        %v3835 = vpop.f32.mrb[0].mxu0
        %v3836 = vadd.f32 %v3683, %v3835
        %v3837 = vpop.f32.mrb[0].mxu0
        %v3838 = vadd.f32 %v3685, %v3837
        %3839 = vmatprep.mubr.f32.mxu0 0.0
        %3840 = vmatmul.mubr.f32.gmra.mrb[0].mxu0 %v3758
        %v3841 = vpop.f32.mrb[0].mxu0
        %v3842 = vadd.f32 %v3689, %v3841
        %v3843 = vpop.f32.mrb[0].mxu0
        %v3844 = vadd.f32 %v3691, %v3843
        %3845 = vmatprep.mubr.f32.mxu0 0.0
        %3846 = vmatmul.mubr.f32.gmra.mrb[0].mxu0 %v3761
        %v3847 = vpop.f32.mrb[0].mxu0
        %v3848 = vadd.f32 %v3695, %v3847
        %v3849 = vpop.f32.mrb[0].mxu0
        %v3850 = vadd.f32 %v3697, %v3849
        %3851 = vdwg.mxu0
        %v3852 = vmul.f32 %v3513, %v2244
        %v3853 = vmul.f32 %v3514, %v2247
        %v3854 = vmul.f32 %v3515, %v2246
        %v3855 = vmul.f32 %v3516, %v2244
        %v3856 = vmul.f32 %v3517, %v2247
        %v3857 = vmul.f32 %v3518, %v2246
        %v3858 = vmul.f32 %v3519, %v2244
        %v3859 = vmul.f32 %v3520, %v2247
        %v3860 = vmul.f32 %v3521, %v2246
        %v3861 = vmul.f32 %v3522, %v2244
        %v3862 = vmul.f32 %v3523, %v2247
        %v3863 = vmul.f32 %v3524, %v2246
        %s3864 = scalar_lea.vmem [#allocation5], 64
        %v3865 = vld [vmem:[%s3864] sm:$0xff]
        %v3866 = vld [vmem:[%s3864 + $0x8] sm:$0xff]
        %v3867 = vld [vmem:[%s3864 + $0x10] sm:$0xff]
        %v3868 = vld [vmem:[%s3864 + $0x18] sm:$0xff]
        %3881 = vrot.lane.b32.xlu0 %v3852, 15
        %v3882 = vpop.permute.xlu0 %3881
        %3883 = vrot.lane.b32.xlu0 %v3853, 15
        %v3884 = vpop.permute.xlu0 %3883
        %3885 = vrot.lane.b32.xlu0 %v3854, 15
        %v3886 = vpop.permute.xlu0 %3885
        %3887 = vrot.lane.b32.xlu0 %v3855, 15
        %v3888 = vpop.permute.xlu0 %3887
        %3889 = vrot.lane.b32.xlu0 %v3856, 15
        %v3890 = vpop.permute.xlu0 %3889
        %3891 = vrot.lane.b32.xlu0 %v3857, 15
        %v3892 = vpop.permute.xlu0 %3891
        %3893 = vrot.lane.b32.xlu0 %v3858, 15
        %v3894 = vpop.permute.xlu0 %3893
        %3895 = vrot.lane.b32.xlu0 %v3859, 15
        %v3896 = vpop.permute.xlu0 %3895
        %3897 = vrot.lane.b32.xlu0 %v3860, 15
        %v3898 = vpop.permute.xlu0 %3897
        %3899 = vrot.lane.b32.xlu0 %v3861, 15
        %v3900 = vpop.permute.xlu0 %3899
        %3901 = vrot.lane.b32.xlu0 %v3862, 15
        %v3902 = vpop.permute.xlu0 %3901
        %3903 = vrot.lane.b32.xlu0 %v3863, 15
        %v3904 = vpop.permute.xlu0 %3903
        %v3905 = vsel %vm1431, %v3882, %v3884
        %v3906 = vsel %vm1431, %v3884, %v3886
        %v3907 = vsel %vm1431, %v3888, %v3890
        %v3908 = vsel %vm1431, %v3890, %v3892
        %v3909 = vsel %vm1431, %v3894, %v3896
        %v3910 = vsel %vm1431, %v3896, %v3898
        %v3911 = vsel %vm1431, %v3900, %v3902
        %v3912 = vsel %vm1431, %v3902, %v3904
        %v3922 = vsel %vm1988, %v3865, 0
        %v3925 = vsel %vm1988, %v3866, 0
        %v3928 = vsel %vm1988, %v3867, 0
        %v3931 = vsel %vm1988, %v3868, 0
        %3933 = vmatprep.subr.mxu0 %v3906
        %3934 = vmatpush1.msra.mxu0 %v3905
        %3935 = vmatprep.subr.mxu0 %v3908
        %3936 = vmatpush1.msra.mxu0 %v3907
        %3937 = vmatprep.subr.mxu0 %v3910
        %3938 = vmatpush1.msra.mxu0 %v3909
        %3939 = vmatprep.subr.mxu0 %v3912
        %3940 = vmatpush1.msra.mxu0 %v3911
        %3941 = vmatprep.subr.mxu0 0.0
        %3942 = vmatpush1.msra.mxu0 0.0
        %3943 = vmatprep.subr.mxu0 0.0
        %3944 = vmatpush1.msra.mxu0 0.0
        %3945 = vmatprep.subr.mxu0 0.0
        %3946 = vmatpush1.msra.mxu0 0.0
        %3947 = vmatprep.subr.mxu0 0.0
        %3948 = vmatpush1.msra.mxu0 0.0
        %3949 = vmatprep.subr.mxu0 0.0
        %3950 = vmatpush1.msra.mxu0 0.0
        %3951 = vmatprep.subr.mxu0 0.0
        %3952 = vmatpush1.msra.mxu0 0.0
        %3953 = vmatprep.subr.mxu0 0.0
        %3954 = vmatpush1.msra.mxu0 0.0
        %3955 = vmatprep.subr.mxu0 0.0
        %3956 = vmatpush1.msra.mxu0 0.0
        %3957 = vmatprep.subr.mxu0 0.0
        %3958 = vmatpush1.msra.mxu0 0.0
        %3959 = vmatprep.subr.mxu0 0.0
        %3960 = vmatpush1.msra.mxu0 0.0
        %3961 = vmatprep.subr.mxu0 0.0
        %3962 = vmatpush1.msra.mxu0 0.0
        %3963 = vmatprep.subr.mxu0 0.0
        %3964 = vmatpush1.msra.mxu0 0.0
        %3965 = vmatprep.subr.mxu0 0.0
        %3966 = vmatpush1.msra.mxu0 0.0
        %3967 = vmatprep.subr.mxu0 0.0
        %3968 = vmatpush1.msra.mxu0 0.0
        %3969 = vmatprep.subr.mxu0 0.0
        %3970 = vmatpush1.msra.mxu0 0.0
        %3971 = vmatprep.subr.mxu0 0.0
        %3972 = vmatpush1.msra.mxu0 0.0
        %3973 = vmatprep.subr.mxu0 0.0
        %3974 = vmatpush1.msra.mxu0 0.0
        %3975 = vmatprep.subr.mxu0 0.0
        %3976 = vmatpush1.msra.mxu0 0.0
        %3977 = vmatprep.subr.mxu0 0.0
        %3978 = vmatpush1.msra.mxu0 0.0
        %3979 = vmatprep.subr.mxu0 0.0
        %3980 = vmatpush1.msra.mxu0 0.0
        %3981 = vmatprep.subr.mxu0 0.0
        %3982 = vmatpush1.msra.mxu0 0.0
        %3983 = vmatprep.subr.mxu0 0.0
        %3984 = vmatpush1.msra.mxu0 0.0
        %3985 = vmatprep.subr.mxu0 0.0
        %3986 = vmatpush1.msra.mxu0 0.0
        %3987 = vmatprep.subr.mxu0 0.0
        %3988 = vmatpush1.msra.mxu0 0.0
        %3989 = vmatprep.subr.mxu0 0.0
        %3990 = vmatpush1.msra.mxu0 0.0
        %3991 = vmatprep.subr.mxu0 0.0
        %3992 = vmatpush1.msra.mxu0 0.0
        %3993 = vmatprep.subr.mxu0 0.0
        %3994 = vmatpush1.msra.mxu0 0.0
        %3995 = vmatprep.subr.mxu0 0.0
        %3996 = vmatpush1.msra.mxu0 0.0
        %3997 = vmatprep.mubr.f32.mxu0 0.0
        %3998 = vmatmul.mubr.f32.gmra.mrb[0].mxu0 %v3922
        %v3999 = vpop.f32.mrb[0].mxu0
        %v4000 = vadd.f32 0.0, %v3999
        %v4001 = vpop.f32.mrb[0].mxu0
        %v4002 = vadd.f32 0.0, %v4001
        %4003 = vmatprep.mubr.f32.mxu0 0.0
        %4004 = vmatmul.mubr.f32.gmra.mrb[0].mxu0 %v3925
        %v4005 = vpop.f32.mrb[0].mxu0
        %v4006 = vadd.f32 0.0, %v4005
        %v4007 = vpop.f32.mrb[0].mxu0
        %v4008 = vadd.f32 0.0, %v4007
        %4009 = vmatprep.mubr.f32.mxu0 0.0
        %4010 = vmatmul.mubr.f32.gmra.mrb[0].mxu0 %v3928
        %v4011 = vpop.f32.mrb[0].mxu0
        %v4012 = vadd.f32 0.0, %v4011
        %v4013 = vpop.f32.mrb[0].mxu0
        %v4014 = vadd.f32 0.0, %v4013
        %4015 = vmatprep.mubr.f32.mxu0 0.0
        %4016 = vmatmul.mubr.f32.gmra.mrb[0].mxu0 %v3931
        %v4017 = vpop.f32.mrb[0].mxu0
        %v4018 = vadd.f32 0.0, %v4017
        %v4019 = vpop.f32.mrb[0].mxu0
        %v4020 = vadd.f32 0.0, %v4019
        %4021 = vdwg.mxu0
        %v4022 = vadd.f32 %v3830, %v4000
        %v4023 = vadd.f32 %v3832, %v4002
        %v4024 = vadd.f32 %v3836, %v4006
        %v4025 = vadd.f32 %v3838, %v4008
        %v4026 = vadd.f32 %v3842, %v4012
        %v4027 = vadd.f32 %v3844, %v4014
        %v4028 = vadd.f32 %v3848, %v4018
        %v4029 = vadd.f32 %v3850, %v4020
        %v4030 = vmul.f32 %v3513, %v2430
        %v4031 = vmul.f32 %v3514, %v2433
        %v4032 = vmul.f32 %v3515, %v2432
        %v4033 = vmul.f32 %v3516, %v2430
        %v4034 = vmul.f32 %v3517, %v2433
        %v4035 = vmul.f32 %v3518, %v2432
        %v4036 = vmul.f32 %v3519, %v2430
        %v4037 = vmul.f32 %v3520, %v2433
        %v4038 = vmul.f32 %v3521, %v2432
        %v4039 = vmul.f32 %v3522, %v2430
        %v4040 = vmul.f32 %v3523, %v2433
        %v4041 = vmul.f32 %v3524, %v2432
        %s4042 = scalar_lea.vmem [#allocation5], 96
        %v4043 = vld [vmem:[%s4042] sm:$0xff]
        %v4044 = vld [vmem:[%s4042 + $0x8] sm:$0xff]
        %v4045 = vld [vmem:[%s4042 + $0x10] sm:$0xff]
        %v4046 = vld [vmem:[%s4042 + $0x18] sm:$0xff]
        %4059 = vrot.lane.b32.xlu0 %v4030, 1
        %v4060 = vpop.permute.xlu0 %4059
        %4061 = vrot.lane.b32.xlu0 %v4031, 1
        %v4062 = vpop.permute.xlu0 %4061
        %4063 = vrot.lane.b32.xlu0 %v4032, 1
        %v4064 = vpop.permute.xlu0 %4063
        %4065 = vrot.lane.b32.xlu0 %v4033, 1
        %v4066 = vpop.permute.xlu0 %4065
        %4067 = vrot.lane.b32.xlu0 %v4034, 1
        %v4068 = vpop.permute.xlu0 %4067
        %4069 = vrot.lane.b32.xlu0 %v4035, 1
        %v4070 = vpop.permute.xlu0 %4069
        %4071 = vrot.lane.b32.xlu0 %v4036, 1
        %v4072 = vpop.permute.xlu0 %4071
        %4073 = vrot.lane.b32.xlu0 %v4037, 1
        %v4074 = vpop.permute.xlu0 %4073
        %4075 = vrot.lane.b32.xlu0 %v4038, 1
        %v4076 = vpop.permute.xlu0 %4075
        %4077 = vrot.lane.b32.xlu0 %v4039, 1
        %v4078 = vpop.permute.xlu0 %4077
        %4079 = vrot.lane.b32.xlu0 %v4040, 1
        %v4080 = vpop.permute.xlu0 %4079
        %4081 = vrot.lane.b32.xlu0 %v4041, 1
        %v4082 = vpop.permute.xlu0 %4081
        %v4083 = vsel %vm1302, %v4060, %v4062
        %v4084 = vsel %vm1302, %v4062, %v4064
        %v4085 = vsel %vm1302, %v4066, %v4068
        %v4086 = vsel %vm1302, %v4068, %v4070
        %v4087 = vsel %vm1302, %v4072, %v4074
        %v4088 = vsel %vm1302, %v4074, %v4076
        %v4089 = vsel %vm1302, %v4078, %v4080
        %v4090 = vsel %vm1302, %v4080, %v4082
        %v4100 = vsel %vm1988, %v4043, 0
        %v4103 = vsel %vm1988, %v4044, 0
        %v4106 = vsel %vm1988, %v4045, 0
        %v4109 = vsel %vm1988, %v4046, 0
        %4111 = vmatprep.subr.mxu0 %v4084
        %4112 = vmatpush1.msra.mxu0 %v4083
        %4113 = vmatprep.subr.mxu0 %v4086
        %4114 = vmatpush1.msra.mxu0 %v4085
        %4115 = vmatprep.subr.mxu0 %v4088
        %4116 = vmatpush1.msra.mxu0 %v4087
        %4117 = vmatprep.subr.mxu0 %v4090
        %4118 = vmatpush1.msra.mxu0 %v4089
        %4119 = vmatprep.subr.mxu0 0.0
        %4120 = vmatpush1.msra.mxu0 0.0
        %4121 = vmatprep.subr.mxu0 0.0
        %4122 = vmatpush1.msra.mxu0 0.0
        %4123 = vmatprep.subr.mxu0 0.0
        %4124 = vmatpush1.msra.mxu0 0.0
        %4125 = vmatprep.subr.mxu0 0.0
        %4126 = vmatpush1.msra.mxu0 0.0
        %4127 = vmatprep.subr.mxu0 0.0
        %4128 = vmatpush1.msra.mxu0 0.0
        %4129 = vmatprep.subr.mxu0 0.0
        %4130 = vmatpush1.msra.mxu0 0.0
        %4131 = vmatprep.subr.mxu0 0.0
        %4132 = vmatpush1.msra.mxu0 0.0
        %4133 = vmatprep.subr.mxu0 0.0
        %4134 = vmatpush1.msra.mxu0 0.0
        %4135 = vmatprep.subr.mxu0 0.0
        %4136 = vmatpush1.msra.mxu0 0.0
        %4137 = vmatprep.subr.mxu0 0.0
        %4138 = vmatpush1.msra.mxu0 0.0
        %4139 = vmatprep.subr.mxu0 0.0
        %4140 = vmatpush1.msra.mxu0 0.0
        %4141 = vmatprep.subr.mxu0 0.0
        %4142 = vmatpush1.msra.mxu0 0.0
        %4143 = vmatprep.subr.mxu0 0.0
        %4144 = vmatpush1.msra.mxu0 0.0
        %4145 = vmatprep.subr.mxu0 0.0
        %4146 = vmatpush1.msra.mxu0 0.0
        %4147 = vmatprep.subr.mxu0 0.0
        %4148 = vmatpush1.msra.mxu0 0.0
        %4149 = vmatprep.subr.mxu0 0.0
        %4150 = vmatpush1.msra.mxu0 0.0
        %4151 = vmatprep.subr.mxu0 0.0
        %4152 = vmatpush1.msra.mxu0 0.0
        %4153 = vmatprep.subr.mxu0 0.0
        %4154 = vmatpush1.msra.mxu0 0.0
        %4155 = vmatprep.subr.mxu0 0.0
        %4156 = vmatpush1.msra.mxu0 0.0
        %4157 = vmatprep.subr.mxu0 0.0
        %4158 = vmatpush1.msra.mxu0 0.0
        %4159 = vmatprep.subr.mxu0 0.0
        %4160 = vmatpush1.msra.mxu0 0.0
        %4161 = vmatprep.subr.mxu0 0.0
        %4162 = vmatpush1.msra.mxu0 0.0
        %4163 = vmatprep.subr.mxu0 0.0
        %4164 = vmatpush1.msra.mxu0 0.0
        %4165 = vmatprep.subr.mxu0 0.0
        %4166 = vmatpush1.msra.mxu0 0.0
        %4167 = vmatprep.subr.mxu0 0.0
        %4168 = vmatpush1.msra.mxu0 0.0
        %4169 = vmatprep.subr.mxu0 0.0
        %4170 = vmatpush1.msra.mxu0 0.0
        %4171 = vmatprep.subr.mxu0 0.0
        %4172 = vmatpush1.msra.mxu0 0.0
        %4173 = vmatprep.subr.mxu0 0.0
        %4174 = vmatpush1.msra.mxu0 0.0
        %4175 = vmatprep.mubr.f32.mxu0 0.0
        %4176 = vmatmul.mubr.f32.gmra.mrb[0].mxu0 %v4100
        %v4177 = vpop.f32.mrb[0].mxu0
        %v4178 = vadd.f32 0.0, %v4177
        %v4179 = vpop.f32.mrb[0].mxu0
        %v4180 = vadd.f32 0.0, %v4179
        %4181 = vmatprep.mubr.f32.mxu0 0.0
        %4182 = vmatmul.mubr.f32.gmra.mrb[0].mxu0 %v4103
        %v4183 = vpop.f32.mrb[0].mxu0
        %v4184 = vadd.f32 0.0, %v4183
        %v4185 = vpop.f32.mrb[0].mxu0
        %v4186 = vadd.f32 0.0, %v4185
        %4187 = vmatprep.mubr.f32.mxu0 0.0
        %4188 = vmatmul.mubr.f32.gmra.mrb[0].mxu0 %v4106
        %v4189 = vpop.f32.mrb[0].mxu0
        %v4190 = vadd.f32 0.0, %v4189
        %v4191 = vpop.f32.mrb[0].mxu0
        %v4192 = vadd.f32 0.0, %v4191
        %4193 = vmatprep.mubr.f32.mxu0 0.0
        %4194 = vmatmul.mubr.f32.gmra.mrb[0].mxu0 %v4109
        %v4195 = vpop.f32.mrb[0].mxu0
        %v4196 = vadd.f32 0.0, %v4195
        %v4197 = vpop.f32.mrb[0].mxu0
        %v4198 = vadd.f32 0.0, %v4197
        %4199 = vdwg.mxu0
        %v4200 = vadd.f32 %v4022, %v4178
        %v4201 = vadd.f32 %v4023, %v4180
        %v4202 = vadd.f32 %v4024, %v4184
        %v4203 = vadd.f32 %v4025, %v4186
        %v4204 = vadd.f32 %v4026, %v4190
        %v4205 = vadd.f32 %v4027, %v4192
        %v4206 = vadd.f32 %v4028, %v4196
        %v4207 = vadd.f32 %v4029, %v4198
        %s4208 = scalar_lea.vmem [#allocation5], 128
        %v4209 = vld [vmem:[%s4208] sm:$0xff]
        %v4210 = vld [vmem:[%s4208 + $0x8] sm:$0xff]
        %v4211 = vld [vmem:[%s4208 + $0x10] sm:$0xff]
        %v4212 = vld [vmem:[%s4208 + $0x18] sm:$0xff]
        %v4214 = vsel %vm1988, %v4209, 0
        %v4217 = vsel %vm1988, %v4210, 0
        %v4220 = vsel %vm1988, %v4211, 0
        %v4223 = vsel %vm1988, %v4212, 0
        %4225 = vmatprep.subr.mxu0 %v3515
        %4226 = vmatpush1.msra.mxu0 %v3514
        %4227 = vmatprep.subr.mxu0 %v3518
        %4228 = vmatpush1.msra.mxu0 %v3517
        %4229 = vmatprep.subr.mxu0 %v3521
        %4230 = vmatpush1.msra.mxu0 %v3520
        %4231 = vmatprep.subr.mxu0 %v3524
        %4232 = vmatpush1.msra.mxu0 %v3523
        %4233 = vmatprep.subr.mxu0 0.0
        %4234 = vmatpush1.msra.mxu0 0.0
        %4235 = vmatprep.subr.mxu0 0.0
        %4236 = vmatpush1.msra.mxu0 0.0
        %4237 = vmatprep.subr.mxu0 0.0
        %4238 = vmatpush1.msra.mxu0 0.0
        %4239 = vmatprep.subr.mxu0 0.0
        %4240 = vmatpush1.msra.mxu0 0.0
        %4241 = vmatprep.subr.mxu0 0.0
        %4242 = vmatpush1.msra.mxu0 0.0
        %4243 = vmatprep.subr.mxu0 0.0
        %4244 = vmatpush1.msra.mxu0 0.0
        %4245 = vmatprep.subr.mxu0 0.0
        %4246 = vmatpush1.msra.mxu0 0.0
        %4247 = vmatprep.subr.mxu0 0.0
        %4248 = vmatpush1.msra.mxu0 0.0
        %4249 = vmatprep.subr.mxu0 0.0
        %4250 = vmatpush1.msra.mxu0 0.0
        %4251 = vmatprep.subr.mxu0 0.0
        %4252 = vmatpush1.msra.mxu0 0.0
        %4253 = vmatprep.subr.mxu0 0.0
        %4254 = vmatpush1.msra.mxu0 0.0
        %4255 = vmatprep.subr.mxu0 0.0
        %4256 = vmatpush1.msra.mxu0 0.0
        %4257 = vmatprep.subr.mxu0 0.0
        %4258 = vmatpush1.msra.mxu0 0.0
        %4259 = vmatprep.subr.mxu0 0.0
        %4260 = vmatpush1.msra.mxu0 0.0
        %4261 = vmatprep.subr.mxu0 0.0
        %4262 = vmatpush1.msra.mxu0 0.0
        %4263 = vmatprep.subr.mxu0 0.0
        %4264 = vmatpush1.msra.mxu0 0.0
        %4265 = vmatprep.subr.mxu0 0.0
        %4266 = vmatpush1.msra.mxu0 0.0
        %4267 = vmatprep.subr.mxu0 0.0
        %4268 = vmatpush1.msra.mxu0 0.0
        %4269 = vmatprep.subr.mxu0 0.0
        %4270 = vmatpush1.msra.mxu0 0.0
        %4271 = vmatprep.subr.mxu0 0.0
        %4272 = vmatpush1.msra.mxu0 0.0
        %4273 = vmatprep.subr.mxu0 0.0
        %4274 = vmatpush1.msra.mxu0 0.0
        %4275 = vmatprep.subr.mxu0 0.0
        %4276 = vmatpush1.msra.mxu0 0.0
        %4277 = vmatprep.subr.mxu0 0.0
        %4278 = vmatpush1.msra.mxu0 0.0
        %4279 = vmatprep.subr.mxu0 0.0
        %4280 = vmatpush1.msra.mxu0 0.0
        %4281 = vmatprep.subr.mxu0 0.0
        %4282 = vmatpush1.msra.mxu0 0.0
        %4283 = vmatprep.subr.mxu0 0.0
        %4284 = vmatpush1.msra.mxu0 0.0
        %4285 = vmatprep.subr.mxu0 0.0
        %4286 = vmatpush1.msra.mxu0 0.0
        %4287 = vmatprep.subr.mxu0 0.0
        %4288 = vmatpush1.msra.mxu0 0.0
        %4289 = vmatprep.mubr.f32.mxu0 0.0
        %4290 = vmatmul.mubr.f32.gmra.mrb[0].mxu0 %v4214
        %v4291 = vpop.f32.mrb[0].mxu0
        %v4292 = vadd.f32 0.0, %v4291
        %v4293 = vpop.f32.mrb[0].mxu0
        %v4294 = vadd.f32 0.0, %v4293
        %4295 = vmatprep.mubr.f32.mxu0 0.0
        %4296 = vmatmul.mubr.f32.gmra.mrb[0].mxu0 %v4217
        %v4297 = vpop.f32.mrb[0].mxu0
        %v4298 = vadd.f32 0.0, %v4297
        %v4299 = vpop.f32.mrb[0].mxu0
        %v4300 = vadd.f32 0.0, %v4299
        %4301 = vmatprep.mubr.f32.mxu0 0.0
        %4302 = vmatmul.mubr.f32.gmra.mrb[0].mxu0 %v4220
        %v4303 = vpop.f32.mrb[0].mxu0
        %v4304 = vadd.f32 0.0, %v4303
        %v4305 = vpop.f32.mrb[0].mxu0
        %v4306 = vadd.f32 0.0, %v4305
        %4307 = vmatprep.mubr.f32.mxu0 0.0
        %4308 = vmatmul.mubr.f32.gmra.mrb[0].mxu0 %v4223
        %v4309 = vpop.f32.mrb[0].mxu0
        %v4310 = vadd.f32 0.0, %v4309
        %v4311 = vpop.f32.mrb[0].mxu0
        %v4312 = vadd.f32 0.0, %v4311
        %4313 = vdwg.mxu0
        %v4314 = vadd.f32 %v4200, %v4292
        %v4315 = vadd.f32 %v4201, %v4294
        %v4316 = vadd.f32 %v4202, %v4298
        %v4317 = vadd.f32 %v4203, %v4300
        %v4318 = vadd.f32 %v4204, %v4304
        %v4319 = vadd.f32 %v4205, %v4306
        %v4320 = vadd.f32 %v4206, %v4310
        %v4321 = vadd.f32 %v4207, %v4312
        %v4322 = vld [vmem:[#allocation2 + $0x8] sm:$0xff]
        %v4323 = vld [vmem:[#allocation2 + $0x10] sm:$0xff]
        %v4324 = vld [vmem:[#allocation2 + $0x18] sm:$0xff]
        %v4325 = vld [vmem:[#allocation2 + $0x28] sm:$0xff]
        %v4326 = vld [vmem:[#allocation2 + $0x30] sm:$0xff]
        %v4327 = vld [vmem:[#allocation2 + $0x38] sm:$0xff]
        %v4328 = vld [vmem:[#allocation2 + $0x48] sm:$0xff]
        %v4329 = vld [vmem:[#allocation2 + $0x50] sm:$0xff]
        %v4330 = vld [vmem:[#allocation2 + $0x58] sm:$0xff]
        %v4331 = vld [vmem:[#allocation2 + $0x68] sm:$0xff]
        %v4332 = vld [vmem:[#allocation2 + $0x70] sm:$0xff]
        %v4333 = vld [vmem:[#allocation2 + $0x78] sm:$0xff]
        %v4334 = vmul.f32 %v4322, %v2742
        %v4335 = vmul.f32 %v4323, %v2745
        %v4336 = vmul.f32 %v4324, %v2744
        %v4337 = vmul.f32 %v4325, %v2742
        %v4338 = vmul.f32 %v4326, %v2745
        %v4339 = vmul.f32 %v4327, %v2744
        %v4340 = vmul.f32 %v4328, %v2742
        %v4341 = vmul.f32 %v4329, %v2745
        %v4342 = vmul.f32 %v4330, %v2744
        %v4343 = vmul.f32 %v4331, %v2742
        %v4344 = vmul.f32 %v4332, %v2745
        %v4345 = vmul.f32 %v4333, %v2744
        %s4346 = scalar_lea.vmem [#allocation5], 160
        %v4347 = vld [vmem:[%s4346] sm:$0xff]
        %v4348 = vld [vmem:[%s4346 + $0x8] sm:$0xff]
        %v4349 = vld [vmem:[%s4346 + $0x10] sm:$0xff]
        %v4350 = vld [vmem:[%s4346 + $0x18] sm:$0xff]
        %4363 = vrot.lane.b32.xlu0 %v4334, 127
        %v4364 = vpop.permute.xlu0 %4363
        %4365 = vrot.lane.b32.xlu0 %v4335, 127
        %v4366 = vpop.permute.xlu0 %4365
        %4367 = vrot.lane.b32.xlu0 %v4336, 127
        %v4368 = vpop.permute.xlu0 %4367
        %4369 = vrot.lane.b32.xlu0 %v4337, 127
        %v4370 = vpop.permute.xlu0 %4369
        %4371 = vrot.lane.b32.xlu0 %v4338, 127
        %v4372 = vpop.permute.xlu0 %4371
        %4373 = vrot.lane.b32.xlu0 %v4339, 127
        %v4374 = vpop.permute.xlu0 %4373
        %4375 = vrot.lane.b32.xlu0 %v4340, 127
        %v4376 = vpop.permute.xlu0 %4375
        %4377 = vrot.lane.b32.xlu0 %v4341, 127
        %v4378 = vpop.permute.xlu0 %4377
        %4379 = vrot.lane.b32.xlu0 %v4342, 127
        %v4380 = vpop.permute.xlu0 %4379
        %4381 = vrot.lane.b32.xlu0 %v4343, 127
        %v4382 = vpop.permute.xlu0 %4381
        %4383 = vrot.lane.b32.xlu0 %v4344, 127
        %v4384 = vpop.permute.xlu0 %4383
        %4385 = vrot.lane.b32.xlu0 %v4345, 127
        %v4386 = vpop.permute.xlu0 %4385
        %v4387 = vsel %vm904, %v4364, %v4366
        %v4388 = vsel %vm904, %v4366, %v4368
        %v4389 = vsel %vm904, %v4370, %v4372
        %v4390 = vsel %vm904, %v4372, %v4374
        %v4391 = vsel %vm904, %v4376, %v4378
        %v4392 = vsel %vm904, %v4378, %v4380
        %v4393 = vsel %vm904, %v4382, %v4384
        %v4394 = vsel %vm904, %v4384, %v4386
        %v4404 = vsel %vm1988, %v4347, 0
        %v4407 = vsel %vm1988, %v4348, 0
        %v4410 = vsel %vm1988, %v4349, 0
        %v4413 = vsel %vm1988, %v4350, 0
        %4415 = vmatprep.subr.mxu0 %v4388
        %4416 = vmatpush1.msra.mxu0 %v4387
        %4417 = vmatprep.subr.mxu0 %v4390
        %4418 = vmatpush1.msra.mxu0 %v4389
        %4419 = vmatprep.subr.mxu0 %v4392
        %4420 = vmatpush1.msra.mxu0 %v4391
        %4421 = vmatprep.subr.mxu0 %v4394
        %4422 = vmatpush1.msra.mxu0 %v4393
        %4423 = vmatprep.subr.mxu0 0.0
        %4424 = vmatpush1.msra.mxu0 0.0
        %4425 = vmatprep.subr.mxu0 0.0
        %4426 = vmatpush1.msra.mxu0 0.0
        %4427 = vmatprep.subr.mxu0 0.0
        %4428 = vmatpush1.msra.mxu0 0.0
        %4429 = vmatprep.subr.mxu0 0.0
        %4430 = vmatpush1.msra.mxu0 0.0
        %4431 = vmatprep.subr.mxu0 0.0
        %4432 = vmatpush1.msra.mxu0 0.0
        %4433 = vmatprep.subr.mxu0 0.0
        %4434 = vmatpush1.msra.mxu0 0.0
        %4435 = vmatprep.subr.mxu0 0.0
        %4436 = vmatpush1.msra.mxu0 0.0
        %4437 = vmatprep.subr.mxu0 0.0
        %4438 = vmatpush1.msra.mxu0 0.0
        %4439 = vmatprep.subr.mxu0 0.0
        %4440 = vmatpush1.msra.mxu0 0.0
        %4441 = vmatprep.subr.mxu0 0.0
        %4442 = vmatpush1.msra.mxu0 0.0
        %4443 = vmatprep.subr.mxu0 0.0
        %4444 = vmatpush1.msra.mxu0 0.0
        %4445 = vmatprep.subr.mxu0 0.0
        %4446 = vmatpush1.msra.mxu0 0.0
        %4447 = vmatprep.subr.mxu0 0.0
        %4448 = vmatpush1.msra.mxu0 0.0
        %4449 = vmatprep.subr.mxu0 0.0
        %4450 = vmatpush1.msra.mxu0 0.0
        %4451 = vmatprep.subr.mxu0 0.0
        %4452 = vmatpush1.msra.mxu0 0.0
        %4453 = vmatprep.subr.mxu0 0.0
        %4454 = vmatpush1.msra.mxu0 0.0
        %4455 = vmatprep.subr.mxu0 0.0
        %4456 = vmatpush1.msra.mxu0 0.0
        %4457 = vmatprep.subr.mxu0 0.0
        %4458 = vmatpush1.msra.mxu0 0.0
        %4459 = vmatprep.subr.mxu0 0.0
        %4460 = vmatpush1.msra.mxu0 0.0
        %4461 = vmatprep.subr.mxu0 0.0
        %4462 = vmatpush1.msra.mxu0 0.0
        %4463 = vmatprep.subr.mxu0 0.0
        %4464 = vmatpush1.msra.mxu0 0.0
        %4465 = vmatprep.subr.mxu0 0.0
        %4466 = vmatpush1.msra.mxu0 0.0
        %4467 = vmatprep.subr.mxu0 0.0
        %4468 = vmatpush1.msra.mxu0 0.0
        %4469 = vmatprep.subr.mxu0 0.0
        %4470 = vmatpush1.msra.mxu0 0.0
        %4471 = vmatprep.subr.mxu0 0.0
        %4472 = vmatpush1.msra.mxu0 0.0
        %4473 = vmatprep.subr.mxu0 0.0
        %4474 = vmatpush1.msra.mxu0 0.0
        %4475 = vmatprep.subr.mxu0 0.0
        %4476 = vmatpush1.msra.mxu0 0.0
        %4477 = vmatprep.subr.mxu0 0.0
        %4478 = vmatpush1.msra.mxu0 0.0
        %4479 = vmatprep.mubr.f32.mxu0 0.0
        %4480 = vmatmul.mubr.f32.gmra.mrb[0].mxu0 %v4404
        %v4481 = vpop.f32.mrb[0].mxu0
        %v4482 = vadd.f32 0.0, %v4481
        %v4483 = vpop.f32.mrb[0].mxu0
        %v4484 = vadd.f32 0.0, %v4483
        %4485 = vmatprep.mubr.f32.mxu0 0.0
        %4486 = vmatmul.mubr.f32.gmra.mrb[0].mxu0 %v4407
        %v4487 = vpop.f32.mrb[0].mxu0
        %v4488 = vadd.f32 0.0, %v4487
        %v4489 = vpop.f32.mrb[0].mxu0
        %v4490 = vadd.f32 0.0, %v4489
        %4491 = vmatprep.mubr.f32.mxu0 0.0
        %4492 = vmatmul.mubr.f32.gmra.mrb[0].mxu0 %v4410
        %v4493 = vpop.f32.mrb[0].mxu0
        %v4494 = vadd.f32 0.0, %v4493
        %v4495 = vpop.f32.mrb[0].mxu0
        %v4496 = vadd.f32 0.0, %v4495
        %4497 = vmatprep.mubr.f32.mxu0 0.0
        %4498 = vmatmul.mubr.f32.gmra.mrb[0].mxu0 %v4413
        %v4499 = vpop.f32.mrb[0].mxu0
        %v4500 = vadd.f32 0.0, %v4499
        %v4501 = vpop.f32.mrb[0].mxu0
        %v4502 = vadd.f32 0.0, %v4501
        %4503 = vdwg.mxu0
        %v4504 = vadd.f32 %v4314, %v4482
        %v4505 = vadd.f32 %v4315, %v4484
        %v4506 = vadd.f32 %v4316, %v4488
        %v4507 = vadd.f32 %v4317, %v4490
        %v4508 = vadd.f32 %v4318, %v4494
        %v4509 = vadd.f32 %v4319, %v4496
        %v4510 = vadd.f32 %v4320, %v4500
        %v4511 = vadd.f32 %v4321, %v4502
        %v4512 = vmul.f32 %v4322, %v2928
        %v4513 = vmul.f32 %v4323, %v2931
        %v4514 = vmul.f32 %v4324, %v2930
        %v4515 = vmul.f32 %v4325, %v2928
        %v4516 = vmul.f32 %v4326, %v2931
        %v4517 = vmul.f32 %v4327, %v2930
        %v4518 = vmul.f32 %v4328, %v2928
        %v4519 = vmul.f32 %v4329, %v2931
        %v4520 = vmul.f32 %v4330, %v2930
        %v4521 = vmul.f32 %v4331, %v2928
        %v4522 = vmul.f32 %v4332, %v2931
        %v4523 = vmul.f32 %v4333, %v2930
        %s4524 = scalar_lea.vmem [#allocation5], 192
        %v4525 = vld [vmem:[%s4524] sm:$0xff]
        %v4526 = vld [vmem:[%s4524 + $0x8] sm:$0xff]
        %v4527 = vld [vmem:[%s4524 + $0x10] sm:$0xff]
        %v4528 = vld [vmem:[%s4524 + $0x18] sm:$0xff]
        %4541 = vrot.lane.b32.xlu0 %v4512, 113
        %v4542 = vpop.permute.xlu0 %4541
        %4543 = vrot.lane.b32.xlu0 %v4513, 113
        %v4544 = vpop.permute.xlu0 %4543
        %4545 = vrot.lane.b32.xlu0 %v4514, 113
        %v4546 = vpop.permute.xlu0 %4545
        %4547 = vrot.lane.b32.xlu0 %v4515, 113
        %v4548 = vpop.permute.xlu0 %4547
        %4549 = vrot.lane.b32.xlu0 %v4516, 113
        %v4550 = vpop.permute.xlu0 %4549
        %4551 = vrot.lane.b32.xlu0 %v4517, 113
        %v4552 = vpop.permute.xlu0 %4551
        %4553 = vrot.lane.b32.xlu0 %v4518, 113
        %v4554 = vpop.permute.xlu0 %4553
        %4555 = vrot.lane.b32.xlu0 %v4519, 113
        %v4556 = vpop.permute.xlu0 %4555
        %4557 = vrot.lane.b32.xlu0 %v4520, 113
        %v4558 = vpop.permute.xlu0 %4557
        %4559 = vrot.lane.b32.xlu0 %v4521, 113
        %v4560 = vpop.permute.xlu0 %4559
        %4561 = vrot.lane.b32.xlu0 %v4522, 113
        %v4562 = vpop.permute.xlu0 %4561
        %4563 = vrot.lane.b32.xlu0 %v4523, 113
        %v4564 = vpop.permute.xlu0 %4563
        %v4565 = vsel %vm957, %v4542, %v4544
        %v4566 = vsel %vm957, %v4544, %v4546
        %v4567 = vsel %vm957, %v4548, %v4550
        %v4568 = vsel %vm957, %v4550, %v4552
        %v4569 = vsel %vm957, %v4554, %v4556
        %v4570 = vsel %vm957, %v4556, %v4558
        %v4571 = vsel %vm957, %v4560, %v4562
        %v4572 = vsel %vm957, %v4562, %v4564
        %v4582 = vsel %vm1988, %v4525, 0
        %v4585 = vsel %vm1988, %v4526, 0
        %v4588 = vsel %vm1988, %v4527, 0
        %v4591 = vsel %vm1988, %v4528, 0
        %4593 = vmatprep.subr.mxu0 %v4566
        %4594 = vmatpush1.msra.mxu0 %v4565
        %4595 = vmatprep.subr.mxu0 %v4568
        %4596 = vmatpush1.msra.mxu0 %v4567
        %4597 = vmatprep.subr.mxu0 %v4570
        %4598 = vmatpush1.msra.mxu0 %v4569
        %4599 = vmatprep.subr.mxu0 %v4572
        %4600 = vmatpush1.msra.mxu0 %v4571
        %4601 = vmatprep.subr.mxu0 0.0
        %4602 = vmatpush1.msra.mxu0 0.0
        %4603 = vmatprep.subr.mxu0 0.0
        %4604 = vmatpush1.msra.mxu0 0.0
        %4605 = vmatprep.subr.mxu0 0.0
        %4606 = vmatpush1.msra.mxu0 0.0
        %4607 = vmatprep.subr.mxu0 0.0
        %4608 = vmatpush1.msra.mxu0 0.0
        %4609 = vmatprep.subr.mxu0 0.0
        %4610 = vmatpush1.msra.mxu0 0.0
        %4611 = vmatprep.subr.mxu0 0.0
        %4612 = vmatpush1.msra.mxu0 0.0
        %4613 = vmatprep.subr.mxu0 0.0
        %4614 = vmatpush1.msra.mxu0 0.0
        %4615 = vmatprep.subr.mxu0 0.0
        %4616 = vmatpush1.msra.mxu0 0.0
        %4617 = vmatprep.subr.mxu0 0.0
        %4618 = vmatpush1.msra.mxu0 0.0
        %4619 = vmatprep.subr.mxu0 0.0
        %4620 = vmatpush1.msra.mxu0 0.0
        %4621 = vmatprep.subr.mxu0 0.0
        %4622 = vmatpush1.msra.mxu0 0.0
        %4623 = vmatprep.subr.mxu0 0.0
        %4624 = vmatpush1.msra.mxu0 0.0
        %4625 = vmatprep.subr.mxu0 0.0
        %4626 = vmatpush1.msra.mxu0 0.0
        %4627 = vmatprep.subr.mxu0 0.0
        %4628 = vmatpush1.msra.mxu0 0.0
        %4629 = vmatprep.subr.mxu0 0.0
        %4630 = vmatpush1.msra.mxu0 0.0
        %4631 = vmatprep.subr.mxu0 0.0
        %4632 = vmatpush1.msra.mxu0 0.0
        %4633 = vmatprep.subr.mxu0 0.0
        %4634 = vmatpush1.msra.mxu0 0.0
        %4635 = vmatprep.subr.mxu0 0.0
        %4636 = vmatpush1.msra.mxu0 0.0
        %4637 = vmatprep.subr.mxu0 0.0
        %4638 = vmatpush1.msra.mxu0 0.0
        %4639 = vmatprep.subr.mxu0 0.0
        %4640 = vmatpush1.msra.mxu0 0.0
        %4641 = vmatprep.subr.mxu0 0.0
        %4642 = vmatpush1.msra.mxu0 0.0
        %4643 = vmatprep.subr.mxu0 0.0
        %4644 = vmatpush1.msra.mxu0 0.0
        %4645 = vmatprep.subr.mxu0 0.0
        %4646 = vmatpush1.msra.mxu0 0.0
        %4647 = vmatprep.subr.mxu0 0.0
        %4648 = vmatpush1.msra.mxu0 0.0
        %4649 = vmatprep.subr.mxu0 0.0
        %4650 = vmatpush1.msra.mxu0 0.0
        %4651 = vmatprep.subr.mxu0 0.0
        %4652 = vmatpush1.msra.mxu0 0.0
        %4653 = vmatprep.subr.mxu0 0.0
        %4654 = vmatpush1.msra.mxu0 0.0
        %4655 = vmatprep.subr.mxu0 0.0
        %4656 = vmatpush1.msra.mxu0 0.0
        %4657 = vmatprep.mubr.f32.mxu0 0.0
        %4658 = vmatmul.mubr.f32.gmra.mrb[0].mxu0 %v4582
        %v4659 = vpop.f32.mrb[0].mxu0
        %v4660 = vadd.f32 0.0, %v4659
        %v4661 = vpop.f32.mrb[0].mxu0
        %v4662 = vadd.f32 0.0, %v4661
        %4663 = vmatprep.mubr.f32.mxu0 0.0
        %4664 = vmatmul.mubr.f32.gmra.mrb[0].mxu0 %v4585
        %v4665 = vpop.f32.mrb[0].mxu0
        %v4666 = vadd.f32 0.0, %v4665
        %v4667 = vpop.f32.mrb[0].mxu0
        %v4668 = vadd.f32 0.0, %v4667
        %4669 = vmatprep.mubr.f32.mxu0 0.0
        %4670 = vmatmul.mubr.f32.gmra.mrb[0].mxu0 %v4588
        %v4671 = vpop.f32.mrb[0].mxu0
        %v4672 = vadd.f32 0.0, %v4671
        %v4673 = vpop.f32.mrb[0].mxu0
        %v4674 = vadd.f32 0.0, %v4673
        %4675 = vmatprep.mubr.f32.mxu0 0.0
        %4676 = vmatmul.mubr.f32.gmra.mrb[0].mxu0 %v4591
        %v4677 = vpop.f32.mrb[0].mxu0
        %v4678 = vadd.f32 0.0, %v4677
        %v4679 = vpop.f32.mrb[0].mxu0
        %v4680 = vadd.f32 0.0, %v4679
        %4681 = vdwg.mxu0
        %v4682 = vadd.f32 %v4504, %v4660
        %v4683 = vadd.f32 %v4505, %v4662
        %v4684 = vadd.f32 %v4506, %v4666
        %v4685 = vadd.f32 %v4507, %v4668
        %v4686 = vadd.f32 %v4508, %v4672
        %v4687 = vadd.f32 %v4509, %v4674
        %v4688 = vadd.f32 %v4510, %v4678
        %v4689 = vadd.f32 %v4511, %v4680
        %s4690 = scalar_lea.vmem [#allocation5], 224
        %v4691 = vld [vmem:[%s4690] sm:$0xff]
        %v4692 = vld [vmem:[%s4690 + $0x8] sm:$0xff]
        %v4693 = vld [vmem:[%s4690 + $0x10] sm:$0xff]
        %v4694 = vld [vmem:[%s4690 + $0x18] sm:$0xff]
        %4707 = vrot.lane.b32.xlu0 %v4322, 112
        %v4708 = vpop.permute.xlu0 %4707
        %4709 = vrot.lane.b32.xlu0 %v4323, 112
        %v4710 = vpop.permute.xlu0 %4709
        %4711 = vrot.lane.b32.xlu0 %v4324, 112
        %v4712 = vpop.permute.xlu0 %4711
        %4713 = vrot.lane.b32.xlu0 %v4325, 112
        %v4714 = vpop.permute.xlu0 %4713
        %4715 = vrot.lane.b32.xlu0 %v4326, 112
        %v4716 = vpop.permute.xlu0 %4715
        %4717 = vrot.lane.b32.xlu0 %v4327, 112
        %v4718 = vpop.permute.xlu0 %4717
        %4719 = vrot.lane.b32.xlu0 %v4328, 112
        %v4720 = vpop.permute.xlu0 %4719
        %4721 = vrot.lane.b32.xlu0 %v4329, 112
        %v4722 = vpop.permute.xlu0 %4721
        %4723 = vrot.lane.b32.xlu0 %v4330, 112
        %v4724 = vpop.permute.xlu0 %4723
        %4725 = vrot.lane.b32.xlu0 %v4331, 112
        %v4726 = vpop.permute.xlu0 %4725
        %4727 = vrot.lane.b32.xlu0 %v4332, 112
        %v4728 = vpop.permute.xlu0 %4727
        %4729 = vrot.lane.b32.xlu0 %v4333, 112
        %v4730 = vpop.permute.xlu0 %4729
        %v4731 = vsel %vm1177, %v4708, %v4710
        %v4732 = vsel %vm1177, %v4710, %v4712
        %v4733 = vsel %vm1177, %v4714, %v4716
        %v4734 = vsel %vm1177, %v4716, %v4718
        %v4735 = vsel %vm1177, %v4720, %v4722
        %v4736 = vsel %vm1177, %v4722, %v4724
        %v4737 = vsel %vm1177, %v4726, %v4728
        %v4738 = vsel %vm1177, %v4728, %v4730
        %v4748 = vsel %vm1988, %v4691, 0
        %v4751 = vsel %vm1988, %v4692, 0
        %v4754 = vsel %vm1988, %v4693, 0
        %v4757 = vsel %vm1988, %v4694, 0
        %4759 = vmatprep.subr.mxu0 %v4732
        %4760 = vmatpush1.msra.mxu0 %v4731
        %4761 = vmatprep.subr.mxu0 %v4734
        %4762 = vmatpush1.msra.mxu0 %v4733
        %4763 = vmatprep.subr.mxu0 %v4736
        %4764 = vmatpush1.msra.mxu0 %v4735
        %4765 = vmatprep.subr.mxu0 %v4738
        %4766 = vmatpush1.msra.mxu0 %v4737
        %4767 = vmatprep.subr.mxu0 0.0
        %4768 = vmatpush1.msra.mxu0 0.0
        %4769 = vmatprep.subr.mxu0 0.0
        %4770 = vmatpush1.msra.mxu0 0.0
        %4771 = vmatprep.subr.mxu0 0.0
        %4772 = vmatpush1.msra.mxu0 0.0
        %4773 = vmatprep.subr.mxu0 0.0
        %4774 = vmatpush1.msra.mxu0 0.0
        %4775 = vmatprep.subr.mxu0 0.0
        %4776 = vmatpush1.msra.mxu0 0.0
        %4777 = vmatprep.subr.mxu0 0.0
        %4778 = vmatpush1.msra.mxu0 0.0
        %4779 = vmatprep.subr.mxu0 0.0
        %4780 = vmatpush1.msra.mxu0 0.0
        %4781 = vmatprep.subr.mxu0 0.0
        %4782 = vmatpush1.msra.mxu0 0.0
        %4783 = vmatprep.subr.mxu0 0.0
        %4784 = vmatpush1.msra.mxu0 0.0
        %4785 = vmatprep.subr.mxu0 0.0
        %4786 = vmatpush1.msra.mxu0 0.0
        %4787 = vmatprep.subr.mxu0 0.0
        %4788 = vmatpush1.msra.mxu0 0.0
        %4789 = vmatprep.subr.mxu0 0.0
        %4790 = vmatpush1.msra.mxu0 0.0
        %4791 = vmatprep.subr.mxu0 0.0
        %4792 = vmatpush1.msra.mxu0 0.0
        %4793 = vmatprep.subr.mxu0 0.0
        %4794 = vmatpush1.msra.mxu0 0.0
        %4795 = vmatprep.subr.mxu0 0.0
        %4796 = vmatpush1.msra.mxu0 0.0
        %4797 = vmatprep.subr.mxu0 0.0
        %4798 = vmatpush1.msra.mxu0 0.0
        %4799 = vmatprep.subr.mxu0 0.0
        %4800 = vmatpush1.msra.mxu0 0.0
        %4801 = vmatprep.subr.mxu0 0.0
        %4802 = vmatpush1.msra.mxu0 0.0
        %4803 = vmatprep.subr.mxu0 0.0
        %4804 = vmatpush1.msra.mxu0 0.0
        %4805 = vmatprep.subr.mxu0 0.0
        %4806 = vmatpush1.msra.mxu0 0.0
        %4807 = vmatprep.subr.mxu0 0.0
        %4808 = vmatpush1.msra.mxu0 0.0
        %4809 = vmatprep.subr.mxu0 0.0
        %4810 = vmatpush1.msra.mxu0 0.0
        %4811 = vmatprep.subr.mxu0 0.0
        %4812 = vmatpush1.msra.mxu0 0.0
        %4813 = vmatprep.subr.mxu0 0.0
        %4814 = vmatpush1.msra.mxu0 0.0
        %4815 = vmatprep.subr.mxu0 0.0
        %4816 = vmatpush1.msra.mxu0 0.0
        %4817 = vmatprep.subr.mxu0 0.0
        %4818 = vmatpush1.msra.mxu0 0.0
        %4819 = vmatprep.subr.mxu0 0.0
        %4820 = vmatpush1.msra.mxu0 0.0
        %4821 = vmatprep.subr.mxu0 0.0
        %4822 = vmatpush1.msra.mxu0 0.0
        %4823 = vmatprep.mubr.f32.mxu0 0.0
        %4824 = vmatmul.mubr.f32.gmra.mrb[0].mxu0 %v4748
        %v4825 = vpop.f32.mrb[0].mxu0
        %v4826 = vadd.f32 0.0, %v4825
        %v4827 = vpop.f32.mrb[0].mxu0
        %v4828 = vadd.f32 0.0, %v4827
        %4829 = vmatprep.mubr.f32.mxu0 0.0
        %4830 = vmatmul.mubr.f32.gmra.mrb[0].mxu0 %v4751
        %v4831 = vpop.f32.mrb[0].mxu0
        %v4832 = vadd.f32 0.0, %v4831
        %v4833 = vpop.f32.mrb[0].mxu0
        %v4834 = vadd.f32 0.0, %v4833
        %4835 = vmatprep.mubr.f32.mxu0 0.0
        %4836 = vmatmul.mubr.f32.gmra.mrb[0].mxu0 %v4754
        %v4837 = vpop.f32.mrb[0].mxu0
        %v4838 = vadd.f32 0.0, %v4837
        %v4839 = vpop.f32.mrb[0].mxu0
        %v4840 = vadd.f32 0.0, %v4839
        %4841 = vmatprep.mubr.f32.mxu0 0.0
        %4842 = vmatmul.mubr.f32.gmra.mrb[0].mxu0 %v4757
        %v4843 = vpop.f32.mrb[0].mxu0
        %v4844 = vadd.f32 0.0, %v4843
        %v4845 = vpop.f32.mrb[0].mxu0
        %v4846 = vadd.f32 0.0, %v4845
        %4847 = vdwg.mxu0
        %v4848 = vadd.f32 %v4682, %v4826
        %v4849 = vadd.f32 %v4683, %v4828
        %v4850 = vadd.f32 %v4684, %v4832
        %v4851 = vadd.f32 %v4685, %v4834
        %v4852 = vadd.f32 %v4686, %v4838
        %v4853 = vadd.f32 %v4687, %v4840
        %v4854 = vadd.f32 %v4688, %v4844
        %v4855 = vadd.f32 %v4689, %v4846
        %v4856 = vmul.f32 %v4322, %v3280
        %v4857 = vmul.f32 %v4323, %v3283
        %v4858 = vmul.f32 %v4324, %v3282
        %v4859 = vmul.f32 %v4325, %v3280
        %v4860 = vmul.f32 %v4326, %v3283
        %v4861 = vmul.f32 %v4327, %v3282
        %v4862 = vmul.f32 %v4328, %v3280
        %v4863 = vmul.f32 %v4329, %v3283
        %v4864 = vmul.f32 %v4330, %v3282
        %v4865 = vmul.f32 %v4331, %v3280
        %v4866 = vmul.f32 %v4332, %v3283
        %v4867 = vmul.f32 %v4333, %v3282
        %s4868 = scalar_lea.vmem [#allocation5], 256
        %v4869 = vld [vmem:[%s4868] sm:$0xff]
        %v4870 = vld [vmem:[%s4868 + $0x8] sm:$0xff]
        %v4871 = vld [vmem:[%s4868 + $0x10] sm:$0xff]
        %v4872 = vld [vmem:[%s4868 + $0x18] sm:$0xff]
        %4885 = vrot.lane.b32.xlu0 %v4856, 111
        %v4886 = vpop.permute.xlu0 %4885
        %4887 = vrot.lane.b32.xlu0 %v4857, 111
        %v4888 = vpop.permute.xlu0 %4887
        %4889 = vrot.lane.b32.xlu0 %v4858, 111
        %v4890 = vpop.permute.xlu0 %4889
        %4891 = vrot.lane.b32.xlu0 %v4859, 111
        %v4892 = vpop.permute.xlu0 %4891
        %4893 = vrot.lane.b32.xlu0 %v4860, 111
        %v4894 = vpop.permute.xlu0 %4893
        %4895 = vrot.lane.b32.xlu0 %v4861, 111
        %v4896 = vpop.permute.xlu0 %4895
        %4897 = vrot.lane.b32.xlu0 %v4862, 111
        %v4898 = vpop.permute.xlu0 %4897
        %4899 = vrot.lane.b32.xlu0 %v4863, 111
        %v4900 = vpop.permute.xlu0 %4899
        %4901 = vrot.lane.b32.xlu0 %v4864, 111
        %v4902 = vpop.permute.xlu0 %4901
        %4903 = vrot.lane.b32.xlu0 %v4865, 111
        %v4904 = vpop.permute.xlu0 %4903
        %4905 = vrot.lane.b32.xlu0 %v4866, 111
        %v4906 = vpop.permute.xlu0 %4905
        %4907 = vrot.lane.b32.xlu0 %v4867, 111
        %v4908 = vpop.permute.xlu0 %4907
        %v4909 = vsel %vm755, %v4886, %v4888
        %v4910 = vsel %vm755, %v4888, %v4890
        %v4911 = vsel %vm755, %v4892, %v4894
        %v4912 = vsel %vm755, %v4894, %v4896
        %v4913 = vsel %vm755, %v4898, %v4900
        %v4914 = vsel %vm755, %v4900, %v4902
        %v4915 = vsel %vm755, %v4904, %v4906
        %v4916 = vsel %vm755, %v4906, %v4908
        %v4926 = vsel %vm1988, %v4869, 0
        %v4929 = vsel %vm1988, %v4870, 0
        %v4932 = vsel %vm1988, %v4871, 0
        %v4935 = vsel %vm1988, %v4872, 0
        %4937 = vmatprep.subr.mxu0 %v4910
        %4938 = vmatpush1.msra.mxu0 %v4909
        %4939 = vmatprep.subr.mxu0 %v4912
        %4940 = vmatpush1.msra.mxu0 %v4911
        %4941 = vmatprep.subr.mxu0 %v4914
        %4942 = vmatpush1.msra.mxu0 %v4913
        %4943 = vmatprep.subr.mxu0 %v4916
        %4944 = vmatpush1.msra.mxu0 %v4915
        %4945 = vmatprep.subr.mxu0 0.0
        %4946 = vmatpush1.msra.mxu0 0.0
        %4947 = vmatprep.subr.mxu0 0.0
        %4948 = vmatpush1.msra.mxu0 0.0
        %4949 = vmatprep.subr.mxu0 0.0
        %4950 = vmatpush1.msra.mxu0 0.0
        %4951 = vmatprep.subr.mxu0 0.0
        %4952 = vmatpush1.msra.mxu0 0.0
        %4953 = vmatprep.subr.mxu0 0.0
        %4954 = vmatpush1.msra.mxu0 0.0
        %4955 = vmatprep.subr.mxu0 0.0
        %4956 = vmatpush1.msra.mxu0 0.0
        %4957 = vmatprep.subr.mxu0 0.0
        %4958 = vmatpush1.msra.mxu0 0.0
        %4959 = vmatprep.subr.mxu0 0.0
        %4960 = vmatpush1.msra.mxu0 0.0
        %4961 = vmatprep.subr.mxu0 0.0
        %4962 = vmatpush1.msra.mxu0 0.0
        %4963 = vmatprep.subr.mxu0 0.0
        %4964 = vmatpush1.msra.mxu0 0.0
        %4965 = vmatprep.subr.mxu0 0.0
        %4966 = vmatpush1.msra.mxu0 0.0
        %4967 = vmatprep.subr.mxu0 0.0
        %4968 = vmatpush1.msra.mxu0 0.0
        %4969 = vmatprep.subr.mxu0 0.0
        %4970 = vmatpush1.msra.mxu0 0.0
        %4971 = vmatprep.subr.mxu0 0.0
        %4972 = vmatpush1.msra.mxu0 0.0
        %4973 = vmatprep.subr.mxu0 0.0
        %4974 = vmatpush1.msra.mxu0 0.0
        %4975 = vmatprep.subr.mxu0 0.0
        %4976 = vmatpush1.msra.mxu0 0.0
        %4977 = vmatprep.subr.mxu0 0.0
        %4978 = vmatpush1.msra.mxu0 0.0
        %4979 = vmatprep.subr.mxu0 0.0
        %4980 = vmatpush1.msra.mxu0 0.0
        %4981 = vmatprep.subr.mxu0 0.0
        %4982 = vmatpush1.msra.mxu0 0.0
        %4983 = vmatprep.subr.mxu0 0.0
        %4984 = vmatpush1.msra.mxu0 0.0
        %4985 = vmatprep.subr.mxu0 0.0
        %4986 = vmatpush1.msra.mxu0 0.0
        %4987 = vmatprep.subr.mxu0 0.0
        %4988 = vmatpush1.msra.mxu0 0.0
        %4989 = vmatprep.subr.mxu0 0.0
        %4990 = vmatpush1.msra.mxu0 0.0
        %4991 = vmatprep.subr.mxu0 0.0
        %4992 = vmatpush1.msra.mxu0 0.0
        %4993 = vmatprep.subr.mxu0 0.0
        %4994 = vmatpush1.msra.mxu0 0.0
        %4995 = vmatprep.subr.mxu0 0.0
        %4996 = vmatpush1.msra.mxu0 0.0
        %4997 = vmatprep.subr.mxu0 0.0
        %4998 = vmatpush1.msra.mxu0 0.0
        %4999 = vmatprep.subr.mxu0 0.0
        %5000 = vmatpush1.msra.mxu0 0.0
        %5001 = vmatprep.mubr.f32.mxu0 0.0
        %5002 = vmatmul.mubr.f32.gmra.mrb[0].mxu0 %v4926
        %v5003 = vpop.f32.mrb[0].mxu0
        %v5004 = vadd.f32 0.0, %v5003
        %v5005 = vpop.f32.mrb[0].mxu0
        %v5006 = vadd.f32 0.0, %v5005
        %5007 = vmatprep.mubr.f32.mxu0 0.0
        %5008 = vmatmul.mubr.f32.gmra.mrb[0].mxu0 %v4929
        %v5009 = vpop.f32.mrb[0].mxu0
        %v5010 = vadd.f32 0.0, %v5009
        %v5011 = vpop.f32.mrb[0].mxu0
        %v5012 = vadd.f32 0.0, %v5011
        %5013 = vmatprep.mubr.f32.mxu0 0.0
        %5014 = vmatmul.mubr.f32.gmra.mrb[0].mxu0 %v4932
        %v5015 = vpop.f32.mrb[0].mxu0
        %v5016 = vadd.f32 0.0, %v5015
        %v5017 = vpop.f32.mrb[0].mxu0
        %v5018 = vadd.f32 0.0, %v5017
        %5019 = vmatprep.mubr.f32.mxu0 0.0
        %5020 = vmatmul.mubr.f32.gmra.mrb[0].mxu0 %v4935
        %v5021 = vpop.f32.mrb[0].mxu0
        %v5022 = vadd.f32 0.0, %v5021
        %v5023 = vpop.f32.mrb[0].mxu0
        %v5024 = vadd.f32 0.0, %v5023
        %5025 = vdwg.mxu0
        %v5026 = vadd.f32 %v4848, %v5004
        %v5027 = vadd.f32 %v4849, %v5006
        %v5028 = vadd.f32 %v4850, %v5010
        %v5029 = vadd.f32 %v4851, %v5012
        %v5030 = vadd.f32 %v4852, %v5016
        %v5031 = vadd.f32 %v4853, %v5018
        %v5032 = vadd.f32 %v4854, %v5022
        %v5033 = vadd.f32 %v4855, %v5024
        %v5034 = vld [vmem:[%s9] sm:$0xff]
        %v5035 = vld [vmem:[%s9 + $0x8] sm:$0xff]
        %v5036 = vld [vmem:[%s9 + $0x10] sm:$0xff]
        %v5037 = vld [vmem:[%s9 + $0x18] sm:$0xff]
        %5039 = vset.pattern.permute.xlu0 0
        %5040 = vperm.xlu0 %5039, %v5034
        %v5041 = vpop.permute.xlu0 %5040
        %5044 = vset.pattern.permute.xlu0 0
        %5045 = vperm.xlu0 %5044, %v5035
        %v5046 = vpop.permute.xlu0 %5045
        %5049 = vset.pattern.permute.xlu0 0
        %5050 = vperm.xlu0 %5049, %v5036
        %v5051 = vpop.permute.xlu0 %5050
        %5054 = vset.pattern.permute.xlu0 0
        %5055 = vperm.xlu0 %5054, %v5037
        %v5056 = vpop.permute.xlu0 %5055
        %v5058 = vadd.f32 %v5026, %v5041
        %v5059 = vadd.f32 %v5027, %v5041
        %v5060 = vadd.f32 %v5028, %v5046
        %v5061 = vadd.f32 %v5029, %v5046
        %v5062 = vadd.f32 %v5030, %v5051
        %v5063 = vadd.f32 %v5031, %v5051
        %v5064 = vadd.f32 %v5032, %v5056
        %v5065 = vadd.f32 %v5033, %v5056
        %5066 = vst [vmem:[#allocation2 + $0x8] sm:$0xff] %v5058
        %5067 = vst [vmem:[#allocation2 + $0x10] sm:$0xff] %v5059
        %5068 = vst [vmem:[#allocation2 + $0x28] sm:$0xff] %v5060
        %5069 = vst [vmem:[#allocation2 + $0x30] sm:$0xff] %v5061
        %5070 = vst [vmem:[#allocation2 + $0x48] sm:$0xff] %v5062
        %5071 = vst [vmem:[#allocation2 + $0x50] sm:$0xff] %v5063
        %5072 = vst [vmem:[#allocation2 + $0x68] sm:$0xff] %v5064
        %5073 = vst [vmem:[#allocation2 + $0x70] sm:$0xff] %v5065
        %v5074 = vld [vmem:[#allocation2] sm:$0xff]
        %v5075 = vld [vmem:[#allocation2 + $0x8] sm:$0xff]
        %v5076 = vld [vmem:[#allocation2 + $0x10] sm:$0xff]
        %v5077 = vld [vmem:[#allocation2 + $0x20] sm:$0xff]
        %v5078 = vld [vmem:[#allocation2 + $0x28] sm:$0xff]
        %v5079 = vld [vmem:[#allocation2 + $0x30] sm:$0xff]
        %v5080 = vld [vmem:[#allocation2 + $0x40] sm:$0xff]
        %v5081 = vld [vmem:[#allocation2 + $0x48] sm:$0xff]
        %v5082 = vld [vmem:[#allocation2 + $0x50] sm:$0xff]
        %v5083 = vld [vmem:[#allocation2 + $0x60] sm:$0xff]
        %v5084 = vld [vmem:[#allocation2 + $0x68] sm:$0xff]
        %v5085 = vld [vmem:[#allocation2 + $0x70] sm:$0xff]
        %v5086 = vmul.f32 %v5074, %v1907
        %v5087 = vmul.f32 %v5075, %v1910
        %v5088 = vmul.f32 %v5076, %v1909
        %v5089 = vmul.f32 %v5077, %v1907
        %v5090 = vmul.f32 %v5078, %v1910
        %v5091 = vmul.f32 %v5079, %v1909
        %v5092 = vmul.f32 %v5080, %v1907
        %v5093 = vmul.f32 %v5081, %v1910
        %v5094 = vmul.f32 %v5082, %v1909
        %v5095 = vmul.f32 %v5083, %v1907
        %v5096 = vmul.f32 %v5084, %v1910
        %v5097 = vmul.f32 %v5085, %v1909
        %v5098 = vld [vmem:[#allocation7] sm:$0xff]
        %v5099 = vld [vmem:[#allocation7 + $0x8] sm:$0xff]
        %v5100 = vld [vmem:[#allocation7 + $0x10] sm:$0xff]
        %v5101 = vld [vmem:[#allocation7 + $0x18] sm:$0xff]
        %s5102 = scalar_lea.vmem [#allocation7], 32
        %v5103 = vld [vmem:[%s5102] sm:$0xff]
        %v5104 = vld [vmem:[%s5102 + $0x8] sm:$0xff]
        %v5105 = vld [vmem:[%s5102 + $0x10] sm:$0xff]
        %v5106 = vld [vmem:[%s5102 + $0x18] sm:$0xff]
        %5119 = vrot.lane.b32.xlu0 %v5074, 16
        %v5120 = vpop.permute.xlu0 %5119
        %5121 = vrot.lane.b32.xlu0 %v5075, 16
        %v5122 = vpop.permute.xlu0 %5121
        %5123 = vrot.lane.b32.xlu0 %v5076, 16
        %v5124 = vpop.permute.xlu0 %5123
        %5125 = vrot.lane.b32.xlu0 %v5077, 16
        %v5126 = vpop.permute.xlu0 %5125
        %5127 = vrot.lane.b32.xlu0 %v5078, 16
        %v5128 = vpop.permute.xlu0 %5127
        %5129 = vrot.lane.b32.xlu0 %v5079, 16
        %v5130 = vpop.permute.xlu0 %5129
        %5131 = vrot.lane.b32.xlu0 %v5080, 16
        %v5132 = vpop.permute.xlu0 %5131
        %5133 = vrot.lane.b32.xlu0 %v5081, 16
        %v5134 = vpop.permute.xlu0 %5133
        %5135 = vrot.lane.b32.xlu0 %v5082, 16
        %v5136 = vpop.permute.xlu0 %5135
        %5137 = vrot.lane.b32.xlu0 %v5083, 16
        %v5138 = vpop.permute.xlu0 %5137
        %5139 = vrot.lane.b32.xlu0 %v5084, 16
        %v5140 = vpop.permute.xlu0 %5139
        %5141 = vrot.lane.b32.xlu0 %v5085, 16
        %v5142 = vpop.permute.xlu0 %5141
        %v5143 = vsel %vm1971, %v5120, %v5122
        %v5144 = vsel %vm1971, %v5122, %v5124
        %v5145 = vsel %vm1971, %v5126, %v5128
        %v5146 = vsel %vm1971, %v5128, %v5130
        %v5147 = vsel %vm1971, %v5132, %v5134
        %v5148 = vsel %vm1971, %v5134, %v5136
        %v5149 = vsel %vm1971, %v5138, %v5140
        %v5150 = vsel %vm1971, %v5140, %v5142
        %v5160 = vsel %vm1988, %v5103, 0
        %v5163 = vsel %vm1988, %v5104, 0
        %v5166 = vsel %vm1988, %v5105, 0
        %v5169 = vsel %vm1988, %v5106, 0
        %5171 = vmatprep.subr.mxu0 %v5144
        %5172 = vmatpush1.msra.mxu0 %v5143
        %5173 = vmatprep.subr.mxu0 %v5146
        %5174 = vmatpush1.msra.mxu0 %v5145
        %5175 = vmatprep.subr.mxu0 %v5148
        %5176 = vmatpush1.msra.mxu0 %v5147
        %5177 = vmatprep.subr.mxu0 %v5150
        %5178 = vmatpush1.msra.mxu0 %v5149
        %5179 = vmatprep.subr.mxu0 0.0
        %5180 = vmatpush1.msra.mxu0 0.0
        %5181 = vmatprep.subr.mxu0 0.0
        %5182 = vmatpush1.msra.mxu0 0.0
        %5183 = vmatprep.subr.mxu0 0.0
        %5184 = vmatpush1.msra.mxu0 0.0
        %5185 = vmatprep.subr.mxu0 0.0
        %5186 = vmatpush1.msra.mxu0 0.0
        %5187 = vmatprep.subr.mxu0 0.0
        %5188 = vmatpush1.msra.mxu0 0.0
        %5189 = vmatprep.subr.mxu0 0.0
        %5190 = vmatpush1.msra.mxu0 0.0
        %5191 = vmatprep.subr.mxu0 0.0
        %5192 = vmatpush1.msra.mxu0 0.0
        %5193 = vmatprep.subr.mxu0 0.0
        %5194 = vmatpush1.msra.mxu0 0.0
        %5195 = vmatprep.subr.mxu0 0.0
        %5196 = vmatpush1.msra.mxu0 0.0
        %5197 = vmatprep.subr.mxu0 0.0
        %5198 = vmatpush1.msra.mxu0 0.0
        %5199 = vmatprep.subr.mxu0 0.0
        %5200 = vmatpush1.msra.mxu0 0.0
        %5201 = vmatprep.subr.mxu0 0.0
        %5202 = vmatpush1.msra.mxu0 0.0
        %5203 = vmatprep.subr.mxu0 0.0
        %5204 = vmatpush1.msra.mxu0 0.0
        %5205 = vmatprep.subr.mxu0 0.0
        %5206 = vmatpush1.msra.mxu0 0.0
        %5207 = vmatprep.subr.mxu0 0.0
        %5208 = vmatpush1.msra.mxu0 0.0
        %5209 = vmatprep.subr.mxu0 0.0
        %5210 = vmatpush1.msra.mxu0 0.0
        %5211 = vmatprep.subr.mxu0 0.0
        %5212 = vmatpush1.msra.mxu0 0.0
        %5213 = vmatprep.subr.mxu0 0.0
        %5214 = vmatpush1.msra.mxu0 0.0
        %5215 = vmatprep.subr.mxu0 0.0
        %5216 = vmatpush1.msra.mxu0 0.0
        %5217 = vmatprep.subr.mxu0 0.0
        %5218 = vmatpush1.msra.mxu0 0.0
        %5219 = vmatprep.subr.mxu0 0.0
        %5220 = vmatpush1.msra.mxu0 0.0
        %5221 = vmatprep.subr.mxu0 0.0
        %5222 = vmatpush1.msra.mxu0 0.0
        %5223 = vmatprep.subr.mxu0 0.0
        %5224 = vmatpush1.msra.mxu0 0.0
        %5225 = vmatprep.subr.mxu0 0.0
        %5226 = vmatpush1.msra.mxu0 0.0
        %5227 = vmatprep.subr.mxu0 0.0
        %5228 = vmatpush1.msra.mxu0 0.0
        %5229 = vmatprep.subr.mxu0 0.0
        %5230 = vmatpush1.msra.mxu0 0.0
        %5231 = vmatprep.subr.mxu0 0.0
        %5232 = vmatpush1.msra.mxu0 0.0
        %5233 = vmatprep.subr.mxu0 0.0
        %5234 = vmatpush1.msra.mxu0 0.0
        %5235 = vmatprep.mubr.f32.mxu0 0.0
        %5236 = vmatmul.mubr.f32.gmra.mrb[0].mxu0 %v5160
        %v5237 = vpop.f32.mrb[0].mxu0
        %v5238 = vadd.f32 0.0, %v5237
        %v5239 = vpop.f32.mrb[0].mxu0
        %v5240 = vadd.f32 0.0, %v5239
        %5241 = vmatprep.mubr.f32.mxu0 0.0
        %5242 = vmatmul.mubr.f32.gmra.mrb[0].mxu0 %v5163
        %v5243 = vpop.f32.mrb[0].mxu0
        %v5244 = vadd.f32 0.0, %v5243
        %v5245 = vpop.f32.mrb[0].mxu0
        %v5246 = vadd.f32 0.0, %v5245
        %5247 = vmatprep.mubr.f32.mxu0 0.0
        %5248 = vmatmul.mubr.f32.gmra.mrb[0].mxu0 %v5166
        %v5249 = vpop.f32.mrb[0].mxu0
        %v5250 = vadd.f32 0.0, %v5249
        %v5251 = vpop.f32.mrb[0].mxu0
        %v5252 = vadd.f32 0.0, %v5251
        %5253 = vmatprep.mubr.f32.mxu0 0.0
        %5254 = vmatmul.mubr.f32.gmra.mrb[0].mxu0 %v5169
        %v5255 = vpop.f32.mrb[0].mxu0
        %v5256 = vadd.f32 0.0, %v5255
        %v5257 = vpop.f32.mrb[0].mxu0
        %v5258 = vadd.f32 0.0, %v5257
        %5259 = vdwg.mxu0
        %5272 = vrot.lane.b32.xlu0 %v5086, 17
        %v5273 = vpop.permute.xlu0 %5272
        %5274 = vrot.lane.b32.xlu0 %v5087, 17
        %v5275 = vpop.permute.xlu0 %5274
        %5276 = vrot.lane.b32.xlu0 %v5088, 17
        %v5277 = vpop.permute.xlu0 %5276
        %5278 = vrot.lane.b32.xlu0 %v5089, 17
        %v5279 = vpop.permute.xlu0 %5278
        %5280 = vrot.lane.b32.xlu0 %v5090, 17
        %v5281 = vpop.permute.xlu0 %5280
        %5282 = vrot.lane.b32.xlu0 %v5091, 17
        %v5283 = vpop.permute.xlu0 %5282
        %5284 = vrot.lane.b32.xlu0 %v5092, 17
        %v5285 = vpop.permute.xlu0 %5284
        %5286 = vrot.lane.b32.xlu0 %v5093, 17
        %v5287 = vpop.permute.xlu0 %5286
        %5288 = vrot.lane.b32.xlu0 %v5094, 17
        %v5289 = vpop.permute.xlu0 %5288
        %5290 = vrot.lane.b32.xlu0 %v5095, 17
        %v5291 = vpop.permute.xlu0 %5290
        %5292 = vrot.lane.b32.xlu0 %v5096, 17
        %v5293 = vpop.permute.xlu0 %5292
        %5294 = vrot.lane.b32.xlu0 %v5097, 17
        %v5295 = vpop.permute.xlu0 %5294
        %v5296 = vsel %vm1673, %v5273, %v5275
        %v5297 = vsel %vm1673, %v5275, %v5277
        %v5298 = vsel %vm1673, %v5279, %v5281
        %v5299 = vsel %vm1673, %v5281, %v5283
        %v5300 = vsel %vm1673, %v5285, %v5287
        %v5301 = vsel %vm1673, %v5287, %v5289
        %v5302 = vsel %vm1673, %v5291, %v5293
        %v5303 = vsel %vm1673, %v5293, %v5295
        %v5313 = vsel %vm1988, %v5098, 0
        %v5316 = vsel %vm1988, %v5099, 0
        %v5319 = vsel %vm1988, %v5100, 0
        %v5322 = vsel %vm1988, %v5101, 0
        %5324 = vmatprep.subr.mxu0 %v5297
        %5325 = vmatpush1.msra.mxu0 %v5296
        %5326 = vmatprep.subr.mxu0 %v5299
        %5327 = vmatpush1.msra.mxu0 %v5298
        %5328 = vmatprep.subr.mxu0 %v5301
        %5329 = vmatpush1.msra.mxu0 %v5300
        %5330 = vmatprep.subr.mxu0 %v5303
        %5331 = vmatpush1.msra.mxu0 %v5302
        %5332 = vmatprep.subr.mxu0 0.0
        %5333 = vmatpush1.msra.mxu0 0.0
        %5334 = vmatprep.subr.mxu0 0.0
        %5335 = vmatpush1.msra.mxu0 0.0
        %5336 = vmatprep.subr.mxu0 0.0
        %5337 = vmatpush1.msra.mxu0 0.0
        %5338 = vmatprep.subr.mxu0 0.0
        %5339 = vmatpush1.msra.mxu0 0.0
        %5340 = vmatprep.subr.mxu0 0.0
        %5341 = vmatpush1.msra.mxu0 0.0
        %5342 = vmatprep.subr.mxu0 0.0
        %5343 = vmatpush1.msra.mxu0 0.0
        %5344 = vmatprep.subr.mxu0 0.0
        %5345 = vmatpush1.msra.mxu0 0.0
        %5346 = vmatprep.subr.mxu0 0.0
        %5347 = vmatpush1.msra.mxu0 0.0
        %5348 = vmatprep.subr.mxu0 0.0
        %5349 = vmatpush1.msra.mxu0 0.0
        %5350 = vmatprep.subr.mxu0 0.0
        %5351 = vmatpush1.msra.mxu0 0.0
        %5352 = vmatprep.subr.mxu0 0.0
        %5353 = vmatpush1.msra.mxu0 0.0
        %5354 = vmatprep.subr.mxu0 0.0
        %5355 = vmatpush1.msra.mxu0 0.0
        %5356 = vmatprep.subr.mxu0 0.0
        %5357 = vmatpush1.msra.mxu0 0.0
        %5358 = vmatprep.subr.mxu0 0.0
        %5359 = vmatpush1.msra.mxu0 0.0
        %5360 = vmatprep.subr.mxu0 0.0
        %5361 = vmatpush1.msra.mxu0 0.0
        %5362 = vmatprep.subr.mxu0 0.0
        %5363 = vmatpush1.msra.mxu0 0.0
        %5364 = vmatprep.subr.mxu0 0.0
        %5365 = vmatpush1.msra.mxu0 0.0
        %5366 = vmatprep.subr.mxu0 0.0
        %5367 = vmatpush1.msra.mxu0 0.0
        %5368 = vmatprep.subr.mxu0 0.0
        %5369 = vmatpush1.msra.mxu0 0.0
        %5370 = vmatprep.subr.mxu0 0.0
        %5371 = vmatpush1.msra.mxu0 0.0
        %5372 = vmatprep.subr.mxu0 0.0
        %5373 = vmatpush1.msra.mxu0 0.0
        %5374 = vmatprep.subr.mxu0 0.0
        %5375 = vmatpush1.msra.mxu0 0.0
        %5376 = vmatprep.subr.mxu0 0.0
        %5377 = vmatpush1.msra.mxu0 0.0
        %5378 = vmatprep.subr.mxu0 0.0
        %5379 = vmatpush1.msra.mxu0 0.0
        %5380 = vmatprep.subr.mxu0 0.0
        %5381 = vmatpush1.msra.mxu0 0.0
        %5382 = vmatprep.subr.mxu0 0.0
        %5383 = vmatpush1.msra.mxu0 0.0
        %5384 = vmatprep.subr.mxu0 0.0
        %5385 = vmatpush1.msra.mxu0 0.0
        %5386 = vmatprep.subr.mxu0 0.0
        %5387 = vmatpush1.msra.mxu0 0.0
        %5388 = vmatprep.mubr.f32.mxu0 0.0
        %5389 = vmatmul.mubr.f32.gmra.mrb[0].mxu0 %v5313
        %v5390 = vpop.f32.mrb[0].mxu0
        %v5391 = vadd.f32 %v5238, %v5390
        %v5392 = vpop.f32.mrb[0].mxu0
        %v5393 = vadd.f32 %v5240, %v5392
        %5394 = vmatprep.mubr.f32.mxu0 0.0
        %5395 = vmatmul.mubr.f32.gmra.mrb[0].mxu0 %v5316
        %v5396 = vpop.f32.mrb[0].mxu0
        %v5397 = vadd.f32 %v5244, %v5396
        %v5398 = vpop.f32.mrb[0].mxu0
        %v5399 = vadd.f32 %v5246, %v5398
        %5400 = vmatprep.mubr.f32.mxu0 0.0
        %5401 = vmatmul.mubr.f32.gmra.mrb[0].mxu0 %v5319
        %v5402 = vpop.f32.mrb[0].mxu0
        %v5403 = vadd.f32 %v5250, %v5402
        %v5404 = vpop.f32.mrb[0].mxu0
        %v5405 = vadd.f32 %v5252, %v5404
        %5406 = vmatprep.mubr.f32.mxu0 0.0
        %5407 = vmatmul.mubr.f32.gmra.mrb[0].mxu0 %v5322
        %v5408 = vpop.f32.mrb[0].mxu0
        %v5409 = vadd.f32 %v5256, %v5408
        %v5410 = vpop.f32.mrb[0].mxu0
        %v5411 = vadd.f32 %v5258, %v5410
        %5412 = vdwg.mxu0
        %v5413 = vmul.f32 %v5074, %v2244
        %v5414 = vmul.f32 %v5075, %v2247
        %v5415 = vmul.f32 %v5076, %v2246
        %v5416 = vmul.f32 %v5077, %v2244
        %v5417 = vmul.f32 %v5078, %v2247
        %v5418 = vmul.f32 %v5079, %v2246
        %v5419 = vmul.f32 %v5080, %v2244
        %v5420 = vmul.f32 %v5081, %v2247
        %v5421 = vmul.f32 %v5082, %v2246
        %v5422 = vmul.f32 %v5083, %v2244
        %v5423 = vmul.f32 %v5084, %v2247
        %v5424 = vmul.f32 %v5085, %v2246
        %s5425 = scalar_lea.vmem [#allocation7], 64
        %v5426 = vld [vmem:[%s5425] sm:$0xff]
        %v5427 = vld [vmem:[%s5425 + $0x8] sm:$0xff]
        %v5428 = vld [vmem:[%s5425 + $0x10] sm:$0xff]
        %v5429 = vld [vmem:[%s5425 + $0x18] sm:$0xff]
        %5442 = vrot.lane.b32.xlu0 %v5413, 15
        %v5443 = vpop.permute.xlu0 %5442
        %5444 = vrot.lane.b32.xlu0 %v5414, 15
        %v5445 = vpop.permute.xlu0 %5444
        %5446 = vrot.lane.b32.xlu0 %v5415, 15
        %v5447 = vpop.permute.xlu0 %5446
        %5448 = vrot.lane.b32.xlu0 %v5416, 15
        %v5449 = vpop.permute.xlu0 %5448
        %5450 = vrot.lane.b32.xlu0 %v5417, 15
        %v5451 = vpop.permute.xlu0 %5450
        %5452 = vrot.lane.b32.xlu0 %v5418, 15
        %v5453 = vpop.permute.xlu0 %5452
        %5454 = vrot.lane.b32.xlu0 %v5419, 15
        %v5455 = vpop.permute.xlu0 %5454
        %5456 = vrot.lane.b32.xlu0 %v5420, 15
        %v5457 = vpop.permute.xlu0 %5456
        %5458 = vrot.lane.b32.xlu0 %v5421, 15
        %v5459 = vpop.permute.xlu0 %5458
        %5460 = vrot.lane.b32.xlu0 %v5422, 15
        %v5461 = vpop.permute.xlu0 %5460
        %5462 = vrot.lane.b32.xlu0 %v5423, 15
        %v5463 = vpop.permute.xlu0 %5462
        %5464 = vrot.lane.b32.xlu0 %v5424, 15
        %v5465 = vpop.permute.xlu0 %5464
        %v5466 = vsel %vm1431, %v5443, %v5445
        %v5467 = vsel %vm1431, %v5445, %v5447
        %v5468 = vsel %vm1431, %v5449, %v5451
        %v5469 = vsel %vm1431, %v5451, %v5453
        %v5470 = vsel %vm1431, %v5455, %v5457
        %v5471 = vsel %vm1431, %v5457, %v5459
        %v5472 = vsel %vm1431, %v5461, %v5463
        %v5473 = vsel %vm1431, %v5463, %v5465
        %v5483 = vsel %vm1988, %v5426, 0
        %v5486 = vsel %vm1988, %v5427, 0
        %v5489 = vsel %vm1988, %v5428, 0
        %v5492 = vsel %vm1988, %v5429, 0
        %5494 = vmatprep.subr.mxu0 %v5467
        %5495 = vmatpush1.msra.mxu0 %v5466
        %5496 = vmatprep.subr.mxu0 %v5469
        %5497 = vmatpush1.msra.mxu0 %v5468
        %5498 = vmatprep.subr.mxu0 %v5471
        %5499 = vmatpush1.msra.mxu0 %v5470
        %5500 = vmatprep.subr.mxu0 %v5473
        %5501 = vmatpush1.msra.mxu0 %v5472
        %5502 = vmatprep.subr.mxu0 0.0
        %5503 = vmatpush1.msra.mxu0 0.0
        %5504 = vmatprep.subr.mxu0 0.0
        %5505 = vmatpush1.msra.mxu0 0.0
        %5506 = vmatprep.subr.mxu0 0.0
        %5507 = vmatpush1.msra.mxu0 0.0
        %5508 = vmatprep.subr.mxu0 0.0
        %5509 = vmatpush1.msra.mxu0 0.0
        %5510 = vmatprep.subr.mxu0 0.0
        %5511 = vmatpush1.msra.mxu0 0.0
        %5512 = vmatprep.subr.mxu0 0.0
        %5513 = vmatpush1.msra.mxu0 0.0
        %5514 = vmatprep.subr.mxu0 0.0
        %5515 = vmatpush1.msra.mxu0 0.0
        %5516 = vmatprep.subr.mxu0 0.0
        %5517 = vmatpush1.msra.mxu0 0.0
        %5518 = vmatprep.subr.mxu0 0.0
        %5519 = vmatpush1.msra.mxu0 0.0
        %5520 = vmatprep.subr.mxu0 0.0
        %5521 = vmatpush1.msra.mxu0 0.0
        %5522 = vmatprep.subr.mxu0 0.0
        %5523 = vmatpush1.msra.mxu0 0.0
        %5524 = vmatprep.subr.mxu0 0.0
        %5525 = vmatpush1.msra.mxu0 0.0
        %5526 = vmatprep.subr.mxu0 0.0
        %5527 = vmatpush1.msra.mxu0 0.0
        %5528 = vmatprep.subr.mxu0 0.0
        %5529 = vmatpush1.msra.mxu0 0.0
        %5530 = vmatprep.subr.mxu0 0.0
        %5531 = vmatpush1.msra.mxu0 0.0
        %5532 = vmatprep.subr.mxu0 0.0
        %5533 = vmatpush1.msra.mxu0 0.0
        %5534 = vmatprep.subr.mxu0 0.0
        %5535 = vmatpush1.msra.mxu0 0.0
        %5536 = vmatprep.subr.mxu0 0.0
        %5537 = vmatpush1.msra.mxu0 0.0
        %5538 = vmatprep.subr.mxu0 0.0
        %5539 = vmatpush1.msra.mxu0 0.0
        %5540 = vmatprep.subr.mxu0 0.0
        %5541 = vmatpush1.msra.mxu0 0.0
        %5542 = vmatprep.subr.mxu0 0.0
        %5543 = vmatpush1.msra.mxu0 0.0
        %5544 = vmatprep.subr.mxu0 0.0
        %5545 = vmatpush1.msra.mxu0 0.0
        %5546 = vmatprep.subr.mxu0 0.0
        %5547 = vmatpush1.msra.mxu0 0.0
        %5548 = vmatprep.subr.mxu0 0.0
        %5549 = vmatpush1.msra.mxu0 0.0
        %5550 = vmatprep.subr.mxu0 0.0
        %5551 = vmatpush1.msra.mxu0 0.0
        %5552 = vmatprep.subr.mxu0 0.0
        %5553 = vmatpush1.msra.mxu0 0.0
        %5554 = vmatprep.subr.mxu0 0.0
        %5555 = vmatpush1.msra.mxu0 0.0
        %5556 = vmatprep.subr.mxu0 0.0
        %5557 = vmatpush1.msra.mxu0 0.0
        %5558 = vmatprep.mubr.f32.mxu0 0.0
        %5559 = vmatmul.mubr.f32.gmra.mrb[0].mxu0 %v5483
        %v5560 = vpop.f32.mrb[0].mxu0
        %v5561 = vadd.f32 0.0, %v5560
        %v5562 = vpop.f32.mrb[0].mxu0
        %v5563 = vadd.f32 0.0, %v5562
        %5564 = vmatprep.mubr.f32.mxu0 0.0
        %5565 = vmatmul.mubr.f32.gmra.mrb[0].mxu0 %v5486
        %v5566 = vpop.f32.mrb[0].mxu0
        %v5567 = vadd.f32 0.0, %v5566
        %v5568 = vpop.f32.mrb[0].mxu0
        %v5569 = vadd.f32 0.0, %v5568
        %5570 = vmatprep.mubr.f32.mxu0 0.0
        %5571 = vmatmul.mubr.f32.gmra.mrb[0].mxu0 %v5489
        %v5572 = vpop.f32.mrb[0].mxu0
        %v5573 = vadd.f32 0.0, %v5572
        %v5574 = vpop.f32.mrb[0].mxu0
        %v5575 = vadd.f32 0.0, %v5574
        %5576 = vmatprep.mubr.f32.mxu0 0.0
        %5577 = vmatmul.mubr.f32.gmra.mrb[0].mxu0 %v5492
        %v5578 = vpop.f32.mrb[0].mxu0
        %v5579 = vadd.f32 0.0, %v5578
        %v5580 = vpop.f32.mrb[0].mxu0
        %v5581 = vadd.f32 0.0, %v5580
        %5582 = vdwg.mxu0
        %v5583 = vadd.f32 %v5391, %v5561
        %v5584 = vadd.f32 %v5393, %v5563
        %v5585 = vadd.f32 %v5397, %v5567
        %v5586 = vadd.f32 %v5399, %v5569
        %v5587 = vadd.f32 %v5403, %v5573
        %v5588 = vadd.f32 %v5405, %v5575
        %v5589 = vadd.f32 %v5409, %v5579
        %v5590 = vadd.f32 %v5411, %v5581
        %v5591 = vmul.f32 %v5074, %v2430
        %v5592 = vmul.f32 %v5075, %v2433
        %v5593 = vmul.f32 %v5076, %v2432
        %v5594 = vmul.f32 %v5077, %v2430
        %v5595 = vmul.f32 %v5078, %v2433
        %v5596 = vmul.f32 %v5079, %v2432
        %v5597 = vmul.f32 %v5080, %v2430
        %v5598 = vmul.f32 %v5081, %v2433
        %v5599 = vmul.f32 %v5082, %v2432
        %v5600 = vmul.f32 %v5083, %v2430
        %v5601 = vmul.f32 %v5084, %v2433
        %v5602 = vmul.f32 %v5085, %v2432
        %s5603 = scalar_lea.vmem [#allocation7], 96
        %v5604 = vld [vmem:[%s5603] sm:$0xff]
        %v5605 = vld [vmem:[%s5603 + $0x8] sm:$0xff]
        %v5606 = vld [vmem:[%s5603 + $0x10] sm:$0xff]
        %v5607 = vld [vmem:[%s5603 + $0x18] sm:$0xff]
        %5620 = vrot.lane.b32.xlu0 %v5591, 1
        %v5621 = vpop.permute.xlu0 %5620
        %5622 = vrot.lane.b32.xlu0 %v5592, 1
        %v5623 = vpop.permute.xlu0 %5622
        %5624 = vrot.lane.b32.xlu0 %v5593, 1
        %v5625 = vpop.permute.xlu0 %5624
        %5626 = vrot.lane.b32.xlu0 %v5594, 1
        %v5627 = vpop.permute.xlu0 %5626
        %5628 = vrot.lane.b32.xlu0 %v5595, 1
        %v5629 = vpop.permute.xlu0 %5628
        %5630 = vrot.lane.b32.xlu0 %v5596, 1
        %v5631 = vpop.permute.xlu0 %5630
        %5632 = vrot.lane.b32.xlu0 %v5597, 1
        %v5633 = vpop.permute.xlu0 %5632
        %5634 = vrot.lane.b32.xlu0 %v5598, 1
        %v5635 = vpop.permute.xlu0 %5634
        %5636 = vrot.lane.b32.xlu0 %v5599, 1
        %v5637 = vpop.permute.xlu0 %5636
        %5638 = vrot.lane.b32.xlu0 %v5600, 1
        %v5639 = vpop.permute.xlu0 %5638
        %5640 = vrot.lane.b32.xlu0 %v5601, 1
        %v5641 = vpop.permute.xlu0 %5640
        %5642 = vrot.lane.b32.xlu0 %v5602, 1
        %v5643 = vpop.permute.xlu0 %5642
        %v5644 = vsel %vm1302, %v5621, %v5623
        %v5645 = vsel %vm1302, %v5623, %v5625
        %v5646 = vsel %vm1302, %v5627, %v5629
        %v5647 = vsel %vm1302, %v5629, %v5631
        %v5648 = vsel %vm1302, %v5633, %v5635
        %v5649 = vsel %vm1302, %v5635, %v5637
        %v5650 = vsel %vm1302, %v5639, %v5641
        %v5651 = vsel %vm1302, %v5641, %v5643
        %v5661 = vsel %vm1988, %v5604, 0
        %v5664 = vsel %vm1988, %v5605, 0
        %v5667 = vsel %vm1988, %v5606, 0
        %v5670 = vsel %vm1988, %v5607, 0
        %5672 = vmatprep.subr.mxu0 %v5645
        %5673 = vmatpush1.msra.mxu0 %v5644
        %5674 = vmatprep.subr.mxu0 %v5647
        %5675 = vmatpush1.msra.mxu0 %v5646
        %5676 = vmatprep.subr.mxu0 %v5649
        %5677 = vmatpush1.msra.mxu0 %v5648
        %5678 = vmatprep.subr.mxu0 %v5651
        %5679 = vmatpush1.msra.mxu0 %v5650
        %5680 = vmatprep.subr.mxu0 0.0
        %5681 = vmatpush1.msra.mxu0 0.0
        %5682 = vmatprep.subr.mxu0 0.0
        %5683 = vmatpush1.msra.mxu0 0.0
        %5684 = vmatprep.subr.mxu0 0.0
        %5685 = vmatpush1.msra.mxu0 0.0
        %5686 = vmatprep.subr.mxu0 0.0
        %5687 = vmatpush1.msra.mxu0 0.0
        %5688 = vmatprep.subr.mxu0 0.0
        %5689 = vmatpush1.msra.mxu0 0.0
        %5690 = vmatprep.subr.mxu0 0.0
        %5691 = vmatpush1.msra.mxu0 0.0
        %5692 = vmatprep.subr.mxu0 0.0
        %5693 = vmatpush1.msra.mxu0 0.0
        %5694 = vmatprep.subr.mxu0 0.0
        %5695 = vmatpush1.msra.mxu0 0.0
        %5696 = vmatprep.subr.mxu0 0.0
        %5697 = vmatpush1.msra.mxu0 0.0
        %5698 = vmatprep.subr.mxu0 0.0
        %5699 = vmatpush1.msra.mxu0 0.0
        %5700 = vmatprep.subr.mxu0 0.0
        %5701 = vmatpush1.msra.mxu0 0.0
        %5702 = vmatprep.subr.mxu0 0.0
        %5703 = vmatpush1.msra.mxu0 0.0
        %5704 = vmatprep.subr.mxu0 0.0
        %5705 = vmatpush1.msra.mxu0 0.0
        %5706 = vmatprep.subr.mxu0 0.0
        %5707 = vmatpush1.msra.mxu0 0.0
        %5708 = vmatprep.subr.mxu0 0.0
        %5709 = vmatpush1.msra.mxu0 0.0
        %5710 = vmatprep.subr.mxu0 0.0
        %5711 = vmatpush1.msra.mxu0 0.0
        %5712 = vmatprep.subr.mxu0 0.0
        %5713 = vmatpush1.msra.mxu0 0.0
        %5714 = vmatprep.subr.mxu0 0.0
        %5715 = vmatpush1.msra.mxu0 0.0
        %5716 = vmatprep.subr.mxu0 0.0
        %5717 = vmatpush1.msra.mxu0 0.0
        %5718 = vmatprep.subr.mxu0 0.0
        %5719 = vmatpush1.msra.mxu0 0.0
        %5720 = vmatprep.subr.mxu0 0.0
        %5721 = vmatpush1.msra.mxu0 0.0
        %5722 = vmatprep.subr.mxu0 0.0
        %5723 = vmatpush1.msra.mxu0 0.0
        %5724 = vmatprep.subr.mxu0 0.0
        %5725 = vmatpush1.msra.mxu0 0.0
        %5726 = vmatprep.subr.mxu0 0.0
        %5727 = vmatpush1.msra.mxu0 0.0
        %5728 = vmatprep.subr.mxu0 0.0
        %5729 = vmatpush1.msra.mxu0 0.0
        %5730 = vmatprep.subr.mxu0 0.0
        %5731 = vmatpush1.msra.mxu0 0.0
        %5732 = vmatprep.subr.mxu0 0.0
        %5733 = vmatpush1.msra.mxu0 0.0
        %5734 = vmatprep.subr.mxu0 0.0
        %5735 = vmatpush1.msra.mxu0 0.0
        %5736 = vmatprep.mubr.f32.mxu0 0.0
        %5737 = vmatmul.mubr.f32.gmra.mrb[0].mxu0 %v5661
        %v5738 = vpop.f32.mrb[0].mxu0
        %v5739 = vadd.f32 0.0, %v5738
        %v5740 = vpop.f32.mrb[0].mxu0
        %v5741 = vadd.f32 0.0, %v5740
        %5742 = vmatprep.mubr.f32.mxu0 0.0
        %5743 = vmatmul.mubr.f32.gmra.mrb[0].mxu0 %v5664
        %v5744 = vpop.f32.mrb[0].mxu0
        %v5745 = vadd.f32 0.0, %v5744
        %v5746 = vpop.f32.mrb[0].mxu0
        %v5747 = vadd.f32 0.0, %v5746
        %5748 = vmatprep.mubr.f32.mxu0 0.0
        %5749 = vmatmul.mubr.f32.gmra.mrb[0].mxu0 %v5667
        %v5750 = vpop.f32.mrb[0].mxu0
        %v5751 = vadd.f32 0.0, %v5750
        %v5752 = vpop.f32.mrb[0].mxu0
        %v5753 = vadd.f32 0.0, %v5752
        %5754 = vmatprep.mubr.f32.mxu0 0.0
        %5755 = vmatmul.mubr.f32.gmra.mrb[0].mxu0 %v5670
        %v5756 = vpop.f32.mrb[0].mxu0
        %v5757 = vadd.f32 0.0, %v5756
        %v5758 = vpop.f32.mrb[0].mxu0
        %v5759 = vadd.f32 0.0, %v5758
        %5760 = vdwg.mxu0
        %v5761 = vadd.f32 %v5583, %v5739
        %v5762 = vadd.f32 %v5584, %v5741
        %v5763 = vadd.f32 %v5585, %v5745
        %v5764 = vadd.f32 %v5586, %v5747
        %v5765 = vadd.f32 %v5587, %v5751
        %v5766 = vadd.f32 %v5588, %v5753
        %v5767 = vadd.f32 %v5589, %v5757
        %v5768 = vadd.f32 %v5590, %v5759
        %s5769 = scalar_lea.vmem [#allocation7], 128
        %v5770 = vld [vmem:[%s5769] sm:$0xff]
        %v5771 = vld [vmem:[%s5769 + $0x8] sm:$0xff]
        %v5772 = vld [vmem:[%s5769 + $0x10] sm:$0xff]
        %v5773 = vld [vmem:[%s5769 + $0x18] sm:$0xff]
        %v5775 = vsel %vm1988, %v5770, 0
        %v5778 = vsel %vm1988, %v5771, 0
        %v5781 = vsel %vm1988, %v5772, 0
        %v5784 = vsel %vm1988, %v5773, 0
        %5786 = vmatprep.subr.mxu0 %v5076
        %5787 = vmatpush1.msra.mxu0 %v5075
        %5788 = vmatprep.subr.mxu0 %v5079
        %5789 = vmatpush1.msra.mxu0 %v5078
        %5790 = vmatprep.subr.mxu0 %v5082
        %5791 = vmatpush1.msra.mxu0 %v5081
        %5792 = vmatprep.subr.mxu0 %v5085
        %5793 = vmatpush1.msra.mxu0 %v5084
        %5794 = vmatprep.subr.mxu0 0.0
        %5795 = vmatpush1.msra.mxu0 0.0
        %5796 = vmatprep.subr.mxu0 0.0
        %5797 = vmatpush1.msra.mxu0 0.0
        %5798 = vmatprep.subr.mxu0 0.0
        %5799 = vmatpush1.msra.mxu0 0.0
        %5800 = vmatprep.subr.mxu0 0.0
        %5801 = vmatpush1.msra.mxu0 0.0
        %5802 = vmatprep.subr.mxu0 0.0
        %5803 = vmatpush1.msra.mxu0 0.0
        %5804 = vmatprep.subr.mxu0 0.0
        %5805 = vmatpush1.msra.mxu0 0.0
        %5806 = vmatprep.subr.mxu0 0.0
        %5807 = vmatpush1.msra.mxu0 0.0
        %5808 = vmatprep.subr.mxu0 0.0
        %5809 = vmatpush1.msra.mxu0 0.0
        %5810 = vmatprep.subr.mxu0 0.0
        %5811 = vmatpush1.msra.mxu0 0.0
        %5812 = vmatprep.subr.mxu0 0.0
        %5813 = vmatpush1.msra.mxu0 0.0
        %5814 = vmatprep.subr.mxu0 0.0
        %5815 = vmatpush1.msra.mxu0 0.0
        %5816 = vmatprep.subr.mxu0 0.0
        %5817 = vmatpush1.msra.mxu0 0.0
        %5818 = vmatprep.subr.mxu0 0.0
        %5819 = vmatpush1.msra.mxu0 0.0
        %5820 = vmatprep.subr.mxu0 0.0
        %5821 = vmatpush1.msra.mxu0 0.0
        %5822 = vmatprep.subr.mxu0 0.0
        %5823 = vmatpush1.msra.mxu0 0.0
        %5824 = vmatprep.subr.mxu0 0.0
        %5825 = vmatpush1.msra.mxu0 0.0
        %5826 = vmatprep.subr.mxu0 0.0
        %5827 = vmatpush1.msra.mxu0 0.0
        %5828 = vmatprep.subr.mxu0 0.0
        %5829 = vmatpush1.msra.mxu0 0.0
        %5830 = vmatprep.subr.mxu0 0.0
        %5831 = vmatpush1.msra.mxu0 0.0
        %5832 = vmatprep.subr.mxu0 0.0
        %5833 = vmatpush1.msra.mxu0 0.0
        %5834 = vmatprep.subr.mxu0 0.0
        %5835 = vmatpush1.msra.mxu0 0.0
        %5836 = vmatprep.subr.mxu0 0.0
        %5837 = vmatpush1.msra.mxu0 0.0
        %5838 = vmatprep.subr.mxu0 0.0
        %5839 = vmatpush1.msra.mxu0 0.0
        %5840 = vmatprep.subr.mxu0 0.0
        %5841 = vmatpush1.msra.mxu0 0.0
        %5842 = vmatprep.subr.mxu0 0.0
        %5843 = vmatpush1.msra.mxu0 0.0
        %5844 = vmatprep.subr.mxu0 0.0
        %5845 = vmatpush1.msra.mxu0 0.0
        %5846 = vmatprep.subr.mxu0 0.0
        %5847 = vmatpush1.msra.mxu0 0.0
        %5848 = vmatprep.subr.mxu0 0.0
        %5849 = vmatpush1.msra.mxu0 0.0
        %5850 = vmatprep.mubr.f32.mxu0 0.0
        %5851 = vmatmul.mubr.f32.gmra.mrb[0].mxu0 %v5775
        %v5852 = vpop.f32.mrb[0].mxu0
        %v5853 = vadd.f32 0.0, %v5852
        %v5854 = vpop.f32.mrb[0].mxu0
        %v5855 = vadd.f32 0.0, %v5854
        %5856 = vmatprep.mubr.f32.mxu0 0.0
        %5857 = vmatmul.mubr.f32.gmra.mrb[0].mxu0 %v5778
        %v5858 = vpop.f32.mrb[0].mxu0
        %v5859 = vadd.f32 0.0, %v5858
        %v5860 = vpop.f32.mrb[0].mxu0
        %v5861 = vadd.f32 0.0, %v5860
        %5862 = vmatprep.mubr.f32.mxu0 0.0
        %5863 = vmatmul.mubr.f32.gmra.mrb[0].mxu0 %v5781
        %v5864 = vpop.f32.mrb[0].mxu0
        %v5865 = vadd.f32 0.0, %v5864
        %v5866 = vpop.f32.mrb[0].mxu0
        %v5867 = vadd.f32 0.0, %v5866
        %5868 = vmatprep.mubr.f32.mxu0 0.0
        %5869 = vmatmul.mubr.f32.gmra.mrb[0].mxu0 %v5784
        %v5870 = vpop.f32.mrb[0].mxu0
        %v5871 = vadd.f32 0.0, %v5870
        %v5872 = vpop.f32.mrb[0].mxu0
        %v5873 = vadd.f32 0.0, %v5872
        %5874 = vdwg.mxu0
        %v5875 = vadd.f32 %v5761, %v5853
        %v5876 = vadd.f32 %v5762, %v5855
        %v5877 = vadd.f32 %v5763, %v5859
        %v5878 = vadd.f32 %v5764, %v5861
        %v5879 = vadd.f32 %v5765, %v5865
        %v5880 = vadd.f32 %v5766, %v5867
        %v5881 = vadd.f32 %v5767, %v5871
        %v5882 = vadd.f32 %v5768, %v5873
        %v5883 = vld [vmem:[#allocation2 + $0x8] sm:$0xff]
        %v5884 = vld [vmem:[#allocation2 + $0x10] sm:$0xff]
        %v5885 = vld [vmem:[#allocation2 + $0x18] sm:$0xff]
        %v5886 = vld [vmem:[#allocation2 + $0x28] sm:$0xff]
        %v5887 = vld [vmem:[#allocation2 + $0x30] sm:$0xff]
        %v5888 = vld [vmem:[#allocation2 + $0x38] sm:$0xff]
        %v5889 = vld [vmem:[#allocation2 + $0x48] sm:$0xff]
        %v5890 = vld [vmem:[#allocation2 + $0x50] sm:$0xff]
        %v5891 = vld [vmem:[#allocation2 + $0x58] sm:$0xff]
        %v5892 = vld [vmem:[#allocation2 + $0x68] sm:$0xff]
        %v5893 = vld [vmem:[#allocation2 + $0x70] sm:$0xff]
        %v5894 = vld [vmem:[#allocation2 + $0x78] sm:$0xff]
        %v5895 = vmul.f32 %v5883, %v2742
        %v5896 = vmul.f32 %v5884, %v2745
        %v5897 = vmul.f32 %v5885, %v2744
        %v5898 = vmul.f32 %v5886, %v2742
        %v5899 = vmul.f32 %v5887, %v2745
        %v5900 = vmul.f32 %v5888, %v2744
        %v5901 = vmul.f32 %v5889, %v2742
        %v5902 = vmul.f32 %v5890, %v2745
        %v5903 = vmul.f32 %v5891, %v2744
        %v5904 = vmul.f32 %v5892, %v2742
        %v5905 = vmul.f32 %v5893, %v2745
        %v5906 = vmul.f32 %v5894, %v2744
        %s5907 = scalar_lea.vmem [#allocation7], 160
        %v5908 = vld [vmem:[%s5907] sm:$0xff]
        %v5909 = vld [vmem:[%s5907 + $0x8] sm:$0xff]
        %v5910 = vld [vmem:[%s5907 + $0x10] sm:$0xff]
        %v5911 = vld [vmem:[%s5907 + $0x18] sm:$0xff]
        %5924 = vrot.lane.b32.xlu0 %v5895, 127
        %v5925 = vpop.permute.xlu0 %5924
        %5926 = vrot.lane.b32.xlu0 %v5896, 127
        %v5927 = vpop.permute.xlu0 %5926
        %5928 = vrot.lane.b32.xlu0 %v5897, 127
        %v5929 = vpop.permute.xlu0 %5928
        %5930 = vrot.lane.b32.xlu0 %v5898, 127
        %v5931 = vpop.permute.xlu0 %5930
        %5932 = vrot.lane.b32.xlu0 %v5899, 127
        %v5933 = vpop.permute.xlu0 %5932
        %5934 = vrot.lane.b32.xlu0 %v5900, 127
        %v5935 = vpop.permute.xlu0 %5934
        %5936 = vrot.lane.b32.xlu0 %v5901, 127
        %v5937 = vpop.permute.xlu0 %5936
        %5938 = vrot.lane.b32.xlu0 %v5902, 127
        %v5939 = vpop.permute.xlu0 %5938
        %5940 = vrot.lane.b32.xlu0 %v5903, 127
        %v5941 = vpop.permute.xlu0 %5940
        %5942 = vrot.lane.b32.xlu0 %v5904, 127
        %v5943 = vpop.permute.xlu0 %5942
        %5944 = vrot.lane.b32.xlu0 %v5905, 127
        %v5945 = vpop.permute.xlu0 %5944
        %5946 = vrot.lane.b32.xlu0 %v5906, 127
        %v5947 = vpop.permute.xlu0 %5946
        %v5948 = vsel %vm904, %v5925, %v5927
        %v5949 = vsel %vm904, %v5927, %v5929
        %v5950 = vsel %vm904, %v5931, %v5933
        %v5951 = vsel %vm904, %v5933, %v5935
        %v5952 = vsel %vm904, %v5937, %v5939
        %v5953 = vsel %vm904, %v5939, %v5941
        %v5954 = vsel %vm904, %v5943, %v5945
        %v5955 = vsel %vm904, %v5945, %v5947
        %v5965 = vsel %vm1988, %v5908, 0
        %v5968 = vsel %vm1988, %v5909, 0
        %v5971 = vsel %vm1988, %v5910, 0
        %v5974 = vsel %vm1988, %v5911, 0
        %5976 = vmatprep.subr.mxu0 %v5949
        %5977 = vmatpush1.msra.mxu0 %v5948
        %5978 = vmatprep.subr.mxu0 %v5951
        %5979 = vmatpush1.msra.mxu0 %v5950
        %5980 = vmatprep.subr.mxu0 %v5953
        %5981 = vmatpush1.msra.mxu0 %v5952
        %5982 = vmatprep.subr.mxu0 %v5955
        %5983 = vmatpush1.msra.mxu0 %v5954
        %5984 = vmatprep.subr.mxu0 0.0
        %5985 = vmatpush1.msra.mxu0 0.0
        %5986 = vmatprep.subr.mxu0 0.0
        %5987 = vmatpush1.msra.mxu0 0.0
        %5988 = vmatprep.subr.mxu0 0.0
        %5989 = vmatpush1.msra.mxu0 0.0
        %5990 = vmatprep.subr.mxu0 0.0
        %5991 = vmatpush1.msra.mxu0 0.0
        %5992 = vmatprep.subr.mxu0 0.0
        %5993 = vmatpush1.msra.mxu0 0.0
        %5994 = vmatprep.subr.mxu0 0.0
        %5995 = vmatpush1.msra.mxu0 0.0
        %5996 = vmatprep.subr.mxu0 0.0
        %5997 = vmatpush1.msra.mxu0 0.0
        %5998 = vmatprep.subr.mxu0 0.0
        %5999 = vmatpush1.msra.mxu0 0.0
        %6000 = vmatprep.subr.mxu0 0.0
        %6001 = vmatpush1.msra.mxu0 0.0
        %6002 = vmatprep.subr.mxu0 0.0
        %6003 = vmatpush1.msra.mxu0 0.0
        %6004 = vmatprep.subr.mxu0 0.0
        %6005 = vmatpush1.msra.mxu0 0.0
        %6006 = vmatprep.subr.mxu0 0.0
        %6007 = vmatpush1.msra.mxu0 0.0
        %6008 = vmatprep.subr.mxu0 0.0
        %6009 = vmatpush1.msra.mxu0 0.0
        %6010 = vmatprep.subr.mxu0 0.0
        %6011 = vmatpush1.msra.mxu0 0.0
        %6012 = vmatprep.subr.mxu0 0.0
        %6013 = vmatpush1.msra.mxu0 0.0
        %6014 = vmatprep.subr.mxu0 0.0
        %6015 = vmatpush1.msra.mxu0 0.0
        %6016 = vmatprep.subr.mxu0 0.0
        %6017 = vmatpush1.msra.mxu0 0.0
        %6018 = vmatprep.subr.mxu0 0.0
        %6019 = vmatpush1.msra.mxu0 0.0
        %6020 = vmatprep.subr.mxu0 0.0
        %6021 = vmatpush1.msra.mxu0 0.0
        %6022 = vmatprep.subr.mxu0 0.0
        %6023 = vmatpush1.msra.mxu0 0.0
        %6024 = vmatprep.subr.mxu0 0.0
        %6025 = vmatpush1.msra.mxu0 0.0
        %6026 = vmatprep.subr.mxu0 0.0
        %6027 = vmatpush1.msra.mxu0 0.0
        %6028 = vmatprep.subr.mxu0 0.0
        %6029 = vmatpush1.msra.mxu0 0.0
        %6030 = vmatprep.subr.mxu0 0.0
        %6031 = vmatpush1.msra.mxu0 0.0
        %6032 = vmatprep.subr.mxu0 0.0
        %6033 = vmatpush1.msra.mxu0 0.0
        %6034 = vmatprep.subr.mxu0 0.0
        %6035 = vmatpush1.msra.mxu0 0.0
        %6036 = vmatprep.subr.mxu0 0.0
        %6037 = vmatpush1.msra.mxu0 0.0
        %6038 = vmatprep.subr.mxu0 0.0
        %6039 = vmatpush1.msra.mxu0 0.0
        %6040 = vmatprep.mubr.f32.mxu0 0.0
        %6041 = vmatmul.mubr.f32.gmra.mrb[0].mxu0 %v5965
        %v6042 = vpop.f32.mrb[0].mxu0
        %v6043 = vadd.f32 0.0, %v6042
        %v6044 = vpop.f32.mrb[0].mxu0
        %v6045 = vadd.f32 0.0, %v6044
        %6046 = vmatprep.mubr.f32.mxu0 0.0
        %6047 = vmatmul.mubr.f32.gmra.mrb[0].mxu0 %v5968
        %v6048 = vpop.f32.mrb[0].mxu0
        %v6049 = vadd.f32 0.0, %v6048
        %v6050 = vpop.f32.mrb[0].mxu0
        %v6051 = vadd.f32 0.0, %v6050
        %6052 = vmatprep.mubr.f32.mxu0 0.0
        %6053 = vmatmul.mubr.f32.gmra.mrb[0].mxu0 %v5971
        %v6054 = vpop.f32.mrb[0].mxu0
        %v6055 = vadd.f32 0.0, %v6054
        %v6056 = vpop.f32.mrb[0].mxu0
        %v6057 = vadd.f32 0.0, %v6056
        %6058 = vmatprep.mubr.f32.mxu0 0.0
        %6059 = vmatmul.mubr.f32.gmra.mrb[0].mxu0 %v5974
        %v6060 = vpop.f32.mrb[0].mxu0
        %v6061 = vadd.f32 0.0, %v6060
        %v6062 = vpop.f32.mrb[0].mxu0
        %v6063 = vadd.f32 0.0, %v6062
        %6064 = vdwg.mxu0
        %v6065 = vadd.f32 %v5875, %v6043
        %v6066 = vadd.f32 %v5876, %v6045
        %v6067 = vadd.f32 %v5877, %v6049
        %v6068 = vadd.f32 %v5878, %v6051
        %v6069 = vadd.f32 %v5879, %v6055
        %v6070 = vadd.f32 %v5880, %v6057
        %v6071 = vadd.f32 %v5881, %v6061
        %v6072 = vadd.f32 %v5882, %v6063
        %v6073 = vmul.f32 %v5883, %v2928
        %v6074 = vmul.f32 %v5884, %v2931
        %v6075 = vmul.f32 %v5885, %v2930
        %v6076 = vmul.f32 %v5886, %v2928
        %v6077 = vmul.f32 %v5887, %v2931
        %v6078 = vmul.f32 %v5888, %v2930
        %v6079 = vmul.f32 %v5889, %v2928
        %v6080 = vmul.f32 %v5890, %v2931
        %v6081 = vmul.f32 %v5891, %v2930
        %v6082 = vmul.f32 %v5892, %v2928
        %v6083 = vmul.f32 %v5893, %v2931
        %v6084 = vmul.f32 %v5894, %v2930
        %s6085 = scalar_lea.vmem [#allocation7], 192
        %v6086 = vld [vmem:[%s6085] sm:$0xff]
        %v6087 = vld [vmem:[%s6085 + $0x8] sm:$0xff]
        %v6088 = vld [vmem:[%s6085 + $0x10] sm:$0xff]
        %v6089 = vld [vmem:[%s6085 + $0x18] sm:$0xff]
        %6102 = vrot.lane.b32.xlu0 %v6073, 113
        %v6103 = vpop.permute.xlu0 %6102
        %6104 = vrot.lane.b32.xlu0 %v6074, 113
        %v6105 = vpop.permute.xlu0 %6104
        %6106 = vrot.lane.b32.xlu0 %v6075, 113
        %v6107 = vpop.permute.xlu0 %6106
        %6108 = vrot.lane.b32.xlu0 %v6076, 113
        %v6109 = vpop.permute.xlu0 %6108
        %6110 = vrot.lane.b32.xlu0 %v6077, 113
        %v6111 = vpop.permute.xlu0 %6110
        %6112 = vrot.lane.b32.xlu0 %v6078, 113
        %v6113 = vpop.permute.xlu0 %6112
        %6114 = vrot.lane.b32.xlu0 %v6079, 113
        %v6115 = vpop.permute.xlu0 %6114
        %6116 = vrot.lane.b32.xlu0 %v6080, 113
        %v6117 = vpop.permute.xlu0 %6116
        %6118 = vrot.lane.b32.xlu0 %v6081, 113
        %v6119 = vpop.permute.xlu0 %6118
        %6120 = vrot.lane.b32.xlu0 %v6082, 113
        %v6121 = vpop.permute.xlu0 %6120
        %6122 = vrot.lane.b32.xlu0 %v6083, 113
        %v6123 = vpop.permute.xlu0 %6122
        %6124 = vrot.lane.b32.xlu0 %v6084, 113
        %v6125 = vpop.permute.xlu0 %6124
        %v6126 = vsel %vm957, %v6103, %v6105
        %v6127 = vsel %vm957, %v6105, %v6107
        %v6128 = vsel %vm957, %v6109, %v6111
        %v6129 = vsel %vm957, %v6111, %v6113
        %v6130 = vsel %vm957, %v6115, %v6117
        %v6131 = vsel %vm957, %v6117, %v6119
        %v6132 = vsel %vm957, %v6121, %v6123
        %v6133 = vsel %vm957, %v6123, %v6125
        %v6143 = vsel %vm1988, %v6086, 0
        %v6146 = vsel %vm1988, %v6087, 0
        %v6149 = vsel %vm1988, %v6088, 0
        %v6152 = vsel %vm1988, %v6089, 0
        %6154 = vmatprep.subr.mxu0 %v6127
        %6155 = vmatpush1.msra.mxu0 %v6126
        %6156 = vmatprep.subr.mxu0 %v6129
        %6157 = vmatpush1.msra.mxu0 %v6128
        %6158 = vmatprep.subr.mxu0 %v6131
        %6159 = vmatpush1.msra.mxu0 %v6130
        %6160 = vmatprep.subr.mxu0 %v6133
        %6161 = vmatpush1.msra.mxu0 %v6132
        %6162 = vmatprep.subr.mxu0 0.0
        %6163 = vmatpush1.msra.mxu0 0.0
        %6164 = vmatprep.subr.mxu0 0.0
        %6165 = vmatpush1.msra.mxu0 0.0
        %6166 = vmatprep.subr.mxu0 0.0
        %6167 = vmatpush1.msra.mxu0 0.0
        %6168 = vmatprep.subr.mxu0 0.0
        %6169 = vmatpush1.msra.mxu0 0.0
        %6170 = vmatprep.subr.mxu0 0.0
        %6171 = vmatpush1.msra.mxu0 0.0
        %6172 = vmatprep.subr.mxu0 0.0
        %6173 = vmatpush1.msra.mxu0 0.0
        %6174 = vmatprep.subr.mxu0 0.0
        %6175 = vmatpush1.msra.mxu0 0.0
        %6176 = vmatprep.subr.mxu0 0.0
        %6177 = vmatpush1.msra.mxu0 0.0
        %6178 = vmatprep.subr.mxu0 0.0
        %6179 = vmatpush1.msra.mxu0 0.0
        %6180 = vmatprep.subr.mxu0 0.0
        %6181 = vmatpush1.msra.mxu0 0.0
        %6182 = vmatprep.subr.mxu0 0.0
        %6183 = vmatpush1.msra.mxu0 0.0
        %6184 = vmatprep.subr.mxu0 0.0
        %6185 = vmatpush1.msra.mxu0 0.0
        %6186 = vmatprep.subr.mxu0 0.0
        %6187 = vmatpush1.msra.mxu0 0.0
        %6188 = vmatprep.subr.mxu0 0.0
        %6189 = vmatpush1.msra.mxu0 0.0
        %6190 = vmatprep.subr.mxu0 0.0
        %6191 = vmatpush1.msra.mxu0 0.0
        %6192 = vmatprep.subr.mxu0 0.0
        %6193 = vmatpush1.msra.mxu0 0.0
        %6194 = vmatprep.subr.mxu0 0.0
        %6195 = vmatpush1.msra.mxu0 0.0
        %6196 = vmatprep.subr.mxu0 0.0
        %6197 = vmatpush1.msra.mxu0 0.0
        %6198 = vmatprep.subr.mxu0 0.0
        %6199 = vmatpush1.msra.mxu0 0.0
        %6200 = vmatprep.subr.mxu0 0.0
        %6201 = vmatpush1.msra.mxu0 0.0
        %6202 = vmatprep.subr.mxu0 0.0
        %6203 = vmatpush1.msra.mxu0 0.0
        %6204 = vmatprep.subr.mxu0 0.0
        %6205 = vmatpush1.msra.mxu0 0.0
        %6206 = vmatprep.subr.mxu0 0.0
        %6207 = vmatpush1.msra.mxu0 0.0
        %6208 = vmatprep.subr.mxu0 0.0
        %6209 = vmatpush1.msra.mxu0 0.0
        %6210 = vmatprep.subr.mxu0 0.0
        %6211 = vmatpush1.msra.mxu0 0.0
        %6212 = vmatprep.subr.mxu0 0.0
        %6213 = vmatpush1.msra.mxu0 0.0
        %6214 = vmatprep.subr.mxu0 0.0
        %6215 = vmatpush1.msra.mxu0 0.0
        %6216 = vmatprep.subr.mxu0 0.0
        %6217 = vmatpush1.msra.mxu0 0.0
        %6218 = vmatprep.mubr.f32.mxu0 0.0
        %6219 = vmatmul.mubr.f32.gmra.mrb[0].mxu0 %v6143
        %v6220 = vpop.f32.mrb[0].mxu0
        %v6221 = vadd.f32 0.0, %v6220
        %v6222 = vpop.f32.mrb[0].mxu0
        %v6223 = vadd.f32 0.0, %v6222
        %6224 = vmatprep.mubr.f32.mxu0 0.0
        %6225 = vmatmul.mubr.f32.gmra.mrb[0].mxu0 %v6146
        %v6226 = vpop.f32.mrb[0].mxu0
        %v6227 = vadd.f32 0.0, %v6226
        %v6228 = vpop.f32.mrb[0].mxu0
        %v6229 = vadd.f32 0.0, %v6228
        %6230 = vmatprep.mubr.f32.mxu0 0.0
        %6231 = vmatmul.mubr.f32.gmra.mrb[0].mxu0 %v6149
        %v6232 = vpop.f32.mrb[0].mxu0
        %v6233 = vadd.f32 0.0, %v6232
        %v6234 = vpop.f32.mrb[0].mxu0
        %v6235 = vadd.f32 0.0, %v6234
        %6236 = vmatprep.mubr.f32.mxu0 0.0
        %6237 = vmatmul.mubr.f32.gmra.mrb[0].mxu0 %v6152
        %v6238 = vpop.f32.mrb[0].mxu0
        %v6239 = vadd.f32 0.0, %v6238
        %v6240 = vpop.f32.mrb[0].mxu0
        %v6241 = vadd.f32 0.0, %v6240
        %6242 = vdwg.mxu0
        %v6243 = vadd.f32 %v6065, %v6221
        %v6244 = vadd.f32 %v6066, %v6223
        %v6245 = vadd.f32 %v6067, %v6227
        %v6246 = vadd.f32 %v6068, %v6229
        %v6247 = vadd.f32 %v6069, %v6233
        %v6248 = vadd.f32 %v6070, %v6235
        %v6249 = vadd.f32 %v6071, %v6239
        %v6250 = vadd.f32 %v6072, %v6241
        %s6251 = scalar_lea.vmem [#allocation7], 224
        %v6252 = vld [vmem:[%s6251] sm:$0xff]
        %v6253 = vld [vmem:[%s6251 + $0x8] sm:$0xff]
        %v6254 = vld [vmem:[%s6251 + $0x10] sm:$0xff]
        %v6255 = vld [vmem:[%s6251 + $0x18] sm:$0xff]
        %6268 = vrot.lane.b32.xlu0 %v5883, 112
        %v6269 = vpop.permute.xlu0 %6268
        %6270 = vrot.lane.b32.xlu0 %v5884, 112
        %v6271 = vpop.permute.xlu0 %6270
        %6272 = vrot.lane.b32.xlu0 %v5885, 112
        %v6273 = vpop.permute.xlu0 %6272
        %6274 = vrot.lane.b32.xlu0 %v5886, 112
        %v6275 = vpop.permute.xlu0 %6274
        %6276 = vrot.lane.b32.xlu0 %v5887, 112
        %v6277 = vpop.permute.xlu0 %6276
        %6278 = vrot.lane.b32.xlu0 %v5888, 112
        %v6279 = vpop.permute.xlu0 %6278
        %6280 = vrot.lane.b32.xlu0 %v5889, 112
        %v6281 = vpop.permute.xlu0 %6280
        %6282 = vrot.lane.b32.xlu0 %v5890, 112
        %v6283 = vpop.permute.xlu0 %6282
        %6284 = vrot.lane.b32.xlu0 %v5891, 112
        %v6285 = vpop.permute.xlu0 %6284
        %6286 = vrot.lane.b32.xlu0 %v5892, 112
        %v6287 = vpop.permute.xlu0 %6286
        %6288 = vrot.lane.b32.xlu0 %v5893, 112
        %v6289 = vpop.permute.xlu0 %6288
        %6290 = vrot.lane.b32.xlu0 %v5894, 112
        %v6291 = vpop.permute.xlu0 %6290
        %v6292 = vsel %vm1177, %v6269, %v6271
        %v6293 = vsel %vm1177, %v6271, %v6273
        %v6294 = vsel %vm1177, %v6275, %v6277
        %v6295 = vsel %vm1177, %v6277, %v6279
        %v6296 = vsel %vm1177, %v6281, %v6283
        %v6297 = vsel %vm1177, %v6283, %v6285
        %v6298 = vsel %vm1177, %v6287, %v6289
        %v6299 = vsel %vm1177, %v6289, %v6291
        %v6309 = vsel %vm1988, %v6252, 0
        %v6312 = vsel %vm1988, %v6253, 0
        %v6315 = vsel %vm1988, %v6254, 0
        %v6318 = vsel %vm1988, %v6255, 0
        %6320 = vmatprep.subr.mxu0 %v6293
        %6321 = vmatpush1.msra.mxu0 %v6292
        %6322 = vmatprep.subr.mxu0 %v6295
        %6323 = vmatpush1.msra.mxu0 %v6294
        %6324 = vmatprep.subr.mxu0 %v6297
        %6325 = vmatpush1.msra.mxu0 %v6296
        %6326 = vmatprep.subr.mxu0 %v6299
        %6327 = vmatpush1.msra.mxu0 %v6298
        %6328 = vmatprep.subr.mxu0 0.0
        %6329 = vmatpush1.msra.mxu0 0.0
        %6330 = vmatprep.subr.mxu0 0.0
        %6331 = vmatpush1.msra.mxu0 0.0
        %6332 = vmatprep.subr.mxu0 0.0
        %6333 = vmatpush1.msra.mxu0 0.0
        %6334 = vmatprep.subr.mxu0 0.0
        %6335 = vmatpush1.msra.mxu0 0.0
        %6336 = vmatprep.subr.mxu0 0.0
        %6337 = vmatpush1.msra.mxu0 0.0
        %6338 = vmatprep.subr.mxu0 0.0
        %6339 = vmatpush1.msra.mxu0 0.0
        %6340 = vmatprep.subr.mxu0 0.0
        %6341 = vmatpush1.msra.mxu0 0.0
        %6342 = vmatprep.subr.mxu0 0.0
        %6343 = vmatpush1.msra.mxu0 0.0
        %6344 = vmatprep.subr.mxu0 0.0
        %6345 = vmatpush1.msra.mxu0 0.0
        %6346 = vmatprep.subr.mxu0 0.0
        %6347 = vmatpush1.msra.mxu0 0.0
        %6348 = vmatprep.subr.mxu0 0.0
        %6349 = vmatpush1.msra.mxu0 0.0
        %6350 = vmatprep.subr.mxu0 0.0
        %6351 = vmatpush1.msra.mxu0 0.0
        %6352 = vmatprep.subr.mxu0 0.0
        %6353 = vmatpush1.msra.mxu0 0.0
        %6354 = vmatprep.subr.mxu0 0.0
        %6355 = vmatpush1.msra.mxu0 0.0
        %6356 = vmatprep.subr.mxu0 0.0
        %6357 = vmatpush1.msra.mxu0 0.0
        %6358 = vmatprep.subr.mxu0 0.0
        %6359 = vmatpush1.msra.mxu0 0.0
        %6360 = vmatprep.subr.mxu0 0.0
        %6361 = vmatpush1.msra.mxu0 0.0
        %6362 = vmatprep.subr.mxu0 0.0
        %6363 = vmatpush1.msra.mxu0 0.0
        %6364 = vmatprep.subr.mxu0 0.0
        %6365 = vmatpush1.msra.mxu0 0.0
        %6366 = vmatprep.subr.mxu0 0.0
        %6367 = vmatpush1.msra.mxu0 0.0
        %6368 = vmatprep.subr.mxu0 0.0
        %6369 = vmatpush1.msra.mxu0 0.0
        %6370 = vmatprep.subr.mxu0 0.0
        %6371 = vmatpush1.msra.mxu0 0.0
        %6372 = vmatprep.subr.mxu0 0.0
        %6373 = vmatpush1.msra.mxu0 0.0
        %6374 = vmatprep.subr.mxu0 0.0
        %6375 = vmatpush1.msra.mxu0 0.0
        %6376 = vmatprep.subr.mxu0 0.0
        %6377 = vmatpush1.msra.mxu0 0.0
        %6378 = vmatprep.subr.mxu0 0.0
        %6379 = vmatpush1.msra.mxu0 0.0
        %6380 = vmatprep.subr.mxu0 0.0
        %6381 = vmatpush1.msra.mxu0 0.0
        %6382 = vmatprep.subr.mxu0 0.0
        %6383 = vmatpush1.msra.mxu0 0.0
        %6384 = vmatprep.mubr.f32.mxu0 0.0
        %6385 = vmatmul.mubr.f32.gmra.mrb[0].mxu0 %v6309
        %v6386 = vpop.f32.mrb[0].mxu0
        %v6387 = vadd.f32 0.0, %v6386
        %v6388 = vpop.f32.mrb[0].mxu0
        %v6389 = vadd.f32 0.0, %v6388
        %6390 = vmatprep.mubr.f32.mxu0 0.0
        %6391 = vmatmul.mubr.f32.gmra.mrb[0].mxu0 %v6312
        %v6392 = vpop.f32.mrb[0].mxu0
        %v6393 = vadd.f32 0.0, %v6392
        %v6394 = vpop.f32.mrb[0].mxu0
        %v6395 = vadd.f32 0.0, %v6394
        %6396 = vmatprep.mubr.f32.mxu0 0.0
        %6397 = vmatmul.mubr.f32.gmra.mrb[0].mxu0 %v6315
        %v6398 = vpop.f32.mrb[0].mxu0
        %v6399 = vadd.f32 0.0, %v6398
        %v6400 = vpop.f32.mrb[0].mxu0
        %v6401 = vadd.f32 0.0, %v6400
        %6402 = vmatprep.mubr.f32.mxu0 0.0
        %6403 = vmatmul.mubr.f32.gmra.mrb[0].mxu0 %v6318
        %v6404 = vpop.f32.mrb[0].mxu0
        %v6405 = vadd.f32 0.0, %v6404
        %v6406 = vpop.f32.mrb[0].mxu0
        %v6407 = vadd.f32 0.0, %v6406
        %6408 = vdwg.mxu0
        %v6409 = vadd.f32 %v6243, %v6387
        %v6410 = vadd.f32 %v6244, %v6389
        %v6411 = vadd.f32 %v6245, %v6393
        %v6412 = vadd.f32 %v6246, %v6395
        %v6413 = vadd.f32 %v6247, %v6399
        %v6414 = vadd.f32 %v6248, %v6401
        %v6415 = vadd.f32 %v6249, %v6405
        %v6416 = vadd.f32 %v6250, %v6407
        %v6417 = vmul.f32 %v5883, %v3280
        %v6418 = vmul.f32 %v5884, %v3283
        %v6419 = vmul.f32 %v5885, %v3282
        %v6420 = vmul.f32 %v5886, %v3280
        %v6421 = vmul.f32 %v5887, %v3283
        %v6422 = vmul.f32 %v5888, %v3282
        %v6423 = vmul.f32 %v5889, %v3280
        %v6424 = vmul.f32 %v5890, %v3283
        %v6425 = vmul.f32 %v5891, %v3282
        %v6426 = vmul.f32 %v5892, %v3280
        %v6427 = vmul.f32 %v5893, %v3283
        %v6428 = vmul.f32 %v5894, %v3282
        %s6429 = scalar_lea.vmem [#allocation7], 256
        %v6430 = vld [vmem:[%s6429] sm:$0xff]
        %v6431 = vld [vmem:[%s6429 + $0x8] sm:$0xff]
        %v6432 = vld [vmem:[%s6429 + $0x10] sm:$0xff]
        %v6433 = vld [vmem:[%s6429 + $0x18] sm:$0xff]
        %6446 = vrot.lane.b32.xlu0 %v6417, 111
        %v6447 = vpop.permute.xlu0 %6446
        %6448 = vrot.lane.b32.xlu0 %v6418, 111
        %v6449 = vpop.permute.xlu0 %6448
        %6450 = vrot.lane.b32.xlu0 %v6419, 111
        %v6451 = vpop.permute.xlu0 %6450
        %6452 = vrot.lane.b32.xlu0 %v6420, 111
        %v6453 = vpop.permute.xlu0 %6452
        %6454 = vrot.lane.b32.xlu0 %v6421, 111
        %v6455 = vpop.permute.xlu0 %6454
        %6456 = vrot.lane.b32.xlu0 %v6422, 111
        %v6457 = vpop.permute.xlu0 %6456
        %6458 = vrot.lane.b32.xlu0 %v6423, 111
        %v6459 = vpop.permute.xlu0 %6458
        %6460 = vrot.lane.b32.xlu0 %v6424, 111
        %v6461 = vpop.permute.xlu0 %6460
        %6462 = vrot.lane.b32.xlu0 %v6425, 111
        %v6463 = vpop.permute.xlu0 %6462
        %6464 = vrot.lane.b32.xlu0 %v6426, 111
        %v6465 = vpop.permute.xlu0 %6464
        %6466 = vrot.lane.b32.xlu0 %v6427, 111
        %v6467 = vpop.permute.xlu0 %6466
        %6468 = vrot.lane.b32.xlu0 %v6428, 111
        %v6469 = vpop.permute.xlu0 %6468
        %v6470 = vsel %vm755, %v6447, %v6449
        %v6471 = vsel %vm755, %v6449, %v6451
        %v6472 = vsel %vm755, %v6453, %v6455
        %v6473 = vsel %vm755, %v6455, %v6457
        %v6474 = vsel %vm755, %v6459, %v6461
        %v6475 = vsel %vm755, %v6461, %v6463
        %v6476 = vsel %vm755, %v6465, %v6467
        %v6477 = vsel %vm755, %v6467, %v6469
        %v6487 = vsel %vm1988, %v6430, 0
        %v6490 = vsel %vm1988, %v6431, 0
        %v6493 = vsel %vm1988, %v6432, 0
        %v6496 = vsel %vm1988, %v6433, 0
        %6498 = vmatprep.subr.mxu0 %v6471
        %6499 = vmatpush1.msra.mxu0 %v6470
        %6500 = vmatprep.subr.mxu0 %v6473
        %6501 = vmatpush1.msra.mxu0 %v6472
        %6502 = vmatprep.subr.mxu0 %v6475
        %6503 = vmatpush1.msra.mxu0 %v6474
        %6504 = vmatprep.subr.mxu0 %v6477
        %6505 = vmatpush1.msra.mxu0 %v6476
        %6506 = vmatprep.subr.mxu0 0.0
        %6507 = vmatpush1.msra.mxu0 0.0
        %6508 = vmatprep.subr.mxu0 0.0
        %6509 = vmatpush1.msra.mxu0 0.0
        %6510 = vmatprep.subr.mxu0 0.0
        %6511 = vmatpush1.msra.mxu0 0.0
        %6512 = vmatprep.subr.mxu0 0.0
        %6513 = vmatpush1.msra.mxu0 0.0
        %6514 = vmatprep.subr.mxu0 0.0
        %6515 = vmatpush1.msra.mxu0 0.0
        %6516 = vmatprep.subr.mxu0 0.0
        %6517 = vmatpush1.msra.mxu0 0.0
        %6518 = vmatprep.subr.mxu0 0.0
        %6519 = vmatpush1.msra.mxu0 0.0
        %6520 = vmatprep.subr.mxu0 0.0
        %6521 = vmatpush1.msra.mxu0 0.0
        %6522 = vmatprep.subr.mxu0 0.0
        %6523 = vmatpush1.msra.mxu0 0.0
        %6524 = vmatprep.subr.mxu0 0.0
        %6525 = vmatpush1.msra.mxu0 0.0
        %6526 = vmatprep.subr.mxu0 0.0
        %6527 = vmatpush1.msra.mxu0 0.0
        %6528 = vmatprep.subr.mxu0 0.0
        %6529 = vmatpush1.msra.mxu0 0.0
        %6530 = vmatprep.subr.mxu0 0.0
        %6531 = vmatpush1.msra.mxu0 0.0
        %6532 = vmatprep.subr.mxu0 0.0
        %6533 = vmatpush1.msra.mxu0 0.0
        %6534 = vmatprep.subr.mxu0 0.0
        %6535 = vmatpush1.msra.mxu0 0.0
        %6536 = vmatprep.subr.mxu0 0.0
        %6537 = vmatpush1.msra.mxu0 0.0
        %6538 = vmatprep.subr.mxu0 0.0
        %6539 = vmatpush1.msra.mxu0 0.0
        %6540 = vmatprep.subr.mxu0 0.0
        %6541 = vmatpush1.msra.mxu0 0.0
        %6542 = vmatprep.subr.mxu0 0.0
        %6543 = vmatpush1.msra.mxu0 0.0
        %6544 = vmatprep.subr.mxu0 0.0
        %6545 = vmatpush1.msra.mxu0 0.0
        %6546 = vmatprep.subr.mxu0 0.0
        %6547 = vmatpush1.msra.mxu0 0.0
        %6548 = vmatprep.subr.mxu0 0.0
        %6549 = vmatpush1.msra.mxu0 0.0
        %6550 = vmatprep.subr.mxu0 0.0
        %6551 = vmatpush1.msra.mxu0 0.0
        %6552 = vmatprep.subr.mxu0 0.0
        %6553 = vmatpush1.msra.mxu0 0.0
        %6554 = vmatprep.subr.mxu0 0.0
        %6555 = vmatpush1.msra.mxu0 0.0
        %6556 = vmatprep.subr.mxu0 0.0
        %6557 = vmatpush1.msra.mxu0 0.0
        %6558 = vmatprep.subr.mxu0 0.0
        %6559 = vmatpush1.msra.mxu0 0.0
        %6560 = vmatprep.subr.mxu0 0.0
        %6561 = vmatpush1.msra.mxu0 0.0
        %6562 = vmatprep.mubr.f32.mxu0 0.0
        %6563 = vmatmul.mubr.f32.gmra.mrb[0].mxu0 %v6487
        %v6564 = vpop.f32.mrb[0].mxu0
        %v6565 = vadd.f32 0.0, %v6564
        %v6566 = vpop.f32.mrb[0].mxu0
        %v6567 = vadd.f32 0.0, %v6566
        %6568 = vmatprep.mubr.f32.mxu0 0.0
        %6569 = vmatmul.mubr.f32.gmra.mrb[0].mxu0 %v6490
        %v6570 = vpop.f32.mrb[0].mxu0
        %v6571 = vadd.f32 0.0, %v6570
        %v6572 = vpop.f32.mrb[0].mxu0
        %v6573 = vadd.f32 0.0, %v6572
        %6574 = vmatprep.mubr.f32.mxu0 0.0
        %6575 = vmatmul.mubr.f32.gmra.mrb[0].mxu0 %v6493
        %v6576 = vpop.f32.mrb[0].mxu0
        %v6577 = vadd.f32 0.0, %v6576
        %v6578 = vpop.f32.mrb[0].mxu0
        %v6579 = vadd.f32 0.0, %v6578
        %6580 = vmatprep.mubr.f32.mxu0 0.0
        %6581 = vmatmul.mubr.f32.gmra.mrb[0].mxu0 %v6496
        %v6582 = vpop.f32.mrb[0].mxu0
        %v6583 = vadd.f32 0.0, %v6582
        %v6584 = vpop.f32.mrb[0].mxu0
        %v6585 = vadd.f32 0.0, %v6584
        %6586 = vdwg.mxu0
        %v6587 = vadd.f32 %v6409, %v6565
        %v6588 = vadd.f32 %v6410, %v6567
        %v6589 = vadd.f32 %v6411, %v6571
        %v6590 = vadd.f32 %v6412, %v6573
        %v6591 = vadd.f32 %v6413, %v6577
        %v6592 = vadd.f32 %v6414, %v6579
        %v6593 = vadd.f32 %v6415, %v6583
        %v6594 = vadd.f32 %v6416, %v6585
        %v6595 = vld [vmem:[%s11] sm:$0xff]
        %v6596 = vld [vmem:[%s11 + $0x8] sm:$0xff]
        %v6597 = vld [vmem:[%s11 + $0x10] sm:$0xff]
        %v6598 = vld [vmem:[%s11 + $0x18] sm:$0xff]
        %6600 = vset.pattern.permute.xlu0 0
        %6601 = vperm.xlu0 %6600, %v6595
        %v6602 = vpop.permute.xlu0 %6601
        %6605 = vset.pattern.permute.xlu0 0
        %6606 = vperm.xlu0 %6605, %v6596
        %v6607 = vpop.permute.xlu0 %6606
        %6610 = vset.pattern.permute.xlu0 0
        %6611 = vperm.xlu0 %6610, %v6597
        %v6612 = vpop.permute.xlu0 %6611
        %6615 = vset.pattern.permute.xlu0 0
        %6616 = vperm.xlu0 %6615, %v6598
        %v6617 = vpop.permute.xlu0 %6616
        %v6619 = vadd.f32 %v6587, %v6602
        %v6620 = vadd.f32 %v6588, %v6602
        %v6621 = vadd.f32 %v6589, %v6607
        %v6622 = vadd.f32 %v6590, %v6607
        %v6623 = vadd.f32 %v6591, %v6612
        %v6624 = vadd.f32 %v6592, %v6612
        %v6625 = vadd.f32 %v6593, %v6617
        %v6626 = vadd.f32 %v6594, %v6617
        %v6627 = vadd.f32 %v5058, %v6619
        %v6628 = vadd.f32 %v5059, %v6620
        %v6629 = vadd.f32 %v5060, %v6621
        %v6630 = vadd.f32 %v5061, %v6622
        %v6631 = vadd.f32 %v5062, %v6623
        %v6632 = vadd.f32 %v5063, %v6624
        %v6633 = vadd.f32 %v5064, %v6625
        %v6634 = vadd.f32 %v5065, %v6626
        %6635 = vst [vmem:[#allocation2 + $0x8] sm:$0xff] %v6627
        %6636 = vst [vmem:[#allocation2 + $0x10] sm:$0xff] %v6628
        %6637 = vst [vmem:[#allocation2 + $0x28] sm:$0xff] %v6629
        %6638 = vst [vmem:[#allocation2 + $0x30] sm:$0xff] %v6630
        %6639 = vst [vmem:[#allocation2 + $0x48] sm:$0xff] %v6631
        %6640 = vst [vmem:[#allocation2 + $0x50] sm:$0xff] %v6632
        %6641 = vst [vmem:[#allocation2 + $0x68] sm:$0xff] %v6633
        %6642 = vst [vmem:[#allocation2 + $0x70] sm:$0xff] %v6634
        %v6643 = vld [vmem:[#allocation2] sm:$0xff]
        %v6644 = vld [vmem:[#allocation2 + $0x8] sm:$0xff]
        %v6645 = vld [vmem:[#allocation2 + $0x10] sm:$0xff]
        %v6646 = vld [vmem:[#allocation2 + $0x20] sm:$0xff]
        %v6647 = vld [vmem:[#allocation2 + $0x28] sm:$0xff]
        %v6648 = vld [vmem:[#allocation2 + $0x30] sm:$0xff]
        %v6649 = vld [vmem:[#allocation2 + $0x40] sm:$0xff]
        %v6650 = vld [vmem:[#allocation2 + $0x48] sm:$0xff]
        %v6651 = vld [vmem:[#allocation2 + $0x50] sm:$0xff]
        %v6652 = vld [vmem:[#allocation2 + $0x60] sm:$0xff]
        %v6653 = vld [vmem:[#allocation2 + $0x68] sm:$0xff]
        %v6654 = vld [vmem:[#allocation2 + $0x70] sm:$0xff]
        %v6655 = vmul.f32 %v6643, %v1907
        %v6656 = vmul.f32 %v6644, %v1910
        %v6657 = vmul.f32 %v6645, %v1909
        %v6658 = vmul.f32 %v6646, %v1907
        %v6659 = vmul.f32 %v6647, %v1910
        %v6660 = vmul.f32 %v6648, %v1909
        %v6661 = vmul.f32 %v6649, %v1907
        %v6662 = vmul.f32 %v6650, %v1910
        %v6663 = vmul.f32 %v6651, %v1909
        %v6664 = vmul.f32 %v6652, %v1907
        %v6665 = vmul.f32 %v6653, %v1910
        %v6666 = vmul.f32 %v6654, %v1909
        %v6667 = vld [vmem:[#allocation9] sm:$0xff]
        %v6668 = vld [vmem:[#allocation9 + $0x8] sm:$0xff]
        %v6669 = vld [vmem:[#allocation9 + $0x10] sm:$0xff]
        %v6670 = vld [vmem:[#allocation9 + $0x18] sm:$0xff]
        %s6671 = scalar_lea.vmem [#allocation9], 32
        %v6672 = vld [vmem:[%s6671] sm:$0xff]
        %v6673 = vld [vmem:[%s6671 + $0x8] sm:$0xff]
        %v6674 = vld [vmem:[%s6671 + $0x10] sm:$0xff]
        %v6675 = vld [vmem:[%s6671 + $0x18] sm:$0xff]
        %6688 = vrot.lane.b32.xlu0 %v6643, 16
        %v6689 = vpop.permute.xlu0 %6688
        %6690 = vrot.lane.b32.xlu0 %v6644, 16
        %v6691 = vpop.permute.xlu0 %6690
        %6692 = vrot.lane.b32.xlu0 %v6645, 16
        %v6693 = vpop.permute.xlu0 %6692
        %6694 = vrot.lane.b32.xlu0 %v6646, 16
        %v6695 = vpop.permute.xlu0 %6694
        %6696 = vrot.lane.b32.xlu0 %v6647, 16
        %v6697 = vpop.permute.xlu0 %6696
        %6698 = vrot.lane.b32.xlu0 %v6648, 16
        %v6699 = vpop.permute.xlu0 %6698
        %6700 = vrot.lane.b32.xlu0 %v6649, 16
        %v6701 = vpop.permute.xlu0 %6700
        %6702 = vrot.lane.b32.xlu0 %v6650, 16
        %v6703 = vpop.permute.xlu0 %6702
        %6704 = vrot.lane.b32.xlu0 %v6651, 16
        %v6705 = vpop.permute.xlu0 %6704
        %6706 = vrot.lane.b32.xlu0 %v6652, 16
        %v6707 = vpop.permute.xlu0 %6706
        %6708 = vrot.lane.b32.xlu0 %v6653, 16
        %v6709 = vpop.permute.xlu0 %6708
        %6710 = vrot.lane.b32.xlu0 %v6654, 16
        %v6711 = vpop.permute.xlu0 %6710
        %v6712 = vsel %vm1971, %v6689, %v6691
        %v6713 = vsel %vm1971, %v6691, %v6693
        %v6714 = vsel %vm1971, %v6695, %v6697
        %v6715 = vsel %vm1971, %v6697, %v6699
        %v6716 = vsel %vm1971, %v6701, %v6703
        %v6717 = vsel %vm1971, %v6703, %v6705
        %v6718 = vsel %vm1971, %v6707, %v6709
        %v6719 = vsel %vm1971, %v6709, %v6711
        %v6729 = vsel %vm1988, %v6672, 0
        %v6732 = vsel %vm1988, %v6673, 0
        %v6735 = vsel %vm1988, %v6674, 0
        %v6738 = vsel %vm1988, %v6675, 0
        %6740 = vmatprep.subr.mxu0 %v6713
        %6741 = vmatpush1.msra.mxu0 %v6712
        %6742 = vmatprep.subr.mxu0 %v6715
        %6743 = vmatpush1.msra.mxu0 %v6714
        %6744 = vmatprep.subr.mxu0 %v6717
        %6745 = vmatpush1.msra.mxu0 %v6716
        %6746 = vmatprep.subr.mxu0 %v6719
        %6747 = vmatpush1.msra.mxu0 %v6718
        %6748 = vmatprep.subr.mxu0 0.0
        %6749 = vmatpush1.msra.mxu0 0.0
        %6750 = vmatprep.subr.mxu0 0.0
        %6751 = vmatpush1.msra.mxu0 0.0
        %6752 = vmatprep.subr.mxu0 0.0
        %6753 = vmatpush1.msra.mxu0 0.0
        %6754 = vmatprep.subr.mxu0 0.0
        %6755 = vmatpush1.msra.mxu0 0.0
        %6756 = vmatprep.subr.mxu0 0.0
        %6757 = vmatpush1.msra.mxu0 0.0
        %6758 = vmatprep.subr.mxu0 0.0
        %6759 = vmatpush1.msra.mxu0 0.0
        %6760 = vmatprep.subr.mxu0 0.0
        %6761 = vmatpush1.msra.mxu0 0.0
        %6762 = vmatprep.subr.mxu0 0.0
        %6763 = vmatpush1.msra.mxu0 0.0
        %6764 = vmatprep.subr.mxu0 0.0
        %6765 = vmatpush1.msra.mxu0 0.0
        %6766 = vmatprep.subr.mxu0 0.0
        %6767 = vmatpush1.msra.mxu0 0.0
        %6768 = vmatprep.subr.mxu0 0.0
        %6769 = vmatpush1.msra.mxu0 0.0
        %6770 = vmatprep.subr.mxu0 0.0
        %6771 = vmatpush1.msra.mxu0 0.0
        %6772 = vmatprep.subr.mxu0 0.0
        %6773 = vmatpush1.msra.mxu0 0.0
        %6774 = vmatprep.subr.mxu0 0.0
        %6775 = vmatpush1.msra.mxu0 0.0
        %6776 = vmatprep.subr.mxu0 0.0
        %6777 = vmatpush1.msra.mxu0 0.0
        %6778 = vmatprep.subr.mxu0 0.0
        %6779 = vmatpush1.msra.mxu0 0.0
        %6780 = vmatprep.subr.mxu0 0.0
        %6781 = vmatpush1.msra.mxu0 0.0
        %6782 = vmatprep.subr.mxu0 0.0
        %6783 = vmatpush1.msra.mxu0 0.0
        %6784 = vmatprep.subr.mxu0 0.0
        %6785 = vmatpush1.msra.mxu0 0.0
        %6786 = vmatprep.subr.mxu0 0.0
        %6787 = vmatpush1.msra.mxu0 0.0
        %6788 = vmatprep.subr.mxu0 0.0
        %6789 = vmatpush1.msra.mxu0 0.0
        %6790 = vmatprep.subr.mxu0 0.0
        %6791 = vmatpush1.msra.mxu0 0.0
        %6792 = vmatprep.subr.mxu0 0.0
        %6793 = vmatpush1.msra.mxu0 0.0
        %6794 = vmatprep.subr.mxu0 0.0
        %6795 = vmatpush1.msra.mxu0 0.0
        %6796 = vmatprep.subr.mxu0 0.0
        %6797 = vmatpush1.msra.mxu0 0.0
        %6798 = vmatprep.subr.mxu0 0.0
        %6799 = vmatpush1.msra.mxu0 0.0
        %6800 = vmatprep.subr.mxu0 0.0
        %6801 = vmatpush1.msra.mxu0 0.0
        %6802 = vmatprep.subr.mxu0 0.0
        %6803 = vmatpush1.msra.mxu0 0.0
        %6804 = vmatprep.mubr.f32.mxu0 0.0
        %6805 = vmatmul.mubr.f32.gmra.mrb[0].mxu0 %v6729
        %v6806 = vpop.f32.mrb[0].mxu0
        %v6807 = vadd.f32 0.0, %v6806
        %v6808 = vpop.f32.mrb[0].mxu0
        %v6809 = vadd.f32 0.0, %v6808
        %6810 = vmatprep.mubr.f32.mxu0 0.0
        %6811 = vmatmul.mubr.f32.gmra.mrb[0].mxu0 %v6732
        %v6812 = vpop.f32.mrb[0].mxu0
        %v6813 = vadd.f32 0.0, %v6812
        %v6814 = vpop.f32.mrb[0].mxu0
        %v6815 = vadd.f32 0.0, %v6814
        %6816 = vmatprep.mubr.f32.mxu0 0.0
        %6817 = vmatmul.mubr.f32.gmra.mrb[0].mxu0 %v6735
        %v6818 = vpop.f32.mrb[0].mxu0
        %v6819 = vadd.f32 0.0, %v6818
        %v6820 = vpop.f32.mrb[0].mxu0
        %v6821 = vadd.f32 0.0, %v6820
        %6822 = vmatprep.mubr.f32.mxu0 0.0
        %6823 = vmatmul.mubr.f32.gmra.mrb[0].mxu0 %v6738
        %v6824 = vpop.f32.mrb[0].mxu0
        %v6825 = vadd.f32 0.0, %v6824
        %v6826 = vpop.f32.mrb[0].mxu0
        %v6827 = vadd.f32 0.0, %v6826
        %6828 = vdwg.mxu0
        %6841 = vrot.lane.b32.xlu0 %v6655, 17
        %v6842 = vpop.permute.xlu0 %6841
        %6843 = vrot.lane.b32.xlu0 %v6656, 17
        %v6844 = vpop.permute.xlu0 %6843
        %6845 = vrot.lane.b32.xlu0 %v6657, 17
        %v6846 = vpop.permute.xlu0 %6845
        %6847 = vrot.lane.b32.xlu0 %v6658, 17
        %v6848 = vpop.permute.xlu0 %6847
        %6849 = vrot.lane.b32.xlu0 %v6659, 17
        %v6850 = vpop.permute.xlu0 %6849
        %6851 = vrot.lane.b32.xlu0 %v6660, 17
        %v6852 = vpop.permute.xlu0 %6851
        %6853 = vrot.lane.b32.xlu0 %v6661, 17
        %v6854 = vpop.permute.xlu0 %6853
        %6855 = vrot.lane.b32.xlu0 %v6662, 17
        %v6856 = vpop.permute.xlu0 %6855
        %6857 = vrot.lane.b32.xlu0 %v6663, 17
        %v6858 = vpop.permute.xlu0 %6857
        %6859 = vrot.lane.b32.xlu0 %v6664, 17
        %v6860 = vpop.permute.xlu0 %6859
        %6861 = vrot.lane.b32.xlu0 %v6665, 17
        %v6862 = vpop.permute.xlu0 %6861
        %6863 = vrot.lane.b32.xlu0 %v6666, 17
        %v6864 = vpop.permute.xlu0 %6863
        %v6865 = vsel %vm1673, %v6842, %v6844
        %v6866 = vsel %vm1673, %v6844, %v6846
        %v6867 = vsel %vm1673, %v6848, %v6850
        %v6868 = vsel %vm1673, %v6850, %v6852
        %v6869 = vsel %vm1673, %v6854, %v6856
        %v6870 = vsel %vm1673, %v6856, %v6858
        %v6871 = vsel %vm1673, %v6860, %v6862
        %v6872 = vsel %vm1673, %v6862, %v6864
        %v6882 = vsel %vm1988, %v6667, 0
        %v6885 = vsel %vm1988, %v6668, 0
        %v6888 = vsel %vm1988, %v6669, 0
        %v6891 = vsel %vm1988, %v6670, 0
        %6893 = vmatprep.subr.mxu0 %v6866
        %6894 = vmatpush1.msra.mxu0 %v6865
        %6895 = vmatprep.subr.mxu0 %v6868
        %6896 = vmatpush1.msra.mxu0 %v6867
        %6897 = vmatprep.subr.mxu0 %v6870
        %6898 = vmatpush1.msra.mxu0 %v6869
        %6899 = vmatprep.subr.mxu0 %v6872
        %6900 = vmatpush1.msra.mxu0 %v6871
        %6901 = vmatprep.subr.mxu0 0.0
        %6902 = vmatpush1.msra.mxu0 0.0
        %6903 = vmatprep.subr.mxu0 0.0
        %6904 = vmatpush1.msra.mxu0 0.0
        %6905 = vmatprep.subr.mxu0 0.0
        %6906 = vmatpush1.msra.mxu0 0.0
        %6907 = vmatprep.subr.mxu0 0.0
        %6908 = vmatpush1.msra.mxu0 0.0
        %6909 = vmatprep.subr.mxu0 0.0
        %6910 = vmatpush1.msra.mxu0 0.0
        %6911 = vmatprep.subr.mxu0 0.0
        %6912 = vmatpush1.msra.mxu0 0.0
        %6913 = vmatprep.subr.mxu0 0.0
        %6914 = vmatpush1.msra.mxu0 0.0
        %6915 = vmatprep.subr.mxu0 0.0
        %6916 = vmatpush1.msra.mxu0 0.0
        %6917 = vmatprep.subr.mxu0 0.0
        %6918 = vmatpush1.msra.mxu0 0.0
        %6919 = vmatprep.subr.mxu0 0.0
        %6920 = vmatpush1.msra.mxu0 0.0
        %6921 = vmatprep.subr.mxu0 0.0
        %6922 = vmatpush1.msra.mxu0 0.0
        %6923 = vmatprep.subr.mxu0 0.0
        %6924 = vmatpush1.msra.mxu0 0.0
        %6925 = vmatprep.subr.mxu0 0.0
        %6926 = vmatpush1.msra.mxu0 0.0
        %6927 = vmatprep.subr.mxu0 0.0
        %6928 = vmatpush1.msra.mxu0 0.0
        %6929 = vmatprep.subr.mxu0 0.0
        %6930 = vmatpush1.msra.mxu0 0.0
        %6931 = vmatprep.subr.mxu0 0.0
        %6932 = vmatpush1.msra.mxu0 0.0
        %6933 = vmatprep.subr.mxu0 0.0
        %6934 = vmatpush1.msra.mxu0 0.0
        %6935 = vmatprep.subr.mxu0 0.0
        %6936 = vmatpush1.msra.mxu0 0.0
        %6937 = vmatprep.subr.mxu0 0.0
        %6938 = vmatpush1.msra.mxu0 0.0
        %6939 = vmatprep.subr.mxu0 0.0
        %6940 = vmatpush1.msra.mxu0 0.0
        %6941 = vmatprep.subr.mxu0 0.0
        %6942 = vmatpush1.msra.mxu0 0.0
        %6943 = vmatprep.subr.mxu0 0.0
        %6944 = vmatpush1.msra.mxu0 0.0
        %6945 = vmatprep.subr.mxu0 0.0
        %6946 = vmatpush1.msra.mxu0 0.0
        %6947 = vmatprep.subr.mxu0 0.0
        %6948 = vmatpush1.msra.mxu0 0.0
        %6949 = vmatprep.subr.mxu0 0.0
        %6950 = vmatpush1.msra.mxu0 0.0
        %6951 = vmatprep.subr.mxu0 0.0
        %6952 = vmatpush1.msra.mxu0 0.0
        %6953 = vmatprep.subr.mxu0 0.0
        %6954 = vmatpush1.msra.mxu0 0.0
        %6955 = vmatprep.subr.mxu0 0.0
        %6956 = vmatpush1.msra.mxu0 0.0
        %6957 = vmatprep.mubr.f32.mxu0 0.0
        %6958 = vmatmul.mubr.f32.gmra.mrb[0].mxu0 %v6882
        %v6959 = vpop.f32.mrb[0].mxu0
        %v6960 = vadd.f32 %v6807, %v6959
        %v6961 = vpop.f32.mrb[0].mxu0
        %v6962 = vadd.f32 %v6809, %v6961
        %6963 = vmatprep.mubr.f32.mxu0 0.0
        %6964 = vmatmul.mubr.f32.gmra.mrb[0].mxu0 %v6885
        %v6965 = vpop.f32.mrb[0].mxu0
        %v6966 = vadd.f32 %v6813, %v6965
        %v6967 = vpop.f32.mrb[0].mxu0
        %v6968 = vadd.f32 %v6815, %v6967
        %6969 = vmatprep.mubr.f32.mxu0 0.0
        %6970 = vmatmul.mubr.f32.gmra.mrb[0].mxu0 %v6888
        %v6971 = vpop.f32.mrb[0].mxu0
        %v6972 = vadd.f32 %v6819, %v6971
        %v6973 = vpop.f32.mrb[0].mxu0
        %v6974 = vadd.f32 %v6821, %v6973
        %6975 = vmatprep.mubr.f32.mxu0 0.0
        %6976 = vmatmul.mubr.f32.gmra.mrb[0].mxu0 %v6891
        %v6977 = vpop.f32.mrb[0].mxu0
        %v6978 = vadd.f32 %v6825, %v6977
        %v6979 = vpop.f32.mrb[0].mxu0
        %v6980 = vadd.f32 %v6827, %v6979
        %6981 = vdwg.mxu0
        %v6982 = vmul.f32 %v6643, %v2244
        %v6983 = vmul.f32 %v6644, %v2247
        %v6984 = vmul.f32 %v6645, %v2246
        %v6985 = vmul.f32 %v6646, %v2244
        %v6986 = vmul.f32 %v6647, %v2247
        %v6987 = vmul.f32 %v6648, %v2246
        %v6988 = vmul.f32 %v6649, %v2244
        %v6989 = vmul.f32 %v6650, %v2247
        %v6990 = vmul.f32 %v6651, %v2246
        %v6991 = vmul.f32 %v6652, %v2244
        %v6992 = vmul.f32 %v6653, %v2247
        %v6993 = vmul.f32 %v6654, %v2246
        %s6994 = scalar_lea.vmem [#allocation9], 64
        %v6995 = vld [vmem:[%s6994] sm:$0xff]
        %v6996 = vld [vmem:[%s6994 + $0x8] sm:$0xff]
        %v6997 = vld [vmem:[%s6994 + $0x10] sm:$0xff]
        %v6998 = vld [vmem:[%s6994 + $0x18] sm:$0xff]
        %7011 = vrot.lane.b32.xlu0 %v6982, 15
        %v7012 = vpop.permute.xlu0 %7011
        %7013 = vrot.lane.b32.xlu0 %v6983, 15
        %v7014 = vpop.permute.xlu0 %7013
        %7015 = vrot.lane.b32.xlu0 %v6984, 15
        %v7016 = vpop.permute.xlu0 %7015
        %7017 = vrot.lane.b32.xlu0 %v6985, 15
        %v7018 = vpop.permute.xlu0 %7017
        %7019 = vrot.lane.b32.xlu0 %v6986, 15
        %v7020 = vpop.permute.xlu0 %7019
        %7021 = vrot.lane.b32.xlu0 %v6987, 15
        %v7022 = vpop.permute.xlu0 %7021
        %7023 = vrot.lane.b32.xlu0 %v6988, 15
        %v7024 = vpop.permute.xlu0 %7023
        %7025 = vrot.lane.b32.xlu0 %v6989, 15
        %v7026 = vpop.permute.xlu0 %7025
        %7027 = vrot.lane.b32.xlu0 %v6990, 15
        %v7028 = vpop.permute.xlu0 %7027
        %7029 = vrot.lane.b32.xlu0 %v6991, 15
        %v7030 = vpop.permute.xlu0 %7029
        %7031 = vrot.lane.b32.xlu0 %v6992, 15
        %v7032 = vpop.permute.xlu0 %7031
        %7033 = vrot.lane.b32.xlu0 %v6993, 15
        %v7034 = vpop.permute.xlu0 %7033
        %v7035 = vsel %vm1431, %v7012, %v7014
        %v7036 = vsel %vm1431, %v7014, %v7016
        %v7037 = vsel %vm1431, %v7018, %v7020
        %v7038 = vsel %vm1431, %v7020, %v7022
        %v7039 = vsel %vm1431, %v7024, %v7026
        %v7040 = vsel %vm1431, %v7026, %v7028
        %v7041 = vsel %vm1431, %v7030, %v7032
        %v7042 = vsel %vm1431, %v7032, %v7034
        %v7052 = vsel %vm1988, %v6995, 0
        %v7055 = vsel %vm1988, %v6996, 0
        %v7058 = vsel %vm1988, %v6997, 0
        %v7061 = vsel %vm1988, %v6998, 0
        %7063 = vmatprep.subr.mxu0 %v7036
        %7064 = vmatpush1.msra.mxu0 %v7035
        %7065 = vmatprep.subr.mxu0 %v7038
        %7066 = vmatpush1.msra.mxu0 %v7037
        %7067 = vmatprep.subr.mxu0 %v7040
        %7068 = vmatpush1.msra.mxu0 %v7039
        %7069 = vmatprep.subr.mxu0 %v7042
        %7070 = vmatpush1.msra.mxu0 %v7041
        %7071 = vmatprep.subr.mxu0 0.0
        %7072 = vmatpush1.msra.mxu0 0.0
        %7073 = vmatprep.subr.mxu0 0.0
        %7074 = vmatpush1.msra.mxu0 0.0
        %7075 = vmatprep.subr.mxu0 0.0
        %7076 = vmatpush1.msra.mxu0 0.0
        %7077 = vmatprep.subr.mxu0 0.0
        %7078 = vmatpush1.msra.mxu0 0.0
        %7079 = vmatprep.subr.mxu0 0.0
        %7080 = vmatpush1.msra.mxu0 0.0
        %7081 = vmatprep.subr.mxu0 0.0
        %7082 = vmatpush1.msra.mxu0 0.0
        %7083 = vmatprep.subr.mxu0 0.0
        %7084 = vmatpush1.msra.mxu0 0.0
        %7085 = vmatprep.subr.mxu0 0.0
        %7086 = vmatpush1.msra.mxu0 0.0
        %7087 = vmatprep.subr.mxu0 0.0
        %7088 = vmatpush1.msra.mxu0 0.0
        %7089 = vmatprep.subr.mxu0 0.0
        %7090 = vmatpush1.msra.mxu0 0.0
        %7091 = vmatprep.subr.mxu0 0.0
        %7092 = vmatpush1.msra.mxu0 0.0
        %7093 = vmatprep.subr.mxu0 0.0
        %7094 = vmatpush1.msra.mxu0 0.0
        %7095 = vmatprep.subr.mxu0 0.0
        %7096 = vmatpush1.msra.mxu0 0.0
        %7097 = vmatprep.subr.mxu0 0.0
        %7098 = vmatpush1.msra.mxu0 0.0
        %7099 = vmatprep.subr.mxu0 0.0
        %7100 = vmatpush1.msra.mxu0 0.0
        %7101 = vmatprep.subr.mxu0 0.0
        %7102 = vmatpush1.msra.mxu0 0.0
        %7103 = vmatprep.subr.mxu0 0.0
        %7104 = vmatpush1.msra.mxu0 0.0
        %7105 = vmatprep.subr.mxu0 0.0
        %7106 = vmatpush1.msra.mxu0 0.0
        %7107 = vmatprep.subr.mxu0 0.0
        %7108 = vmatpush1.msra.mxu0 0.0
        %7109 = vmatprep.subr.mxu0 0.0
        %7110 = vmatpush1.msra.mxu0 0.0
        %7111 = vmatprep.subr.mxu0 0.0
        %7112 = vmatpush1.msra.mxu0 0.0
        %7113 = vmatprep.subr.mxu0 0.0
        %7114 = vmatpush1.msra.mxu0 0.0
        %7115 = vmatprep.subr.mxu0 0.0
        %7116 = vmatpush1.msra.mxu0 0.0
        %7117 = vmatprep.subr.mxu0 0.0
        %7118 = vmatpush1.msra.mxu0 0.0
        %7119 = vmatprep.subr.mxu0 0.0
        %7120 = vmatpush1.msra.mxu0 0.0
        %7121 = vmatprep.subr.mxu0 0.0
        %7122 = vmatpush1.msra.mxu0 0.0
        %7123 = vmatprep.subr.mxu0 0.0
        %7124 = vmatpush1.msra.mxu0 0.0
        %7125 = vmatprep.subr.mxu0 0.0
        %7126 = vmatpush1.msra.mxu0 0.0
        %7127 = vmatprep.mubr.f32.mxu0 0.0
        %7128 = vmatmul.mubr.f32.gmra.mrb[0].mxu0 %v7052
        %v7129 = vpop.f32.mrb[0].mxu0
        %v7130 = vadd.f32 0.0, %v7129
        %v7131 = vpop.f32.mrb[0].mxu0
        %v7132 = vadd.f32 0.0, %v7131
        %7133 = vmatprep.mubr.f32.mxu0 0.0
        %7134 = vmatmul.mubr.f32.gmra.mrb[0].mxu0 %v7055
        %v7135 = vpop.f32.mrb[0].mxu0
        %v7136 = vadd.f32 0.0, %v7135
        %v7137 = vpop.f32.mrb[0].mxu0
        %v7138 = vadd.f32 0.0, %v7137
        %7139 = vmatprep.mubr.f32.mxu0 0.0
        %7140 = vmatmul.mubr.f32.gmra.mrb[0].mxu0 %v7058
        %v7141 = vpop.f32.mrb[0].mxu0
        %v7142 = vadd.f32 0.0, %v7141
        %v7143 = vpop.f32.mrb[0].mxu0
        %v7144 = vadd.f32 0.0, %v7143
        %7145 = vmatprep.mubr.f32.mxu0 0.0
        %7146 = vmatmul.mubr.f32.gmra.mrb[0].mxu0 %v7061
        %v7147 = vpop.f32.mrb[0].mxu0
        %v7148 = vadd.f32 0.0, %v7147
        %v7149 = vpop.f32.mrb[0].mxu0
        %v7150 = vadd.f32 0.0, %v7149
        %7151 = vdwg.mxu0
        %v7152 = vadd.f32 %v6960, %v7130
        %v7153 = vadd.f32 %v6962, %v7132
        %v7154 = vadd.f32 %v6966, %v7136
        %v7155 = vadd.f32 %v6968, %v7138
        %v7156 = vadd.f32 %v6972, %v7142
        %v7157 = vadd.f32 %v6974, %v7144
        %v7158 = vadd.f32 %v6978, %v7148
        %v7159 = vadd.f32 %v6980, %v7150
        %v7160 = vmul.f32 %v6643, %v2430
        %v7161 = vmul.f32 %v6644, %v2433
        %v7162 = vmul.f32 %v6645, %v2432
        %v7163 = vmul.f32 %v6646, %v2430
        %v7164 = vmul.f32 %v6647, %v2433
        %v7165 = vmul.f32 %v6648, %v2432
        %v7166 = vmul.f32 %v6649, %v2430
        %v7167 = vmul.f32 %v6650, %v2433
        %v7168 = vmul.f32 %v6651, %v2432
        %v7169 = vmul.f32 %v6652, %v2430
        %v7170 = vmul.f32 %v6653, %v2433
        %v7171 = vmul.f32 %v6654, %v2432
        %s7172 = scalar_lea.vmem [#allocation9], 96
        %v7173 = vld [vmem:[%s7172] sm:$0xff]
        %v7174 = vld [vmem:[%s7172 + $0x8] sm:$0xff]
        %v7175 = vld [vmem:[%s7172 + $0x10] sm:$0xff]
        %v7176 = vld [vmem:[%s7172 + $0x18] sm:$0xff]
        %7189 = vrot.lane.b32.xlu0 %v7160, 1
        %v7190 = vpop.permute.xlu0 %7189
        %7191 = vrot.lane.b32.xlu0 %v7161, 1
        %v7192 = vpop.permute.xlu0 %7191
        %7193 = vrot.lane.b32.xlu0 %v7162, 1
        %v7194 = vpop.permute.xlu0 %7193
        %7195 = vrot.lane.b32.xlu0 %v7163, 1
        %v7196 = vpop.permute.xlu0 %7195
        %7197 = vrot.lane.b32.xlu0 %v7164, 1
        %v7198 = vpop.permute.xlu0 %7197
        %7199 = vrot.lane.b32.xlu0 %v7165, 1
        %v7200 = vpop.permute.xlu0 %7199
        %7201 = vrot.lane.b32.xlu0 %v7166, 1
        %v7202 = vpop.permute.xlu0 %7201
        %7203 = vrot.lane.b32.xlu0 %v7167, 1
        %v7204 = vpop.permute.xlu0 %7203
        %7205 = vrot.lane.b32.xlu0 %v7168, 1
        %v7206 = vpop.permute.xlu0 %7205
        %7207 = vrot.lane.b32.xlu0 %v7169, 1
        %v7208 = vpop.permute.xlu0 %7207
        %7209 = vrot.lane.b32.xlu0 %v7170, 1
        %v7210 = vpop.permute.xlu0 %7209
        %7211 = vrot.lane.b32.xlu0 %v7171, 1
        %v7212 = vpop.permute.xlu0 %7211
        %v7213 = vsel %vm1302, %v7190, %v7192
        %v7214 = vsel %vm1302, %v7192, %v7194
        %v7215 = vsel %vm1302, %v7196, %v7198
        %v7216 = vsel %vm1302, %v7198, %v7200
        %v7217 = vsel %vm1302, %v7202, %v7204
        %v7218 = vsel %vm1302, %v7204, %v7206
        %v7219 = vsel %vm1302, %v7208, %v7210
        %v7220 = vsel %vm1302, %v7210, %v7212
        %v7230 = vsel %vm1988, %v7173, 0
        %v7233 = vsel %vm1988, %v7174, 0
        %v7236 = vsel %vm1988, %v7175, 0
        %v7239 = vsel %vm1988, %v7176, 0
        %7241 = vmatprep.subr.mxu0 %v7214
        %7242 = vmatpush1.msra.mxu0 %v7213
        %7243 = vmatprep.subr.mxu0 %v7216
        %7244 = vmatpush1.msra.mxu0 %v7215
        %7245 = vmatprep.subr.mxu0 %v7218
        %7246 = vmatpush1.msra.mxu0 %v7217
        %7247 = vmatprep.subr.mxu0 %v7220
        %7248 = vmatpush1.msra.mxu0 %v7219
        %7249 = vmatprep.subr.mxu0 0.0
        %7250 = vmatpush1.msra.mxu0 0.0
        %7251 = vmatprep.subr.mxu0 0.0
        %7252 = vmatpush1.msra.mxu0 0.0
        %7253 = vmatprep.subr.mxu0 0.0
        %7254 = vmatpush1.msra.mxu0 0.0
        %7255 = vmatprep.subr.mxu0 0.0
        %7256 = vmatpush1.msra.mxu0 0.0
        %7257 = vmatprep.subr.mxu0 0.0
        %7258 = vmatpush1.msra.mxu0 0.0
        %7259 = vmatprep.subr.mxu0 0.0
        %7260 = vmatpush1.msra.mxu0 0.0
        %7261 = vmatprep.subr.mxu0 0.0
        %7262 = vmatpush1.msra.mxu0 0.0
        %7263 = vmatprep.subr.mxu0 0.0
        %7264 = vmatpush1.msra.mxu0 0.0
        %7265 = vmatprep.subr.mxu0 0.0
        %7266 = vmatpush1.msra.mxu0 0.0
        %7267 = vmatprep.subr.mxu0 0.0
        %7268 = vmatpush1.msra.mxu0 0.0
        %7269 = vmatprep.subr.mxu0 0.0
        %7270 = vmatpush1.msra.mxu0 0.0
        %7271 = vmatprep.subr.mxu0 0.0
        %7272 = vmatpush1.msra.mxu0 0.0
        %7273 = vmatprep.subr.mxu0 0.0
        %7274 = vmatpush1.msra.mxu0 0.0
        %7275 = vmatprep.subr.mxu0 0.0
        %7276 = vmatpush1.msra.mxu0 0.0
        %7277 = vmatprep.subr.mxu0 0.0
        %7278 = vmatpush1.msra.mxu0 0.0
        %7279 = vmatprep.subr.mxu0 0.0
        %7280 = vmatpush1.msra.mxu0 0.0
        %7281 = vmatprep.subr.mxu0 0.0
        %7282 = vmatpush1.msra.mxu0 0.0
        %7283 = vmatprep.subr.mxu0 0.0
        %7284 = vmatpush1.msra.mxu0 0.0
        %7285 = vmatprep.subr.mxu0 0.0
        %7286 = vmatpush1.msra.mxu0 0.0
        %7287 = vmatprep.subr.mxu0 0.0
        %7288 = vmatpush1.msra.mxu0 0.0
        %7289 = vmatprep.subr.mxu0 0.0
        %7290 = vmatpush1.msra.mxu0 0.0
        %7291 = vmatprep.subr.mxu0 0.0
        %7292 = vmatpush1.msra.mxu0 0.0
        %7293 = vmatprep.subr.mxu0 0.0
        %7294 = vmatpush1.msra.mxu0 0.0
        %7295 = vmatprep.subr.mxu0 0.0
        %7296 = vmatpush1.msra.mxu0 0.0
        %7297 = vmatprep.subr.mxu0 0.0
        %7298 = vmatpush1.msra.mxu0 0.0
        %7299 = vmatprep.subr.mxu0 0.0
        %7300 = vmatpush1.msra.mxu0 0.0
        %7301 = vmatprep.subr.mxu0 0.0
        %7302 = vmatpush1.msra.mxu0 0.0
        %7303 = vmatprep.subr.mxu0 0.0
        %7304 = vmatpush1.msra.mxu0 0.0
        %7305 = vmatprep.mubr.f32.mxu0 0.0
        %7306 = vmatmul.mubr.f32.gmra.mrb[0].mxu0 %v7230
        %v7307 = vpop.f32.mrb[0].mxu0
        %v7308 = vadd.f32 0.0, %v7307
        %v7309 = vpop.f32.mrb[0].mxu0
        %v7310 = vadd.f32 0.0, %v7309
        %7311 = vmatprep.mubr.f32.mxu0 0.0
        %7312 = vmatmul.mubr.f32.gmra.mrb[0].mxu0 %v7233
        %v7313 = vpop.f32.mrb[0].mxu0
        %v7314 = vadd.f32 0.0, %v7313
        %v7315 = vpop.f32.mrb[0].mxu0
        %v7316 = vadd.f32 0.0, %v7315
        %7317 = vmatprep.mubr.f32.mxu0 0.0
        %7318 = vmatmul.mubr.f32.gmra.mrb[0].mxu0 %v7236
        %v7319 = vpop.f32.mrb[0].mxu0
        %v7320 = vadd.f32 0.0, %v7319
        %v7321 = vpop.f32.mrb[0].mxu0
        %v7322 = vadd.f32 0.0, %v7321
        %7323 = vmatprep.mubr.f32.mxu0 0.0
        %7324 = vmatmul.mubr.f32.gmra.mrb[0].mxu0 %v7239
        %v7325 = vpop.f32.mrb[0].mxu0
        %v7326 = vadd.f32 0.0, %v7325
        %v7327 = vpop.f32.mrb[0].mxu0
        %v7328 = vadd.f32 0.0, %v7327
        %7329 = vdwg.mxu0
        %v7330 = vadd.f32 %v7152, %v7308
        %v7331 = vadd.f32 %v7153, %v7310
        %v7332 = vadd.f32 %v7154, %v7314
        %v7333 = vadd.f32 %v7155, %v7316
        %v7334 = vadd.f32 %v7156, %v7320
        %v7335 = vadd.f32 %v7157, %v7322
        %v7336 = vadd.f32 %v7158, %v7326
        %v7337 = vadd.f32 %v7159, %v7328
        %s7338 = scalar_lea.vmem [#allocation9], 128
        %v7339 = vld [vmem:[%s7338] sm:$0xff]
        %v7340 = vld [vmem:[%s7338 + $0x8] sm:$0xff]
        %v7341 = vld [vmem:[%s7338 + $0x10] sm:$0xff]
        %v7342 = vld [vmem:[%s7338 + $0x18] sm:$0xff]
        %v7344 = vsel %vm1988, %v7339, 0
        %v7347 = vsel %vm1988, %v7340, 0
        %v7350 = vsel %vm1988, %v7341, 0
        %v7353 = vsel %vm1988, %v7342, 0
        %7355 = vmatprep.subr.mxu0 %v6645
        %7356 = vmatpush1.msra.mxu0 %v6644
        %7357 = vmatprep.subr.mxu0 %v6648
        %7358 = vmatpush1.msra.mxu0 %v6647
        %7359 = vmatprep.subr.mxu0 %v6651
        %7360 = vmatpush1.msra.mxu0 %v6650
        %7361 = vmatprep.subr.mxu0 %v6654
        %7362 = vmatpush1.msra.mxu0 %v6653
        %7363 = vmatprep.subr.mxu0 0.0
        %7364 = vmatpush1.msra.mxu0 0.0
        %7365 = vmatprep.subr.mxu0 0.0
        %7366 = vmatpush1.msra.mxu0 0.0
        %7367 = vmatprep.subr.mxu0 0.0
        %7368 = vmatpush1.msra.mxu0 0.0
        %7369 = vmatprep.subr.mxu0 0.0
        %7370 = vmatpush1.msra.mxu0 0.0
        %7371 = vmatprep.subr.mxu0 0.0
        %7372 = vmatpush1.msra.mxu0 0.0
        %7373 = vmatprep.subr.mxu0 0.0
        %7374 = vmatpush1.msra.mxu0 0.0
        %7375 = vmatprep.subr.mxu0 0.0
        %7376 = vmatpush1.msra.mxu0 0.0
        %7377 = vmatprep.subr.mxu0 0.0
        %7378 = vmatpush1.msra.mxu0 0.0
        %7379 = vmatprep.subr.mxu0 0.0
        %7380 = vmatpush1.msra.mxu0 0.0
        %7381 = vmatprep.subr.mxu0 0.0
        %7382 = vmatpush1.msra.mxu0 0.0
        %7383 = vmatprep.subr.mxu0 0.0
        %7384 = vmatpush1.msra.mxu0 0.0
        %7385 = vmatprep.subr.mxu0 0.0
        %7386 = vmatpush1.msra.mxu0 0.0
        %7387 = vmatprep.subr.mxu0 0.0
        %7388 = vmatpush1.msra.mxu0 0.0
        %7389 = vmatprep.subr.mxu0 0.0
        %7390 = vmatpush1.msra.mxu0 0.0
        %7391 = vmatprep.subr.mxu0 0.0
        %7392 = vmatpush1.msra.mxu0 0.0
        %7393 = vmatprep.subr.mxu0 0.0
        %7394 = vmatpush1.msra.mxu0 0.0
        %7395 = vmatprep.subr.mxu0 0.0
        %7396 = vmatpush1.msra.mxu0 0.0
        %7397 = vmatprep.subr.mxu0 0.0
        %7398 = vmatpush1.msra.mxu0 0.0
        %7399 = vmatprep.subr.mxu0 0.0
        %7400 = vmatpush1.msra.mxu0 0.0
        %7401 = vmatprep.subr.mxu0 0.0
        %7402 = vmatpush1.msra.mxu0 0.0
        %7403 = vmatprep.subr.mxu0 0.0
        %7404 = vmatpush1.msra.mxu0 0.0
        %7405 = vmatprep.subr.mxu0 0.0
        %7406 = vmatpush1.msra.mxu0 0.0
        %7407 = vmatprep.subr.mxu0 0.0
        %7408 = vmatpush1.msra.mxu0 0.0
        %7409 = vmatprep.subr.mxu0 0.0
        %7410 = vmatpush1.msra.mxu0 0.0
        %7411 = vmatprep.subr.mxu0 0.0
        %7412 = vmatpush1.msra.mxu0 0.0
        %7413 = vmatprep.subr.mxu0 0.0
        %7414 = vmatpush1.msra.mxu0 0.0
        %7415 = vmatprep.subr.mxu0 0.0
        %7416 = vmatpush1.msra.mxu0 0.0
        %7417 = vmatprep.subr.mxu0 0.0
        %7418 = vmatpush1.msra.mxu0 0.0
        %7419 = vmatprep.mubr.f32.mxu0 0.0
        %7420 = vmatmul.mubr.f32.gmra.mrb[0].mxu0 %v7344
        %v7421 = vpop.f32.mrb[0].mxu0
        %v7422 = vadd.f32 0.0, %v7421
        %v7423 = vpop.f32.mrb[0].mxu0
        %v7424 = vadd.f32 0.0, %v7423
        %7425 = vmatprep.mubr.f32.mxu0 0.0
        %7426 = vmatmul.mubr.f32.gmra.mrb[0].mxu0 %v7347
        %v7427 = vpop.f32.mrb[0].mxu0
        %v7428 = vadd.f32 0.0, %v7427
        %v7429 = vpop.f32.mrb[0].mxu0
        %v7430 = vadd.f32 0.0, %v7429
        %7431 = vmatprep.mubr.f32.mxu0 0.0
        %7432 = vmatmul.mubr.f32.gmra.mrb[0].mxu0 %v7350
        %v7433 = vpop.f32.mrb[0].mxu0
        %v7434 = vadd.f32 0.0, %v7433
        %v7435 = vpop.f32.mrb[0].mxu0
        %v7436 = vadd.f32 0.0, %v7435
        %7437 = vmatprep.mubr.f32.mxu0 0.0
        %7438 = vmatmul.mubr.f32.gmra.mrb[0].mxu0 %v7353
        %v7439 = vpop.f32.mrb[0].mxu0
        %v7440 = vadd.f32 0.0, %v7439
        %v7441 = vpop.f32.mrb[0].mxu0
        %v7442 = vadd.f32 0.0, %v7441
        %7443 = vdwg.mxu0
        %v7444 = vadd.f32 %v7330, %v7422
        %v7445 = vadd.f32 %v7331, %v7424
        %v7446 = vadd.f32 %v7332, %v7428
        %v7447 = vadd.f32 %v7333, %v7430
        %v7448 = vadd.f32 %v7334, %v7434
        %v7449 = vadd.f32 %v7335, %v7436
        %v7450 = vadd.f32 %v7336, %v7440
        %v7451 = vadd.f32 %v7337, %v7442
        %v7452 = vld [vmem:[#allocation2 + $0x8] sm:$0xff]
        %v7453 = vld [vmem:[#allocation2 + $0x10] sm:$0xff]
        %v7454 = vld [vmem:[#allocation2 + $0x18] sm:$0xff]
        %v7455 = vld [vmem:[#allocation2 + $0x28] sm:$0xff]
        %v7456 = vld [vmem:[#allocation2 + $0x30] sm:$0xff]
        %v7457 = vld [vmem:[#allocation2 + $0x38] sm:$0xff]
        %v7458 = vld [vmem:[#allocation2 + $0x48] sm:$0xff]
        %v7459 = vld [vmem:[#allocation2 + $0x50] sm:$0xff]
        %v7460 = vld [vmem:[#allocation2 + $0x58] sm:$0xff]
        %v7461 = vld [vmem:[#allocation2 + $0x68] sm:$0xff]
        %v7462 = vld [vmem:[#allocation2 + $0x70] sm:$0xff]
        %v7463 = vld [vmem:[#allocation2 + $0x78] sm:$0xff]
        %v7464 = vmul.f32 %v7452, %v2742
        %v7465 = vmul.f32 %v7453, %v2745
        %v7466 = vmul.f32 %v7454, %v2744
        %v7467 = vmul.f32 %v7455, %v2742
        %v7468 = vmul.f32 %v7456, %v2745
        %v7469 = vmul.f32 %v7457, %v2744
        %v7470 = vmul.f32 %v7458, %v2742
        %v7471 = vmul.f32 %v7459, %v2745
        %v7472 = vmul.f32 %v7460, %v2744
        %v7473 = vmul.f32 %v7461, %v2742
        %v7474 = vmul.f32 %v7462, %v2745
        %v7475 = vmul.f32 %v7463, %v2744
        %s7476 = scalar_lea.vmem [#allocation9], 160
        %v7477 = vld [vmem:[%s7476] sm:$0xff]
        %v7478 = vld [vmem:[%s7476 + $0x8] sm:$0xff]
        %v7479 = vld [vmem:[%s7476 + $0x10] sm:$0xff]
        %v7480 = vld [vmem:[%s7476 + $0x18] sm:$0xff]
        %7493 = vrot.lane.b32.xlu0 %v7464, 127
        %v7494 = vpop.permute.xlu0 %7493
        %7495 = vrot.lane.b32.xlu0 %v7465, 127
        %v7496 = vpop.permute.xlu0 %7495
        %7497 = vrot.lane.b32.xlu0 %v7466, 127
        %v7498 = vpop.permute.xlu0 %7497
        %7499 = vrot.lane.b32.xlu0 %v7467, 127
        %v7500 = vpop.permute.xlu0 %7499
        %7501 = vrot.lane.b32.xlu0 %v7468, 127
        %v7502 = vpop.permute.xlu0 %7501
        %7503 = vrot.lane.b32.xlu0 %v7469, 127
        %v7504 = vpop.permute.xlu0 %7503
        %7505 = vrot.lane.b32.xlu0 %v7470, 127
        %v7506 = vpop.permute.xlu0 %7505
        %7507 = vrot.lane.b32.xlu0 %v7471, 127
        %v7508 = vpop.permute.xlu0 %7507
        %7509 = vrot.lane.b32.xlu0 %v7472, 127
        %v7510 = vpop.permute.xlu0 %7509
        %7511 = vrot.lane.b32.xlu0 %v7473, 127
        %v7512 = vpop.permute.xlu0 %7511
        %7513 = vrot.lane.b32.xlu0 %v7474, 127
        %v7514 = vpop.permute.xlu0 %7513
        %7515 = vrot.lane.b32.xlu0 %v7475, 127
        %v7516 = vpop.permute.xlu0 %7515
        %v7517 = vsel %vm904, %v7494, %v7496
        %v7518 = vsel %vm904, %v7496, %v7498
        %v7519 = vsel %vm904, %v7500, %v7502
        %v7520 = vsel %vm904, %v7502, %v7504
        %v7521 = vsel %vm904, %v7506, %v7508
        %v7522 = vsel %vm904, %v7508, %v7510
        %v7523 = vsel %vm904, %v7512, %v7514
        %v7524 = vsel %vm904, %v7514, %v7516
        %v7534 = vsel %vm1988, %v7477, 0
        %v7537 = vsel %vm1988, %v7478, 0
        %v7540 = vsel %vm1988, %v7479, 0
        %v7543 = vsel %vm1988, %v7480, 0
        %7545 = vmatprep.subr.mxu0 %v7518
        %7546 = vmatpush1.msra.mxu0 %v7517
        %7547 = vmatprep.subr.mxu0 %v7520
        %7548 = vmatpush1.msra.mxu0 %v7519
        %7549 = vmatprep.subr.mxu0 %v7522
        %7550 = vmatpush1.msra.mxu0 %v7521
        %7551 = vmatprep.subr.mxu0 %v7524
        %7552 = vmatpush1.msra.mxu0 %v7523
        %7553 = vmatprep.subr.mxu0 0.0
        %7554 = vmatpush1.msra.mxu0 0.0
        %7555 = vmatprep.subr.mxu0 0.0
        %7556 = vmatpush1.msra.mxu0 0.0
        %7557 = vmatprep.subr.mxu0 0.0
        %7558 = vmatpush1.msra.mxu0 0.0
        %7559 = vmatprep.subr.mxu0 0.0
        %7560 = vmatpush1.msra.mxu0 0.0
        %7561 = vmatprep.subr.mxu0 0.0
        %7562 = vmatpush1.msra.mxu0 0.0
        %7563 = vmatprep.subr.mxu0 0.0
        %7564 = vmatpush1.msra.mxu0 0.0
        %7565 = vmatprep.subr.mxu0 0.0
        %7566 = vmatpush1.msra.mxu0 0.0
        %7567 = vmatprep.subr.mxu0 0.0
        %7568 = vmatpush1.msra.mxu0 0.0
        %7569 = vmatprep.subr.mxu0 0.0
        %7570 = vmatpush1.msra.mxu0 0.0
        %7571 = vmatprep.subr.mxu0 0.0
        %7572 = vmatpush1.msra.mxu0 0.0
        %7573 = vmatprep.subr.mxu0 0.0
        %7574 = vmatpush1.msra.mxu0 0.0
        %7575 = vmatprep.subr.mxu0 0.0
        %7576 = vmatpush1.msra.mxu0 0.0
        %7577 = vmatprep.subr.mxu0 0.0
        %7578 = vmatpush1.msra.mxu0 0.0
        %7579 = vmatprep.subr.mxu0 0.0
        %7580 = vmatpush1.msra.mxu0 0.0
        %7581 = vmatprep.subr.mxu0 0.0
        %7582 = vmatpush1.msra.mxu0 0.0
        %7583 = vmatprep.subr.mxu0 0.0
        %7584 = vmatpush1.msra.mxu0 0.0
        %7585 = vmatprep.subr.mxu0 0.0
        %7586 = vmatpush1.msra.mxu0 0.0
        %7587 = vmatprep.subr.mxu0 0.0
        %7588 = vmatpush1.msra.mxu0 0.0
        %7589 = vmatprep.subr.mxu0 0.0
        %7590 = vmatpush1.msra.mxu0 0.0
        %7591 = vmatprep.subr.mxu0 0.0
        %7592 = vmatpush1.msra.mxu0 0.0
        %7593 = vmatprep.subr.mxu0 0.0
        %7594 = vmatpush1.msra.mxu0 0.0
        %7595 = vmatprep.subr.mxu0 0.0
        %7596 = vmatpush1.msra.mxu0 0.0
        %7597 = vmatprep.subr.mxu0 0.0
        %7598 = vmatpush1.msra.mxu0 0.0
        %7599 = vmatprep.subr.mxu0 0.0
        %7600 = vmatpush1.msra.mxu0 0.0
        %7601 = vmatprep.subr.mxu0 0.0
        %7602 = vmatpush1.msra.mxu0 0.0
        %7603 = vmatprep.subr.mxu0 0.0
        %7604 = vmatpush1.msra.mxu0 0.0
        %7605 = vmatprep.subr.mxu0 0.0
        %7606 = vmatpush1.msra.mxu0 0.0
        %7607 = vmatprep.subr.mxu0 0.0
        %7608 = vmatpush1.msra.mxu0 0.0
        %7609 = vmatprep.mubr.f32.mxu0 0.0
        %7610 = vmatmul.mubr.f32.gmra.mrb[0].mxu0 %v7534
        %v7611 = vpop.f32.mrb[0].mxu0
        %v7612 = vadd.f32 0.0, %v7611
        %v7613 = vpop.f32.mrb[0].mxu0
        %v7614 = vadd.f32 0.0, %v7613
        %7615 = vmatprep.mubr.f32.mxu0 0.0
        %7616 = vmatmul.mubr.f32.gmra.mrb[0].mxu0 %v7537
        %v7617 = vpop.f32.mrb[0].mxu0
        %v7618 = vadd.f32 0.0, %v7617
        %v7619 = vpop.f32.mrb[0].mxu0
        %v7620 = vadd.f32 0.0, %v7619
        %7621 = vmatprep.mubr.f32.mxu0 0.0
        %7622 = vmatmul.mubr.f32.gmra.mrb[0].mxu0 %v7540
        %v7623 = vpop.f32.mrb[0].mxu0
        %v7624 = vadd.f32 0.0, %v7623
        %v7625 = vpop.f32.mrb[0].mxu0
        %v7626 = vadd.f32 0.0, %v7625
        %7627 = vmatprep.mubr.f32.mxu0 0.0
        %7628 = vmatmul.mubr.f32.gmra.mrb[0].mxu0 %v7543
        %v7629 = vpop.f32.mrb[0].mxu0
        %v7630 = vadd.f32 0.0, %v7629
        %v7631 = vpop.f32.mrb[0].mxu0
        %v7632 = vadd.f32 0.0, %v7631
        %7633 = vdwg.mxu0
        %v7634 = vadd.f32 %v7444, %v7612
        %v7635 = vadd.f32 %v7445, %v7614
        %v7636 = vadd.f32 %v7446, %v7618
        %v7637 = vadd.f32 %v7447, %v7620
        %v7638 = vadd.f32 %v7448, %v7624
        %v7639 = vadd.f32 %v7449, %v7626
        %v7640 = vadd.f32 %v7450, %v7630
        %v7641 = vadd.f32 %v7451, %v7632
        %v7642 = vmul.f32 %v7452, %v2928
        %v7643 = vmul.f32 %v7453, %v2931
        %v7644 = vmul.f32 %v7454, %v2930
        %v7645 = vmul.f32 %v7455, %v2928
        %v7646 = vmul.f32 %v7456, %v2931
        %v7647 = vmul.f32 %v7457, %v2930
        %v7648 = vmul.f32 %v7458, %v2928
        %v7649 = vmul.f32 %v7459, %v2931
        %v7650 = vmul.f32 %v7460, %v2930
        %v7651 = vmul.f32 %v7461, %v2928
        %v7652 = vmul.f32 %v7462, %v2931
        %v7653 = vmul.f32 %v7463, %v2930
        %s7654 = scalar_lea.vmem [#allocation9], 192
        %v7655 = vld [vmem:[%s7654] sm:$0xff]
        %v7656 = vld [vmem:[%s7654 + $0x8] sm:$0xff]
        %v7657 = vld [vmem:[%s7654 + $0x10] sm:$0xff]
        %v7658 = vld [vmem:[%s7654 + $0x18] sm:$0xff]
        %7671 = vrot.lane.b32.xlu0 %v7642, 113
        %v7672 = vpop.permute.xlu0 %7671
        %7673 = vrot.lane.b32.xlu0 %v7643, 113
        %v7674 = vpop.permute.xlu0 %7673
        %7675 = vrot.lane.b32.xlu0 %v7644, 113
        %v7676 = vpop.permute.xlu0 %7675
        %7677 = vrot.lane.b32.xlu0 %v7645, 113
        %v7678 = vpop.permute.xlu0 %7677
        %7679 = vrot.lane.b32.xlu0 %v7646, 113
        %v7680 = vpop.permute.xlu0 %7679
        %7681 = vrot.lane.b32.xlu0 %v7647, 113
        %v7682 = vpop.permute.xlu0 %7681
        %7683 = vrot.lane.b32.xlu0 %v7648, 113
        %v7684 = vpop.permute.xlu0 %7683
        %7685 = vrot.lane.b32.xlu0 %v7649, 113
        %v7686 = vpop.permute.xlu0 %7685
        %7687 = vrot.lane.b32.xlu0 %v7650, 113
        %v7688 = vpop.permute.xlu0 %7687
        %7689 = vrot.lane.b32.xlu0 %v7651, 113
        %v7690 = vpop.permute.xlu0 %7689
        %7691 = vrot.lane.b32.xlu0 %v7652, 113
        %v7692 = vpop.permute.xlu0 %7691
        %7693 = vrot.lane.b32.xlu0 %v7653, 113
        %v7694 = vpop.permute.xlu0 %7693
        %v7695 = vsel %vm957, %v7672, %v7674
        %v7696 = vsel %vm957, %v7674, %v7676
        %v7697 = vsel %vm957, %v7678, %v7680
        %v7698 = vsel %vm957, %v7680, %v7682
        %v7699 = vsel %vm957, %v7684, %v7686
        %v7700 = vsel %vm957, %v7686, %v7688
        %v7701 = vsel %vm957, %v7690, %v7692
        %v7702 = vsel %vm957, %v7692, %v7694
        %v7712 = vsel %vm1988, %v7655, 0
        %v7715 = vsel %vm1988, %v7656, 0
        %v7718 = vsel %vm1988, %v7657, 0
        %v7721 = vsel %vm1988, %v7658, 0
        %7723 = vmatprep.subr.mxu0 %v7696
        %7724 = vmatpush1.msra.mxu0 %v7695
        %7725 = vmatprep.subr.mxu0 %v7698
        %7726 = vmatpush1.msra.mxu0 %v7697
        %7727 = vmatprep.subr.mxu0 %v7700
        %7728 = vmatpush1.msra.mxu0 %v7699
        %7729 = vmatprep.subr.mxu0 %v7702
        %7730 = vmatpush1.msra.mxu0 %v7701
        %7731 = vmatprep.subr.mxu0 0.0
        %7732 = vmatpush1.msra.mxu0 0.0
        %7733 = vmatprep.subr.mxu0 0.0
        %7734 = vmatpush1.msra.mxu0 0.0
        %7735 = vmatprep.subr.mxu0 0.0
        %7736 = vmatpush1.msra.mxu0 0.0
        %7737 = vmatprep.subr.mxu0 0.0
        %7738 = vmatpush1.msra.mxu0 0.0
        %7739 = vmatprep.subr.mxu0 0.0
        %7740 = vmatpush1.msra.mxu0 0.0
        %7741 = vmatprep.subr.mxu0 0.0
        %7742 = vmatpush1.msra.mxu0 0.0
        %7743 = vmatprep.subr.mxu0 0.0
        %7744 = vmatpush1.msra.mxu0 0.0
        %7745 = vmatprep.subr.mxu0 0.0
        %7746 = vmatpush1.msra.mxu0 0.0
        %7747 = vmatprep.subr.mxu0 0.0
        %7748 = vmatpush1.msra.mxu0 0.0
        %7749 = vmatprep.subr.mxu0 0.0
        %7750 = vmatpush1.msra.mxu0 0.0
        %7751 = vmatprep.subr.mxu0 0.0
        %7752 = vmatpush1.msra.mxu0 0.0
        %7753 = vmatprep.subr.mxu0 0.0
        %7754 = vmatpush1.msra.mxu0 0.0
        %7755 = vmatprep.subr.mxu0 0.0
        %7756 = vmatpush1.msra.mxu0 0.0
        %7757 = vmatprep.subr.mxu0 0.0
        %7758 = vmatpush1.msra.mxu0 0.0
        %7759 = vmatprep.subr.mxu0 0.0
        %7760 = vmatpush1.msra.mxu0 0.0
        %7761 = vmatprep.subr.mxu0 0.0
        %7762 = vmatpush1.msra.mxu0 0.0
        %7763 = vmatprep.subr.mxu0 0.0
        %7764 = vmatpush1.msra.mxu0 0.0
        %7765 = vmatprep.subr.mxu0 0.0
        %7766 = vmatpush1.msra.mxu0 0.0
        %7767 = vmatprep.subr.mxu0 0.0
        %7768 = vmatpush1.msra.mxu0 0.0
        %7769 = vmatprep.subr.mxu0 0.0
        %7770 = vmatpush1.msra.mxu0 0.0
        %7771 = vmatprep.subr.mxu0 0.0
        %7772 = vmatpush1.msra.mxu0 0.0
        %7773 = vmatprep.subr.mxu0 0.0
        %7774 = vmatpush1.msra.mxu0 0.0
        %7775 = vmatprep.subr.mxu0 0.0
        %7776 = vmatpush1.msra.mxu0 0.0
        %7777 = vmatprep.subr.mxu0 0.0
        %7778 = vmatpush1.msra.mxu0 0.0
        %7779 = vmatprep.subr.mxu0 0.0
        %7780 = vmatpush1.msra.mxu0 0.0
        %7781 = vmatprep.subr.mxu0 0.0
        %7782 = vmatpush1.msra.mxu0 0.0
        %7783 = vmatprep.subr.mxu0 0.0
        %7784 = vmatpush1.msra.mxu0 0.0
        %7785 = vmatprep.subr.mxu0 0.0
        %7786 = vmatpush1.msra.mxu0 0.0
        %7787 = vmatprep.mubr.f32.mxu0 0.0
        %7788 = vmatmul.mubr.f32.gmra.mrb[0].mxu0 %v7712
        %v7789 = vpop.f32.mrb[0].mxu0
        %v7790 = vadd.f32 0.0, %v7789
        %v7791 = vpop.f32.mrb[0].mxu0
        %v7792 = vadd.f32 0.0, %v7791
        %7793 = vmatprep.mubr.f32.mxu0 0.0
        %7794 = vmatmul.mubr.f32.gmra.mrb[0].mxu0 %v7715
        %v7795 = vpop.f32.mrb[0].mxu0
        %v7796 = vadd.f32 0.0, %v7795
        %v7797 = vpop.f32.mrb[0].mxu0
        %v7798 = vadd.f32 0.0, %v7797
        %7799 = vmatprep.mubr.f32.mxu0 0.0
        %7800 = vmatmul.mubr.f32.gmra.mrb[0].mxu0 %v7718
        %v7801 = vpop.f32.mrb[0].mxu0
        %v7802 = vadd.f32 0.0, %v7801
        %v7803 = vpop.f32.mrb[0].mxu0
        %v7804 = vadd.f32 0.0, %v7803
        %7805 = vmatprep.mubr.f32.mxu0 0.0
        %7806 = vmatmul.mubr.f32.gmra.mrb[0].mxu0 %v7721
        %v7807 = vpop.f32.mrb[0].mxu0
        %v7808 = vadd.f32 0.0, %v7807
        %v7809 = vpop.f32.mrb[0].mxu0
        %v7810 = vadd.f32 0.0, %v7809
        %7811 = vdwg.mxu0
        %v7812 = vadd.f32 %v7634, %v7790
        %v7813 = vadd.f32 %v7635, %v7792
        %v7814 = vadd.f32 %v7636, %v7796
        %v7815 = vadd.f32 %v7637, %v7798
        %v7816 = vadd.f32 %v7638, %v7802
        %v7817 = vadd.f32 %v7639, %v7804
        %v7818 = vadd.f32 %v7640, %v7808
        %v7819 = vadd.f32 %v7641, %v7810
        %s7820 = scalar_lea.vmem [#allocation9], 224
        %v7821 = vld [vmem:[%s7820] sm:$0xff]
        %v7822 = vld [vmem:[%s7820 + $0x8] sm:$0xff]
        %v7823 = vld [vmem:[%s7820 + $0x10] sm:$0xff]
        %v7824 = vld [vmem:[%s7820 + $0x18] sm:$0xff]
        %7837 = vrot.lane.b32.xlu0 %v7452, 112
        %v7838 = vpop.permute.xlu0 %7837
        %7839 = vrot.lane.b32.xlu0 %v7453, 112
        %v7840 = vpop.permute.xlu0 %7839
        %7841 = vrot.lane.b32.xlu0 %v7454, 112
        %v7842 = vpop.permute.xlu0 %7841
        %7843 = vrot.lane.b32.xlu0 %v7455, 112
        %v7844 = vpop.permute.xlu0 %7843
        %7845 = vrot.lane.b32.xlu0 %v7456, 112
        %v7846 = vpop.permute.xlu0 %7845
        %7847 = vrot.lane.b32.xlu0 %v7457, 112
        %v7848 = vpop.permute.xlu0 %7847
        %7849 = vrot.lane.b32.xlu0 %v7458, 112
        %v7850 = vpop.permute.xlu0 %7849
        %7851 = vrot.lane.b32.xlu0 %v7459, 112
        %v7852 = vpop.permute.xlu0 %7851
        %7853 = vrot.lane.b32.xlu0 %v7460, 112
        %v7854 = vpop.permute.xlu0 %7853
        %7855 = vrot.lane.b32.xlu0 %v7461, 112
        %v7856 = vpop.permute.xlu0 %7855
        %7857 = vrot.lane.b32.xlu0 %v7462, 112
        %v7858 = vpop.permute.xlu0 %7857
        %7859 = vrot.lane.b32.xlu0 %v7463, 112
        %v7860 = vpop.permute.xlu0 %7859
        %v7861 = vsel %vm1177, %v7838, %v7840
        %v7862 = vsel %vm1177, %v7840, %v7842
        %v7863 = vsel %vm1177, %v7844, %v7846
        %v7864 = vsel %vm1177, %v7846, %v7848
        %v7865 = vsel %vm1177, %v7850, %v7852
        %v7866 = vsel %vm1177, %v7852, %v7854
        %v7867 = vsel %vm1177, %v7856, %v7858
        %v7868 = vsel %vm1177, %v7858, %v7860
        %v7878 = vsel %vm1988, %v7821, 0
        %v7881 = vsel %vm1988, %v7822, 0
        %v7884 = vsel %vm1988, %v7823, 0
        %v7887 = vsel %vm1988, %v7824, 0
        %7889 = vmatprep.subr.mxu0 %v7862
        %7890 = vmatpush1.msra.mxu0 %v7861
        %7891 = vmatprep.subr.mxu0 %v7864
        %7892 = vmatpush1.msra.mxu0 %v7863
        %7893 = vmatprep.subr.mxu0 %v7866
        %7894 = vmatpush1.msra.mxu0 %v7865
        %7895 = vmatprep.subr.mxu0 %v7868
        %7896 = vmatpush1.msra.mxu0 %v7867
        %7897 = vmatprep.subr.mxu0 0.0
        %7898 = vmatpush1.msra.mxu0 0.0
        %7899 = vmatprep.subr.mxu0 0.0
        %7900 = vmatpush1.msra.mxu0 0.0
        %7901 = vmatprep.subr.mxu0 0.0
        %7902 = vmatpush1.msra.mxu0 0.0
        %7903 = vmatprep.subr.mxu0 0.0
        %7904 = vmatpush1.msra.mxu0 0.0
        %7905 = vmatprep.subr.mxu0 0.0
        %7906 = vmatpush1.msra.mxu0 0.0
        %7907 = vmatprep.subr.mxu0 0.0
        %7908 = vmatpush1.msra.mxu0 0.0
        %7909 = vmatprep.subr.mxu0 0.0
        %7910 = vmatpush1.msra.mxu0 0.0
        %7911 = vmatprep.subr.mxu0 0.0
        %7912 = vmatpush1.msra.mxu0 0.0
        %7913 = vmatprep.subr.mxu0 0.0
        %7914 = vmatpush1.msra.mxu0 0.0
        %7915 = vmatprep.subr.mxu0 0.0
        %7916 = vmatpush1.msra.mxu0 0.0
        %7917 = vmatprep.subr.mxu0 0.0
        %7918 = vmatpush1.msra.mxu0 0.0
        %7919 = vmatprep.subr.mxu0 0.0
        %7920 = vmatpush1.msra.mxu0 0.0
        %7921 = vmatprep.subr.mxu0 0.0
        %7922 = vmatpush1.msra.mxu0 0.0
        %7923 = vmatprep.subr.mxu0 0.0
        %7924 = vmatpush1.msra.mxu0 0.0
        %7925 = vmatprep.subr.mxu0 0.0
        %7926 = vmatpush1.msra.mxu0 0.0
        %7927 = vmatprep.subr.mxu0 0.0
        %7928 = vmatpush1.msra.mxu0 0.0
        %7929 = vmatprep.subr.mxu0 0.0
        %7930 = vmatpush1.msra.mxu0 0.0
        %7931 = vmatprep.subr.mxu0 0.0
        %7932 = vmatpush1.msra.mxu0 0.0
        %7933 = vmatprep.subr.mxu0 0.0
        %7934 = vmatpush1.msra.mxu0 0.0
        %7935 = vmatprep.subr.mxu0 0.0
        %7936 = vmatpush1.msra.mxu0 0.0
        %7937 = vmatprep.subr.mxu0 0.0
        %7938 = vmatpush1.msra.mxu0 0.0
        %7939 = vmatprep.subr.mxu0 0.0
        %7940 = vmatpush1.msra.mxu0 0.0
        %7941 = vmatprep.subr.mxu0 0.0
        %7942 = vmatpush1.msra.mxu0 0.0
        %7943 = vmatprep.subr.mxu0 0.0
        %7944 = vmatpush1.msra.mxu0 0.0
        %7945 = vmatprep.subr.mxu0 0.0
        %7946 = vmatpush1.msra.mxu0 0.0
        %7947 = vmatprep.subr.mxu0 0.0
        %7948 = vmatpush1.msra.mxu0 0.0
        %7949 = vmatprep.subr.mxu0 0.0
        %7950 = vmatpush1.msra.mxu0 0.0
        %7951 = vmatprep.subr.mxu0 0.0
        %7952 = vmatpush1.msra.mxu0 0.0
        %7953 = vmatprep.mubr.f32.mxu0 0.0
        %7954 = vmatmul.mubr.f32.gmra.mrb[0].mxu0 %v7878
        %v7955 = vpop.f32.mrb[0].mxu0
        %v7956 = vadd.f32 0.0, %v7955
        %v7957 = vpop.f32.mrb[0].mxu0
        %v7958 = vadd.f32 0.0, %v7957
        %7959 = vmatprep.mubr.f32.mxu0 0.0
        %7960 = vmatmul.mubr.f32.gmra.mrb[0].mxu0 %v7881
        %v7961 = vpop.f32.mrb[0].mxu0
        %v7962 = vadd.f32 0.0, %v7961
        %v7963 = vpop.f32.mrb[0].mxu0
        %v7964 = vadd.f32 0.0, %v7963
        %7965 = vmatprep.mubr.f32.mxu0 0.0
        %7966 = vmatmul.mubr.f32.gmra.mrb[0].mxu0 %v7884
        %v7967 = vpop.f32.mrb[0].mxu0
        %v7968 = vadd.f32 0.0, %v7967
        %v7969 = vpop.f32.mrb[0].mxu0
        %v7970 = vadd.f32 0.0, %v7969
        %7971 = vmatprep.mubr.f32.mxu0 0.0
        %7972 = vmatmul.mubr.f32.gmra.mrb[0].mxu0 %v7887
        %v7973 = vpop.f32.mrb[0].mxu0
        %v7974 = vadd.f32 0.0, %v7973
        %v7975 = vpop.f32.mrb[0].mxu0
        %v7976 = vadd.f32 0.0, %v7975
        %7977 = vdwg.mxu0
        %v7978 = vadd.f32 %v7812, %v7956
        %v7979 = vadd.f32 %v7813, %v7958
        %v7980 = vadd.f32 %v7814, %v7962
        %v7981 = vadd.f32 %v7815, %v7964
        %v7982 = vadd.f32 %v7816, %v7968
        %v7983 = vadd.f32 %v7817, %v7970
        %v7984 = vadd.f32 %v7818, %v7974
        %v7985 = vadd.f32 %v7819, %v7976
        %v7986 = vmul.f32 %v7452, %v3280
        %v7987 = vmul.f32 %v7453, %v3283
        %v7988 = vmul.f32 %v7454, %v3282
        %v7989 = vmul.f32 %v7455, %v3280
        %v7990 = vmul.f32 %v7456, %v3283
        %v7991 = vmul.f32 %v7457, %v3282
        %v7992 = vmul.f32 %v7458, %v3280
        %v7993 = vmul.f32 %v7459, %v3283
        %v7994 = vmul.f32 %v7460, %v3282
        %v7995 = vmul.f32 %v7461, %v3280
        %v7996 = vmul.f32 %v7462, %v3283
        %v7997 = vmul.f32 %v7463, %v3282
        %s7998 = scalar_lea.vmem [#allocation9], 256
        %v7999 = vld [vmem:[%s7998] sm:$0xff]
        %v8000 = vld [vmem:[%s7998 + $0x8] sm:$0xff]
        %v8001 = vld [vmem:[%s7998 + $0x10] sm:$0xff]
        %v8002 = vld [vmem:[%s7998 + $0x18] sm:$0xff]
        %8015 = vrot.lane.b32.xlu0 %v7986, 111
        %v8016 = vpop.permute.xlu0 %8015
        %8017 = vrot.lane.b32.xlu0 %v7987, 111
        %v8018 = vpop.permute.xlu0 %8017
        %8019 = vrot.lane.b32.xlu0 %v7988, 111
        %v8020 = vpop.permute.xlu0 %8019
        %8021 = vrot.lane.b32.xlu0 %v7989, 111
        %v8022 = vpop.permute.xlu0 %8021
        %8023 = vrot.lane.b32.xlu0 %v7990, 111
        %v8024 = vpop.permute.xlu0 %8023
        %8025 = vrot.lane.b32.xlu0 %v7991, 111
        %v8026 = vpop.permute.xlu0 %8025
        %8027 = vrot.lane.b32.xlu0 %v7992, 111
        %v8028 = vpop.permute.xlu0 %8027
        %8029 = vrot.lane.b32.xlu0 %v7993, 111
        %v8030 = vpop.permute.xlu0 %8029
        %8031 = vrot.lane.b32.xlu0 %v7994, 111
        %v8032 = vpop.permute.xlu0 %8031
        %8033 = vrot.lane.b32.xlu0 %v7995, 111
        %v8034 = vpop.permute.xlu0 %8033
        %8035 = vrot.lane.b32.xlu0 %v7996, 111
        %v8036 = vpop.permute.xlu0 %8035
        %8037 = vrot.lane.b32.xlu0 %v7997, 111
        %v8038 = vpop.permute.xlu0 %8037
        %v8039 = vsel %vm755, %v8016, %v8018
        %v8040 = vsel %vm755, %v8018, %v8020
        %v8041 = vsel %vm755, %v8022, %v8024
        %v8042 = vsel %vm755, %v8024, %v8026
        %v8043 = vsel %vm755, %v8028, %v8030
        %v8044 = vsel %vm755, %v8030, %v8032
        %v8045 = vsel %vm755, %v8034, %v8036
        %v8046 = vsel %vm755, %v8036, %v8038
        %v8056 = vsel %vm1988, %v7999, 0
        %v8059 = vsel %vm1988, %v8000, 0
        %v8062 = vsel %vm1988, %v8001, 0
        %v8065 = vsel %vm1988, %v8002, 0
        %8067 = vmatprep.subr.mxu0 %v8040
        %8068 = vmatpush1.msra.mxu0 %v8039
        %8069 = vmatprep.subr.mxu0 %v8042
        %8070 = vmatpush1.msra.mxu0 %v8041
        %8071 = vmatprep.subr.mxu0 %v8044
        %8072 = vmatpush1.msra.mxu0 %v8043
        %8073 = vmatprep.subr.mxu0 %v8046
        %8074 = vmatpush1.msra.mxu0 %v8045
        %8075 = vmatprep.subr.mxu0 0.0
        %8076 = vmatpush1.msra.mxu0 0.0
        %8077 = vmatprep.subr.mxu0 0.0
        %8078 = vmatpush1.msra.mxu0 0.0
        %8079 = vmatprep.subr.mxu0 0.0
        %8080 = vmatpush1.msra.mxu0 0.0
        %8081 = vmatprep.subr.mxu0 0.0
        %8082 = vmatpush1.msra.mxu0 0.0
        %8083 = vmatprep.subr.mxu0 0.0
        %8084 = vmatpush1.msra.mxu0 0.0
        %8085 = vmatprep.subr.mxu0 0.0
        %8086 = vmatpush1.msra.mxu0 0.0
        %8087 = vmatprep.subr.mxu0 0.0
        %8088 = vmatpush1.msra.mxu0 0.0
        %8089 = vmatprep.subr.mxu0 0.0
        %8090 = vmatpush1.msra.mxu0 0.0
        %8091 = vmatprep.subr.mxu0 0.0
        %8092 = vmatpush1.msra.mxu0 0.0
        %8093 = vmatprep.subr.mxu0 0.0
        %8094 = vmatpush1.msra.mxu0 0.0
        %8095 = vmatprep.subr.mxu0 0.0
        %8096 = vmatpush1.msra.mxu0 0.0
        %8097 = vmatprep.subr.mxu0 0.0
        %8098 = vmatpush1.msra.mxu0 0.0
        %8099 = vmatprep.subr.mxu0 0.0
        %8100 = vmatpush1.msra.mxu0 0.0
        %8101 = vmatprep.subr.mxu0 0.0
        %8102 = vmatpush1.msra.mxu0 0.0
        %8103 = vmatprep.subr.mxu0 0.0
        %8104 = vmatpush1.msra.mxu0 0.0
        %8105 = vmatprep.subr.mxu0 0.0
        %8106 = vmatpush1.msra.mxu0 0.0
        %8107 = vmatprep.subr.mxu0 0.0
        %8108 = vmatpush1.msra.mxu0 0.0
        %8109 = vmatprep.subr.mxu0 0.0
        %8110 = vmatpush1.msra.mxu0 0.0
        %8111 = vmatprep.subr.mxu0 0.0
        %8112 = vmatpush1.msra.mxu0 0.0
        %8113 = vmatprep.subr.mxu0 0.0
        %8114 = vmatpush1.msra.mxu0 0.0
        %8115 = vmatprep.subr.mxu0 0.0
        %8116 = vmatpush1.msra.mxu0 0.0
        %8117 = vmatprep.subr.mxu0 0.0
        %8118 = vmatpush1.msra.mxu0 0.0
        %8119 = vmatprep.subr.mxu0 0.0
        %8120 = vmatpush1.msra.mxu0 0.0
        %8121 = vmatprep.subr.mxu0 0.0
        %8122 = vmatpush1.msra.mxu0 0.0
        %8123 = vmatprep.subr.mxu0 0.0
        %8124 = vmatpush1.msra.mxu0 0.0
        %8125 = vmatprep.subr.mxu0 0.0
        %8126 = vmatpush1.msra.mxu0 0.0
        %8127 = vmatprep.subr.mxu0 0.0
        %8128 = vmatpush1.msra.mxu0 0.0
        %8129 = vmatprep.subr.mxu0 0.0
        %8130 = vmatpush1.msra.mxu0 0.0
        %8131 = vmatprep.mubr.f32.mxu0 0.0
        %8132 = vmatmul.mubr.f32.gmra.mrb[0].mxu0 %v8056
        %v8133 = vpop.f32.mrb[0].mxu0
        %v8134 = vadd.f32 0.0, %v8133
        %v8135 = vpop.f32.mrb[0].mxu0
        %v8136 = vadd.f32 0.0, %v8135
        %8137 = vmatprep.mubr.f32.mxu0 0.0
        %8138 = vmatmul.mubr.f32.gmra.mrb[0].mxu0 %v8059
        %v8139 = vpop.f32.mrb[0].mxu0
        %v8140 = vadd.f32 0.0, %v8139
        %v8141 = vpop.f32.mrb[0].mxu0
        %v8142 = vadd.f32 0.0, %v8141
        %8143 = vmatprep.mubr.f32.mxu0 0.0
        %8144 = vmatmul.mubr.f32.gmra.mrb[0].mxu0 %v8062
        %v8145 = vpop.f32.mrb[0].mxu0
        %v8146 = vadd.f32 0.0, %v8145
        %v8147 = vpop.f32.mrb[0].mxu0
        %v8148 = vadd.f32 0.0, %v8147
        %8149 = vmatprep.mubr.f32.mxu0 0.0
        %8150 = vmatmul.mubr.f32.gmra.mrb[0].mxu0 %v8065
        %v8151 = vpop.f32.mrb[0].mxu0
        %v8152 = vadd.f32 0.0, %v8151
        %v8153 = vpop.f32.mrb[0].mxu0
        %v8154 = vadd.f32 0.0, %v8153
        %8155 = vdwg.mxu0
        %v8156 = vadd.f32 %v7978, %v8134
        %v8157 = vadd.f32 %v7979, %v8136
        %v8158 = vadd.f32 %v7980, %v8140
        %v8159 = vadd.f32 %v7981, %v8142
        %v8160 = vadd.f32 %v7982, %v8146
        %v8161 = vadd.f32 %v7983, %v8148
        %v8162 = vadd.f32 %v7984, %v8152
        %v8163 = vadd.f32 %v7985, %v8154
        %v8164 = vld [vmem:[%s13] sm:$0xff]
        %v8165 = vld [vmem:[%s13 + $0x8] sm:$0xff]
        %v8166 = vld [vmem:[%s13 + $0x10] sm:$0xff]
        %v8167 = vld [vmem:[%s13 + $0x18] sm:$0xff]
        %8169 = vset.pattern.permute.xlu0 0
        %8170 = vperm.xlu0 %8169, %v8164
        %v8171 = vpop.permute.xlu0 %8170
        %8174 = vset.pattern.permute.xlu0 0
        %8175 = vperm.xlu0 %8174, %v8165
        %v8176 = vpop.permute.xlu0 %8175
        %8179 = vset.pattern.permute.xlu0 0
        %8180 = vperm.xlu0 %8179, %v8166
        %v8181 = vpop.permute.xlu0 %8180
        %8184 = vset.pattern.permute.xlu0 0
        %8185 = vperm.xlu0 %8184, %v8167
        %v8186 = vpop.permute.xlu0 %8185
        %v8188 = vadd.f32 %v8156, %v8171
        %v8189 = vadd.f32 %v8157, %v8171
        %v8190 = vadd.f32 %v8158, %v8176
        %v8191 = vadd.f32 %v8159, %v8176
        %v8192 = vadd.f32 %v8160, %v8181
        %v8193 = vadd.f32 %v8161, %v8181
        %v8194 = vadd.f32 %v8162, %v8186
        %v8195 = vadd.f32 %v8163, %v8186
        %v8196 = vmax.f32 %v8188, 0.0
        %v8197 = vmax.f32 %v8189, 0.0
        %v8198 = vmax.f32 %v8190, 0.0
        %v8199 = vmax.f32 %v8191, 0.0
        %v8200 = vmax.f32 %v8192, 0.0
        %v8201 = vmax.f32 %v8193, 0.0
        %v8202 = vmax.f32 %v8194, 0.0
        %v8203 = vmax.f32 %v8195, 0.0
        %8204 = vst [vmem:[#allocation2 + $0x8] sm:$0xff] %v8196
        %8205 = vst [vmem:[#allocation2 + $0x10] sm:$0xff] %v8197
        %8206 = vst [vmem:[#allocation2 + $0x28] sm:$0xff] %v8198
        %8207 = vst [vmem:[#allocation2 + $0x30] sm:$0xff] %v8199
        %8208 = vst [vmem:[#allocation2 + $0x48] sm:$0xff] %v8200
        %8209 = vst [vmem:[#allocation2 + $0x50] sm:$0xff] %v8201
        %8210 = vst [vmem:[#allocation2 + $0x68] sm:$0xff] %v8202
        %8211 = vst [vmem:[#allocation2 + $0x70] sm:$0xff] %v8203
        %v8212 = vld [vmem:[#allocation2] sm:$0xff]
        %v8213 = vld [vmem:[#allocation2 + $0x8] sm:$0xff]
        %v8214 = vld [vmem:[#allocation2 + $0x10] sm:$0xff]
        %v8215 = vld [vmem:[#allocation2 + $0x20] sm:$0xff]
        %v8216 = vld [vmem:[#allocation2 + $0x28] sm:$0xff]
        %v8217 = vld [vmem:[#allocation2 + $0x30] sm:$0xff]
        %v8218 = vld [vmem:[#allocation2 + $0x40] sm:$0xff]
        %v8219 = vld [vmem:[#allocation2 + $0x48] sm:$0xff]
        %v8220 = vld [vmem:[#allocation2 + $0x50] sm:$0xff]
        %v8221 = vld [vmem:[#allocation2 + $0x60] sm:$0xff]
        %v8222 = vld [vmem:[#allocation2 + $0x68] sm:$0xff]
        %v8223 = vld [vmem:[#allocation2 + $0x70] sm:$0xff]
        %v8224 = vmul.f32 %v8212, %v1907
        %v8225 = vmul.f32 %v8213, %v1910
        %v8226 = vmul.f32 %v8214, %v1909
        %v8227 = vmul.f32 %v8215, %v1907
        %v8228 = vmul.f32 %v8216, %v1910
        %v8229 = vmul.f32 %v8217, %v1909
        %v8230 = vmul.f32 %v8218, %v1907
        %v8231 = vmul.f32 %v8219, %v1910
        %v8232 = vmul.f32 %v8220, %v1909
        %v8233 = vmul.f32 %v8221, %v1907
        %v8234 = vmul.f32 %v8222, %v1910
        %v8235 = vmul.f32 %v8223, %v1909
        %v8236 = vld [vmem:[#allocation10] sm:$0xff]
        %v8237 = vld [vmem:[#allocation10 + $0x8] sm:$0xff]
        %v8238 = vld [vmem:[#allocation10 + $0x10] sm:$0xff]
        %v8239 = vld [vmem:[#allocation10 + $0x18] sm:$0xff]
        %s8240 = scalar_lea.vmem [#allocation10], 32
        %v8241 = vld [vmem:[%s8240] sm:$0xff]
        %v8242 = vld [vmem:[%s8240 + $0x8] sm:$0xff]
        %v8243 = vld [vmem:[%s8240 + $0x10] sm:$0xff]
        %v8244 = vld [vmem:[%s8240 + $0x18] sm:$0xff]
        %8257 = vrot.lane.b32.xlu0 %v8212, 16
        %v8258 = vpop.permute.xlu0 %8257
        %8259 = vrot.lane.b32.xlu0 %v8213, 16
        %v8260 = vpop.permute.xlu0 %8259
        %8261 = vrot.lane.b32.xlu0 %v8214, 16
        %v8262 = vpop.permute.xlu0 %8261
        %8263 = vrot.lane.b32.xlu0 %v8215, 16
        %v8264 = vpop.permute.xlu0 %8263
        %8265 = vrot.lane.b32.xlu0 %v8216, 16
        %v8266 = vpop.permute.xlu0 %8265
        %8267 = vrot.lane.b32.xlu0 %v8217, 16
        %v8268 = vpop.permute.xlu0 %8267
        %8269 = vrot.lane.b32.xlu0 %v8218, 16
        %v8270 = vpop.permute.xlu0 %8269
        %8271 = vrot.lane.b32.xlu0 %v8219, 16
        %v8272 = vpop.permute.xlu0 %8271
        %8273 = vrot.lane.b32.xlu0 %v8220, 16
        %v8274 = vpop.permute.xlu0 %8273
        %8275 = vrot.lane.b32.xlu0 %v8221, 16
        %v8276 = vpop.permute.xlu0 %8275
        %8277 = vrot.lane.b32.xlu0 %v8222, 16
        %v8278 = vpop.permute.xlu0 %8277
        %8279 = vrot.lane.b32.xlu0 %v8223, 16
        %v8280 = vpop.permute.xlu0 %8279
        %v8281 = vsel %vm1971, %v8258, %v8260
        %v8282 = vsel %vm1971, %v8260, %v8262
        %v8283 = vsel %vm1971, %v8264, %v8266
        %v8284 = vsel %vm1971, %v8266, %v8268
        %v8285 = vsel %vm1971, %v8270, %v8272
        %v8286 = vsel %vm1971, %v8272, %v8274
        %v8287 = vsel %vm1971, %v8276, %v8278
        %v8288 = vsel %vm1971, %v8278, %v8280
        %v8298 = vsel %vm1988, %v8241, 0
        %v8301 = vsel %vm1988, %v8242, 0
        %v8304 = vsel %vm1988, %v8243, 0
        %v8307 = vsel %vm1988, %v8244, 0
        %8309 = vmatprep.subr.mxu0 %v8282
        %8310 = vmatpush1.msra.mxu0 %v8281
        %8311 = vmatprep.subr.mxu0 %v8284
        %8312 = vmatpush1.msra.mxu0 %v8283
        %8313 = vmatprep.subr.mxu0 %v8286
        %8314 = vmatpush1.msra.mxu0 %v8285
        %8315 = vmatprep.subr.mxu0 %v8288
        %8316 = vmatpush1.msra.mxu0 %v8287
        %8317 = vmatprep.subr.mxu0 0.0
        %8318 = vmatpush1.msra.mxu0 0.0
        %8319 = vmatprep.subr.mxu0 0.0
        %8320 = vmatpush1.msra.mxu0 0.0
        %8321 = vmatprep.subr.mxu0 0.0
        %8322 = vmatpush1.msra.mxu0 0.0
        %8323 = vmatprep.subr.mxu0 0.0
        %8324 = vmatpush1.msra.mxu0 0.0
        %8325 = vmatprep.subr.mxu0 0.0
        %8326 = vmatpush1.msra.mxu0 0.0
        %8327 = vmatprep.subr.mxu0 0.0
        %8328 = vmatpush1.msra.mxu0 0.0
        %8329 = vmatprep.subr.mxu0 0.0
        %8330 = vmatpush1.msra.mxu0 0.0
        %8331 = vmatprep.subr.mxu0 0.0
        %8332 = vmatpush1.msra.mxu0 0.0
        %8333 = vmatprep.subr.mxu0 0.0
        %8334 = vmatpush1.msra.mxu0 0.0
        %8335 = vmatprep.subr.mxu0 0.0
        %8336 = vmatpush1.msra.mxu0 0.0
        %8337 = vmatprep.subr.mxu0 0.0
        %8338 = vmatpush1.msra.mxu0 0.0
        %8339 = vmatprep.subr.mxu0 0.0
        %8340 = vmatpush1.msra.mxu0 0.0
        %8341 = vmatprep.subr.mxu0 0.0
        %8342 = vmatpush1.msra.mxu0 0.0
        %8343 = vmatprep.subr.mxu0 0.0
        %8344 = vmatpush1.msra.mxu0 0.0
        %8345 = vmatprep.subr.mxu0 0.0
        %8346 = vmatpush1.msra.mxu0 0.0
        %8347 = vmatprep.subr.mxu0 0.0
        %8348 = vmatpush1.msra.mxu0 0.0
        %8349 = vmatprep.subr.mxu0 0.0
        %8350 = vmatpush1.msra.mxu0 0.0
        %8351 = vmatprep.subr.mxu0 0.0
        %8352 = vmatpush1.msra.mxu0 0.0
        %8353 = vmatprep.subr.mxu0 0.0
        %8354 = vmatpush1.msra.mxu0 0.0
        %8355 = vmatprep.subr.mxu0 0.0
        %8356 = vmatpush1.msra.mxu0 0.0
        %8357 = vmatprep.subr.mxu0 0.0
        %8358 = vmatpush1.msra.mxu0 0.0
        %8359 = vmatprep.subr.mxu0 0.0
        %8360 = vmatpush1.msra.mxu0 0.0
        %8361 = vmatprep.subr.mxu0 0.0
        %8362 = vmatpush1.msra.mxu0 0.0
        %8363 = vmatprep.subr.mxu0 0.0
        %8364 = vmatpush1.msra.mxu0 0.0
        %8365 = vmatprep.subr.mxu0 0.0
        %8366 = vmatpush1.msra.mxu0 0.0
        %8367 = vmatprep.subr.mxu0 0.0
        %8368 = vmatpush1.msra.mxu0 0.0
        %8369 = vmatprep.subr.mxu0 0.0
        %8370 = vmatpush1.msra.mxu0 0.0
        %8371 = vmatprep.subr.mxu0 0.0
        %8372 = vmatpush1.msra.mxu0 0.0
        %8373 = vmatprep.mubr.f32.mxu0 0.0
        %8374 = vmatmul.mubr.f32.gmra.mrb[0].mxu0 %v8298
        %v8375 = vpop.f32.mrb[0].mxu0
        %v8376 = vadd.f32 0.0, %v8375
        %v8377 = vpop.f32.mrb[0].mxu0
        %v8378 = vadd.f32 0.0, %v8377
        %8379 = vmatprep.mubr.f32.mxu0 0.0
        %8380 = vmatmul.mubr.f32.gmra.mrb[0].mxu0 %v8301
        %v8381 = vpop.f32.mrb[0].mxu0
        %v8382 = vadd.f32 0.0, %v8381
        %v8383 = vpop.f32.mrb[0].mxu0
        %v8384 = vadd.f32 0.0, %v8383
        %8385 = vmatprep.mubr.f32.mxu0 0.0
        %8386 = vmatmul.mubr.f32.gmra.mrb[0].mxu0 %v8304
        %v8387 = vpop.f32.mrb[0].mxu0
        %v8388 = vadd.f32 0.0, %v8387
        %v8389 = vpop.f32.mrb[0].mxu0
        %v8390 = vadd.f32 0.0, %v8389
        %8391 = vmatprep.mubr.f32.mxu0 0.0
        %8392 = vmatmul.mubr.f32.gmra.mrb[0].mxu0 %v8307
        %v8393 = vpop.f32.mrb[0].mxu0
        %v8394 = vadd.f32 0.0, %v8393
        %v8395 = vpop.f32.mrb[0].mxu0
        %v8396 = vadd.f32 0.0, %v8395
        %8397 = vdwg.mxu0
        %8410 = vrot.lane.b32.xlu0 %v8224, 17
        %v8411 = vpop.permute.xlu0 %8410
        %8412 = vrot.lane.b32.xlu0 %v8225, 17
        %v8413 = vpop.permute.xlu0 %8412
        %8414 = vrot.lane.b32.xlu0 %v8226, 17
        %v8415 = vpop.permute.xlu0 %8414
        %8416 = vrot.lane.b32.xlu0 %v8227, 17
        %v8417 = vpop.permute.xlu0 %8416
        %8418 = vrot.lane.b32.xlu0 %v8228, 17
        %v8419 = vpop.permute.xlu0 %8418
        %8420 = vrot.lane.b32.xlu0 %v8229, 17
        %v8421 = vpop.permute.xlu0 %8420
        %8422 = vrot.lane.b32.xlu0 %v8230, 17
        %v8423 = vpop.permute.xlu0 %8422
        %8424 = vrot.lane.b32.xlu0 %v8231, 17
        %v8425 = vpop.permute.xlu0 %8424
        %8426 = vrot.lane.b32.xlu0 %v8232, 17
        %v8427 = vpop.permute.xlu0 %8426
        %8428 = vrot.lane.b32.xlu0 %v8233, 17
        %v8429 = vpop.permute.xlu0 %8428
        %8430 = vrot.lane.b32.xlu0 %v8234, 17
        %v8431 = vpop.permute.xlu0 %8430
        %8432 = vrot.lane.b32.xlu0 %v8235, 17
        %v8433 = vpop.permute.xlu0 %8432
        %v8434 = vsel %vm1673, %v8411, %v8413
        %v8435 = vsel %vm1673, %v8413, %v8415
        %v8436 = vsel %vm1673, %v8417, %v8419
        %v8437 = vsel %vm1673, %v8419, %v8421
        %v8438 = vsel %vm1673, %v8423, %v8425
        %v8439 = vsel %vm1673, %v8425, %v8427
        %v8440 = vsel %vm1673, %v8429, %v8431
        %v8441 = vsel %vm1673, %v8431, %v8433
        %v8451 = vsel %vm1988, %v8236, 0
        %v8454 = vsel %vm1988, %v8237, 0
        %v8457 = vsel %vm1988, %v8238, 0
        %v8460 = vsel %vm1988, %v8239, 0
        %8462 = vmatprep.subr.mxu0 %v8435
        %8463 = vmatpush1.msra.mxu0 %v8434
        %8464 = vmatprep.subr.mxu0 %v8437
        %8465 = vmatpush1.msra.mxu0 %v8436
        %8466 = vmatprep.subr.mxu0 %v8439
        %8467 = vmatpush1.msra.mxu0 %v8438
        %8468 = vmatprep.subr.mxu0 %v8441
        %8469 = vmatpush1.msra.mxu0 %v8440
        %8470 = vmatprep.subr.mxu0 0.0
        %8471 = vmatpush1.msra.mxu0 0.0
        %8472 = vmatprep.subr.mxu0 0.0
        %8473 = vmatpush1.msra.mxu0 0.0
        %8474 = vmatprep.subr.mxu0 0.0
        %8475 = vmatpush1.msra.mxu0 0.0
        %8476 = vmatprep.subr.mxu0 0.0
        %8477 = vmatpush1.msra.mxu0 0.0
        %8478 = vmatprep.subr.mxu0 0.0
        %8479 = vmatpush1.msra.mxu0 0.0
        %8480 = vmatprep.subr.mxu0 0.0
        %8481 = vmatpush1.msra.mxu0 0.0
        %8482 = vmatprep.subr.mxu0 0.0
        %8483 = vmatpush1.msra.mxu0 0.0
        %8484 = vmatprep.subr.mxu0 0.0
        %8485 = vmatpush1.msra.mxu0 0.0
        %8486 = vmatprep.subr.mxu0 0.0
        %8487 = vmatpush1.msra.mxu0 0.0
        %8488 = vmatprep.subr.mxu0 0.0
        %8489 = vmatpush1.msra.mxu0 0.0
        %8490 = vmatprep.subr.mxu0 0.0
        %8491 = vmatpush1.msra.mxu0 0.0
        %8492 = vmatprep.subr.mxu0 0.0
        %8493 = vmatpush1.msra.mxu0 0.0
        %8494 = vmatprep.subr.mxu0 0.0
        %8495 = vmatpush1.msra.mxu0 0.0
        %8496 = vmatprep.subr.mxu0 0.0
        %8497 = vmatpush1.msra.mxu0 0.0
        %8498 = vmatprep.subr.mxu0 0.0
        %8499 = vmatpush1.msra.mxu0 0.0
        %8500 = vmatprep.subr.mxu0 0.0
        %8501 = vmatpush1.msra.mxu0 0.0
        %8502 = vmatprep.subr.mxu0 0.0
        %8503 = vmatpush1.msra.mxu0 0.0
        %8504 = vmatprep.subr.mxu0 0.0
        %8505 = vmatpush1.msra.mxu0 0.0
        %8506 = vmatprep.subr.mxu0 0.0
        %8507 = vmatpush1.msra.mxu0 0.0
        %8508 = vmatprep.subr.mxu0 0.0
        %8509 = vmatpush1.msra.mxu0 0.0
        %8510 = vmatprep.subr.mxu0 0.0
        %8511 = vmatpush1.msra.mxu0 0.0
        %8512 = vmatprep.subr.mxu0 0.0
        %8513 = vmatpush1.msra.mxu0 0.0
        %8514 = vmatprep.subr.mxu0 0.0
        %8515 = vmatpush1.msra.mxu0 0.0
        %8516 = vmatprep.subr.mxu0 0.0
        %8517 = vmatpush1.msra.mxu0 0.0
        %8518 = vmatprep.subr.mxu0 0.0
        %8519 = vmatpush1.msra.mxu0 0.0
        %8520 = vmatprep.subr.mxu0 0.0
        %8521 = vmatpush1.msra.mxu0 0.0
        %8522 = vmatprep.subr.mxu0 0.0
        %8523 = vmatpush1.msra.mxu0 0.0
        %8524 = vmatprep.subr.mxu0 0.0
        %8525 = vmatpush1.msra.mxu0 0.0
        %8526 = vmatprep.mubr.f32.mxu0 0.0
        %8527 = vmatmul.mubr.f32.gmra.mrb[0].mxu0 %v8451
        %v8528 = vpop.f32.mrb[0].mxu0
        %v8529 = vadd.f32 %v8376, %v8528
        %v8530 = vpop.f32.mrb[0].mxu0
        %v8531 = vadd.f32 %v8378, %v8530
        %8532 = vmatprep.mubr.f32.mxu0 0.0
        %8533 = vmatmul.mubr.f32.gmra.mrb[0].mxu0 %v8454
        %v8534 = vpop.f32.mrb[0].mxu0
        %v8535 = vadd.f32 %v8382, %v8534
        %v8536 = vpop.f32.mrb[0].mxu0
        %v8537 = vadd.f32 %v8384, %v8536
        %8538 = vmatprep.mubr.f32.mxu0 0.0
        %8539 = vmatmul.mubr.f32.gmra.mrb[0].mxu0 %v8457
        %v8540 = vpop.f32.mrb[0].mxu0
        %v8541 = vadd.f32 %v8388, %v8540
        %v8542 = vpop.f32.mrb[0].mxu0
        %v8543 = vadd.f32 %v8390, %v8542
        %8544 = vmatprep.mubr.f32.mxu0 0.0
        %8545 = vmatmul.mubr.f32.gmra.mrb[0].mxu0 %v8460
        %v8546 = vpop.f32.mrb[0].mxu0
        %v8547 = vadd.f32 %v8394, %v8546
        %v8548 = vpop.f32.mrb[0].mxu0
        %v8549 = vadd.f32 %v8396, %v8548
        %8550 = vdwg.mxu0
        %v8551 = vmul.f32 %v8212, %v2244
        %v8552 = vmul.f32 %v8213, %v2247
        %v8553 = vmul.f32 %v8214, %v2246
        %v8554 = vmul.f32 %v8215, %v2244
        %v8555 = vmul.f32 %v8216, %v2247
        %v8556 = vmul.f32 %v8217, %v2246
        %v8557 = vmul.f32 %v8218, %v2244
        %v8558 = vmul.f32 %v8219, %v2247
        %v8559 = vmul.f32 %v8220, %v2246
        %v8560 = vmul.f32 %v8221, %v2244
        %v8561 = vmul.f32 %v8222, %v2247
        %v8562 = vmul.f32 %v8223, %v2246
        %s8563 = scalar_lea.vmem [#allocation10], 64
        %v8564 = vld [vmem:[%s8563] sm:$0xff]
        %v8565 = vld [vmem:[%s8563 + $0x8] sm:$0xff]
        %v8566 = vld [vmem:[%s8563 + $0x10] sm:$0xff]
        %v8567 = vld [vmem:[%s8563 + $0x18] sm:$0xff]
        %8580 = vrot.lane.b32.xlu0 %v8551, 15
        %v8581 = vpop.permute.xlu0 %8580
        %8582 = vrot.lane.b32.xlu0 %v8552, 15
        %v8583 = vpop.permute.xlu0 %8582
        %8584 = vrot.lane.b32.xlu0 %v8553, 15
        %v8585 = vpop.permute.xlu0 %8584
        %8586 = vrot.lane.b32.xlu0 %v8554, 15
        %v8587 = vpop.permute.xlu0 %8586
        %8588 = vrot.lane.b32.xlu0 %v8555, 15
        %v8589 = vpop.permute.xlu0 %8588
        %8590 = vrot.lane.b32.xlu0 %v8556, 15
        %v8591 = vpop.permute.xlu0 %8590
        %8592 = vrot.lane.b32.xlu0 %v8557, 15
        %v8593 = vpop.permute.xlu0 %8592
        %8594 = vrot.lane.b32.xlu0 %v8558, 15
        %v8595 = vpop.permute.xlu0 %8594
        %8596 = vrot.lane.b32.xlu0 %v8559, 15
        %v8597 = vpop.permute.xlu0 %8596
        %8598 = vrot.lane.b32.xlu0 %v8560, 15
        %v8599 = vpop.permute.xlu0 %8598
        %8600 = vrot.lane.b32.xlu0 %v8561, 15
        %v8601 = vpop.permute.xlu0 %8600
        %8602 = vrot.lane.b32.xlu0 %v8562, 15
        %v8603 = vpop.permute.xlu0 %8602
        %v8604 = vsel %vm1431, %v8581, %v8583
        %v8605 = vsel %vm1431, %v8583, %v8585
        %v8606 = vsel %vm1431, %v8587, %v8589
        %v8607 = vsel %vm1431, %v8589, %v8591
        %v8608 = vsel %vm1431, %v8593, %v8595
        %v8609 = vsel %vm1431, %v8595, %v8597
        %v8610 = vsel %vm1431, %v8599, %v8601
        %v8611 = vsel %vm1431, %v8601, %v8603
        %v8621 = vsel %vm1988, %v8564, 0
        %v8624 = vsel %vm1988, %v8565, 0
        %v8627 = vsel %vm1988, %v8566, 0
        %v8630 = vsel %vm1988, %v8567, 0
        %8632 = vmatprep.subr.mxu0 %v8605
        %8633 = vmatpush1.msra.mxu0 %v8604
        %8634 = vmatprep.subr.mxu0 %v8607
        %8635 = vmatpush1.msra.mxu0 %v8606
        %8636 = vmatprep.subr.mxu0 %v8609
        %8637 = vmatpush1.msra.mxu0 %v8608
        %8638 = vmatprep.subr.mxu0 %v8611
        %8639 = vmatpush1.msra.mxu0 %v8610
        %8640 = vmatprep.subr.mxu0 0.0
        %8641 = vmatpush1.msra.mxu0 0.0
        %8642 = vmatprep.subr.mxu0 0.0
        %8643 = vmatpush1.msra.mxu0 0.0
        %8644 = vmatprep.subr.mxu0 0.0
        %8645 = vmatpush1.msra.mxu0 0.0
        %8646 = vmatprep.subr.mxu0 0.0
        %8647 = vmatpush1.msra.mxu0 0.0
        %8648 = vmatprep.subr.mxu0 0.0
        %8649 = vmatpush1.msra.mxu0 0.0
        %8650 = vmatprep.subr.mxu0 0.0
        %8651 = vmatpush1.msra.mxu0 0.0
        %8652 = vmatprep.subr.mxu0 0.0
        %8653 = vmatpush1.msra.mxu0 0.0
        %8654 = vmatprep.subr.mxu0 0.0
        %8655 = vmatpush1.msra.mxu0 0.0
        %8656 = vmatprep.subr.mxu0 0.0
        %8657 = vmatpush1.msra.mxu0 0.0
        %8658 = vmatprep.subr.mxu0 0.0
        %8659 = vmatpush1.msra.mxu0 0.0
        %8660 = vmatprep.subr.mxu0 0.0
        %8661 = vmatpush1.msra.mxu0 0.0
        %8662 = vmatprep.subr.mxu0 0.0
        %8663 = vmatpush1.msra.mxu0 0.0
        %8664 = vmatprep.subr.mxu0 0.0
        %8665 = vmatpush1.msra.mxu0 0.0
        %8666 = vmatprep.subr.mxu0 0.0
        %8667 = vmatpush1.msra.mxu0 0.0
        %8668 = vmatprep.subr.mxu0 0.0
        %8669 = vmatpush1.msra.mxu0 0.0
        %8670 = vmatprep.subr.mxu0 0.0
        %8671 = vmatpush1.msra.mxu0 0.0
        %8672 = vmatprep.subr.mxu0 0.0
        %8673 = vmatpush1.msra.mxu0 0.0
        %8674 = vmatprep.subr.mxu0 0.0
        %8675 = vmatpush1.msra.mxu0 0.0
        %8676 = vmatprep.subr.mxu0 0.0
        %8677 = vmatpush1.msra.mxu0 0.0
        %8678 = vmatprep.subr.mxu0 0.0
        %8679 = vmatpush1.msra.mxu0 0.0
        %8680 = vmatprep.subr.mxu0 0.0
        %8681 = vmatpush1.msra.mxu0 0.0
        %8682 = vmatprep.subr.mxu0 0.0
        %8683 = vmatpush1.msra.mxu0 0.0
        %8684 = vmatprep.subr.mxu0 0.0
        %8685 = vmatpush1.msra.mxu0 0.0
        %8686 = vmatprep.subr.mxu0 0.0
        %8687 = vmatpush1.msra.mxu0 0.0
        %8688 = vmatprep.subr.mxu0 0.0
        %8689 = vmatpush1.msra.mxu0 0.0
        %8690 = vmatprep.subr.mxu0 0.0
        %8691 = vmatpush1.msra.mxu0 0.0
        %8692 = vmatprep.subr.mxu0 0.0
        %8693 = vmatpush1.msra.mxu0 0.0
        %8694 = vmatprep.subr.mxu0 0.0
        %8695 = vmatpush1.msra.mxu0 0.0
        %8696 = vmatprep.mubr.f32.mxu0 0.0
        %8697 = vmatmul.mubr.f32.gmra.mrb[0].mxu0 %v8621
        %v8698 = vpop.f32.mrb[0].mxu0
        %v8699 = vadd.f32 0.0, %v8698
        %v8700 = vpop.f32.mrb[0].mxu0
        %v8701 = vadd.f32 0.0, %v8700
        %8702 = vmatprep.mubr.f32.mxu0 0.0
        %8703 = vmatmul.mubr.f32.gmra.mrb[0].mxu0 %v8624
        %v8704 = vpop.f32.mrb[0].mxu0
        %v8705 = vadd.f32 0.0, %v8704
        %v8706 = vpop.f32.mrb[0].mxu0
        %v8707 = vadd.f32 0.0, %v8706
        %8708 = vmatprep.mubr.f32.mxu0 0.0
        %8709 = vmatmul.mubr.f32.gmra.mrb[0].mxu0 %v8627
        %v8710 = vpop.f32.mrb[0].mxu0
        %v8711 = vadd.f32 0.0, %v8710
        %v8712 = vpop.f32.mrb[0].mxu0
        %v8713 = vadd.f32 0.0, %v8712
        %8714 = vmatprep.mubr.f32.mxu0 0.0
        %8715 = vmatmul.mubr.f32.gmra.mrb[0].mxu0 %v8630
        %v8716 = vpop.f32.mrb[0].mxu0
        %v8717 = vadd.f32 0.0, %v8716
        %v8718 = vpop.f32.mrb[0].mxu0
        %v8719 = vadd.f32 0.0, %v8718
        %8720 = vdwg.mxu0
        %v8721 = vadd.f32 %v8529, %v8699
        %v8722 = vadd.f32 %v8531, %v8701
        %v8723 = vadd.f32 %v8535, %v8705
        %v8724 = vadd.f32 %v8537, %v8707
        %v8725 = vadd.f32 %v8541, %v8711
        %v8726 = vadd.f32 %v8543, %v8713
        %v8727 = vadd.f32 %v8547, %v8717
        %v8728 = vadd.f32 %v8549, %v8719
        %v8729 = vmul.f32 %v8212, %v2430
        %v8730 = vmul.f32 %v8213, %v2433
        %v8731 = vmul.f32 %v8214, %v2432
        %v8732 = vmul.f32 %v8215, %v2430
        %v8733 = vmul.f32 %v8216, %v2433
        %v8734 = vmul.f32 %v8217, %v2432
        %v8735 = vmul.f32 %v8218, %v2430
        %v8736 = vmul.f32 %v8219, %v2433
        %v8737 = vmul.f32 %v8220, %v2432
        %v8738 = vmul.f32 %v8221, %v2430
        %v8739 = vmul.f32 %v8222, %v2433
        %v8740 = vmul.f32 %v8223, %v2432
        %s8741 = scalar_lea.vmem [#allocation10], 96
        %v8742 = vld [vmem:[%s8741] sm:$0xff]
        %v8743 = vld [vmem:[%s8741 + $0x8] sm:$0xff]
        %v8744 = vld [vmem:[%s8741 + $0x10] sm:$0xff]
        %v8745 = vld [vmem:[%s8741 + $0x18] sm:$0xff]
        %8758 = vrot.lane.b32.xlu0 %v8729, 1
        %v8759 = vpop.permute.xlu0 %8758
        %8760 = vrot.lane.b32.xlu0 %v8730, 1
        %v8761 = vpop.permute.xlu0 %8760
        %8762 = vrot.lane.b32.xlu0 %v8731, 1
        %v8763 = vpop.permute.xlu0 %8762
        %8764 = vrot.lane.b32.xlu0 %v8732, 1
        %v8765 = vpop.permute.xlu0 %8764
        %8766 = vrot.lane.b32.xlu0 %v8733, 1
        %v8767 = vpop.permute.xlu0 %8766
        %8768 = vrot.lane.b32.xlu0 %v8734, 1
        %v8769 = vpop.permute.xlu0 %8768
        %8770 = vrot.lane.b32.xlu0 %v8735, 1
        %v8771 = vpop.permute.xlu0 %8770
        %8772 = vrot.lane.b32.xlu0 %v8736, 1
        %v8773 = vpop.permute.xlu0 %8772
        %8774 = vrot.lane.b32.xlu0 %v8737, 1
        %v8775 = vpop.permute.xlu0 %8774
        %8776 = vrot.lane.b32.xlu0 %v8738, 1
        %v8777 = vpop.permute.xlu0 %8776
        %8778 = vrot.lane.b32.xlu0 %v8739, 1
        %v8779 = vpop.permute.xlu0 %8778
        %8780 = vrot.lane.b32.xlu0 %v8740, 1
        %v8781 = vpop.permute.xlu0 %8780
        %v8782 = vsel %vm1302, %v8759, %v8761
        %v8783 = vsel %vm1302, %v8761, %v8763
        %v8784 = vsel %vm1302, %v8765, %v8767
        %v8785 = vsel %vm1302, %v8767, %v8769
        %v8786 = vsel %vm1302, %v8771, %v8773
        %v8787 = vsel %vm1302, %v8773, %v8775
        %v8788 = vsel %vm1302, %v8777, %v8779
        %v8789 = vsel %vm1302, %v8779, %v8781
        %v8799 = vsel %vm1988, %v8742, 0
        %v8802 = vsel %vm1988, %v8743, 0
        %v8805 = vsel %vm1988, %v8744, 0
        %v8808 = vsel %vm1988, %v8745, 0
        %8810 = vmatprep.subr.mxu0 %v8783
        %8811 = vmatpush1.msra.mxu0 %v8782
        %8812 = vmatprep.subr.mxu0 %v8785
        %8813 = vmatpush1.msra.mxu0 %v8784
        %8814 = vmatprep.subr.mxu0 %v8787
        %8815 = vmatpush1.msra.mxu0 %v8786
        %8816 = vmatprep.subr.mxu0 %v8789
        %8817 = vmatpush1.msra.mxu0 %v8788
        %8818 = vmatprep.subr.mxu0 0.0
        %8819 = vmatpush1.msra.mxu0 0.0
        %8820 = vmatprep.subr.mxu0 0.0
        %8821 = vmatpush1.msra.mxu0 0.0
        %8822 = vmatprep.subr.mxu0 0.0
        %8823 = vmatpush1.msra.mxu0 0.0
        %8824 = vmatprep.subr.mxu0 0.0
        %8825 = vmatpush1.msra.mxu0 0.0
        %8826 = vmatprep.subr.mxu0 0.0
        %8827 = vmatpush1.msra.mxu0 0.0
        %8828 = vmatprep.subr.mxu0 0.0
        %8829 = vmatpush1.msra.mxu0 0.0
        %8830 = vmatprep.subr.mxu0 0.0
        %8831 = vmatpush1.msra.mxu0 0.0
        %8832 = vmatprep.subr.mxu0 0.0
        %8833 = vmatpush1.msra.mxu0 0.0
        %8834 = vmatprep.subr.mxu0 0.0
        %8835 = vmatpush1.msra.mxu0 0.0
        %8836 = vmatprep.subr.mxu0 0.0
        %8837 = vmatpush1.msra.mxu0 0.0
        %8838 = vmatprep.subr.mxu0 0.0
        %8839 = vmatpush1.msra.mxu0 0.0
        %8840 = vmatprep.subr.mxu0 0.0
        %8841 = vmatpush1.msra.mxu0 0.0
        %8842 = vmatprep.subr.mxu0 0.0
        %8843 = vmatpush1.msra.mxu0 0.0
        %8844 = vmatprep.subr.mxu0 0.0
        %8845 = vmatpush1.msra.mxu0 0.0
        %8846 = vmatprep.subr.mxu0 0.0
        %8847 = vmatpush1.msra.mxu0 0.0
        %8848 = vmatprep.subr.mxu0 0.0
        %8849 = vmatpush1.msra.mxu0 0.0
        %8850 = vmatprep.subr.mxu0 0.0
        %8851 = vmatpush1.msra.mxu0 0.0
        %8852 = vmatprep.subr.mxu0 0.0
        %8853 = vmatpush1.msra.mxu0 0.0
        %8854 = vmatprep.subr.mxu0 0.0
        %8855 = vmatpush1.msra.mxu0 0.0
        %8856 = vmatprep.subr.mxu0 0.0
        %8857 = vmatpush1.msra.mxu0 0.0
        %8858 = vmatprep.subr.mxu0 0.0
        %8859 = vmatpush1.msra.mxu0 0.0
        %8860 = vmatprep.subr.mxu0 0.0
        %8861 = vmatpush1.msra.mxu0 0.0
        %8862 = vmatprep.subr.mxu0 0.0
        %8863 = vmatpush1.msra.mxu0 0.0
        %8864 = vmatprep.subr.mxu0 0.0
        %8865 = vmatpush1.msra.mxu0 0.0
        %8866 = vmatprep.subr.mxu0 0.0
        %8867 = vmatpush1.msra.mxu0 0.0
        %8868 = vmatprep.subr.mxu0 0.0
        %8869 = vmatpush1.msra.mxu0 0.0
        %8870 = vmatprep.subr.mxu0 0.0
        %8871 = vmatpush1.msra.mxu0 0.0
        %8872 = vmatprep.subr.mxu0 0.0
        %8873 = vmatpush1.msra.mxu0 0.0
        %8874 = vmatprep.mubr.f32.mxu0 0.0
        %8875 = vmatmul.mubr.f32.gmra.mrb[0].mxu0 %v8799
        %v8876 = vpop.f32.mrb[0].mxu0
        %v8877 = vadd.f32 0.0, %v8876
        %v8878 = vpop.f32.mrb[0].mxu0
        %v8879 = vadd.f32 0.0, %v8878
        %8880 = vmatprep.mubr.f32.mxu0 0.0
        %8881 = vmatmul.mubr.f32.gmra.mrb[0].mxu0 %v8802
        %v8882 = vpop.f32.mrb[0].mxu0
        %v8883 = vadd.f32 0.0, %v8882
        %v8884 = vpop.f32.mrb[0].mxu0
        %v8885 = vadd.f32 0.0, %v8884
        %8886 = vmatprep.mubr.f32.mxu0 0.0
        %8887 = vmatmul.mubr.f32.gmra.mrb[0].mxu0 %v8805
        %v8888 = vpop.f32.mrb[0].mxu0
        %v8889 = vadd.f32 0.0, %v8888
        %v8890 = vpop.f32.mrb[0].mxu0
        %v8891 = vadd.f32 0.0, %v8890
        %8892 = vmatprep.mubr.f32.mxu0 0.0
        %8893 = vmatmul.mubr.f32.gmra.mrb[0].mxu0 %v8808
        %v8894 = vpop.f32.mrb[0].mxu0
        %v8895 = vadd.f32 0.0, %v8894
        %v8896 = vpop.f32.mrb[0].mxu0
        %v8897 = vadd.f32 0.0, %v8896
        %8898 = vdwg.mxu0
        %v8899 = vadd.f32 %v8721, %v8877
        %v8900 = vadd.f32 %v8722, %v8879
        %v8901 = vadd.f32 %v8723, %v8883
        %v8902 = vadd.f32 %v8724, %v8885
        %v8903 = vadd.f32 %v8725, %v8889
        %v8904 = vadd.f32 %v8726, %v8891
        %v8905 = vadd.f32 %v8727, %v8895
        %v8906 = vadd.f32 %v8728, %v8897
        %s8907 = scalar_lea.vmem [#allocation10], 128
        %v8908 = vld [vmem:[%s8907] sm:$0xff]
        %v8909 = vld [vmem:[%s8907 + $0x8] sm:$0xff]
        %v8910 = vld [vmem:[%s8907 + $0x10] sm:$0xff]
        %v8911 = vld [vmem:[%s8907 + $0x18] sm:$0xff]
        %v8913 = vsel %vm1988, %v8908, 0
        %v8916 = vsel %vm1988, %v8909, 0
        %v8919 = vsel %vm1988, %v8910, 0
        %v8922 = vsel %vm1988, %v8911, 0
        %8924 = vmatprep.subr.mxu0 %v8214
        %8925 = vmatpush1.msra.mxu0 %v8213
        %8926 = vmatprep.subr.mxu0 %v8217
        %8927 = vmatpush1.msra.mxu0 %v8216
        %8928 = vmatprep.subr.mxu0 %v8220
        %8929 = vmatpush1.msra.mxu0 %v8219
        %8930 = vmatprep.subr.mxu0 %v8223
        %8931 = vmatpush1.msra.mxu0 %v8222
        %8932 = vmatprep.subr.mxu0 0.0
        %8933 = vmatpush1.msra.mxu0 0.0
        %8934 = vmatprep.subr.mxu0 0.0
        %8935 = vmatpush1.msra.mxu0 0.0
        %8936 = vmatprep.subr.mxu0 0.0
        %8937 = vmatpush1.msra.mxu0 0.0
        %8938 = vmatprep.subr.mxu0 0.0
        %8939 = vmatpush1.msra.mxu0 0.0
        %8940 = vmatprep.subr.mxu0 0.0
        %8941 = vmatpush1.msra.mxu0 0.0
        %8942 = vmatprep.subr.mxu0 0.0
        %8943 = vmatpush1.msra.mxu0 0.0
        %8944 = vmatprep.subr.mxu0 0.0
        %8945 = vmatpush1.msra.mxu0 0.0
        %8946 = vmatprep.subr.mxu0 0.0
        %8947 = vmatpush1.msra.mxu0 0.0
        %8948 = vmatprep.subr.mxu0 0.0
        %8949 = vmatpush1.msra.mxu0 0.0
        %8950 = vmatprep.subr.mxu0 0.0
        %8951 = vmatpush1.msra.mxu0 0.0
        %8952 = vmatprep.subr.mxu0 0.0
        %8953 = vmatpush1.msra.mxu0 0.0
        %8954 = vmatprep.subr.mxu0 0.0
        %8955 = vmatpush1.msra.mxu0 0.0
        %8956 = vmatprep.subr.mxu0 0.0
        %8957 = vmatpush1.msra.mxu0 0.0
        %8958 = vmatprep.subr.mxu0 0.0
        %8959 = vmatpush1.msra.mxu0 0.0
        %8960 = vmatprep.subr.mxu0 0.0
        %8961 = vmatpush1.msra.mxu0 0.0
        %8962 = vmatprep.subr.mxu0 0.0
        %8963 = vmatpush1.msra.mxu0 0.0
        %8964 = vmatprep.subr.mxu0 0.0
        %8965 = vmatpush1.msra.mxu0 0.0
        %8966 = vmatprep.subr.mxu0 0.0
        %8967 = vmatpush1.msra.mxu0 0.0
        %8968 = vmatprep.subr.mxu0 0.0
        %8969 = vmatpush1.msra.mxu0 0.0
        %8970 = vmatprep.subr.mxu0 0.0
        %8971 = vmatpush1.msra.mxu0 0.0
        %8972 = vmatprep.subr.mxu0 0.0
        %8973 = vmatpush1.msra.mxu0 0.0
        %8974 = vmatprep.subr.mxu0 0.0
        %8975 = vmatpush1.msra.mxu0 0.0
        %8976 = vmatprep.subr.mxu0 0.0
        %8977 = vmatpush1.msra.mxu0 0.0
        %8978 = vmatprep.subr.mxu0 0.0
        %8979 = vmatpush1.msra.mxu0 0.0
        %8980 = vmatprep.subr.mxu0 0.0
        %8981 = vmatpush1.msra.mxu0 0.0
        %8982 = vmatprep.subr.mxu0 0.0
        %8983 = vmatpush1.msra.mxu0 0.0
        %8984 = vmatprep.subr.mxu0 0.0
        %8985 = vmatpush1.msra.mxu0 0.0
        %8986 = vmatprep.subr.mxu0 0.0
        %8987 = vmatpush1.msra.mxu0 0.0
        %8988 = vmatprep.mubr.f32.mxu0 0.0
        %8989 = vmatmul.mubr.f32.gmra.mrb[0].mxu0 %v8913
        %v8990 = vpop.f32.mrb[0].mxu0
        %v8991 = vadd.f32 0.0, %v8990
        %v8992 = vpop.f32.mrb[0].mxu0
        %v8993 = vadd.f32 0.0, %v8992
        %8994 = vmatprep.mubr.f32.mxu0 0.0
        %8995 = vmatmul.mubr.f32.gmra.mrb[0].mxu0 %v8916
        %v8996 = vpop.f32.mrb[0].mxu0
        %v8997 = vadd.f32 0.0, %v8996
        %v8998 = vpop.f32.mrb[0].mxu0
        %v8999 = vadd.f32 0.0, %v8998
        %9000 = vmatprep.mubr.f32.mxu0 0.0
        %9001 = vmatmul.mubr.f32.gmra.mrb[0].mxu0 %v8919
        %v9002 = vpop.f32.mrb[0].mxu0
        %v9003 = vadd.f32 0.0, %v9002
        %v9004 = vpop.f32.mrb[0].mxu0
        %v9005 = vadd.f32 0.0, %v9004
        %9006 = vmatprep.mubr.f32.mxu0 0.0
        %9007 = vmatmul.mubr.f32.gmra.mrb[0].mxu0 %v8922
        %v9008 = vpop.f32.mrb[0].mxu0
        %v9009 = vadd.f32 0.0, %v9008
        %v9010 = vpop.f32.mrb[0].mxu0
        %v9011 = vadd.f32 0.0, %v9010
        %9012 = vdwg.mxu0
        %v9013 = vadd.f32 %v8899, %v8991
        %v9014 = vadd.f32 %v8900, %v8993
        %v9015 = vadd.f32 %v8901, %v8997
        %v9016 = vadd.f32 %v8902, %v8999
        %v9017 = vadd.f32 %v8903, %v9003
        %v9018 = vadd.f32 %v8904, %v9005
        %v9019 = vadd.f32 %v8905, %v9009
        %v9020 = vadd.f32 %v8906, %v9011
        %v9021 = vld [vmem:[#allocation2 + $0x8] sm:$0xff]
        %v9022 = vld [vmem:[#allocation2 + $0x10] sm:$0xff]
        %v9023 = vld [vmem:[#allocation2 + $0x18] sm:$0xff]
        %v9024 = vld [vmem:[#allocation2 + $0x28] sm:$0xff]
        %v9025 = vld [vmem:[#allocation2 + $0x30] sm:$0xff]
        %v9026 = vld [vmem:[#allocation2 + $0x38] sm:$0xff]
        %v9027 = vld [vmem:[#allocation2 + $0x48] sm:$0xff]
        %v9028 = vld [vmem:[#allocation2 + $0x50] sm:$0xff]
        %v9029 = vld [vmem:[#allocation2 + $0x58] sm:$0xff]
        %v9030 = vld [vmem:[#allocation2 + $0x68] sm:$0xff]
        %v9031 = vld [vmem:[#allocation2 + $0x70] sm:$0xff]
        %v9032 = vld [vmem:[#allocation2 + $0x78] sm:$0xff]
        %v9033 = vmul.f32 %v9021, %v2742
        %v9034 = vmul.f32 %v9022, %v2745
        %v9035 = vmul.f32 %v9023, %v2744
        %v9036 = vmul.f32 %v9024, %v2742
        %v9037 = vmul.f32 %v9025, %v2745
        %v9038 = vmul.f32 %v9026, %v2744
        %v9039 = vmul.f32 %v9027, %v2742
        %v9040 = vmul.f32 %v9028, %v2745
        %v9041 = vmul.f32 %v9029, %v2744
        %v9042 = vmul.f32 %v9030, %v2742
        %v9043 = vmul.f32 %v9031, %v2745
        %v9044 = vmul.f32 %v9032, %v2744
        %s9045 = scalar_lea.vmem [#allocation10], 160
        %v9046 = vld [vmem:[%s9045] sm:$0xff]
        %v9047 = vld [vmem:[%s9045 + $0x8] sm:$0xff]
        %v9048 = vld [vmem:[%s9045 + $0x10] sm:$0xff]
        %v9049 = vld [vmem:[%s9045 + $0x18] sm:$0xff]
        %9062 = vrot.lane.b32.xlu0 %v9033, 127
        %v9063 = vpop.permute.xlu0 %9062
        %9064 = vrot.lane.b32.xlu0 %v9034, 127
        %v9065 = vpop.permute.xlu0 %9064
        %9066 = vrot.lane.b32.xlu0 %v9035, 127
        %v9067 = vpop.permute.xlu0 %9066
        %9068 = vrot.lane.b32.xlu0 %v9036, 127
        %v9069 = vpop.permute.xlu0 %9068
        %9070 = vrot.lane.b32.xlu0 %v9037, 127
        %v9071 = vpop.permute.xlu0 %9070
        %9072 = vrot.lane.b32.xlu0 %v9038, 127
        %v9073 = vpop.permute.xlu0 %9072
        %9074 = vrot.lane.b32.xlu0 %v9039, 127
        %v9075 = vpop.permute.xlu0 %9074
        %9076 = vrot.lane.b32.xlu0 %v9040, 127
        %v9077 = vpop.permute.xlu0 %9076
        %9078 = vrot.lane.b32.xlu0 %v9041, 127
        %v9079 = vpop.permute.xlu0 %9078
        %9080 = vrot.lane.b32.xlu0 %v9042, 127
        %v9081 = vpop.permute.xlu0 %9080
        %9082 = vrot.lane.b32.xlu0 %v9043, 127
        %v9083 = vpop.permute.xlu0 %9082
        %9084 = vrot.lane.b32.xlu0 %v9044, 127
        %v9085 = vpop.permute.xlu0 %9084
        %v9086 = vsel %vm904, %v9063, %v9065
        %v9087 = vsel %vm904, %v9065, %v9067
        %v9088 = vsel %vm904, %v9069, %v9071
        %v9089 = vsel %vm904, %v9071, %v9073
        %v9090 = vsel %vm904, %v9075, %v9077
        %v9091 = vsel %vm904, %v9077, %v9079
        %v9092 = vsel %vm904, %v9081, %v9083
        %v9093 = vsel %vm904, %v9083, %v9085
        %v9103 = vsel %vm1988, %v9046, 0
        %v9106 = vsel %vm1988, %v9047, 0
        %v9109 = vsel %vm1988, %v9048, 0
        %v9112 = vsel %vm1988, %v9049, 0
        %9114 = vmatprep.subr.mxu0 %v9087
        %9115 = vmatpush1.msra.mxu0 %v9086
        %9116 = vmatprep.subr.mxu0 %v9089
        %9117 = vmatpush1.msra.mxu0 %v9088
        %9118 = vmatprep.subr.mxu0 %v9091
        %9119 = vmatpush1.msra.mxu0 %v9090
        %9120 = vmatprep.subr.mxu0 %v9093
        %9121 = vmatpush1.msra.mxu0 %v9092
        %9122 = vmatprep.subr.mxu0 0.0
        %9123 = vmatpush1.msra.mxu0 0.0
        %9124 = vmatprep.subr.mxu0 0.0
        %9125 = vmatpush1.msra.mxu0 0.0
        %9126 = vmatprep.subr.mxu0 0.0
        %9127 = vmatpush1.msra.mxu0 0.0
        %9128 = vmatprep.subr.mxu0 0.0
        %9129 = vmatpush1.msra.mxu0 0.0
        %9130 = vmatprep.subr.mxu0 0.0
        %9131 = vmatpush1.msra.mxu0 0.0
        %9132 = vmatprep.subr.mxu0 0.0
        %9133 = vmatpush1.msra.mxu0 0.0
        %9134 = vmatprep.subr.mxu0 0.0
        %9135 = vmatpush1.msra.mxu0 0.0
        %9136 = vmatprep.subr.mxu0 0.0
        %9137 = vmatpush1.msra.mxu0 0.0
        %9138 = vmatprep.subr.mxu0 0.0
        %9139 = vmatpush1.msra.mxu0 0.0
        %9140 = vmatprep.subr.mxu0 0.0
        %9141 = vmatpush1.msra.mxu0 0.0
        %9142 = vmatprep.subr.mxu0 0.0
        %9143 = vmatpush1.msra.mxu0 0.0
        %9144 = vmatprep.subr.mxu0 0.0
        %9145 = vmatpush1.msra.mxu0 0.0
        %9146 = vmatprep.subr.mxu0 0.0
        %9147 = vmatpush1.msra.mxu0 0.0
        %9148 = vmatprep.subr.mxu0 0.0
        %9149 = vmatpush1.msra.mxu0 0.0
        %9150 = vmatprep.subr.mxu0 0.0
        %9151 = vmatpush1.msra.mxu0 0.0
        %9152 = vmatprep.subr.mxu0 0.0
        %9153 = vmatpush1.msra.mxu0 0.0
        %9154 = vmatprep.subr.mxu0 0.0
        %9155 = vmatpush1.msra.mxu0 0.0
        %9156 = vmatprep.subr.mxu0 0.0
        %9157 = vmatpush1.msra.mxu0 0.0
        %9158 = vmatprep.subr.mxu0 0.0
        %9159 = vmatpush1.msra.mxu0 0.0
        %9160 = vmatprep.subr.mxu0 0.0
        %9161 = vmatpush1.msra.mxu0 0.0
        %9162 = vmatprep.subr.mxu0 0.0
        %9163 = vmatpush1.msra.mxu0 0.0
        %9164 = vmatprep.subr.mxu0 0.0
        %9165 = vmatpush1.msra.mxu0 0.0
        %9166 = vmatprep.subr.mxu0 0.0
        %9167 = vmatpush1.msra.mxu0 0.0
        %9168 = vmatprep.subr.mxu0 0.0
        %9169 = vmatpush1.msra.mxu0 0.0
        %9170 = vmatprep.subr.mxu0 0.0
        %9171 = vmatpush1.msra.mxu0 0.0
        %9172 = vmatprep.subr.mxu0 0.0
        %9173 = vmatpush1.msra.mxu0 0.0
        %9174 = vmatprep.subr.mxu0 0.0
        %9175 = vmatpush1.msra.mxu0 0.0
        %9176 = vmatprep.subr.mxu0 0.0
        %9177 = vmatpush1.msra.mxu0 0.0
        %9178 = vmatprep.mubr.f32.mxu0 0.0
        %9179 = vmatmul.mubr.f32.gmra.mrb[0].mxu0 %v9103
        %v9180 = vpop.f32.mrb[0].mxu0
        %v9181 = vadd.f32 0.0, %v9180
        %v9182 = vpop.f32.mrb[0].mxu0
        %v9183 = vadd.f32 0.0, %v9182
        %9184 = vmatprep.mubr.f32.mxu0 0.0
        %9185 = vmatmul.mubr.f32.gmra.mrb[0].mxu0 %v9106
        %v9186 = vpop.f32.mrb[0].mxu0
        %v9187 = vadd.f32 0.0, %v9186
        %v9188 = vpop.f32.mrb[0].mxu0
        %v9189 = vadd.f32 0.0, %v9188
        %9190 = vmatprep.mubr.f32.mxu0 0.0
        %9191 = vmatmul.mubr.f32.gmra.mrb[0].mxu0 %v9109
        %v9192 = vpop.f32.mrb[0].mxu0
        %v9193 = vadd.f32 0.0, %v9192
        %v9194 = vpop.f32.mrb[0].mxu0
        %v9195 = vadd.f32 0.0, %v9194
        %9196 = vmatprep.mubr.f32.mxu0 0.0
        %9197 = vmatmul.mubr.f32.gmra.mrb[0].mxu0 %v9112
        %v9198 = vpop.f32.mrb[0].mxu0
        %v9199 = vadd.f32 0.0, %v9198
        %v9200 = vpop.f32.mrb[0].mxu0
        %v9201 = vadd.f32 0.0, %v9200
        %9202 = vdwg.mxu0
        %v9203 = vadd.f32 %v9013, %v9181
        %v9204 = vadd.f32 %v9014, %v9183
        %v9205 = vadd.f32 %v9015, %v9187
        %v9206 = vadd.f32 %v9016, %v9189
        %v9207 = vadd.f32 %v9017, %v9193
        %v9208 = vadd.f32 %v9018, %v9195
        %v9209 = vadd.f32 %v9019, %v9199
        %v9210 = vadd.f32 %v9020, %v9201
        %v9211 = vmul.f32 %v9021, %v2928
        %v9212 = vmul.f32 %v9022, %v2931
        %v9213 = vmul.f32 %v9023, %v2930
        %v9214 = vmul.f32 %v9024, %v2928
        %v9215 = vmul.f32 %v9025, %v2931
        %v9216 = vmul.f32 %v9026, %v2930
        %v9217 = vmul.f32 %v9027, %v2928
        %v9218 = vmul.f32 %v9028, %v2931
        %v9219 = vmul.f32 %v9029, %v2930
        %v9220 = vmul.f32 %v9030, %v2928
        %v9221 = vmul.f32 %v9031, %v2931
        %v9222 = vmul.f32 %v9032, %v2930
        %s9223 = scalar_lea.vmem [#allocation10], 192
        %v9224 = vld [vmem:[%s9223] sm:$0xff]
        %v9225 = vld [vmem:[%s9223 + $0x8] sm:$0xff]
        %v9226 = vld [vmem:[%s9223 + $0x10] sm:$0xff]
        %v9227 = vld [vmem:[%s9223 + $0x18] sm:$0xff]
        %9240 = vrot.lane.b32.xlu0 %v9211, 113
        %v9241 = vpop.permute.xlu0 %9240
        %9242 = vrot.lane.b32.xlu0 %v9212, 113
        %v9243 = vpop.permute.xlu0 %9242
        %9244 = vrot.lane.b32.xlu0 %v9213, 113
        %v9245 = vpop.permute.xlu0 %9244
        %9246 = vrot.lane.b32.xlu0 %v9214, 113
        %v9247 = vpop.permute.xlu0 %9246
        %9248 = vrot.lane.b32.xlu0 %v9215, 113
        %v9249 = vpop.permute.xlu0 %9248
        %9250 = vrot.lane.b32.xlu0 %v9216, 113
        %v9251 = vpop.permute.xlu0 %9250
        %9252 = vrot.lane.b32.xlu0 %v9217, 113
        %v9253 = vpop.permute.xlu0 %9252
        %9254 = vrot.lane.b32.xlu0 %v9218, 113
        %v9255 = vpop.permute.xlu0 %9254
        %9256 = vrot.lane.b32.xlu0 %v9219, 113
        %v9257 = vpop.permute.xlu0 %9256
        %9258 = vrot.lane.b32.xlu0 %v9220, 113
        %v9259 = vpop.permute.xlu0 %9258
        %9260 = vrot.lane.b32.xlu0 %v9221, 113
        %v9261 = vpop.permute.xlu0 %9260
        %9262 = vrot.lane.b32.xlu0 %v9222, 113
        %v9263 = vpop.permute.xlu0 %9262
        %v9264 = vsel %vm957, %v9241, %v9243
        %v9265 = vsel %vm957, %v9243, %v9245
        %v9266 = vsel %vm957, %v9247, %v9249
        %v9267 = vsel %vm957, %v9249, %v9251
        %v9268 = vsel %vm957, %v9253, %v9255
        %v9269 = vsel %vm957, %v9255, %v9257
        %v9270 = vsel %vm957, %v9259, %v9261
        %v9271 = vsel %vm957, %v9261, %v9263
        %v9281 = vsel %vm1988, %v9224, 0
        %v9284 = vsel %vm1988, %v9225, 0
        %v9287 = vsel %vm1988, %v9226, 0
        %v9290 = vsel %vm1988, %v9227, 0
        %9292 = vmatprep.subr.mxu0 %v9265
        %9293 = vmatpush1.msra.mxu0 %v9264
        %9294 = vmatprep.subr.mxu0 %v9267
        %9295 = vmatpush1.msra.mxu0 %v9266
        %9296 = vmatprep.subr.mxu0 %v9269
        %9297 = vmatpush1.msra.mxu0 %v9268
        %9298 = vmatprep.subr.mxu0 %v9271
        %9299 = vmatpush1.msra.mxu0 %v9270
        %9300 = vmatprep.subr.mxu0 0.0
        %9301 = vmatpush1.msra.mxu0 0.0
        %9302 = vmatprep.subr.mxu0 0.0
        %9303 = vmatpush1.msra.mxu0 0.0
        %9304 = vmatprep.subr.mxu0 0.0
        %9305 = vmatpush1.msra.mxu0 0.0
        %9306 = vmatprep.subr.mxu0 0.0
        %9307 = vmatpush1.msra.mxu0 0.0
        %9308 = vmatprep.subr.mxu0 0.0
        %9309 = vmatpush1.msra.mxu0 0.0
        %9310 = vmatprep.subr.mxu0 0.0
        %9311 = vmatpush1.msra.mxu0 0.0
        %9312 = vmatprep.subr.mxu0 0.0
        %9313 = vmatpush1.msra.mxu0 0.0
        %9314 = vmatprep.subr.mxu0 0.0
        %9315 = vmatpush1.msra.mxu0 0.0
        %9316 = vmatprep.subr.mxu0 0.0
        %9317 = vmatpush1.msra.mxu0 0.0
        %9318 = vmatprep.subr.mxu0 0.0
        %9319 = vmatpush1.msra.mxu0 0.0
        %9320 = vmatprep.subr.mxu0 0.0
        %9321 = vmatpush1.msra.mxu0 0.0
        %9322 = vmatprep.subr.mxu0 0.0
        %9323 = vmatpush1.msra.mxu0 0.0
        %9324 = vmatprep.subr.mxu0 0.0
        %9325 = vmatpush1.msra.mxu0 0.0
        %9326 = vmatprep.subr.mxu0 0.0
        %9327 = vmatpush1.msra.mxu0 0.0
        %9328 = vmatprep.subr.mxu0 0.0
        %9329 = vmatpush1.msra.mxu0 0.0
        %9330 = vmatprep.subr.mxu0 0.0
        %9331 = vmatpush1.msra.mxu0 0.0
        %9332 = vmatprep.subr.mxu0 0.0
        %9333 = vmatpush1.msra.mxu0 0.0
        %9334 = vmatprep.subr.mxu0 0.0
        %9335 = vmatpush1.msra.mxu0 0.0
        %9336 = vmatprep.subr.mxu0 0.0
        %9337 = vmatpush1.msra.mxu0 0.0
        %9338 = vmatprep.subr.mxu0 0.0
        %9339 = vmatpush1.msra.mxu0 0.0
        %9340 = vmatprep.subr.mxu0 0.0
        %9341 = vmatpush1.msra.mxu0 0.0
        %9342 = vmatprep.subr.mxu0 0.0
        %9343 = vmatpush1.msra.mxu0 0.0
        %9344 = vmatprep.subr.mxu0 0.0
        %9345 = vmatpush1.msra.mxu0 0.0
        %9346 = vmatprep.subr.mxu0 0.0
        %9347 = vmatpush1.msra.mxu0 0.0
        %9348 = vmatprep.subr.mxu0 0.0
        %9349 = vmatpush1.msra.mxu0 0.0
        %9350 = vmatprep.subr.mxu0 0.0
        %9351 = vmatpush1.msra.mxu0 0.0
        %9352 = vmatprep.subr.mxu0 0.0
        %9353 = vmatpush1.msra.mxu0 0.0
        %9354 = vmatprep.subr.mxu0 0.0
        %9355 = vmatpush1.msra.mxu0 0.0
        %9356 = vmatprep.mubr.f32.mxu0 0.0
        %9357 = vmatmul.mubr.f32.gmra.mrb[0].mxu0 %v9281
        %v9358 = vpop.f32.mrb[0].mxu0
        %v9359 = vadd.f32 0.0, %v9358
        %v9360 = vpop.f32.mrb[0].mxu0
        %v9361 = vadd.f32 0.0, %v9360
        %9362 = vmatprep.mubr.f32.mxu0 0.0
        %9363 = vmatmul.mubr.f32.gmra.mrb[0].mxu0 %v9284
        %v9364 = vpop.f32.mrb[0].mxu0
        %v9365 = vadd.f32 0.0, %v9364
        %v9366 = vpop.f32.mrb[0].mxu0
        %v9367 = vadd.f32 0.0, %v9366
        %9368 = vmatprep.mubr.f32.mxu0 0.0
        %9369 = vmatmul.mubr.f32.gmra.mrb[0].mxu0 %v9287
        %v9370 = vpop.f32.mrb[0].mxu0
        %v9371 = vadd.f32 0.0, %v9370
        %v9372 = vpop.f32.mrb[0].mxu0
        %v9373 = vadd.f32 0.0, %v9372
        %9374 = vmatprep.mubr.f32.mxu0 0.0
        %9375 = vmatmul.mubr.f32.gmra.mrb[0].mxu0 %v9290
        %v9376 = vpop.f32.mrb[0].mxu0
        %v9377 = vadd.f32 0.0, %v9376
        %v9378 = vpop.f32.mrb[0].mxu0
        %v9379 = vadd.f32 0.0, %v9378
        %9380 = vdwg.mxu0
        %v9381 = vadd.f32 %v9203, %v9359
        %v9382 = vadd.f32 %v9204, %v9361
        %v9383 = vadd.f32 %v9205, %v9365
        %v9384 = vadd.f32 %v9206, %v9367
        %v9385 = vadd.f32 %v9207, %v9371
        %v9386 = vadd.f32 %v9208, %v9373
        %v9387 = vadd.f32 %v9209, %v9377
        %v9388 = vadd.f32 %v9210, %v9379
        %s9389 = scalar_lea.vmem [#allocation10], 224
        %v9390 = vld [vmem:[%s9389] sm:$0xff]
        %v9391 = vld [vmem:[%s9389 + $0x8] sm:$0xff]
        %v9392 = vld [vmem:[%s9389 + $0x10] sm:$0xff]
        %v9393 = vld [vmem:[%s9389 + $0x18] sm:$0xff]
        %9406 = vrot.lane.b32.xlu0 %v9021, 112
        %v9407 = vpop.permute.xlu0 %9406
        %9408 = vrot.lane.b32.xlu0 %v9022, 112
        %v9409 = vpop.permute.xlu0 %9408
        %9410 = vrot.lane.b32.xlu0 %v9023, 112
        %v9411 = vpop.permute.xlu0 %9410
        %9412 = vrot.lane.b32.xlu0 %v9024, 112
        %v9413 = vpop.permute.xlu0 %9412
        %9414 = vrot.lane.b32.xlu0 %v9025, 112
        %v9415 = vpop.permute.xlu0 %9414
        %9416 = vrot.lane.b32.xlu0 %v9026, 112
        %v9417 = vpop.permute.xlu0 %9416
        %9418 = vrot.lane.b32.xlu0 %v9027, 112
        %v9419 = vpop.permute.xlu0 %9418
        %9420 = vrot.lane.b32.xlu0 %v9028, 112
        %v9421 = vpop.permute.xlu0 %9420
        %9422 = vrot.lane.b32.xlu0 %v9029, 112
        %v9423 = vpop.permute.xlu0 %9422
        %9424 = vrot.lane.b32.xlu0 %v9030, 112
        %v9425 = vpop.permute.xlu0 %9424
        %9426 = vrot.lane.b32.xlu0 %v9031, 112
        %v9427 = vpop.permute.xlu0 %9426
        %9428 = vrot.lane.b32.xlu0 %v9032, 112
        %v9429 = vpop.permute.xlu0 %9428
        %v9430 = vsel %vm1177, %v9407, %v9409
        %v9431 = vsel %vm1177, %v9409, %v9411
        %v9432 = vsel %vm1177, %v9413, %v9415
        %v9433 = vsel %vm1177, %v9415, %v9417
        %v9434 = vsel %vm1177, %v9419, %v9421
        %v9435 = vsel %vm1177, %v9421, %v9423
        %v9436 = vsel %vm1177, %v9425, %v9427
        %v9437 = vsel %vm1177, %v9427, %v9429
        %v9447 = vsel %vm1988, %v9390, 0
        %v9450 = vsel %vm1988, %v9391, 0
        %v9453 = vsel %vm1988, %v9392, 0
        %v9456 = vsel %vm1988, %v9393, 0
        %9458 = vmatprep.subr.mxu0 %v9431
        %9459 = vmatpush1.msra.mxu0 %v9430
        %9460 = vmatprep.subr.mxu0 %v9433
        %9461 = vmatpush1.msra.mxu0 %v9432
        %9462 = vmatprep.subr.mxu0 %v9435
        %9463 = vmatpush1.msra.mxu0 %v9434
        %9464 = vmatprep.subr.mxu0 %v9437
        %9465 = vmatpush1.msra.mxu0 %v9436
        %9466 = vmatprep.subr.mxu0 0.0
        %9467 = vmatpush1.msra.mxu0 0.0
        %9468 = vmatprep.subr.mxu0 0.0
        %9469 = vmatpush1.msra.mxu0 0.0
        %9470 = vmatprep.subr.mxu0 0.0
        %9471 = vmatpush1.msra.mxu0 0.0
        %9472 = vmatprep.subr.mxu0 0.0
        %9473 = vmatpush1.msra.mxu0 0.0
        %9474 = vmatprep.subr.mxu0 0.0
        %9475 = vmatpush1.msra.mxu0 0.0
        %9476 = vmatprep.subr.mxu0 0.0
        %9477 = vmatpush1.msra.mxu0 0.0
        %9478 = vmatprep.subr.mxu0 0.0
        %9479 = vmatpush1.msra.mxu0 0.0
        %9480 = vmatprep.subr.mxu0 0.0
        %9481 = vmatpush1.msra.mxu0 0.0
        %9482 = vmatprep.subr.mxu0 0.0
        %9483 = vmatpush1.msra.mxu0 0.0
        %9484 = vmatprep.subr.mxu0 0.0
        %9485 = vmatpush1.msra.mxu0 0.0
        %9486 = vmatprep.subr.mxu0 0.0
        %9487 = vmatpush1.msra.mxu0 0.0
        %9488 = vmatprep.subr.mxu0 0.0
        %9489 = vmatpush1.msra.mxu0 0.0
        %9490 = vmatprep.subr.mxu0 0.0
        %9491 = vmatpush1.msra.mxu0 0.0
        %9492 = vmatprep.subr.mxu0 0.0
        %9493 = vmatpush1.msra.mxu0 0.0
        %9494 = vmatprep.subr.mxu0 0.0
        %9495 = vmatpush1.msra.mxu0 0.0
        %9496 = vmatprep.subr.mxu0 0.0
        %9497 = vmatpush1.msra.mxu0 0.0
        %9498 = vmatprep.subr.mxu0 0.0
        %9499 = vmatpush1.msra.mxu0 0.0
        %9500 = vmatprep.subr.mxu0 0.0
        %9501 = vmatpush1.msra.mxu0 0.0
        %9502 = vmatprep.subr.mxu0 0.0
        %9503 = vmatpush1.msra.mxu0 0.0
        %9504 = vmatprep.subr.mxu0 0.0
        %9505 = vmatpush1.msra.mxu0 0.0
        %9506 = vmatprep.subr.mxu0 0.0
        %9507 = vmatpush1.msra.mxu0 0.0
        %9508 = vmatprep.subr.mxu0 0.0
        %9509 = vmatpush1.msra.mxu0 0.0
        %9510 = vmatprep.subr.mxu0 0.0
        %9511 = vmatpush1.msra.mxu0 0.0
        %9512 = vmatprep.subr.mxu0 0.0
        %9513 = vmatpush1.msra.mxu0 0.0
        %9514 = vmatprep.subr.mxu0 0.0
        %9515 = vmatpush1.msra.mxu0 0.0
        %9516 = vmatprep.subr.mxu0 0.0
        %9517 = vmatpush1.msra.mxu0 0.0
        %9518 = vmatprep.subr.mxu0 0.0
        %9519 = vmatpush1.msra.mxu0 0.0
        %9520 = vmatprep.subr.mxu0 0.0
        %9521 = vmatpush1.msra.mxu0 0.0
        %9522 = vmatprep.mubr.f32.mxu0 0.0
        %9523 = vmatmul.mubr.f32.gmra.mrb[0].mxu0 %v9447
        %v9524 = vpop.f32.mrb[0].mxu0
        %v9525 = vadd.f32 0.0, %v9524
        %v9526 = vpop.f32.mrb[0].mxu0
        %v9527 = vadd.f32 0.0, %v9526
        %9528 = vmatprep.mubr.f32.mxu0 0.0
        %9529 = vmatmul.mubr.f32.gmra.mrb[0].mxu0 %v9450
        %v9530 = vpop.f32.mrb[0].mxu0
        %v9531 = vadd.f32 0.0, %v9530
        %v9532 = vpop.f32.mrb[0].mxu0
        %v9533 = vadd.f32 0.0, %v9532
        %9534 = vmatprep.mubr.f32.mxu0 0.0
        %9535 = vmatmul.mubr.f32.gmra.mrb[0].mxu0 %v9453
        %v9536 = vpop.f32.mrb[0].mxu0
        %v9537 = vadd.f32 0.0, %v9536
        %v9538 = vpop.f32.mrb[0].mxu0
        %v9539 = vadd.f32 0.0, %v9538
        %9540 = vmatprep.mubr.f32.mxu0 0.0
        %9541 = vmatmul.mubr.f32.gmra.mrb[0].mxu0 %v9456
        %v9542 = vpop.f32.mrb[0].mxu0
        %v9543 = vadd.f32 0.0, %v9542
        %v9544 = vpop.f32.mrb[0].mxu0
        %v9545 = vadd.f32 0.0, %v9544
        %9546 = vdwg.mxu0
        %v9547 = vadd.f32 %v9381, %v9525
        %v9548 = vadd.f32 %v9382, %v9527
        %v9549 = vadd.f32 %v9383, %v9531
        %v9550 = vadd.f32 %v9384, %v9533
        %v9551 = vadd.f32 %v9385, %v9537
        %v9552 = vadd.f32 %v9386, %v9539
        %v9553 = vadd.f32 %v9387, %v9543
        %v9554 = vadd.f32 %v9388, %v9545
        %v9555 = vmul.f32 %v9021, %v3280
        %v9556 = vmul.f32 %v9022, %v3283
        %v9557 = vmul.f32 %v9023, %v3282
        %v9558 = vmul.f32 %v9024, %v3280
        %v9559 = vmul.f32 %v9025, %v3283
        %v9560 = vmul.f32 %v9026, %v3282
        %v9561 = vmul.f32 %v9027, %v3280
        %v9562 = vmul.f32 %v9028, %v3283
        %v9563 = vmul.f32 %v9029, %v3282
        %v9564 = vmul.f32 %v9030, %v3280
        %v9565 = vmul.f32 %v9031, %v3283
        %v9566 = vmul.f32 %v9032, %v3282
        %s9567 = scalar_lea.vmem [#allocation10], 256
        %v9568 = vld [vmem:[%s9567] sm:$0xff]
        %v9569 = vld [vmem:[%s9567 + $0x8] sm:$0xff]
        %v9570 = vld [vmem:[%s9567 + $0x10] sm:$0xff]
        %v9571 = vld [vmem:[%s9567 + $0x18] sm:$0xff]
        %9584 = vrot.lane.b32.xlu0 %v9555, 111
        %v9585 = vpop.permute.xlu0 %9584
        %9586 = vrot.lane.b32.xlu0 %v9556, 111
        %v9587 = vpop.permute.xlu0 %9586
        %9588 = vrot.lane.b32.xlu0 %v9557, 111
        %v9589 = vpop.permute.xlu0 %9588
        %9590 = vrot.lane.b32.xlu0 %v9558, 111
        %v9591 = vpop.permute.xlu0 %9590
        %9592 = vrot.lane.b32.xlu0 %v9559, 111
        %v9593 = vpop.permute.xlu0 %9592
        %9594 = vrot.lane.b32.xlu0 %v9560, 111
        %v9595 = vpop.permute.xlu0 %9594
        %9596 = vrot.lane.b32.xlu0 %v9561, 111
        %v9597 = vpop.permute.xlu0 %9596
        %9598 = vrot.lane.b32.xlu0 %v9562, 111
        %v9599 = vpop.permute.xlu0 %9598
        %9600 = vrot.lane.b32.xlu0 %v9563, 111
        %v9601 = vpop.permute.xlu0 %9600
        %9602 = vrot.lane.b32.xlu0 %v9564, 111
        %v9603 = vpop.permute.xlu0 %9602
        %9604 = vrot.lane.b32.xlu0 %v9565, 111
        %v9605 = vpop.permute.xlu0 %9604
        %9606 = vrot.lane.b32.xlu0 %v9566, 111
        %v9607 = vpop.permute.xlu0 %9606
        %v9608 = vsel %vm755, %v9585, %v9587
        %v9609 = vsel %vm755, %v9587, %v9589
        %v9610 = vsel %vm755, %v9591, %v9593
        %v9611 = vsel %vm755, %v9593, %v9595
        %v9612 = vsel %vm755, %v9597, %v9599
        %v9613 = vsel %vm755, %v9599, %v9601
        %v9614 = vsel %vm755, %v9603, %v9605
        %v9615 = vsel %vm755, %v9605, %v9607
        %v9625 = vsel %vm1988, %v9568, 0
        %v9628 = vsel %vm1988, %v9569, 0
        %v9631 = vsel %vm1988, %v9570, 0
        %v9634 = vsel %vm1988, %v9571, 0
        %9636 = vmatprep.subr.mxu0 %v9609
        %9637 = vmatpush1.msra.mxu0 %v9608
        %9638 = vmatprep.subr.mxu0 %v9611
        %9639 = vmatpush1.msra.mxu0 %v9610
        %9640 = vmatprep.subr.mxu0 %v9613
        %9641 = vmatpush1.msra.mxu0 %v9612
        %9642 = vmatprep.subr.mxu0 %v9615
        %9643 = vmatpush1.msra.mxu0 %v9614
        %9644 = vmatprep.subr.mxu0 0.0
        %9645 = vmatpush1.msra.mxu0 0.0
        %9646 = vmatprep.subr.mxu0 0.0
        %9647 = vmatpush1.msra.mxu0 0.0
        %9648 = vmatprep.subr.mxu0 0.0
        %9649 = vmatpush1.msra.mxu0 0.0
        %9650 = vmatprep.subr.mxu0 0.0
        %9651 = vmatpush1.msra.mxu0 0.0
        %9652 = vmatprep.subr.mxu0 0.0
        %9653 = vmatpush1.msra.mxu0 0.0
        %9654 = vmatprep.subr.mxu0 0.0
        %9655 = vmatpush1.msra.mxu0 0.0
        %9656 = vmatprep.subr.mxu0 0.0
        %9657 = vmatpush1.msra.mxu0 0.0
        %9658 = vmatprep.subr.mxu0 0.0
        %9659 = vmatpush1.msra.mxu0 0.0
        %9660 = vmatprep.subr.mxu0 0.0
        %9661 = vmatpush1.msra.mxu0 0.0
        %9662 = vmatprep.subr.mxu0 0.0
        %9663 = vmatpush1.msra.mxu0 0.0
        %9664 = vmatprep.subr.mxu0 0.0
        %9665 = vmatpush1.msra.mxu0 0.0
        %9666 = vmatprep.subr.mxu0 0.0
        %9667 = vmatpush1.msra.mxu0 0.0
        %9668 = vmatprep.subr.mxu0 0.0
        %9669 = vmatpush1.msra.mxu0 0.0
        %9670 = vmatprep.subr.mxu0 0.0
        %9671 = vmatpush1.msra.mxu0 0.0
        %9672 = vmatprep.subr.mxu0 0.0
        %9673 = vmatpush1.msra.mxu0 0.0
        %9674 = vmatprep.subr.mxu0 0.0
        %9675 = vmatpush1.msra.mxu0 0.0
        %9676 = vmatprep.subr.mxu0 0.0
        %9677 = vmatpush1.msra.mxu0 0.0
        %9678 = vmatprep.subr.mxu0 0.0
        %9679 = vmatpush1.msra.mxu0 0.0
        %9680 = vmatprep.subr.mxu0 0.0
        %9681 = vmatpush1.msra.mxu0 0.0
        %9682 = vmatprep.subr.mxu0 0.0
        %9683 = vmatpush1.msra.mxu0 0.0
        %9684 = vmatprep.subr.mxu0 0.0
        %9685 = vmatpush1.msra.mxu0 0.0
        %9686 = vmatprep.subr.mxu0 0.0
        %9687 = vmatpush1.msra.mxu0 0.0
        %9688 = vmatprep.subr.mxu0 0.0
        %9689 = vmatpush1.msra.mxu0 0.0
        %9690 = vmatprep.subr.mxu0 0.0
        %9691 = vmatpush1.msra.mxu0 0.0
        %9692 = vmatprep.subr.mxu0 0.0
        %9693 = vmatpush1.msra.mxu0 0.0
        %9694 = vmatprep.subr.mxu0 0.0
        %9695 = vmatpush1.msra.mxu0 0.0
        %9696 = vmatprep.subr.mxu0 0.0
        %9697 = vmatpush1.msra.mxu0 0.0
        %9698 = vmatprep.subr.mxu0 0.0
        %9699 = vmatpush1.msra.mxu0 0.0
        %9700 = vmatprep.mubr.f32.mxu0 0.0
        %9701 = vmatmul.mubr.f32.gmra.mrb[0].mxu0 %v9625
        %v9702 = vpop.f32.mrb[0].mxu0
        %v9703 = vadd.f32 0.0, %v9702
        %v9704 = vpop.f32.mrb[0].mxu0
        %v9705 = vadd.f32 0.0, %v9704
        %9706 = vmatprep.mubr.f32.mxu0 0.0
        %9707 = vmatmul.mubr.f32.gmra.mrb[0].mxu0 %v9628
        %v9708 = vpop.f32.mrb[0].mxu0
        %v9709 = vadd.f32 0.0, %v9708
        %v9710 = vpop.f32.mrb[0].mxu0
        %v9711 = vadd.f32 0.0, %v9710
        %9712 = vmatprep.mubr.f32.mxu0 0.0
        %9713 = vmatmul.mubr.f32.gmra.mrb[0].mxu0 %v9631
        %v9714 = vpop.f32.mrb[0].mxu0
        %v9715 = vadd.f32 0.0, %v9714
        %v9716 = vpop.f32.mrb[0].mxu0
        %v9717 = vadd.f32 0.0, %v9716
        %9718 = vmatprep.mubr.f32.mxu0 0.0
        %9719 = vmatmul.mubr.f32.gmra.mrb[0].mxu0 %v9634
        %v9720 = vpop.f32.mrb[0].mxu0
        %v9721 = vadd.f32 0.0, %v9720
        %v9722 = vpop.f32.mrb[0].mxu0
        %v9723 = vadd.f32 0.0, %v9722
        %9724 = vdwg.mxu0
        %v9725 = vadd.f32 %v9547, %v9703
        %v9726 = vadd.f32 %v9548, %v9705
        %v9727 = vadd.f32 %v9549, %v9709
        %v9728 = vadd.f32 %v9550, %v9711
        %v9729 = vadd.f32 %v9551, %v9715
        %v9730 = vadd.f32 %v9552, %v9717
        %v9731 = vadd.f32 %v9553, %v9721
        %v9732 = vadd.f32 %v9554, %v9723
        %v9733 = vld [vmem:[%s15] sm:$0xff]
        %v9734 = vld [vmem:[%s15 + $0x8] sm:$0xff]
        %v9735 = vld [vmem:[%s15 + $0x10] sm:$0xff]
        %v9736 = vld [vmem:[%s15 + $0x18] sm:$0xff]
        %9738 = vset.pattern.permute.xlu0 0
        %9739 = vperm.xlu0 %9738, %v9733
        %v9740 = vpop.permute.xlu0 %9739
        %9743 = vset.pattern.permute.xlu0 0
        %9744 = vperm.xlu0 %9743, %v9734
        %v9745 = vpop.permute.xlu0 %9744
        %9748 = vset.pattern.permute.xlu0 0
        %9749 = vperm.xlu0 %9748, %v9735
        %v9750 = vpop.permute.xlu0 %9749
        %9753 = vset.pattern.permute.xlu0 0
        %9754 = vperm.xlu0 %9753, %v9736
        %v9755 = vpop.permute.xlu0 %9754
        %v9757 = vadd.f32 %v9725, %v9740
        %v9758 = vadd.f32 %v9726, %v9740
        %v9759 = vadd.f32 %v9727, %v9745
        %v9760 = vadd.f32 %v9728, %v9745
        %v9761 = vadd.f32 %v9729, %v9750
        %v9762 = vadd.f32 %v9730, %v9750
        %v9763 = vadd.f32 %v9731, %v9755
        %v9764 = vadd.f32 %v9732, %v9755
        %9765 = vst [vmem:[#allocation2 + $0x8] sm:$0xff] %v9757
        %9766 = vst [vmem:[#allocation2 + $0x10] sm:$0xff] %v9758
        %9767 = vst [vmem:[#allocation2 + $0x28] sm:$0xff] %v9759
        %9768 = vst [vmem:[#allocation2 + $0x30] sm:$0xff] %v9760
        %9769 = vst [vmem:[#allocation2 + $0x48] sm:$0xff] %v9761
        %9770 = vst [vmem:[#allocation2 + $0x50] sm:$0xff] %v9762
        %9771 = vst [vmem:[#allocation2 + $0x68] sm:$0xff] %v9763
        %9772 = vst [vmem:[#allocation2 + $0x70] sm:$0xff] %v9764
        %v9773 = vld [vmem:[#allocation2] sm:$0xff]
        %v9774 = vld [vmem:[#allocation2 + $0x8] sm:$0xff]
        %v9775 = vld [vmem:[#allocation2 + $0x10] sm:$0xff]
        %v9776 = vld [vmem:[#allocation2 + $0x20] sm:$0xff]
        %v9777 = vld [vmem:[#allocation2 + $0x28] sm:$0xff]
        %v9778 = vld [vmem:[#allocation2 + $0x30] sm:$0xff]
        %v9779 = vld [vmem:[#allocation2 + $0x40] sm:$0xff]
        %v9780 = vld [vmem:[#allocation2 + $0x48] sm:$0xff]
        %v9781 = vld [vmem:[#allocation2 + $0x50] sm:$0xff]
        %v9782 = vld [vmem:[#allocation2 + $0x60] sm:$0xff]
        %v9783 = vld [vmem:[#allocation2 + $0x68] sm:$0xff]
        %v9784 = vld [vmem:[#allocation2 + $0x70] sm:$0xff]
        %v9785 = vmul.f32 %v9773, %v1907
        %v9786 = vmul.f32 %v9774, %v1910
        %v9787 = vmul.f32 %v9775, %v1909
        %v9788 = vmul.f32 %v9776, %v1907
        %v9789 = vmul.f32 %v9777, %v1910
        %v9790 = vmul.f32 %v9778, %v1909
        %v9791 = vmul.f32 %v9779, %v1907
        %v9792 = vmul.f32 %v9780, %v1910
        %v9793 = vmul.f32 %v9781, %v1909
        %v9794 = vmul.f32 %v9782, %v1907
        %v9795 = vmul.f32 %v9783, %v1910
        %v9796 = vmul.f32 %v9784, %v1909
        %v9797 = vld [vmem:[%s16] sm:$0xff]
        %v9798 = vld [vmem:[%s16 + $0x8] sm:$0xff]
        %v9799 = vld [vmem:[%s16 + $0x10] sm:$0xff]
        %v9800 = vld [vmem:[%s16 + $0x18] sm:$0xff]
        %9802 = vset.pattern.permute.xlu0 0
        %9803 = vperm.xlu0 %9802, %v9797
        %v9804 = vpop.permute.xlu0 %9803
        %9807 = vset.pattern.permute.xlu0 0
        %9808 = vperm.xlu0 %9807, %v9798
        %v9809 = vpop.permute.xlu0 %9808
        %9812 = vset.pattern.permute.xlu0 0
        %9813 = vperm.xlu0 %9812, %v9799
        %v9814 = vpop.permute.xlu0 %9813
        %9817 = vset.pattern.permute.xlu0 0
        %9818 = vperm.xlu0 %9817, %v9800
        %v9819 = vpop.permute.xlu0 %9818
        %v9821 = vmul.f32 %v9785, %v9804
        %v9822 = vmul.f32 %v9786, %v9804
        %v9823 = vmul.f32 %v9787, %v9804
        %v9824 = vmul.f32 %v9788, %v9809
        %v9825 = vmul.f32 %v9789, %v9809
        %v9826 = vmul.f32 %v9790, %v9809
        %v9827 = vmul.f32 %v9791, %v9814
        %v9828 = vmul.f32 %v9792, %v9814
        %v9829 = vmul.f32 %v9793, %v9814
        %v9830 = vmul.f32 %v9794, %v9819
        %v9831 = vmul.f32 %v9795, %v9819
        %v9832 = vmul.f32 %v9796, %v9819
        %v9833 = vadd.f32 %v9821, 0.0
        %v9834 = vadd.f32 %v9822, 0.0
        %v9835 = vadd.f32 %v9823, 0.0
        %v9836 = vadd.f32 %v9824, 0.0
        %v9837 = vadd.f32 %v9825, 0.0
        %v9838 = vadd.f32 %v9826, 0.0
        %v9839 = vadd.f32 %v9827, 0.0
        %v9840 = vadd.f32 %v9828, 0.0
        %v9841 = vadd.f32 %v9829, 0.0
        %v9842 = vadd.f32 %v9830, 0.0
        %v9843 = vadd.f32 %v9831, 0.0
        %v9844 = vadd.f32 %v9832, 0.0
        %9845 = vset.pattern.permute.xlu0 1
        %9846 = vperm.xlu0 %9845, %v9797
        %v9847 = vpop.permute.xlu0 %9846
        %9849 = vset.pattern.permute.xlu0 1
        %9850 = vperm.xlu0 %9849, %v9798
        %v9851 = vpop.permute.xlu0 %9850
        %9853 = vset.pattern.permute.xlu0 1
        %9854 = vperm.xlu0 %9853, %v9799
        %v9855 = vpop.permute.xlu0 %9854
        %9857 = vset.pattern.permute.xlu0 1
        %9858 = vperm.xlu0 %9857, %v9800
        %v9859 = vpop.permute.xlu0 %9858
        %v9861 = vmul.f32 %v9773, %v9847
        %v9862 = vmul.f32 %v9774, %v9847
        %v9863 = vmul.f32 %v9775, %v9847
        %v9864 = vmul.f32 %v9776, %v9851
        %v9865 = vmul.f32 %v9777, %v9851
        %v9866 = vmul.f32 %v9778, %v9851
        %v9867 = vmul.f32 %v9779, %v9855
        %v9868 = vmul.f32 %v9780, %v9855
        %v9869 = vmul.f32 %v9781, %v9855
        %v9870 = vmul.f32 %v9782, %v9859
        %v9871 = vmul.f32 %v9783, %v9859
        %v9872 = vmul.f32 %v9784, %v9859
        %9885 = vrot.lane.b32.xlu0 %v9861, 127
        %v9886 = vpop.permute.xlu0 %9885
        %9887 = vrot.lane.b32.xlu0 %v9862, 127
        %v9888 = vpop.permute.xlu0 %9887
        %9889 = vrot.lane.b32.xlu0 %v9863, 127
        %v9890 = vpop.permute.xlu0 %9889
        %9891 = vrot.lane.b32.xlu0 %v9864, 127
        %v9892 = vpop.permute.xlu0 %9891
        %9893 = vrot.lane.b32.xlu0 %v9865, 127
        %v9894 = vpop.permute.xlu0 %9893
        %9895 = vrot.lane.b32.xlu0 %v9866, 127
        %v9896 = vpop.permute.xlu0 %9895
        %9897 = vrot.lane.b32.xlu0 %v9867, 127
        %v9898 = vpop.permute.xlu0 %9897
        %9899 = vrot.lane.b32.xlu0 %v9868, 127
        %v9900 = vpop.permute.xlu0 %9899
        %9901 = vrot.lane.b32.xlu0 %v9869, 127
        %v9902 = vpop.permute.xlu0 %9901
        %9903 = vrot.lane.b32.xlu0 %v9870, 127
        %v9904 = vpop.permute.xlu0 %9903
        %9905 = vrot.lane.b32.xlu0 %v9871, 127
        %v9906 = vpop.permute.xlu0 %9905
        %9907 = vrot.lane.b32.xlu0 %v9872, 127
        %v9908 = vpop.permute.xlu0 %9907
        %v9909 = vsel %vm904, %v9886, %v9888
        %v9910 = vsel %vm904, %v9888, %v9890
        %v9911 = vsel %vm904, %v9892, %v9894
        %v9912 = vsel %vm904, %v9894, %v9896
        %v9913 = vsel %vm904, %v9898, %v9900
        %v9914 = vsel %vm904, %v9900, %v9902
        %v9915 = vsel %vm904, %v9904, %v9906
        %v9916 = vsel %vm904, %v9906, %v9908
        %v9929 = vadd.f32 %v9833, %v9909
        %v9930 = vadd.f32 %v9834, %v9910
        %v9931 = vadd.f32 %v9835, %v9890
        %v9932 = vadd.f32 %v9836, %v9911
        %v9933 = vadd.f32 %v9837, %v9912
        %v9934 = vadd.f32 %v9838, %v9896
        %v9935 = vadd.f32 %v9839, %v9913
        %v9936 = vadd.f32 %v9840, %v9914
        %v9937 = vadd.f32 %v9841, %v9902
        %v9938 = vadd.f32 %v9842, %v9915
        %v9939 = vadd.f32 %v9843, %v9916
        %v9940 = vadd.f32 %v9844, %v9908
        %v9941 = vmul.f32 %v9773, %v2244
        %v9942 = vmul.f32 %v9774, %v2247
        %v9943 = vmul.f32 %v9775, %v2246
        %v9944 = vmul.f32 %v9776, %v2244
        %v9945 = vmul.f32 %v9777, %v2247
        %v9946 = vmul.f32 %v9778, %v2246
        %v9947 = vmul.f32 %v9779, %v2244
        %v9948 = vmul.f32 %v9780, %v2247
        %v9949 = vmul.f32 %v9781, %v2246
        %v9950 = vmul.f32 %v9782, %v2244
        %v9951 = vmul.f32 %v9783, %v2247
        %v9952 = vmul.f32 %v9784, %v2246
        %9953 = vset.pattern.permute.xlu0 2
        %9954 = vperm.xlu0 %9953, %v9797
        %v9955 = vpop.permute.xlu0 %9954
        %9957 = vset.pattern.permute.xlu0 2
        %9958 = vperm.xlu0 %9957, %v9798
        %v9959 = vpop.permute.xlu0 %9958
        %9961 = vset.pattern.permute.xlu0 2
        %9962 = vperm.xlu0 %9961, %v9799
        %v9963 = vpop.permute.xlu0 %9962
        %9965 = vset.pattern.permute.xlu0 2
        %9966 = vperm.xlu0 %9965, %v9800
        %v9967 = vpop.permute.xlu0 %9966
        %v9969 = vmul.f32 %v9941, %v9955
        %v9970 = vmul.f32 %v9942, %v9955
        %v9971 = vmul.f32 %v9943, %v9955
        %v9972 = vmul.f32 %v9944, %v9959
        %v9973 = vmul.f32 %v9945, %v9959
        %v9974 = vmul.f32 %v9946, %v9959
        %v9975 = vmul.f32 %v9947, %v9963
        %v9976 = vmul.f32 %v9948, %v9963
        %v9977 = vmul.f32 %v9949, %v9963
        %v9978 = vmul.f32 %v9950, %v9967
        %v9979 = vmul.f32 %v9951, %v9967
        %v9980 = vmul.f32 %v9952, %v9967
        %9993 = vrot.lane.b32.xlu0 %v9969, 126
        %v9994 = vpop.permute.xlu0 %9993
        %9995 = vrot.lane.b32.xlu0 %v9970, 126
        %v9996 = vpop.permute.xlu0 %9995
        %9997 = vrot.lane.b32.xlu0 %v9971, 126
        %v9998 = vpop.permute.xlu0 %9997
        %9999 = vrot.lane.b32.xlu0 %v9972, 126
        %v10000 = vpop.permute.xlu0 %9999
        %10001 = vrot.lane.b32.xlu0 %v9973, 126
        %v10002 = vpop.permute.xlu0 %10001
        %10003 = vrot.lane.b32.xlu0 %v9974, 126
        %v10004 = vpop.permute.xlu0 %10003
        %10005 = vrot.lane.b32.xlu0 %v9975, 126
        %v10006 = vpop.permute.xlu0 %10005
        %10007 = vrot.lane.b32.xlu0 %v9976, 126
        %v10008 = vpop.permute.xlu0 %10007
        %10009 = vrot.lane.b32.xlu0 %v9977, 126
        %v10010 = vpop.permute.xlu0 %10009
        %10011 = vrot.lane.b32.xlu0 %v9978, 126
        %v10012 = vpop.permute.xlu0 %10011
        %10013 = vrot.lane.b32.xlu0 %v9979, 126
        %v10014 = vpop.permute.xlu0 %10013
        %10015 = vrot.lane.b32.xlu0 %v9980, 126
        %v10016 = vpop.permute.xlu0 %10015
        %v10017 = vsel %vm1049, %v9994, %v9996
        %v10018 = vsel %vm1049, %v9996, %v9998
        %v10019 = vsel %vm1049, %v10000, %v10002
        %v10020 = vsel %vm1049, %v10002, %v10004
        %v10021 = vsel %vm1049, %v10006, %v10008
        %v10022 = vsel %vm1049, %v10008, %v10010
        %v10023 = vsel %vm1049, %v10012, %v10014
        %v10024 = vsel %vm1049, %v10014, %v10016
        %v10037 = vadd.f32 %v9929, %v10017
        %v10038 = vadd.f32 %v9930, %v10018
        %v10039 = vadd.f32 %v9931, %v9998
        %v10040 = vadd.f32 %v9932, %v10019
        %v10041 = vadd.f32 %v9933, %v10020
        %v10042 = vadd.f32 %v9934, %v10004
        %v10043 = vadd.f32 %v9935, %v10021
        %v10044 = vadd.f32 %v9936, %v10022
        %v10045 = vadd.f32 %v9937, %v10010
        %v10046 = vadd.f32 %v9938, %v10023
        %v10047 = vadd.f32 %v9939, %v10024
        %v10048 = vadd.f32 %v9940, %v10016
        %v10049 = vmul.f32 %v9773, %v2430
        %v10050 = vmul.f32 %v9774, %v2433
        %v10051 = vmul.f32 %v9775, %v2432
        %v10052 = vmul.f32 %v9776, %v2430
        %v10053 = vmul.f32 %v9777, %v2433
        %v10054 = vmul.f32 %v9778, %v2432
        %v10055 = vmul.f32 %v9779, %v2430
        %v10056 = vmul.f32 %v9780, %v2433
        %v10057 = vmul.f32 %v9781, %v2432
        %v10058 = vmul.f32 %v9782, %v2430
        %v10059 = vmul.f32 %v9783, %v2433
        %v10060 = vmul.f32 %v9784, %v2432
        %10061 = vset.pattern.permute.xlu0 3
        %10062 = vperm.xlu0 %10061, %v9797
        %v10063 = vpop.permute.xlu0 %10062
        %10065 = vset.pattern.permute.xlu0 3
        %10066 = vperm.xlu0 %10065, %v9798
        %v10067 = vpop.permute.xlu0 %10066
        %10069 = vset.pattern.permute.xlu0 3
        %10070 = vperm.xlu0 %10069, %v9799
        %v10071 = vpop.permute.xlu0 %10070
        %10073 = vset.pattern.permute.xlu0 3
        %10074 = vperm.xlu0 %10073, %v9800
        %v10075 = vpop.permute.xlu0 %10074
        %v10077 = vmul.f32 %v10049, %v10063
        %v10078 = vmul.f32 %v10050, %v10063
        %v10079 = vmul.f32 %v10051, %v10063
        %v10080 = vmul.f32 %v10052, %v10067
        %v10081 = vmul.f32 %v10053, %v10067
        %v10082 = vmul.f32 %v10054, %v10067
        %v10083 = vmul.f32 %v10055, %v10071
        %v10084 = vmul.f32 %v10056, %v10071
        %v10085 = vmul.f32 %v10057, %v10071
        %v10086 = vmul.f32 %v10058, %v10075
        %v10087 = vmul.f32 %v10059, %v10075
        %v10088 = vmul.f32 %v10060, %v10075
        %10101 = vrot.lane.b32.xlu0 %v10077, 112
        %v10102 = vpop.permute.xlu0 %10101
        %10103 = vrot.lane.b32.xlu0 %v10078, 112
        %v10104 = vpop.permute.xlu0 %10103
        %10105 = vrot.lane.b32.xlu0 %v10079, 112
        %v10106 = vpop.permute.xlu0 %10105
        %10107 = vrot.lane.b32.xlu0 %v10080, 112
        %v10108 = vpop.permute.xlu0 %10107
        %10109 = vrot.lane.b32.xlu0 %v10081, 112
        %v10110 = vpop.permute.xlu0 %10109
        %10111 = vrot.lane.b32.xlu0 %v10082, 112
        %v10112 = vpop.permute.xlu0 %10111
        %10113 = vrot.lane.b32.xlu0 %v10083, 112
        %v10114 = vpop.permute.xlu0 %10113
        %10115 = vrot.lane.b32.xlu0 %v10084, 112
        %v10116 = vpop.permute.xlu0 %10115
        %10117 = vrot.lane.b32.xlu0 %v10085, 112
        %v10118 = vpop.permute.xlu0 %10117
        %10119 = vrot.lane.b32.xlu0 %v10086, 112
        %v10120 = vpop.permute.xlu0 %10119
        %10121 = vrot.lane.b32.xlu0 %v10087, 112
        %v10122 = vpop.permute.xlu0 %10121
        %10123 = vrot.lane.b32.xlu0 %v10088, 112
        %v10124 = vpop.permute.xlu0 %10123
        %v10125 = vsel %vm1177, %v10102, %v10104
        %v10126 = vsel %vm1177, %v10104, %v10106
        %v10127 = vsel %vm1177, %v10108, %v10110
        %v10128 = vsel %vm1177, %v10110, %v10112
        %v10129 = vsel %vm1177, %v10114, %v10116
        %v10130 = vsel %vm1177, %v10116, %v10118
        %v10131 = vsel %vm1177, %v10120, %v10122
        %v10132 = vsel %vm1177, %v10122, %v10124
        %v10145 = vadd.f32 %v10037, %v10125
        %v10146 = vadd.f32 %v10038, %v10126
        %v10147 = vadd.f32 %v10039, %v10106
        %v10148 = vadd.f32 %v10040, %v10127
        %v10149 = vadd.f32 %v10041, %v10128
        %v10150 = vadd.f32 %v10042, %v10112
        %v10151 = vadd.f32 %v10043, %v10129
        %v10152 = vadd.f32 %v10044, %v10130
        %v10153 = vadd.f32 %v10045, %v10118
        %v10154 = vadd.f32 %v10046, %v10131
        %v10155 = vadd.f32 %v10047, %v10132
        %v10156 = vadd.f32 %v10048, %v10124
        %10157 = vset.pattern.permute.xlu0 4
        %10158 = vperm.xlu0 %10157, %v9797
        %v10159 = vpop.permute.xlu0 %10158
        %10161 = vset.pattern.permute.xlu0 4
        %10162 = vperm.xlu0 %10161, %v9798
        %v10163 = vpop.permute.xlu0 %10162
        %10165 = vset.pattern.permute.xlu0 4
        %10166 = vperm.xlu0 %10165, %v9799
        %v10167 = vpop.permute.xlu0 %10166
        %10169 = vset.pattern.permute.xlu0 4
        %10170 = vperm.xlu0 %10169, %v9800
        %v10171 = vpop.permute.xlu0 %10170
        %v10173 = vmul.f32 %v9774, %v10159
        %v10174 = vmul.f32 %v9775, %v10159
        %v10175 = vmul.f32 %v9777, %v10163
        %v10176 = vmul.f32 %v9778, %v10163
        %v10177 = vmul.f32 %v9780, %v10167
        %v10178 = vmul.f32 %v9781, %v10167
        %v10179 = vmul.f32 %v9783, %v10171
        %v10180 = vmul.f32 %v9784, %v10171
        %10189 = vrot.lane.b32.xlu0 %v10173, 111
        %v10190 = vpop.permute.xlu0 %10189
        %10191 = vrot.lane.b32.xlu0 %v10174, 111
        %v10192 = vpop.permute.xlu0 %10191
        %10193 = vrot.lane.b32.xlu0 %v10175, 111
        %v10194 = vpop.permute.xlu0 %10193
        %10195 = vrot.lane.b32.xlu0 %v10176, 111
        %v10196 = vpop.permute.xlu0 %10195
        %10197 = vrot.lane.b32.xlu0 %v10177, 111
        %v10198 = vpop.permute.xlu0 %10197
        %10199 = vrot.lane.b32.xlu0 %v10178, 111
        %v10200 = vpop.permute.xlu0 %10199
        %10201 = vrot.lane.b32.xlu0 %v10179, 111
        %v10202 = vpop.permute.xlu0 %10201
        %10203 = vrot.lane.b32.xlu0 %v10180, 111
        %v10204 = vpop.permute.xlu0 %10203
        %v10205 = vsel %vm755, %v10190, %v10192
        %v10206 = vsel %vm755, %v10194, %v10196
        %v10207 = vsel %vm755, %v10198, %v10200
        %v10208 = vsel %vm755, %v10202, %v10204
        %v10221 = vadd.f32 %v10145, %v10190
        %v10222 = vadd.f32 %v10146, %v10205
        %v10223 = vadd.f32 %v10147, %v10192
        %v10224 = vadd.f32 %v10148, %v10194
        %v10225 = vadd.f32 %v10149, %v10206
        %v10226 = vadd.f32 %v10150, %v10196
        %v10227 = vadd.f32 %v10151, %v10198
        %v10228 = vadd.f32 %v10152, %v10207
        %v10229 = vadd.f32 %v10153, %v10200
        %v10230 = vadd.f32 %v10154, %v10202
        %v10231 = vadd.f32 %v10155, %v10208
        %v10232 = vadd.f32 %v10156, %v10204
        %v10233 = vld [vmem:[#allocation2 + $0x8] sm:$0xff]
        %v10234 = vld [vmem:[#allocation2 + $0x10] sm:$0xff]
        %v10235 = vld [vmem:[#allocation2 + $0x18] sm:$0xff]
        %v10236 = vld [vmem:[#allocation2 + $0x28] sm:$0xff]
        %v10237 = vld [vmem:[#allocation2 + $0x30] sm:$0xff]
        %v10238 = vld [vmem:[#allocation2 + $0x38] sm:$0xff]
        %v10239 = vld [vmem:[#allocation2 + $0x48] sm:$0xff]
        %v10240 = vld [vmem:[#allocation2 + $0x50] sm:$0xff]
        %v10241 = vld [vmem:[#allocation2 + $0x58] sm:$0xff]
        %v10242 = vld [vmem:[#allocation2 + $0x68] sm:$0xff]
        %v10243 = vld [vmem:[#allocation2 + $0x70] sm:$0xff]
        %v10244 = vld [vmem:[#allocation2 + $0x78] sm:$0xff]
        %v10245 = vmul.f32 %v10233, %v2742
        %v10246 = vmul.f32 %v10234, %v2745
        %v10247 = vmul.f32 %v10235, %v2744
        %v10248 = vmul.f32 %v10236, %v2742
        %v10249 = vmul.f32 %v10237, %v2745
        %v10250 = vmul.f32 %v10238, %v2744
        %v10251 = vmul.f32 %v10239, %v2742
        %v10252 = vmul.f32 %v10240, %v2745
        %v10253 = vmul.f32 %v10241, %v2744
        %v10254 = vmul.f32 %v10242, %v2742
        %v10255 = vmul.f32 %v10243, %v2745
        %v10256 = vmul.f32 %v10244, %v2744
        %10257 = vset.pattern.permute.xlu0 5
        %10258 = vperm.xlu0 %10257, %v9797
        %v10259 = vpop.permute.xlu0 %10258
        %10261 = vset.pattern.permute.xlu0 5
        %10262 = vperm.xlu0 %10261, %v9798
        %v10263 = vpop.permute.xlu0 %10262
        %10265 = vset.pattern.permute.xlu0 5
        %10266 = vperm.xlu0 %10265, %v9799
        %v10267 = vpop.permute.xlu0 %10266
        %10269 = vset.pattern.permute.xlu0 5
        %10270 = vperm.xlu0 %10269, %v9800
        %v10271 = vpop.permute.xlu0 %10270
        %v10273 = vmul.f32 %v10245, %v10259
        %v10274 = vmul.f32 %v10246, %v10259
        %v10275 = vmul.f32 %v10247, %v10259
        %v10276 = vmul.f32 %v10248, %v10263
        %v10277 = vmul.f32 %v10249, %v10263
        %v10278 = vmul.f32 %v10250, %v10263
        %v10279 = vmul.f32 %v10251, %v10267
        %v10280 = vmul.f32 %v10252, %v10267
        %v10281 = vmul.f32 %v10253, %v10267
        %v10282 = vmul.f32 %v10254, %v10271
        %v10283 = vmul.f32 %v10255, %v10271
        %v10284 = vmul.f32 %v10256, %v10271
        %10297 = vrot.lane.b32.xlu0 %v10273, 110
        %v10298 = vpop.permute.xlu0 %10297
        %10299 = vrot.lane.b32.xlu0 %v10274, 110
        %v10300 = vpop.permute.xlu0 %10299
        %10301 = vrot.lane.b32.xlu0 %v10275, 110
        %v10302 = vpop.permute.xlu0 %10301
        %10303 = vrot.lane.b32.xlu0 %v10276, 110
        %v10304 = vpop.permute.xlu0 %10303
        %10305 = vrot.lane.b32.xlu0 %v10277, 110
        %v10306 = vpop.permute.xlu0 %10305
        %10307 = vrot.lane.b32.xlu0 %v10278, 110
        %v10308 = vpop.permute.xlu0 %10307
        %10309 = vrot.lane.b32.xlu0 %v10279, 110
        %v10310 = vpop.permute.xlu0 %10309
        %10311 = vrot.lane.b32.xlu0 %v10280, 110
        %v10312 = vpop.permute.xlu0 %10311
        %10313 = vrot.lane.b32.xlu0 %v10281, 110
        %v10314 = vpop.permute.xlu0 %10313
        %10315 = vrot.lane.b32.xlu0 %v10282, 110
        %v10316 = vpop.permute.xlu0 %10315
        %10317 = vrot.lane.b32.xlu0 %v10283, 110
        %v10318 = vpop.permute.xlu0 %10317
        %10319 = vrot.lane.b32.xlu0 %v10284, 110
        %v10320 = vpop.permute.xlu0 %10319
        %v10321 = vsel %vm1394, %v10298, %v10300
        %v10322 = vsel %vm1394, %v10300, %v10302
        %v10323 = vsel %vm1394, %v10304, %v10306
        %v10324 = vsel %vm1394, %v10306, %v10308
        %v10325 = vsel %vm1394, %v10310, %v10312
        %v10326 = vsel %vm1394, %v10312, %v10314
        %v10327 = vsel %vm1394, %v10316, %v10318
        %v10328 = vsel %vm1394, %v10318, %v10320
        %v10341 = vadd.f32 %v10221, %v10298
        %v10342 = vadd.f32 %v10222, %v10321
        %v10343 = vadd.f32 %v10223, %v10322
        %v10344 = vadd.f32 %v10224, %v10304
        %v10345 = vadd.f32 %v10225, %v10323
        %v10346 = vadd.f32 %v10226, %v10324
        %v10347 = vadd.f32 %v10227, %v10310
        %v10348 = vadd.f32 %v10228, %v10325
        %v10349 = vadd.f32 %v10229, %v10326
        %v10350 = vadd.f32 %v10230, %v10316
        %v10351 = vadd.f32 %v10231, %v10327
        %v10352 = vadd.f32 %v10232, %v10328
        %v10353 = vmul.f32 %v10233, %v2928
        %v10354 = vmul.f32 %v10234, %v2931
        %v10355 = vmul.f32 %v10235, %v2930
        %v10356 = vmul.f32 %v10236, %v2928
        %v10357 = vmul.f32 %v10237, %v2931
        %v10358 = vmul.f32 %v10238, %v2930
        %v10359 = vmul.f32 %v10239, %v2928
        %v10360 = vmul.f32 %v10240, %v2931
        %v10361 = vmul.f32 %v10241, %v2930
        %v10362 = vmul.f32 %v10242, %v2928
        %v10363 = vmul.f32 %v10243, %v2931
        %v10364 = vmul.f32 %v10244, %v2930
        %10365 = vset.pattern.permute.xlu0 6
        %10366 = vperm.xlu0 %10365, %v9797
        %v10367 = vpop.permute.xlu0 %10366
        %10369 = vset.pattern.permute.xlu0 6
        %10370 = vperm.xlu0 %10369, %v9798
        %v10371 = vpop.permute.xlu0 %10370
        %10373 = vset.pattern.permute.xlu0 6
        %10374 = vperm.xlu0 %10373, %v9799
        %v10375 = vpop.permute.xlu0 %10374
        %10377 = vset.pattern.permute.xlu0 6
        %10378 = vperm.xlu0 %10377, %v9800
        %v10379 = vpop.permute.xlu0 %10378
        %v10381 = vmul.f32 %v10353, %v10367
        %v10382 = vmul.f32 %v10354, %v10367
        %v10383 = vmul.f32 %v10355, %v10367
        %v10384 = vmul.f32 %v10356, %v10371
        %v10385 = vmul.f32 %v10357, %v10371
        %v10386 = vmul.f32 %v10358, %v10371
        %v10387 = vmul.f32 %v10359, %v10375
        %v10388 = vmul.f32 %v10360, %v10375
        %v10389 = vmul.f32 %v10361, %v10375
        %v10390 = vmul.f32 %v10362, %v10379
        %v10391 = vmul.f32 %v10363, %v10379
        %v10392 = vmul.f32 %v10364, %v10379
        %10405 = vrot.lane.b32.xlu0 %v10381, 96
        %v10406 = vpop.permute.xlu0 %10405
        %10407 = vrot.lane.b32.xlu0 %v10382, 96
        %v10408 = vpop.permute.xlu0 %10407
        %10409 = vrot.lane.b32.xlu0 %v10383, 96
        %v10410 = vpop.permute.xlu0 %10409
        %10411 = vrot.lane.b32.xlu0 %v10384, 96
        %v10412 = vpop.permute.xlu0 %10411
        %10413 = vrot.lane.b32.xlu0 %v10385, 96
        %v10414 = vpop.permute.xlu0 %10413
        %10415 = vrot.lane.b32.xlu0 %v10386, 96
        %v10416 = vpop.permute.xlu0 %10415
        %10417 = vrot.lane.b32.xlu0 %v10387, 96
        %v10418 = vpop.permute.xlu0 %10417
        %10419 = vrot.lane.b32.xlu0 %v10388, 96
        %v10420 = vpop.permute.xlu0 %10419
        %10421 = vrot.lane.b32.xlu0 %v10389, 96
        %v10422 = vpop.permute.xlu0 %10421
        %10423 = vrot.lane.b32.xlu0 %v10390, 96
        %v10424 = vpop.permute.xlu0 %10423
        %10425 = vrot.lane.b32.xlu0 %v10391, 96
        %v10426 = vpop.permute.xlu0 %10425
        %10427 = vrot.lane.b32.xlu0 %v10392, 96
        %v10428 = vpop.permute.xlu0 %10427
        %v10429 = vsel %vm1523, %v10406, %v10408
        %v10430 = vsel %vm1523, %v10408, %v10410
        %v10431 = vsel %vm1523, %v10412, %v10414
        %v10432 = vsel %vm1523, %v10414, %v10416
        %v10433 = vsel %vm1523, %v10418, %v10420
        %v10434 = vsel %vm1523, %v10420, %v10422
        %v10435 = vsel %vm1523, %v10424, %v10426
        %v10436 = vsel %vm1523, %v10426, %v10428
        %v10449 = vadd.f32 %v10341, %v10406
        %v10450 = vadd.f32 %v10342, %v10429
        %v10451 = vadd.f32 %v10343, %v10430
        %v10452 = vadd.f32 %v10344, %v10412
        %v10453 = vadd.f32 %v10345, %v10431
        %v10454 = vadd.f32 %v10346, %v10432
        %v10455 = vadd.f32 %v10347, %v10418
        %v10456 = vadd.f32 %v10348, %v10433
        %v10457 = vadd.f32 %v10349, %v10434
        %v10458 = vadd.f32 %v10350, %v10424
        %v10459 = vadd.f32 %v10351, %v10435
        %v10460 = vadd.f32 %v10352, %v10436
        %10461 = vset.pattern.permute.xlu0 7
        %10462 = vperm.xlu0 %10461, %v9797
        %v10463 = vpop.permute.xlu0 %10462
        %10465 = vset.pattern.permute.xlu0 7
        %10466 = vperm.xlu0 %10465, %v9798
        %v10467 = vpop.permute.xlu0 %10466
        %10469 = vset.pattern.permute.xlu0 7
        %10470 = vperm.xlu0 %10469, %v9799
        %v10471 = vpop.permute.xlu0 %10470
        %10473 = vset.pattern.permute.xlu0 7
        %10474 = vperm.xlu0 %10473, %v9800
        %v10475 = vpop.permute.xlu0 %10474
        %v10477 = vmul.f32 %v10233, %v10463
        %v10478 = vmul.f32 %v10234, %v10463
        %v10479 = vmul.f32 %v10235, %v10463
        %v10480 = vmul.f32 %v10236, %v10467
        %v10481 = vmul.f32 %v10237, %v10467
        %v10482 = vmul.f32 %v10238, %v10467
        %v10483 = vmul.f32 %v10239, %v10471
        %v10484 = vmul.f32 %v10240, %v10471
        %v10485 = vmul.f32 %v10241, %v10471
        %v10486 = vmul.f32 %v10242, %v10475
        %v10487 = vmul.f32 %v10243, %v10475
        %v10488 = vmul.f32 %v10244, %v10475
        %10501 = vrot.lane.b32.xlu0 %v10477, 95
        %v10502 = vpop.permute.xlu0 %10501
        %10503 = vrot.lane.b32.xlu0 %v10478, 95
        %v10504 = vpop.permute.xlu0 %10503
        %10505 = vrot.lane.b32.xlu0 %v10479, 95
        %v10506 = vpop.permute.xlu0 %10505
        %10507 = vrot.lane.b32.xlu0 %v10480, 95
        %v10508 = vpop.permute.xlu0 %10507
        %10509 = vrot.lane.b32.xlu0 %v10481, 95
        %v10510 = vpop.permute.xlu0 %10509
        %10511 = vrot.lane.b32.xlu0 %v10482, 95
        %v10512 = vpop.permute.xlu0 %10511
        %10513 = vrot.lane.b32.xlu0 %v10483, 95
        %v10514 = vpop.permute.xlu0 %10513
        %10515 = vrot.lane.b32.xlu0 %v10484, 95
        %v10516 = vpop.permute.xlu0 %10515
        %10517 = vrot.lane.b32.xlu0 %v10485, 95
        %v10518 = vpop.permute.xlu0 %10517
        %10519 = vrot.lane.b32.xlu0 %v10486, 95
        %v10520 = vpop.permute.xlu0 %10519
        %10521 = vrot.lane.b32.xlu0 %v10487, 95
        %v10522 = vpop.permute.xlu0 %10521
        %10523 = vrot.lane.b32.xlu0 %v10488, 95
        %v10524 = vpop.permute.xlu0 %10523
        %v10525 = vsel %vm1637, %v10502, %v10504
        %v10526 = vsel %vm1637, %v10504, %v10506
        %v10527 = vsel %vm1637, %v10508, %v10510
        %v10528 = vsel %vm1637, %v10510, %v10512
        %v10529 = vsel %vm1637, %v10514, %v10516
        %v10530 = vsel %vm1637, %v10516, %v10518
        %v10531 = vsel %vm1637, %v10520, %v10522
        %v10532 = vsel %vm1637, %v10522, %v10524
        %v10545 = vadd.f32 %v10449, %v10502
        %v10546 = vadd.f32 %v10450, %v10525
        %v10547 = vadd.f32 %v10451, %v10526
        %v10548 = vadd.f32 %v10452, %v10508
        %v10549 = vadd.f32 %v10453, %v10527
        %v10550 = vadd.f32 %v10454, %v10528
        %v10551 = vadd.f32 %v10455, %v10514
        %v10552 = vadd.f32 %v10456, %v10529
        %v10553 = vadd.f32 %v10457, %v10530
        %v10554 = vadd.f32 %v10458, %v10520
        %v10555 = vadd.f32 %v10459, %v10531
        %v10556 = vadd.f32 %v10460, %v10532
        %v10557 = vmul.f32 %v10233, %v3280
        %v10558 = vmul.f32 %v10234, %v3283
        %v10559 = vmul.f32 %v10235, %v3282
        %v10560 = vmul.f32 %v10236, %v3280
        %v10561 = vmul.f32 %v10237, %v3283
        %v10562 = vmul.f32 %v10238, %v3282
        %v10563 = vmul.f32 %v10239, %v3280
        %v10564 = vmul.f32 %v10240, %v3283
        %v10565 = vmul.f32 %v10241, %v3282
        %v10566 = vmul.f32 %v10242, %v3280
        %v10567 = vmul.f32 %v10243, %v3283
        %v10568 = vmul.f32 %v10244, %v3282
        %10569 = vset.pattern.permute.xlu0 8
        %10570 = vperm.xlu0 %10569, %v9797
        %v10571 = vpop.permute.xlu0 %10570
        %10573 = vset.pattern.permute.xlu0 8
        %10574 = vperm.xlu0 %10573, %v9798
        %v10575 = vpop.permute.xlu0 %10574
        %10577 = vset.pattern.permute.xlu0 8
        %10578 = vperm.xlu0 %10577, %v9799
        %v10579 = vpop.permute.xlu0 %10578
        %10581 = vset.pattern.permute.xlu0 8
        %10582 = vperm.xlu0 %10581, %v9800
        %v10583 = vpop.permute.xlu0 %10582
        %v10585 = vmul.f32 %v10557, %v10571
        %v10586 = vmul.f32 %v10558, %v10571
        %v10587 = vmul.f32 %v10559, %v10571
        %v10588 = vmul.f32 %v10560, %v10575
        %v10589 = vmul.f32 %v10561, %v10575
        %v10590 = vmul.f32 %v10562, %v10575
        %v10591 = vmul.f32 %v10563, %v10579
        %v10592 = vmul.f32 %v10564, %v10579
        %v10593 = vmul.f32 %v10565, %v10579
        %v10594 = vmul.f32 %v10566, %v10583
        %v10595 = vmul.f32 %v10567, %v10583
        %v10596 = vmul.f32 %v10568, %v10583
        %10609 = vrot.lane.b32.xlu0 %v10585, 94
        %v10610 = vpop.permute.xlu0 %10609
        %10611 = vrot.lane.b32.xlu0 %v10586, 94
        %v10612 = vpop.permute.xlu0 %10611
        %10613 = vrot.lane.b32.xlu0 %v10587, 94
        %v10614 = vpop.permute.xlu0 %10613
        %10615 = vrot.lane.b32.xlu0 %v10588, 94
        %v10616 = vpop.permute.xlu0 %10615
        %10617 = vrot.lane.b32.xlu0 %v10589, 94
        %v10618 = vpop.permute.xlu0 %10617
        %10619 = vrot.lane.b32.xlu0 %v10590, 94
        %v10620 = vpop.permute.xlu0 %10619
        %10621 = vrot.lane.b32.xlu0 %v10591, 94
        %v10622 = vpop.permute.xlu0 %10621
        %10623 = vrot.lane.b32.xlu0 %v10592, 94
        %v10624 = vpop.permute.xlu0 %10623
        %10625 = vrot.lane.b32.xlu0 %v10593, 94
        %v10626 = vpop.permute.xlu0 %10625
        %10627 = vrot.lane.b32.xlu0 %v10594, 94
        %v10628 = vpop.permute.xlu0 %10627
        %10629 = vrot.lane.b32.xlu0 %v10595, 94
        %v10630 = vpop.permute.xlu0 %10629
        %10631 = vrot.lane.b32.xlu0 %v10596, 94
        %v10632 = vpop.permute.xlu0 %10631
        %v10633 = vsel %vm1765, %v10610, %v10612
        %v10634 = vsel %vm1765, %v10612, %v10614
        %v10635 = vsel %vm1765, %v10616, %v10618
        %v10636 = vsel %vm1765, %v10618, %v10620
        %v10637 = vsel %vm1765, %v10622, %v10624
        %v10638 = vsel %vm1765, %v10624, %v10626
        %v10639 = vsel %vm1765, %v10628, %v10630
        %v10640 = vsel %vm1765, %v10630, %v10632
        %v10653 = vadd.f32 %v10545, %v10610
        %v10654 = vadd.f32 %v10546, %v10633
        %v10655 = vadd.f32 %v10547, %v10634
        %v10656 = vadd.f32 %v10548, %v10616
        %v10657 = vadd.f32 %v10549, %v10635
        %v10658 = vadd.f32 %v10550, %v10636
        %v10659 = vadd.f32 %v10551, %v10622
        %v10660 = vadd.f32 %v10552, %v10637
        %v10661 = vadd.f32 %v10553, %v10638
        %v10662 = vadd.f32 %v10554, %v10628
        %v10663 = vadd.f32 %v10555, %v10639
        %v10664 = vadd.f32 %v10556, %v10640
        %vm10665 = vcmask 1048440
        %v10666 = vsel %vm10665, %v10653, 0.0
        %v10667 = vsel %vm10665, %v10656, 0.0
        %v10668 = vadd.f32 %v10666, %v10667
        %v10669 = vsel %vm10665, %v10659, 0.0
        %v10670 = vadd.f32 %v10668, %v10669
        %v10671 = vsel %vm10665, %v10662, 0.0
        %v10672 = vadd.f32 %v10670, %v10671
        %v10673 = vrot.slane %v10672, 4
        %v10674 = vadd.f32 %v10672, %v10673
        %v10675 = vrot.slane %v10674, 2
        %v10676 = vadd.f32 %v10674, %v10675
        %v10677 = vrot.slane %v10676, 1
        %v10678 = vadd.f32 %v10676, %v10677
        %v10679 = vadd.f32 %v10654, %v10657
        %v10680 = vadd.f32 %v10679, %v10660
        %v10681 = vadd.f32 %v10680, %v10663
        %v10682 = vrot.slane %v10681, 4
        %v10683 = vadd.f32 %v10681, %v10682
        %v10684 = vrot.slane %v10683, 2
        %v10685 = vadd.f32 %v10683, %v10684
        %v10686 = vrot.slane %v10685, 1
        %v10687 = vadd.f32 %v10685, %v10686
        %v10688 = vsel %vm755, %v10655, 0.0
        %v10689 = vsel %vm755, %v10658, 0.0
        %v10690 = vadd.f32 %v10688, %v10689
        %v10691 = vsel %vm755, %v10661, 0.0
        %v10692 = vadd.f32 %v10690, %v10691
        %v10693 = vsel %vm755, %v10664, 0.0
        %v10694 = vadd.f32 %v10692, %v10693
        %v10695 = vrot.slane %v10694, 4
        %v10696 = vadd.f32 %v10694, %v10695
        %v10697 = vrot.slane %v10696, 2
        %v10698 = vadd.f32 %v10696, %v10697
        %v10699 = vrot.slane %v10698, 1
        %v10700 = vadd.f32 %v10698, %v10699
        %v10701 = vld [vmem:[#allocation4] sm:$0x1]
        %10703 = vset.pattern.permute.xlu0 0
        %10704 = vperm.xlu0 %10703, %v10701
        %v10705 = vpop.permute.xlu0 %10704
        %v10707 = vlaneseq
        %v10708 = vshrl.u32 %v10707, 7
        %v10709 = vsub.s32 0, %v10708
        %v10710 = vrot.slane %v10705, %v10709
        %v10711 = vadd.f32 %v10678, %v10710
        %v10712 = vadd.f32 %v10687, %v10710
        %v10713 = vadd.f32 %v10700, %v10710
        %v10717 = vcombine.low %v10711, %v10712
        %v10719 = vunpack.c.l.s4 1966171168
        %v10720 = vunpack.c.0.s8 %v10719
        %v10721 = vlaneseq
        %v10722 = vshrl.u32 %v10721, 7
        %v10723 = vsub.s32 %v10720, %v10722
        %v10724 = vrot.slane %v10717, %v10723
        %v10726 = vunpack.c.l.s4 1966171168
        %v10727 = vunpack.c.0.s8 %v10726
        %v10728 = vlaneseq
        %v10729 = vshrl.u32 %v10728, 7
        %v10730 = vsub.s32 %v10727, %v10729
        %v10731 = vrot.slane %v10713, %v10730
        %v10732 = vcombine.low %v10724, %v10731
        %v10734 = vunpack.c.l.s4 1966171168
        %v10735 = vunpack.c.0.s8 %v10734
        %v10736 = vlaneseq
        %v10737 = vshrl.u32 %v10736, 7
        %v10738 = vsub.s32 %v10735, %v10737
        %v10739 = vrot.slane %v10732, %v10738
        %10740 = vrot.lane.b32.xlu0 %v10739, 17
        %v10741 = vpop.permute.xlu0 %10740
        %v10742 = vrot.slane %v10741, 1
        %v10743 = vsel %vm1673, %v10741, %v10742
        %v10745 = vadd.f32 %v726, %v10743
        %10746 = vst.msk [vmem:[%s667] sm:$0x3] %vm730, %v10745
        %p10747 = scmp.lt.s32.totalorder %s36, 1
        %s10748 = scalar_select %p10747, %s36, 1
        %s10749 = smul.addr %s10748, 2
        %s10750 = scalar_lea.vmem %s18, %s10749
        // Predicated region
        $region109: #{ista_2rb_forward.1} parent=91 // pred_check
          %p10751 = pneg %p447
        $region110: #{ista_2rb_forward.1} parent=91 // pred_check_branch
          %10753 = sbr.rel (%p10751) target = $region112
        $region111: #{ista_2rb_forward.1} parent=91 // pred_region
          _
        $region112: #{ista_2rb_forward.1} parent=91 // pred_fallthru
          _
      $region92: #{ista_2rb_forward.1} parent=5 // pred_fallthru
        _
      %p10754 = scmp.le.s32.totalorder 2, %s31
      // Predicated region
      $region113: #{ista_2rb_forward.1} parent=5 // pred_check
        %p10755 = pneg %p10754
      $region114: #{ista_2rb_forward.1} parent=5 // pred_check_branch
        %10757 = sbr.rel (%p10755) target = $region116
      $region115: #{ista_2rb_forward.1} parent=5 // pred_region
        %s10758 = ssub.s32 %s31, 2
        // Predicated region
        $region117: #{ista_2rb_forward.1} parent=115 // pred_check
          %p10759 = pneg %p453
        $region118: #{ista_2rb_forward.1} parent=115 // pred_check_branch
          %10761 = sbr.rel (%p10759) target = $region120
        $region119: #{ista_2rb_forward.1} parent=115 // pred_region
          %p10762 = scmp.lt.s32.totalorder %s37, 1
          %s10763 = scalar_select %p10762, %s37, 1
          %s10764 = smul.addr %s10763, 2
          %s10765 = scalar_lea.vmem %s18, %s10764
        $region120: #{ista_2rb_forward.1} parent=115 // pred_fallthru
          _
      $region116: #{ista_2rb_forward.1} parent=5 // pred_fallthru
        _
    $region6: #{ista_2rb_forward.1} parent=1 // loop_footer
      %s35 = sadd.s32 1, %s31
    $region7: #{ista_2rb_forward.1} parent=1 // loop_footer_branch
      %30 = sbr.rel target = $region3
    $region8: #{ista_2rb_forward.1} parent=1 // loop_exit
      _
    %10766 = vsyncpa [#allocation6], 1
    %s10767 = scalar_lea.sflag [#allocation6], 1
    %10768 = vsyncpa %s10767, 1
    %10769 = vsyncpa [#allocation8], 1
    %10770 = vsyncpa [#allocation11], 1

</llo_original>
